<compile_context>
chip_gen: v5e
topology: v5e:2x2
jax: 0.10.0
libtpu: 0.0.40
codegen_flags: <defaults>
</compile_context>

<pallas_src>
import jax
import jax.numpy as jnp
from jax.experimental import pallas as pl
from jax.experimental.pallas import tpu as pltpu


N_W1_CHUNKS = 4  # the ~2.9 MB bf16 FC1 weight is DMA'd in 4 chunks of ~0.72 MB


# ----------------------------------------------------------------------------
# In-kernel helpers.
# ----------------------------------------------------------------------------
def _pool2(y2d, b, l, c):
    """MaxPool1d(kernel=2, stride=2) on a (B*L, C) slab -> (B, L//2, C).

    L is even, so consecutive row pairs never straddle a sample boundary.
    """
    p = jnp.max(y2d.reshape(b * l // 2, 2, c), axis=1)
    return p.reshape(b, l // 2, c)


def _conv1_relu_pool(x, w_ref, b_ref):
    """Conv1d(1->64, k=3, pad=1) + ReLU + MaxPool1d(2), batched over B.

    Cin == 1, so the contraction is a lane-broadcast multiply on the VPU
    (the MXU is not worth a K=1 contraction).
    x: (B, L, 1).  w_ref: (3, 1, 64).  b_ref: (1, 64).
    """
    B, L, _ = x.shape
    cout = w_ref.shape[-1]
    zrow = jnp.zeros((B, 1, 1), x.dtype)
    xp = jnp.concatenate([zrow, x, zrow], axis=1)            # padding=1 (zeros)
    acc = jnp.zeros((B, L, cout), jnp.float32)
    for k in range(3):                                       # kernel_size=3
        acc = acc + xp[:, k:k + L, :] * w_ref[k]             # (B,L,1)*(1,64)
    acc = jnp.maximum(acc + b_ref[...], 0.0)                 # bias + ReLU
    return _pool2(acc.reshape(B * L, cout), B, L, cout)


def _conv_relu_pool_im2col(x, wcat_ref, b_ref):
    """Conv1d(k=3, pad=1) + ReLU + MaxPool1d(2) as ONE MXU dot per stage.

    The 3 taps are concatenated into the contraction dim (im2col) and the
    batch is folded into M, so the whole stage is a single
    (B*L, 3*Cin) @ (3*Cin, Cout) matmul.
    x: (B, L, Cin).  wcat_ref: (3*Cin, Cout) with row = k*Cin + ci.
    b_ref: (1, Cout).
    """
    B, L, cin = x.shape
    cout = wcat_ref.shape[1]
    zrow = jnp.zeros((B, 1, cin), x.dtype)
    xp = jnp.concatenate([zrow, x, zrow], axis=1)            # (B, L+2, Cin)
    xcat = jnp.concatenate(
        [xp[:, 0:L, :], xp[:, 1:L + 1, :], xp[:, 2:L + 2, :]], axis=2)
    y = jnp.dot(xcat.reshape(B * L, 3 * cin), wcat_ref[...],
                preferred_element_type=jnp.float32)          # (B*L, Cout)
    y = jnp.maximum(y + b_ref[...], 0.0)                     # bias + ReLU
    return _pool2(y, B, L, cout)


# ----------------------------------------------------------------------------
# Fused kernel: FeatureExtractor + LabelPredictor, whole batch per invocation.
# ----------------------------------------------------------------------------
def classifier_kernel(x_ref, wc1_ref, bc1_ref, wc2_ref, bc2_ref,
                      wc3_ref, bc3_ref, w1_hbm_ref, b1_ref, w2_ref, b2_ref,
                      o_ref, w1_vmem, h3_vmem, feats_vmem, w1_sems):
    n_rows = w1_vmem.shape[0]                    # 5632 = 22 * 256
    chunk = n_rows // N_W1_CHUNKS                # 1408 rows (mult. of 16 & 128)

    def w1_copy(c):
        sl = pl.ds(c * chunk, chunk)
        return pltpu.make_async_copy(
            w1_hbm_ref.at[sl, :], w1_vmem.at[sl, :], w1_sems.at[c])

    # Kick off all FC1-weight chunk DMAs immediately so they overlap the convs.
    for c in range(N_W1_CHUNKS):
        w1_copy(c).start()

    # ---- Feature extractor: 3x (conv + relu + pool), batch folded into M.
    x = x_ref[...]                                           # (B, 176,   1)
    h = _conv1_relu_pool(x, wc1_ref, bc1_ref)                # (B,  88,  64)
    h = _conv_relu_pool_im2col(h, wc2_ref, bc2_ref)          # (B,  44, 128)
    h = _conv_relu_pool_im2col(h, wc3_ref, bc3_ref)          # (B,  22, 256)

    B = h.shape[0]
    n_hidden = b1_ref.shape[-1]

    # ---- Flatten (torch's x.view(B, -1); its channel-major order is folded
    # into the w_fc1 row ordering row = l*256 + c).  Staged through a bf16
    # VMEM scratch with 22 aligned lane-slice stores: no cross-lane value
    # reshape, no per-l concats, and the FC1 lhs is lane-dense.
    h3_vmem[...] = h.astype(jnp.bfloat16)                    # (B, 22, 256)
    n_l, c3 = h3_vmem.shape[1], h3_vmem.shape[2]
    for l in range(n_l):
        feats_vmem[:, l * c3:(l + 1) * c3] = h3_vmem[:, l, :]

    # ---- FC1: one (B, 5632) @ (5632, 256) contraction, consumed chunk by
    # chunk as each weight-chunk DMA lands (f32 accumulation on the MXU).
    acc = jnp.zeros((B, n_hidden), jnp.float32)
    for c in range(N_W1_CHUNKS):
        w1_copy(c).wait()                        # block only on this chunk
        r0 = c * chunk
        acc = acc + jnp.dot(feats_vmem[:, r0:r0 + chunk],
                            w1_vmem[pl.ds(r0, chunk), :],
                            preferred_element_type=jnp.float32)
    h1 = jnp.maximum(acc + b1_ref[...], 0.0)
    # TODO(synk): F.dropout(p=0.5) is identity at inference (training=False); not applied.

    # ---- FC2 + LogSoftmax(dim=1) (numerically stable).
    logits = jnp.dot(h1, w2_ref[...],
                     preferred_element_type=jnp.float32) + b2_ref[...]
    m = jnp.max(logits, axis=-1, keepdims=True)
    z = logits - m
    lse = jnp.log(jnp.sum(jnp.exp(z), axis=-1, keepdims=True))
    o_ref[...] = (z - lse).astype(o_ref.dtype)


def _vmem_spec():
    return pl.BlockSpec(memory_space=pltpu.MemorySpace.VMEM)


@jax.jit
def classifier_forward(x_ncl, params):
    # PyTorch NCL (B, 1, L) -> channels-last (B, L, 1).
    x = jnp.transpose(x_ncl, (0, 2, 1))
    B = x.shape[0]
    n_classes = params["w_fc2"].shape[1]
    n_feat = params["w_fc1"].shape[0]                        # 5632
    c3 = params["b_c3"].shape[-1]                            # 256
    n_l = n_feat // c3                                       # 22
    return pl.pallas_call(
        classifier_kernel,
        out_shape=jax.ShapeDtypeStruct((B, n_classes), x.dtype),
        in_specs=[
            _vmem_spec(),                       # x
            _vmem_spec(), _vmem_spec(),         # conv1 w, b
            _vmem_spec(), _vmem_spec(),         # conv2 w, b (im2col layout)
            _vmem_spec(), _vmem_spec(),         # conv3 w, b (im2col layout)
            pl.BlockSpec(memory_space=pl.ANY),  # w_fc1 (bf16) stays in HBM
            _vmem_spec(),                       # b_fc1
            _vmem_spec(), _vmem_spec(),         # fc2 w, b
        ],
        out_specs=_vmem_spec(),
        scratch_shapes=[
            pltpu.VMEM(params["w_fc1"].shape, params["w_fc1"].dtype),  # bf16 W1
            pltpu.VMEM((B, n_l, c3), jnp.bfloat16),   # conv3 output staging
            pltpu.VMEM((B, n_feat), jnp.bfloat16),    # flattened FC1 lhs
            pltpu.SemaphoreType.DMA((N_W1_CHUNKS,)),  # one sem per W1 chunk
        ],
        compiler_params=pltpu.CompilerParams(
            # Resident footprint ~3.5 MiB; 16 MiB fits comfortably within
            # every generation's VMEM (incl. v7x's 64 MiB per TensorCore).
            vmem_limit_bytes=16 * 1024 * 1024),
    )(x, params["w_c1"], params["b_c1"], params["w_c2"], params["b_c2"],
      params["w_c3"], params["b_c3"], params["w_fc1"], params["b_fc1"],
      params["w_fc2"], params["b_fc2"])


# ----------------------------------------------------------------------------
# Pure-JAX (non-Pallas) reference with identical weight layouts, for checking.
# ----------------------------------------------------------------------------
@jax.jit
def reference_forward(x_ncl, params):
    x = jnp.transpose(x_ncl, (0, 2, 1))                      # (B, L, 1)

    def conv_relu_pool(x, w_kco, b):                         # w_kco: (3,Cin,Cout)
        B, L, _ = x.shape
        xp = jnp.pad(x, ((0, 0), (1, 1), (0, 0)))
        y = sum(jnp.einsum("blc,co->blo", xp[:, k:k + L, :], w_kco[k])
                for k in range(3))
        y = jax.nn.relu(y + b)
        return jnp.max(y.reshape(B, L // 2, 2, y.shape[-1]), axis=2)

    h = conv_relu_pool(x, params["w_c1"], params["b_c1"])
    h = conv_relu_pool(h, params["w_c2"].reshape(3, 64, 128), params["b_c2"])
    h = conv_relu_pool(h, params["w_c3"].reshape(3, 128, 256), params["b_c3"])
    f = jax.nn.relu(h.reshape(h.shape[0], -1)
                    @ params["w_fc1"].astype(jnp.float32) + params["b_fc1"])
    logits = f @ params["w_fc2"] + params["b_fc2"]
    return jax.nn.log_softmax(logits, axis=-1)


def _uniform(key, shape, fan_in):
    bound = 1.0 / jnp.sqrt(jnp.float32(fan_in))
    return jax.random.uniform(key, shape, jnp.float32, -bound, bound)


def init_params(key):
    ks = jax.random.split(key, 10)
    p = {}
    # Conv1 weight: torch (64, 1, 3) stored as (3, 1, 64); bias as (1, 64).
    p["w_c1"] = _uniform(ks[0], (3, 1, 64), 1 * 3)
    p["b_c1"] = _uniform(ks[1], (1, 64), 1 * 3)
    # Conv2/conv3 weights stored in im2col layout (3*Cin, Cout) with
    # row = k*Cin + ci, i.e. torch_w.transpose(2, 1, 0).reshape(3*Cin, Cout).
    p["w_c2"] = _uniform(ks[2], (3 * 64, 128), 64 * 3)
    p["b_c2"] = _uniform(ks[3], (1, 128), 64 * 3)
    p["w_c3"] = _uniform(ks[4], (3 * 128, 256), 128 * 3)
    p["b_c3"] = _uniform(ks[5], (1, 256), 128 * 3)
    # fc1: torch weight is (256, 5632) with input features in channel-major
    # order (feature index = c * 22 + l).  Stored here as (5632, 256) with
    # row index = l * 256 + c, i.e.
    #   w_fc1[l*256 + c, o] == torch_fc1_weight[o, c*22 + l]
    #   (== torch_w.reshape(256, 256, 22).transpose(2, 1, 0).reshape(5632, 256))
    # so the conv3 output flattens straight into it.  Kept in bf16 (the
    # weight is the dominant HBM transfer of the whole network).
    p["w_fc1"] = _uniform(ks[6], (5632, 256), 5632).astype(jnp.bfloat16)
    p["b_fc1"] = _uniform(ks[7], (1, 256), 5632)
    # fc2: torch weight (4, 256) stored as (256, 4); bias (1, 4).
    p["w_fc2"] = _uniform(ks[8], (256, 4), 256)
    p["b_fc2"] = _uniform(ks[9], (1, 4), 256)
    return p


if __name__ == "__main__":
    key = jax.random.PRNGKey(0)
    pkey, xkey = jax.random.split(key)
    params = init_params(pkey)

    # PyTorch-style NCL input: batch=2, channels=1, length=176
    # (=> 22 * 256 = 5632 flattened features, matching nn.Linear(5632, 256)).
    x = jax.random.normal(xkey, (2, 1, 176), jnp.float32)

    out = jax.block_until_ready(classifier_forward(x, params))
    ref = jax.block_until_ready(reference_forward(x, params))

    assert out.shape == (2, 4), out.shape
    # Rows of a log-softmax must exponentiate to ~1.
    assert jnp.allclose(jnp.sum(jnp.exp(out), axis=1), 1.0, atol=1e-4)
    # Fused Pallas kernel must match the pure-JAX reference.
    assert jnp.allclose(out, ref, atol=2e-3, rtol=2e-3)
    print("KERNEL_OK")
</pallas_src>

<mosaic_0001>
module attributes {stable_mosaic.version = 11 : i64} {
  func.func @classifier_kernel(%arg0: memref<2x176x1xf32, #tpu.memory_space<vmem>>, %arg1: memref<3x1x64xf32, #tpu.memory_space<vmem>>, %arg2: memref<1x64xf32, #tpu.memory_space<vmem>>, %arg3: memref<192x128xf32, #tpu.memory_space<vmem>>, %arg4: memref<1x128xf32, #tpu.memory_space<vmem>>, %arg5: memref<384x256xf32, #tpu.memory_space<vmem>>, %arg6: memref<1x256xf32, #tpu.memory_space<vmem>>, %arg7: memref<5632x256xbf16, #tpu.memory_space<any>>, %arg8: memref<1x256xf32, #tpu.memory_space<vmem>>, %arg9: memref<256x4xf32, #tpu.memory_space<vmem>>, %arg10: memref<1x4xf32, #tpu.memory_space<vmem>>, %arg11: memref<2x4xf32, #tpu.memory_space<vmem>>, %arg12: memref<5632x256xbf16, #tpu.memory_space<vmem>>, %arg13: memref<2x22x256xbf16, #tpu.memory_space<vmem>>, %arg14: memref<2x5632xbf16, #tpu.memory_space<vmem>>, %arg15: memref<4x!tpu.dma_semaphore, #tpu.memory_space<semaphore_mem>>) attributes {dimension_semantics = [], scalar_prefetch = 0 : i64, scratch_operands = 4 : i64, tpu.core_type = #tpu.core_type<tc>} {
    %c0_i32 = arith.constant 0 : i32
    %c0_i32_0 = arith.constant 0 : i32
    %c0_i32_1 = arith.constant 0 : i32
    %0 = tpu.memref_slice %arg7[%c0_i32_0, %c0_i32_1] : memref<5632x256xbf16, #tpu.memory_space<any>> -> memref<1408x256xbf16, #tpu.memory_space<any>>
    %c0_i32_2 = arith.constant 0 : i32
    %c0_i32_3 = arith.constant 0 : i32
    %1 = tpu.memref_slice %arg12[%c0_i32_2, %c0_i32_3] : memref<5632x256xbf16, #tpu.memory_space<vmem>> -> memref<1408x256xbf16, #tpu.memory_space<vmem>>
    %2 = tpu.memref_slice %arg15[%c0_i32] : memref<4x!tpu.dma_semaphore, #tpu.memory_space<semaphore_mem>> -> memref<1x!tpu.dma_semaphore, #tpu.memory_space<semaphore_mem>>
    %3 = tpu.memref_squeeze %2 : memref<1x!tpu.dma_semaphore, #tpu.memory_space<semaphore_mem>> -> memref<!tpu.dma_semaphore, #tpu.memory_space<semaphore_mem>>
    tpu.enqueue_dma source(%0 : memref<1408x256xbf16, #tpu.memory_space<any>>) target(%1 : memref<1408x256xbf16, #tpu.memory_space<vmem>>) target_semaphore(%3 : memref<!tpu.dma_semaphore, #tpu.memory_space<semaphore_mem>>)
    %c1_i32 = arith.constant 1 : i32
    %c1408_i32 = arith.constant 1408 : i32
    %c0_i32_4 = arith.constant 0 : i32
    %4 = tpu.memref_slice %arg7[%c1408_i32, %c0_i32_4] : memref<5632x256xbf16, #tpu.memory_space<any>> -> memref<1408x256xbf16, #tpu.memory_space<any>>
    %c1408_i32_5 = arith.constant 1408 : i32
    %c0_i32_6 = arith.constant 0 : i32
    %5 = tpu.memref_slice %arg12[%c1408_i32_5, %c0_i32_6] : memref<5632x256xbf16, #tpu.memory_space<vmem>> -> memref<1408x256xbf16, #tpu.memory_space<vmem>>
    %6 = tpu.memref_slice %arg15[%c1_i32] : memref<4x!tpu.dma_semaphore, #tpu.memory_space<semaphore_mem>> -> memref<1x!tpu.dma_semaphore, #tpu.memory_space<semaphore_mem>>
    %7 = tpu.memref_squeeze %6 : memref<1x!tpu.dma_semaphore, #tpu.memory_space<semaphore_mem>> -> memref<!tpu.dma_semaphore, #tpu.memory_space<semaphore_mem>>
    tpu.enqueue_dma source(%4 : memref<1408x256xbf16, #tpu.memory_space<any>>) target(%5 : memref<1408x256xbf16, #tpu.memory_space<vmem>>) target_semaphore(%7 : memref<!tpu.dma_semaphore, #tpu.memory_space<semaphore_mem>>)
    %c2_i32 = arith.constant 2 : i32
    %c2816_i32 = arith.constant 2816 : i32
    %c0_i32_7 = arith.constant 0 : i32
    %8 = tpu.memref_slice %arg7[%c2816_i32, %c0_i32_7] : memref<5632x256xbf16, #tpu.memory_space<any>> -> memref<1408x256xbf16, #tpu.memory_space<any>>
    %c2816_i32_8 = arith.constant 2816 : i32
    %c0_i32_9 = arith.constant 0 : i32
    %9 = tpu.memref_slice %arg12[%c2816_i32_8, %c0_i32_9] : memref<5632x256xbf16, #tpu.memory_space<vmem>> -> memref<1408x256xbf16, #tpu.memory_space<vmem>>
    %10 = tpu.memref_slice %arg15[%c2_i32] : memref<4x!tpu.dma_semaphore, #tpu.memory_space<semaphore_mem>> -> memref<1x!tpu.dma_semaphore, #tpu.memory_space<semaphore_mem>>
    %11 = tpu.memref_squeeze %10 : memref<1x!tpu.dma_semaphore, #tpu.memory_space<semaphore_mem>> -> memref<!tpu.dma_semaphore, #tpu.memory_space<semaphore_mem>>
    tpu.enqueue_dma source(%8 : memref<1408x256xbf16, #tpu.memory_space<any>>) target(%9 : memref<1408x256xbf16, #tpu.memory_space<vmem>>) target_semaphore(%11 : memref<!tpu.dma_semaphore, #tpu.memory_space<semaphore_mem>>)
    %c3_i32 = arith.constant 3 : i32
    %c4224_i32 = arith.constant 4224 : i32
    %c0_i32_10 = arith.constant 0 : i32
    %12 = tpu.memref_slice %arg7[%c4224_i32, %c0_i32_10] : memref<5632x256xbf16, #tpu.memory_space<any>> -> memref<1408x256xbf16, #tpu.memory_space<any>>
    %c4224_i32_11 = arith.constant 4224 : i32
    %c0_i32_12 = arith.constant 0 : i32
    %13 = tpu.memref_slice %arg12[%c4224_i32_11, %c0_i32_12] : memref<5632x256xbf16, #tpu.memory_space<vmem>> -> memref<1408x256xbf16, #tpu.memory_space<vmem>>
    %14 = tpu.memref_slice %arg15[%c3_i32] : memref<4x!tpu.dma_semaphore, #tpu.memory_space<semaphore_mem>> -> memref<1x!tpu.dma_semaphore, #tpu.memory_space<semaphore_mem>>
    %15 = tpu.memref_squeeze %14 : memref<1x!tpu.dma_semaphore, #tpu.memory_space<semaphore_mem>> -> memref<!tpu.dma_semaphore, #tpu.memory_space<semaphore_mem>>
    tpu.enqueue_dma source(%12 : memref<1408x256xbf16, #tpu.memory_space<any>>) target(%13 : memref<1408x256xbf16, #tpu.memory_space<vmem>>) target_semaphore(%15 : memref<!tpu.dma_semaphore, #tpu.memory_space<semaphore_mem>>)
    %c0 = arith.constant 0 : index
    %c0_13 = arith.constant 0 : index
    %c0_14 = arith.constant 0 : index
    %16 = vector.load %arg0[%c0, %c0_13, %c0_14] : memref<2x176x1xf32, #tpu.memory_space<vmem>>, vector<2x176x1xf32>
    %cst = arith.constant 0.000000e+00 : f32
    %17 = vector.broadcast %cst : f32 to vector<2x1x1xf32>
    %18 = tpu.concatenate %17, %16, %17 in 1 : vector<2x1x1xf32>, vector<2x176x1xf32>, vector<2x1x1xf32> -> vector<2x178x1xf32>
    %cst_15 = arith.constant 0.000000e+00 : f32
    %19 = vector.broadcast %cst_15 : f32 to vector<2x176x64xf32>
    %20 = vector.extract_strided_slice %18 {offsets = [0, 0, 0], sizes = [2, 176, 1], strides = [1, 1, 1]} : vector<2x178x1xf32> to vector<2x176x1xf32>
    %c0_16 = arith.constant 0 : index
    %c0_17 = arith.constant 0 : index
    %c0_18 = arith.constant 0 : index
    %21 = vector.load %arg1[%c0_16, %c0_17, %c0_18] : memref<3x1x64xf32, #tpu.memory_space<vmem>>, vector<1x1x64xf32>
    %22 = vector.shape_cast %21 : vector<1x1x64xf32> to vector<1x64xf32>
    %23 = vector.shape_cast %22 : vector<1x64xf32> to vector<1x1x64xf32>
    %24 = vector.broadcast %20 : vector<2x176x1xf32> to vector<2x176x64xf32>
    %25 = vector.broadcast %23 : vector<1x1x64xf32> to vector<2x176x64xf32>
    %26 = arith.mulf %24, %25 : vector<2x176x64xf32>
    %27 = arith.addf %19, %26 : vector<2x176x64xf32>
    %28 = vector.extract_strided_slice %18 {offsets = [0, 1, 0], sizes = [2, 176, 1], strides = [1, 1, 1]} : vector<2x178x1xf32> to vector<2x176x1xf32>
    %c1 = arith.constant 1 : index
    %c0_19 = arith.constant 0 : index
    %c0_20 = arith.constant 0 : index
    %29 = vector.load %arg1[%c1, %c0_19, %c0_20] : memref<3x1x64xf32, #tpu.memory_space<vmem>>, vector<1x1x64xf32>
    %30 = vector.shape_cast %29 : vector<1x1x64xf32> to vector<1x64xf32>
    %31 = vector.shape_cast %30 : vector<1x64xf32> to vector<1x1x64xf32>
    %32 = vector.broadcast %28 : vector<2x176x1xf32> to vector<2x176x64xf32>
    %33 = vector.broadcast %31 : vector<1x1x64xf32> to vector<2x176x64xf32>
    %34 = arith.mulf %32, %33 : vector<2x176x64xf32>
    %35 = arith.addf %27, %34 : vector<2x176x64xf32>
    %36 = vector.extract_strided_slice %18 {offsets = [0, 2, 0], sizes = [2, 176, 1], strides = [1, 1, 1]} : vector<2x178x1xf32> to vector<2x176x1xf32>
    %c2 = arith.constant 2 : index
    %c0_21 = arith.constant 0 : index
    %c0_22 = arith.constant 0 : index
    %37 = vector.load %arg1[%c2, %c0_21, %c0_22] : memref<3x1x64xf32, #tpu.memory_space<vmem>>, vector<1x1x64xf32>
    %38 = vector.shape_cast %37 : vector<1x1x64xf32> to vector<1x64xf32>
    %39 = vector.shape_cast %38 : vector<1x64xf32> to vector<1x1x64xf32>
    %40 = vector.broadcast %36 : vector<2x176x1xf32> to vector<2x176x64xf32>
    %41 = vector.broadcast %39 : vector<1x1x64xf32> to vector<2x176x64xf32>
    %42 = arith.mulf %40, %41 : vector<2x176x64xf32>
    %43 = arith.addf %35, %42 : vector<2x176x64xf32>
    %c0_23 = arith.constant 0 : index
    %c0_24 = arith.constant 0 : index
    %44 = vector.load %arg2[%c0_23, %c0_24] : memref<1x64xf32, #tpu.memory_space<vmem>>, vector<1x64xf32>
    %45 = vector.shape_cast %44 : vector<1x64xf32> to vector<1x1x64xf32>
    %46 = vector.broadcast %45 : vector<1x1x64xf32> to vector<2x176x64xf32>
    %47 = arith.addf %43, %46 : vector<2x176x64xf32>
    %cst_25 = arith.constant 0.000000e+00 : f32
    %48 = vector.broadcast %cst_25 : f32 to vector<2x176x64xf32>
    %49 = arith.maximumf %47, %48 : vector<2x176x64xf32>
    %50 = vector.shape_cast %49 : vector<2x176x64xf32> to vector<352x64xf32>
    %51 = vector.shape_cast %50 : vector<352x64xf32> to vector<176x2x64xf32>
    %cst_26 = arith.constant dense<0xFF800000> : vector<176x64xf32>
    %52 = vector.multi_reduction <maximumf>, %51, %cst_26 [1] : vector<176x2x64xf32> to vector<176x64xf32>
    %53 = vector.shape_cast %52 : vector<176x64xf32> to vector<2x88x64xf32>
    %cst_27 = arith.constant 0.000000e+00 : f32
    %54 = vector.broadcast %cst_27 : f32 to vector<2x1x64xf32>
    %55 = tpu.concatenate %54, %53, %54 in 1 : vector<2x1x64xf32>, vector<2x88x64xf32>, vector<2x1x64xf32> -> vector<2x90x64xf32>
    %56 = vector.extract_strided_slice %55 {offsets = [0, 0, 0], sizes = [2, 88, 64], strides = [1, 1, 1]} : vector<2x90x64xf32> to vector<2x88x64xf32>
    %57 = vector.extract_strided_slice %55 {offsets = [0, 1, 0], sizes = [2, 88, 64], strides = [1, 1, 1]} : vector<2x90x64xf32> to vector<2x88x64xf32>
    %58 = vector.extract_strided_slice %55 {offsets = [0, 2, 0], sizes = [2, 88, 64], strides = [1, 1, 1]} : vector<2x90x64xf32> to vector<2x88x64xf32>
    %59 = tpu.concatenate %56, %57, %58 in 2 : vector<2x88x64xf32>, vector<2x88x64xf32>, vector<2x88x64xf32> -> vector<2x88x192xf32>
    %60 = vector.shape_cast %59 : vector<2x88x192xf32> to vector<176x192xf32>
    %c0_28 = arith.constant 0 : index
    %c0_29 = arith.constant 0 : index
    %61 = vector.load %arg3[%c0_28, %c0_29] : memref<192x128xf32, #tpu.memory_space<vmem>>, vector<192x128xf32>
    %cst_30 = arith.constant dense<0.000000e+00> : vector<176x128xf32>
    %62 = tpu.matmul %60, %61, %cst_30 {dimension_numbers = #tpu.dot_dimension_numbers<[1], [0], [0], [1], [0, 0, 1, 1], [], []>} : vector<176x192xf32>, vector<192x128xf32>, vector<176x128xf32> -> vector<176x128xf32>
    %c0_31 = arith.constant 0 : index
    %c0_32 = arith.constant 0 : index
    %63 = vector.load %arg4[%c0_31, %c0_32] : memref<1x128xf32, #tpu.memory_space<vmem>>, vector<1x128xf32>
    %64 = vector.broadcast %63 : vector<1x128xf32> to vector<176x128xf32>
    %65 = arith.addf %62, %64 : vector<176x128xf32>
    %cst_33 = arith.constant 0.000000e+00 : f32
    %66 = vector.broadcast %cst_33 : f32 to vector<176x128xf32>
    %67 = arith.maximumf %65, %66 : vector<176x128xf32>
    %68 = vector.shape_cast %67 : vector<176x128xf32> to vector<88x2x128xf32>
    %cst_34 = arith.constant dense<0xFF800000> : vector<88x128xf32>
    %69 = vector.multi_reduction <maximumf>, %68, %cst_34 [1] : vector<88x2x128xf32> to vector<88x128xf32>
    %70 = vector.shape_cast %69 : vector<88x128xf32> to vector<2x44x128xf32>
    %cst_35 = arith.constant 0.000000e+00 : f32
    %71 = vector.broadcast %cst_35 : f32 to vector<2x1x128xf32>
    %72 = tpu.concatenate %71, %70, %71 in 1 : vector<2x1x128xf32>, vector<2x44x128xf32>, vector<2x1x128xf32> -> vector<2x46x128xf32>
    %73 = vector.extract_strided_slice %72 {offsets = [0, 0, 0], sizes = [2, 44, 128], strides = [1, 1, 1]} : vector<2x46x128xf32> to vector<2x44x128xf32>
    %74 = vector.extract_strided_slice %72 {offsets = [0, 1, 0], sizes = [2, 44, 128], strides = [1, 1, 1]} : vector<2x46x128xf32> to vector<2x44x128xf32>
    %75 = vector.extract_strided_slice %72 {offsets = [0, 2, 0], sizes = [2, 44, 128], strides = [1, 1, 1]} : vector<2x46x128xf32> to vector<2x44x128xf32>
    %76 = tpu.concatenate %73, %74, %75 in 2 : vector<2x44x128xf32>, vector<2x44x128xf32>, vector<2x44x128xf32> -> vector<2x44x384xf32>
    %77 = vector.shape_cast %76 : vector<2x44x384xf32> to vector<88x384xf32>
    %c0_36 = arith.constant 0 : index
    %c0_37 = arith.constant 0 : index
    %78 = vector.load %arg5[%c0_36, %c0_37] : memref<384x256xf32, #tpu.memory_space<vmem>>, vector<384x256xf32>
    %cst_38 = arith.constant dense<0.000000e+00> : vector<88x256xf32>
    %79 = tpu.matmul %77, %78, %cst_38 {dimension_numbers = #tpu.dot_dimension_numbers<[1], [0], [0], [1], [0, 0, 1, 1], [], []>} : vector<88x384xf32>, vector<384x256xf32>, vector<88x256xf32> -> vector<88x256xf32>
    %c0_39 = arith.constant 0 : index
    %c0_40 = arith.constant 0 : index
    %80 = vector.load %arg6[%c0_39, %c0_40] : memref<1x256xf32, #tpu.memory_space<vmem>>, vector<1x256xf32>
    %81 = vector.broadcast %80 : vector<1x256xf32> to vector<88x256xf32>
    %82 = arith.addf %79, %81 : vector<88x256xf32>
    %cst_41 = arith.constant 0.000000e+00 : f32
    %83 = vector.broadcast %cst_41 : f32 to vector<88x256xf32>
    %84 = arith.maximumf %82, %83 : vector<88x256xf32>
    %85 = vector.shape_cast %84 : vector<88x256xf32> to vector<44x2x256xf32>
    %cst_42 = arith.constant dense<0xFF800000> : vector<44x256xf32>
    %86 = vector.multi_reduction <maximumf>, %85, %cst_42 [1] : vector<44x2x256xf32> to vector<44x256xf32>
    %87 = vector.shape_cast %86 : vector<44x256xf32> to vector<2x22x256xf32>
    %88 = arith.truncf %87 : vector<2x22x256xf32> to vector<2x22x256xbf16>
    %c0_43 = arith.constant 0 : index
    %c0_44 = arith.constant 0 : index
    %c0_45 = arith.constant 0 : index
    %89 = vector.load %arg13[%c0_43, %c0_44, %c0_45] : memref<2x22x256xbf16, #tpu.memory_space<vmem>>, vector<2x22x256xbf16>
    tpu.vector_store %arg13[%c0_43, %c0_44, %c0_45], %88 {strides = array<i32>} : memref<2x22x256xbf16, #tpu.memory_space<vmem>>, vector<2x22x256xbf16>,
    %c0_46 = arith.constant 0 : index
    %c0_47 = arith.constant 0 : index
    %c0_48 = arith.constant 0 : index
    %90 = vector.load %arg13[%c0_46, %c0_47, %c0_48] : memref<2x22x256xbf16, #tpu.memory_space<vmem>>, vector<2x1x256xbf16>
    %91 = vector.shape_cast %90 : vector<2x1x256xbf16> to vector<2x256xbf16>
    %c0_49 = arith.constant 0 : index
    %c0_50 = arith.constant 0 : index
    %92 = vector.load %arg14[%c0_49, %c0_50] : memref<2x5632xbf16, #tpu.memory_space<vmem>>, vector<2x256xbf16>
    tpu.vector_store %arg14[%c0_49, %c0_50], %91 {strides = array<i32>} : memref<2x5632xbf16, #tpu.memory_space<vmem>>, vector<2x256xbf16>,
    %c0_51 = arith.constant 0 : index
    %c1_52 = arith.constant 1 : index
    %c0_53 = arith.constant 0 : index
    %93 = vector.load %arg13[%c0_51, %c1_52, %c0_53] : memref<2x22x256xbf16, #tpu.memory_space<vmem>>, vector<2x1x256xbf16>
    %94 = vector.shape_cast %93 : vector<2x1x256xbf16> to vector<2x256xbf16>
    %c0_54 = arith.constant 0 : index
    %c256 = arith.constant 256 : index
    %95 = vector.load %arg14[%c0_54, %c256] : memref<2x5632xbf16, #tpu.memory_space<vmem>>, vector<2x256xbf16>
    tpu.vector_store %arg14[%c0_54, %c256], %94 {strides = array<i32>} : memref<2x5632xbf16, #tpu.memory_space<vmem>>, vector<2x256xbf16>,
    %c0_55 = arith.constant 0 : index
    %c2_56 = arith.constant 2 : index
    %c0_57 = arith.constant 0 : index
    %96 = vector.load %arg13[%c0_55, %c2_56, %c0_57] : memref<2x22x256xbf16, #tpu.memory_space<vmem>>, vector<2x1x256xbf16>
    %97 = vector.shape_cast %96 : vector<2x1x256xbf16> to vector<2x256xbf16>
    %c0_58 = arith.constant 0 : index
    %c512 = arith.constant 512 : index
    %98 = vector.load %arg14[%c0_58, %c512] : memref<2x5632xbf16, #tpu.memory_space<vmem>>, vector<2x256xbf16>
    tpu.vector_store %arg14[%c0_58, %c512], %97 {strides = array<i32>} : memref<2x5632xbf16, #tpu.memory_space<vmem>>, vector<2x256xbf16>,
    %c0_59 = arith.constant 0 : index
    %c3 = arith.constant 3 : index
    %c0_60 = arith.constant 0 : index
    %99 = vector.load %arg13[%c0_59, %c3, %c0_60] : memref<2x22x256xbf16, #tpu.memory_space<vmem>>, vector<2x1x256xbf16>
    %100 = vector.shape_cast %99 : vector<2x1x256xbf16> to vector<2x256xbf16>
    %c0_61 = arith.constant 0 : index
    %c768 = arith.constant 768 : index
    %101 = vector.load %arg14[%c0_61, %c768] : memref<2x5632xbf16, #tpu.memory_space<vmem>>, vector<2x256xbf16>
    tpu.vector_store %arg14[%c0_61, %c768], %100 {strides = array<i32>} : memref<2x5632xbf16, #tpu.memory_space<vmem>>, vector<2x256xbf16>,
    %c0_62 = arith.constant 0 : index
    %c4 = arith.constant 4 : index
    %c0_63 = arith.constant 0 : index
    %102 = vector.load %arg13[%c0_62, %c4, %c0_63] : memref<2x22x256xbf16, #tpu.memory_space<vmem>>, vector<2x1x256xbf16>
    %103 = vector.shape_cast %102 : vector<2x1x256xbf16> to vector<2x256xbf16>
    %c0_64 = arith.constant 0 : index
    %c1024 = arith.constant 1024 : index
    %104 = vector.load %arg14[%c0_64, %c1024] : memref<2x5632xbf16, #tpu.memory_space<vmem>>, vector<2x256xbf16>
    tpu.vector_store %arg14[%c0_64, %c1024], %103 {strides = array<i32>} : memref<2x5632xbf16, #tpu.memory_space<vmem>>, vector<2x256xbf16>,
    %c0_65 = arith.constant 0 : index
    %c5 = arith.constant 5 : index
    %c0_66 = arith.constant 0 : index
    %105 = vector.load %arg13[%c0_65, %c5, %c0_66] : memref<2x22x256xbf16, #tpu.memory_space<vmem>>, vector<2x1x256xbf16>
    %106 = vector.shape_cast %105 : vector<2x1x256xbf16> to vector<2x256xbf16>
    %c0_67 = arith.constant 0 : index
    %c1280 = arith.constant 1280 : index
    %107 = vector.load %arg14[%c0_67, %c1280] : memref<2x5632xbf16, #tpu.memory_space<vmem>>, vector<2x256xbf16>
    tpu.vector_store %arg14[%c0_67, %c1280], %106 {strides = array<i32>} : memref<2x5632xbf16, #tpu.memory_space<vmem>>, vector<2x256xbf16>,
    %c0_68 = arith.constant 0 : index
    %c6 = arith.constant 6 : index
    %c0_69 = arith.constant 0 : index
    %108 = vector.load %arg13[%c0_68, %c6, %c0_69] : memref<2x22x256xbf16, #tpu.memory_space<vmem>>, vector<2x1x256xbf16>
    %109 = vector.shape_cast %108 : vector<2x1x256xbf16> to vector<2x256xbf16>
    %c0_70 = arith.constant 0 : index
    %c1536 = arith.constant 1536 : index
    %110 = vector.load %arg14[%c0_70, %c1536] : memref<2x5632xbf16, #tpu.memory_space<vmem>>, vector<2x256xbf16>
    tpu.vector_store %arg14[%c0_70, %c1536], %109 {strides = array<i32>} : memref<2x5632xbf16, #tpu.memory_space<vmem>>, vector<2x256xbf16>,
    %c0_71 = arith.constant 0 : index
    %c7 = arith.constant 7 : index
    %c0_72 = arith.constant 0 : index
    %111 = vector.load %arg13[%c0_71, %c7, %c0_72] : memref<2x22x256xbf16, #tpu.memory_space<vmem>>, vector<2x1x256xbf16>
    %112 = vector.shape_cast %111 : vector<2x1x256xbf16> to vector<2x256xbf16>
    %c0_73 = arith.constant 0 : index
    %c1792 = arith.constant 1792 : index
    %113 = vector.load %arg14[%c0_73, %c1792] : memref<2x5632xbf16, #tpu.memory_space<vmem>>, vector<2x256xbf16>
    tpu.vector_store %arg14[%c0_73, %c1792], %112 {strides = array<i32>} : memref<2x5632xbf16, #tpu.memory_space<vmem>>, vector<2x256xbf16>,
    %c0_74 = arith.constant 0 : index
    %c8 = arith.constant 8 : index
    %c0_75 = arith.constant 0 : index
    %114 = vector.load %arg13[%c0_74, %c8, %c0_75] : memref<2x22x256xbf16, #tpu.memory_space<vmem>>, vector<2x1x256xbf16>
    %115 = vector.shape_cast %114 : vector<2x1x256xbf16> to vector<2x256xbf16>
    %c0_76 = arith.constant 0 : index
    %c2048 = arith.constant 2048 : index
    %116 = vector.load %arg14[%c0_76, %c2048] : memref<2x5632xbf16, #tpu.memory_space<vmem>>, vector<2x256xbf16>
    tpu.vector_store %arg14[%c0_76, %c2048], %115 {strides = array<i32>} : memref<2x5632xbf16, #tpu.memory_space<vmem>>, vector<2x256xbf16>,
    %c0_77 = arith.constant 0 : index
    %c9 = arith.constant 9 : index
    %c0_78 = arith.constant 0 : index
    %117 = vector.load %arg13[%c0_77, %c9, %c0_78] : memref<2x22x256xbf16, #tpu.memory_space<vmem>>, vector<2x1x256xbf16>
    %118 = vector.shape_cast %117 : vector<2x1x256xbf16> to vector<2x256xbf16>
    %c0_79 = arith.constant 0 : index
    %c2304 = arith.constant 2304 : index
    %119 = vector.load %arg14[%c0_79, %c2304] : memref<2x5632xbf16, #tpu.memory_space<vmem>>, vector<2x256xbf16>
    tpu.vector_store %arg14[%c0_79, %c2304], %118 {strides = array<i32>} : memref<2x5632xbf16, #tpu.memory_space<vmem>>, vector<2x256xbf16>,
    %c0_80 = arith.constant 0 : index
    %c10 = arith.constant 10 : index
    %c0_81 = arith.constant 0 : index
    %120 = vector.load %arg13[%c0_80, %c10, %c0_81] : memref<2x22x256xbf16, #tpu.memory_space<vmem>>, vector<2x1x256xbf16>
    %121 = vector.shape_cast %120 : vector<2x1x256xbf16> to vector<2x256xbf16>
    %c0_82 = arith.constant 0 : index
    %c2560 = arith.constant 2560 : index
    %122 = vector.load %arg14[%c0_82, %c2560] : memref<2x5632xbf16, #tpu.memory_space<vmem>>, vector<2x256xbf16>
    tpu.vector_store %arg14[%c0_82, %c2560], %121 {strides = array<i32>} : memref<2x5632xbf16, #tpu.memory_space<vmem>>, vector<2x256xbf16>,
    %c0_83 = arith.constant 0 : index
    %c11 = arith.constant 11 : index
    %c0_84 = arith.constant 0 : index
    %123 = vector.load %arg13[%c0_83, %c11, %c0_84] : memref<2x22x256xbf16, #tpu.memory_space<vmem>>, vector<2x1x256xbf16>
    %124 = vector.shape_cast %123 : vector<2x1x256xbf16> to vector<2x256xbf16>
    %c0_85 = arith.constant 0 : index
    %c2816 = arith.constant 2816 : index
    %125 = vector.load %arg14[%c0_85, %c2816] : memref<2x5632xbf16, #tpu.memory_space<vmem>>, vector<2x256xbf16>
    tpu.vector_store %arg14[%c0_85, %c2816], %124 {strides = array<i32>} : memref<2x5632xbf16, #tpu.memory_space<vmem>>, vector<2x256xbf16>,
    %c0_86 = arith.constant 0 : index
    %c12 = arith.constant 12 : index
    %c0_87 = arith.constant 0 : index
    %126 = vector.load %arg13[%c0_86, %c12, %c0_87] : memref<2x22x256xbf16, #tpu.memory_space<vmem>>, vector<2x1x256xbf16>
    %127 = vector.shape_cast %126 : vector<2x1x256xbf16> to vector<2x256xbf16>
    %c0_88 = arith.constant 0 : index
    %c3072 = arith.constant 3072 : index
    %128 = vector.load %arg14[%c0_88, %c3072] : memref<2x5632xbf16, #tpu.memory_space<vmem>>, vector<2x256xbf16>
    tpu.vector_store %arg14[%c0_88, %c3072], %127 {strides = array<i32>} : memref<2x5632xbf16, #tpu.memory_space<vmem>>, vector<2x256xbf16>,
    %c0_89 = arith.constant 0 : index
    %c13 = arith.constant 13 : index
    %c0_90 = arith.constant 0 : index
    %129 = vector.load %arg13[%c0_89, %c13, %c0_90] : memref<2x22x256xbf16, #tpu.memory_space<vmem>>, vector<2x1x256xbf16>
    %130 = vector.shape_cast %129 : vector<2x1x256xbf16> to vector<2x256xbf16>
    %c0_91 = arith.constant 0 : index
    %c3328 = arith.constant 3328 : index
    %131 = vector.load %arg14[%c0_91, %c3328] : memref<2x5632xbf16, #tpu.memory_space<vmem>>, vector<2x256xbf16>
    tpu.vector_store %arg14[%c0_91, %c3328], %130 {strides = array<i32>} : memref<2x5632xbf16, #tpu.memory_space<vmem>>, vector<2x256xbf16>,
    %c0_92 = arith.constant 0 : index
    %c14 = arith.constant 14 : index
    %c0_93 = arith.constant 0 : index
    %132 = vector.load %arg13[%c0_92, %c14, %c0_93] : memref<2x22x256xbf16, #tpu.memory_space<vmem>>, vector<2x1x256xbf16>
    %133 = vector.shape_cast %132 : vector<2x1x256xbf16> to vector<2x256xbf16>
    %c0_94 = arith.constant 0 : index
    %c3584 = arith.constant 3584 : index
    %134 = vector.load %arg14[%c0_94, %c3584] : memref<2x5632xbf16, #tpu.memory_space<vmem>>, vector<2x256xbf16>
    tpu.vector_store %arg14[%c0_94, %c3584], %133 {strides = array<i32>} : memref<2x5632xbf16, #tpu.memory_space<vmem>>, vector<2x256xbf16>,
    %c0_95 = arith.constant 0 : index
    %c15 = arith.constant 15 : index
    %c0_96 = arith.constant 0 : index
    %135 = vector.load %arg13[%c0_95, %c15, %c0_96] : memref<2x22x256xbf16, #tpu.memory_space<vmem>>, vector<2x1x256xbf16>
    %136 = vector.shape_cast %135 : vector<2x1x256xbf16> to vector<2x256xbf16>
    %c0_97 = arith.constant 0 : index
    %c3840 = arith.constant 3840 : index
    %137 = vector.load %arg14[%c0_97, %c3840] : memref<2x5632xbf16, #tpu.memory_space<vmem>>, vector<2x256xbf16>
    tpu.vector_store %arg14[%c0_97, %c3840], %136 {strides = array<i32>} : memref<2x5632xbf16, #tpu.memory_space<vmem>>, vector<2x256xbf16>,
    %c0_98 = arith.constant 0 : index
    %c16 = arith.constant 16 : index
    %c0_99 = arith.constant 0 : index
    %138 = vector.load %arg13[%c0_98, %c16, %c0_99] : memref<2x22x256xbf16, #tpu.memory_space<vmem>>, vector<2x1x256xbf16>
    %139 = vector.shape_cast %138 : vector<2x1x256xbf16> to vector<2x256xbf16>
    %c0_100 = arith.constant 0 : index
    %c4096 = arith.constant 4096 : index
    %140 = vector.load %arg14[%c0_100, %c4096] : memref<2x5632xbf16, #tpu.memory_space<vmem>>, vector<2x256xbf16>
    tpu.vector_store %arg14[%c0_100, %c4096], %139 {strides = array<i32>} : memref<2x5632xbf16, #tpu.memory_space<vmem>>, vector<2x256xbf16>,
    %c0_101 = arith.constant 0 : index
    %c17 = arith.constant 17 : index
    %c0_102 = arith.constant 0 : index
    %141 = vector.load %arg13[%c0_101, %c17, %c0_102] : memref<2x22x256xbf16, #tpu.memory_space<vmem>>, vector<2x1x256xbf16>
    %142 = vector.shape_cast %141 : vector<2x1x256xbf16> to vector<2x256xbf16>
    %c0_103 = arith.constant 0 : index
    %c4352 = arith.constant 4352 : index
    %143 = vector.load %arg14[%c0_103, %c4352] : memref<2x5632xbf16, #tpu.memory_space<vmem>>, vector<2x256xbf16>
    tpu.vector_store %arg14[%c0_103, %c4352], %142 {strides = array<i32>} : memref<2x5632xbf16, #tpu.memory_space<vmem>>, vector<2x256xbf16>,
    %c0_104 = arith.constant 0 : index
    %c18 = arith.constant 18 : index
    %c0_105 = arith.constant 0 : index
    %144 = vector.load %arg13[%c0_104, %c18, %c0_105] : memref<2x22x256xbf16, #tpu.memory_space<vmem>>, vector<2x1x256xbf16>
    %145 = vector.shape_cast %144 : vector<2x1x256xbf16> to vector<2x256xbf16>
    %c0_106 = arith.constant 0 : index
    %c4608 = arith.constant 4608 : index
    %146 = vector.load %arg14[%c0_106, %c4608] : memref<2x5632xbf16, #tpu.memory_space<vmem>>, vector<2x256xbf16>
    tpu.vector_store %arg14[%c0_106, %c4608], %145 {strides = array<i32>} : memref<2x5632xbf16, #tpu.memory_space<vmem>>, vector<2x256xbf16>,
    %c0_107 = arith.constant 0 : index
    %c19 = arith.constant 19 : index
    %c0_108 = arith.constant 0 : index
    %147 = vector.load %arg13[%c0_107, %c19, %c0_108] : memref<2x22x256xbf16, #tpu.memory_space<vmem>>, vector<2x1x256xbf16>
    %148 = vector.shape_cast %147 : vector<2x1x256xbf16> to vector<2x256xbf16>
    %c0_109 = arith.constant 0 : index
    %c4864 = arith.constant 4864 : index
    %149 = vector.load %arg14[%c0_109, %c4864] : memref<2x5632xbf16, #tpu.memory_space<vmem>>, vector<2x256xbf16>
    tpu.vector_store %arg14[%c0_109, %c4864], %148 {strides = array<i32>} : memref<2x5632xbf16, #tpu.memory_space<vmem>>, vector<2x256xbf16>,
    %c0_110 = arith.constant 0 : index
    %c20 = arith.constant 20 : index
    %c0_111 = arith.constant 0 : index
    %150 = vector.load %arg13[%c0_110, %c20, %c0_111] : memref<2x22x256xbf16, #tpu.memory_space<vmem>>, vector<2x1x256xbf16>
    %151 = vector.shape_cast %150 : vector<2x1x256xbf16> to vector<2x256xbf16>
    %c0_112 = arith.constant 0 : index
    %c5120 = arith.constant 5120 : index
    %152 = vector.load %arg14[%c0_112, %c5120] : memref<2x5632xbf16, #tpu.memory_space<vmem>>, vector<2x256xbf16>
    tpu.vector_store %arg14[%c0_112, %c5120], %151 {strides = array<i32>} : memref<2x5632xbf16, #tpu.memory_space<vmem>>, vector<2x256xbf16>,
    %c0_113 = arith.constant 0 : index
    %c21 = arith.constant 21 : index
    %c0_114 = arith.constant 0 : index
    %153 = vector.load %arg13[%c0_113, %c21, %c0_114] : memref<2x22x256xbf16, #tpu.memory_space<vmem>>, vector<2x1x256xbf16>
    %154 = vector.shape_cast %153 : vector<2x1x256xbf16> to vector<2x256xbf16>
    %c0_115 = arith.constant 0 : index
    %c5376 = arith.constant 5376 : index
    %155 = vector.load %arg14[%c0_115, %c5376] : memref<2x5632xbf16, #tpu.memory_space<vmem>>, vector<2x256xbf16>
    tpu.vector_store %arg14[%c0_115, %c5376], %154 {strides = array<i32>} : memref<2x5632xbf16, #tpu.memory_space<vmem>>, vector<2x256xbf16>,
    %cst_116 = arith.constant 0.000000e+00 : f32
    %156 = vector.broadcast %cst_116 : f32 to vector<2x256xf32>
    %c0_i32_117 = arith.constant 0 : i32
    %c0_i32_118 = arith.constant 0 : i32
    %c0_i32_119 = arith.constant 0 : i32
    %157 = tpu.memref_slice %arg7[%c0_i32_118, %c0_i32_119] : memref<5632x256xbf16, #tpu.memory_space<any>> -> memref<1408x256xbf16, #tpu.memory_space<any>>
    %c0_i32_120 = arith.constant 0 : i32
    %c0_i32_121 = arith.constant 0 : i32
    %158 = tpu.memref_slice %arg12[%c0_i32_120, %c0_i32_121] : memref<5632x256xbf16, #tpu.memory_space<vmem>> -> memref<1408x256xbf16, #tpu.memory_space<vmem>>
    %159 = tpu.memref_slice %arg15[%c0_i32_117] : memref<4x!tpu.dma_semaphore, #tpu.memory_space<semaphore_mem>> -> memref<1x!tpu.dma_semaphore, #tpu.memory_space<semaphore_mem>>
    %160 = tpu.memref_squeeze %159 : memref<1x!tpu.dma_semaphore, #tpu.memory_space<semaphore_mem>> -> memref<!tpu.dma_semaphore, #tpu.memory_space<semaphore_mem>>
    tpu.wait_dma2 semaphore(%160 : memref<!tpu.dma_semaphore, #tpu.memory_space<semaphore_mem>>) src(%157 : memref<1408x256xbf16, #tpu.memory_space<any>>) dst(%158 : memref<1408x256xbf16, #tpu.memory_space<vmem>>)
    %c0_122 = arith.constant 0 : index
    %c0_123 = arith.constant 0 : index
    %161 = vector.load %arg14[%c0_122, %c0_123] : memref<2x5632xbf16, #tpu.memory_space<vmem>>, vector<2x1408xbf16>
    %c0_124 = arith.constant 0 : index
    %c0_125 = arith.constant 0 : index
    %162 = vector.load %arg12[%c0_124, %c0_125] : memref<5632x256xbf16, #tpu.memory_space<vmem>>, vector<1408x256xbf16>
    %cst_126 = arith.constant dense<0.000000e+00> : vector<2x256xf32>
    %163 = tpu.matmul %161, %162, %cst_126 {dimension_numbers = #tpu.dot_dimension_numbers<[1], [0], [0], [1], [0, 0, 1, 1], [], []>} : vector<2x1408xbf16>, vector<1408x256xbf16>, vector<2x256xf32> -> vector<2x256xf32>
    %164 = arith.addf %156, %163 : vector<2x256xf32>
    %c1_i32_127 = arith.constant 1 : i32
    %c1408_i32_128 = arith.constant 1408 : i32
    %c0_i32_129 = arith.constant 0 : i32
    %165 = tpu.memref_slice %arg7[%c1408_i32_128, %c0_i32_129] : memref<5632x256xbf16, #tpu.memory_space<any>> -> memref<1408x256xbf16, #tpu.memory_space<any>>
    %c1408_i32_130 = arith.constant 1408 : i32
    %c0_i32_131 = arith.constant 0 : i32
    %166 = tpu.memref_slice %arg12[%c1408_i32_130, %c0_i32_131] : memref<5632x256xbf16, #tpu.memory_space<vmem>> -> memref<1408x256xbf16, #tpu.memory_space<vmem>>
    %167 = tpu.memref_slice %arg15[%c1_i32_127] : memref<4x!tpu.dma_semaphore, #tpu.memory_space<semaphore_mem>> -> memref<1x!tpu.dma_semaphore, #tpu.memory_space<semaphore_mem>>
    %168 = tpu.memref_squeeze %167 : memref<1x!tpu.dma_semaphore, #tpu.memory_space<semaphore_mem>> -> memref<!tpu.dma_semaphore, #tpu.memory_space<semaphore_mem>>
    tpu.wait_dma2 semaphore(%168 : memref<!tpu.dma_semaphore, #tpu.memory_space<semaphore_mem>>) src(%165 : memref<1408x256xbf16, #tpu.memory_space<any>>) dst(%166 : memref<1408x256xbf16, #tpu.memory_space<vmem>>)
    %c0_132 = arith.constant 0 : index
    %c1408 = arith.constant 1408 : index
    %169 = vector.load %arg14[%c0_132, %c1408] : memref<2x5632xbf16, #tpu.memory_space<vmem>>, vector<2x1408xbf16>
    %c1408_133 = arith.constant 1408 : index
    %c0_134 = arith.constant 0 : index
    %170 = vector.load %arg12[%c1408_133, %c0_134] : memref<5632x256xbf16, #tpu.memory_space<vmem>>, vector<1408x256xbf16>
    %cst_135 = arith.constant dense<0.000000e+00> : vector<2x256xf32>
    %171 = tpu.matmul %169, %170, %cst_135 {dimension_numbers = #tpu.dot_dimension_numbers<[1], [0], [0], [1], [0, 0, 1, 1], [], []>} : vector<2x1408xbf16>, vector<1408x256xbf16>, vector<2x256xf32> -> vector<2x256xf32>
    %172 = arith.addf %164, %171 : vector<2x256xf32>
    %c2_i32_136 = arith.constant 2 : i32
    %c2816_i32_137 = arith.constant 2816 : i32
    %c0_i32_138 = arith.constant 0 : i32
    %173 = tpu.memref_slice %arg7[%c2816_i32_137, %c0_i32_138] : memref<5632x256xbf16, #tpu.memory_space<any>> -> memref<1408x256xbf16, #tpu.memory_space<any>>
    %c2816_i32_139 = arith.constant 2816 : i32
    %c0_i32_140 = arith.constant 0 : i32
    %174 = tpu.memref_slice %arg12[%c2816_i32_139, %c0_i32_140] : memref<5632x256xbf16, #tpu.memory_space<vmem>> -> memref<1408x256xbf16, #tpu.memory_space<vmem>>
    %175 = tpu.memref_slice %arg15[%c2_i32_136] : memref<4x!tpu.dma_semaphore, #tpu.memory_space<semaphore_mem>> -> memref<1x!tpu.dma_semaphore, #tpu.memory_space<semaphore_mem>>
    %176 = tpu.memref_squeeze %175 : memref<1x!tpu.dma_semaphore, #tpu.memory_space<semaphore_mem>> -> memref<!tpu.dma_semaphore, #tpu.memory_space<semaphore_mem>>
    tpu.wait_dma2 semaphore(%176 : memref<!tpu.dma_semaphore, #tpu.memory_space<semaphore_mem>>) src(%173 : memref<1408x256xbf16, #tpu.memory_space<any>>) dst(%174 : memref<1408x256xbf16, #tpu.memory_space<vmem>>)
    %c0_141 = arith.constant 0 : index
    %c2816_142 = arith.constant 2816 : index
    %177 = vector.load %arg14[%c0_141, %c2816_142] : memref<2x5632xbf16, #tpu.memory_space<vmem>>, vector<2x1408xbf16>
    %c2816_143 = arith.constant 2816 : index
    %c0_144 = arith.constant 0 : index
    %178 = vector.load %arg12[%c2816_143, %c0_144] : memref<5632x256xbf16, #tpu.memory_space<vmem>>, vector<1408x256xbf16>
    %cst_145 = arith.constant dense<0.000000e+00> : vector<2x256xf32>
    %179 = tpu.matmul %177, %178, %cst_145 {dimension_numbers = #tpu.dot_dimension_numbers<[1], [0], [0], [1], [0, 0, 1, 1], [], []>} : vector<2x1408xbf16>, vector<1408x256xbf16>, vector<2x256xf32> -> vector<2x256xf32>
    %180 = arith.addf %172, %179 : vector<2x256xf32>
    %c3_i32_146 = arith.constant 3 : i32
    %c4224_i32_147 = arith.constant 4224 : i32
    %c0_i32_148 = arith.constant 0 : i32
    %181 = tpu.memref_slice %arg7[%c4224_i32_147, %c0_i32_148] : memref<5632x256xbf16, #tpu.memory_space<any>> -> memref<1408x256xbf16, #tpu.memory_space<any>>
    %c4224_i32_149 = arith.constant 4224 : i32
    %c0_i32_150 = arith.constant 0 : i32
    %182 = tpu.memref_slice %arg12[%c4224_i32_149, %c0_i32_150] : memref<5632x256xbf16, #tpu.memory_space<vmem>> -> memref<1408x256xbf16, #tpu.memory_space<vmem>>
    %183 = tpu.memref_slice %arg15[%c3_i32_146] : memref<4x!tpu.dma_semaphore, #tpu.memory_space<semaphore_mem>> -> memref<1x!tpu.dma_semaphore, #tpu.memory_space<semaphore_mem>>
    %184 = tpu.memref_squeeze %183 : memref<1x!tpu.dma_semaphore, #tpu.memory_space<semaphore_mem>> -> memref<!tpu.dma_semaphore, #tpu.memory_space<semaphore_mem>>
    tpu.wait_dma2 semaphore(%184 : memref<!tpu.dma_semaphore, #tpu.memory_space<semaphore_mem>>) src(%181 : memref<1408x256xbf16, #tpu.memory_space<any>>) dst(%182 : memref<1408x256xbf16, #tpu.memory_space<vmem>>)
    %c0_151 = arith.constant 0 : index
    %c4224 = arith.constant 4224 : index
    %185 = vector.load %arg14[%c0_151, %c4224] : memref<2x5632xbf16, #tpu.memory_space<vmem>>, vector<2x1408xbf16>
    %c4224_152 = arith.constant 4224 : index
    %c0_153 = arith.constant 0 : index
    %186 = vector.load %arg12[%c4224_152, %c0_153] : memref<5632x256xbf16, #tpu.memory_space<vmem>>, vector<1408x256xbf16>
    %cst_154 = arith.constant dense<0.000000e+00> : vector<2x256xf32>
    %187 = tpu.matmul %185, %186, %cst_154 {dimension_numbers = #tpu.dot_dimension_numbers<[1], [0], [0], [1], [0, 0, 1, 1], [], []>} : vector<2x1408xbf16>, vector<1408x256xbf16>, vector<2x256xf32> -> vector<2x256xf32>
    %188 = arith.addf %180, %187 : vector<2x256xf32>
    %c0_155 = arith.constant 0 : index
    %c0_156 = arith.constant 0 : index
    %189 = vector.load %arg8[%c0_155, %c0_156] : memref<1x256xf32, #tpu.memory_space<vmem>>, vector<1x256xf32>
    %190 = vector.broadcast %189 : vector<1x256xf32> to vector<2x256xf32>
    %191 = arith.addf %188, %190 : vector<2x256xf32>
    %cst_157 = arith.constant 0.000000e+00 : f32
    %192 = vector.broadcast %cst_157 : f32 to vector<2x256xf32>
    %193 = arith.maximumf %191, %192 : vector<2x256xf32>
    %c0_158 = arith.constant 0 : index
    %c0_159 = arith.constant 0 : index
    %194 = vector.load %arg9[%c0_158, %c0_159] : memref<256x4xf32, #tpu.memory_space<vmem>>, vector<256x4xf32>
    %cst_160 = arith.constant dense<0.000000e+00> : vector<2x4xf32>
    %195 = tpu.matmul %193, %194, %cst_160 {dimension_numbers = #tpu.dot_dimension_numbers<[1], [0], [0], [1], [0, 0, 1, 1], [], []>} : vector<2x256xf32>, vector<256x4xf32>, vector<2x4xf32> -> vector<2x4xf32>
    %c0_161 = arith.constant 0 : index
    %c0_162 = arith.constant 0 : index
    %196 = vector.load %arg10[%c0_161, %c0_162] : memref<1x4xf32, #tpu.memory_space<vmem>>, vector<1x4xf32>
    %197 = vector.broadcast %196 : vector<1x4xf32> to vector<2x4xf32>
    %198 = arith.addf %195, %197 : vector<2x4xf32>
    %cst_163 = arith.constant dense<0xFF800000> : vector<2xf32>
    %199 = vector.multi_reduction <maximumf>, %198, %cst_163 [1] : vector<2x4xf32> to vector<2xf32>
    %200 = vector.shape_cast %199 : vector<2xf32> to vector<2x1xf32>
    %201 = vector.broadcast %200 : vector<2x1xf32> to vector<2x4xf32>
    %202 = arith.subf %198, %201 : vector<2x4xf32>
    %203 = math.exp %202 : vector<2x4xf32>
    %cst_164 = arith.constant dense<0.000000e+00> : vector<2xf32>
    %204 = vector.multi_reduction <add>, %203, %cst_164 [1] : vector<2x4xf32> to vector<2xf32>
    %205 = vector.shape_cast %204 : vector<2xf32> to vector<2x1xf32>
    %206 = math.log %205 : vector<2x1xf32>
    %207 = vector.broadcast %206 : vector<2x1xf32> to vector<2x4xf32>
    %208 = arith.subf %202, %207 : vector<2x4xf32>
    %c0_165 = arith.constant 0 : index
    %c0_166 = arith.constant 0 : index
    %209 = vector.load %arg11[%c0_165, %c0_166] : memref<2x4xf32, #tpu.memory_space<vmem>>, vector<2x4xf32>
    tpu.vector_store %arg11[%c0_165, %c0_166], %208 {strides = array<i32>} : memref<2x4xf32, #tpu.memory_space<vmem>>, vector<2x4xf32>,
    return
  }
}

</mosaic_0001>

<llo_original>
// kernel: classifier_forward.1
$region0: #{classifier_forward.1}
  #allocation0 [shape = 'u32[]', space=smem, size = 0x4, offset = 0x4, fixed_abs, tag = 'smem constant byte address 0x4 - core index']
  #allocation1 [shape = 'u32[72,128]{1,0:T(1,128)}', space=vmem, size = 0x9000, scoped, tag = 'internal scratch']
  #allocation2 [shape = 'bf16[5632,256]{1,0:T(8,128)(2,1)}', space=vmem, size = 0x2c0000, scoped, tag = 'scratch operand']
  #allocation3 [shape = 'bf16[2,22,256]{2,1,0:T(8,128)(2,1)}', space=vmem, size = 0x6000, scoped, tag = 'scratch operand']
  #allocation4 [shape = 'bf16[2,5632]{1,0:T(2,128)(2,1)}', space=vmem, size = 0x5800, scoped, tag = 'scratch operand']
  #allocation5 [shape = 's32[4]{0}', space=sflag, size = 0x10, scoped, tag = 'scratch operand']
  #allocation21 [shape = 's32[]', space=sflag, size = 0x4, offset = 0, fixed_abs, tag = 'sflag constant byte address 0x0 - dummy sync flag']
  #allocation22 [shape = 's32[]', space=sflag, size = 0x4, offset = 0, fixed_abs, tag = 'sflag constant byte address 0x0 - dummy sync flag']
  #allocation23 [shape = 'u32[]', space=smem, size = 0x4, offset = 0x44, fixed_abs, tag = 'smem constant byte address 0x44 - assertion arg 0']
  #allocation24 [shape = 'u32[]', space=smem, size = 0x4, offset = 0x48, fixed_abs, tag = 'smem constant byte address 0x48 - assertion arg 1']
  #allocation25 [shape = 's32[]', space=sflag, size = 0x4, offset = 0, fixed_abs, tag = 'sflag constant byte address 0x0 - dummy sync flag']
  #allocation26 [shape = 's32[]', space=sflag, size = 0x4, offset = 0, fixed_abs, tag = 'sflag constant byte address 0x0 - dummy sync flag']
  #allocation27 [shape = 's32[]', space=sflag, size = 0x4, offset = 0, fixed_abs, tag = 'sflag constant byte address 0x0 - dummy sync flag']
  #allocation28 [shape = 's32[]', space=sflag, size = 0x4, offset = 0, fixed_abs, tag = 'sflag constant byte address 0x0 - dummy sync flag']
  #allocation29 [shape = 's32[]', space=sflag, size = 0x4, offset = 0, fixed_abs, tag = 'sflag constant byte address 0x0 - dummy sync flag']
  #allocation30 [shape = 's32[]', space=sflag, size = 0x4, offset = 0, fixed_abs, tag = 'sflag constant byte address 0x0 - dummy sync flag']
  %s0 = inlined_call_operand.vmem [shape: f32[2,176,1], index: 0, kind: input, shape index: {}]
  %s1 = inlined_call_operand.hbm [shape: f32[3,1,64], index: 1, kind: input, shape index: {}]
  %s2 = inlined_call_operand.hbm [shape: f32[1,64], index: 2, kind: input, shape index: {}]
  %s3 = inlined_call_operand.hbm [shape: f32[192,128], index: 3, kind: input, shape index: {}]
  %s4 = inlined_call_operand.hbm [shape: f32[1,128], index: 4, kind: input, shape index: {}]
  %s5 = inlined_call_operand.hbm [shape: f32[384,256], index: 5, kind: input, shape index: {}]
  %s6 = inlined_call_operand.hbm [shape: f32[1,256], index: 6, kind: input, shape index: {}]
  %s7 = inlined_call_operand.hbm [shape: bf16[5632,256], index: 7, kind: input, shape index: {}]
  %s8 = inlined_call_operand.hbm [shape: f32[1,256], index: 8, kind: input, shape index: {}]
  %s9 = inlined_call_operand.vmem [shape: f32[256,4], index: 9, kind: input, shape index: {}]
  %s10 = inlined_call_operand.hbm [shape: f32[1,4], index: 10, kind: input, shape index: {}]
  %s11 = inlined_call_operand.hbm [shape: f32[2,4], index: 11, kind: output, shape index: {}]
  %s12 = sld [smem:[#allocation0]]
  $region98: #{classifier_forward.1} parent=0
    _
  %s14 = ssub.s32 1, %s12
  %s15 = scalar_select 0, %s14, %s12
  $region1: #{classifier_forward.1} parent=0
    #allocation6 [shape = 'u8[1536]{0}', space=vmem, size = 0x800, scoped, tag = 'input window, operand 1, single buffered']
    #allocation7 [shape = 's32[1]{0}', space=sflag, size = 0x4, scoped, tag = 'scoped memory for classifier_forward.1']
    #allocation8 [shape = 's32[1]{0}', space=sflag, size = 0x4, scoped, tag = 'scoped memory for classifier_forward.1']
    #allocation9 [shape = 'u8[512]{0}', space=vmem, size = 0x400, scoped, tag = 'input window, operand 2, single buffered']
    #allocation10 [shape = 's32[1]{0}', space=sflag, size = 0x4, scoped, tag = 'scoped memory for classifier_forward.1']
    #allocation11 [shape = 'u8[98304]{0}', space=vmem, size = 0x18000, scoped, tag = 'input window, operand 3, single buffered']
    #allocation12 [shape = 'u8[512]{0}', space=vmem, size = 0x400, scoped, tag = 'input window, operand 4, single buffered']
    #allocation13 [shape = 's32[1]{0}', space=sflag, size = 0x4, scoped, tag = 'scoped memory for classifier_forward.1']
    #allocation14 [shape = 'u8[393216]{0}', space=vmem, size = 0x60000, scoped, tag = 'input window, operand 5, single buffered']
    #allocation15 [shape = 'u8[1024]{0}', space=vmem, size = 0x400, scoped, tag = 'input window, operand 6, single buffered']
    #allocation16 [shape = 's32[1]{0}', space=sflag, size = 0x4, scoped, tag = 'scoped memory for classifier_forward.1']
    #allocation17 [shape = 'u8[1024]{0}', space=vmem, size = 0x400, scoped, tag = 'input window, operand 8, single buffered']
    #allocation18 [shape = 'u8[512]{0}', space=vmem, size = 0x400, scoped, tag = 'input window, operand 10, single buffered']
    #allocation19 [shape = 's32[1]{0}', space=sflag, size = 0x4, scoped, tag = 'scoped memory for classifier_forward.1']
    #allocation20 [shape = 'u8[1024]{0}', space=vmem, size = 0x400, scoped, tag = 'output window, operand 0, single buffered']
    %16 = vsyncpa [#allocation7], 0
    %17 = vsyncpa [#allocation10], 0
    %18 = vsyncpa [#allocation13], 0
    %19 = vsyncpa [#allocation16], 0
    %20 = vsyncpa [#allocation19], 0
    %21 = vsyncpa [#allocation8], 0
    // Predicated region
    $region2: #{classifier_forward.1} parent=1 // pred_check
      _
    $region3: #{classifier_forward.1} parent=1 // pred_check_branch
      %23 = sbr.rel (0) target = $region5
    $region4: #{classifier_forward.1} parent=1 // pred_region
      _
    $region5: #{classifier_forward.1} parent=1 // pred_fallthru
      _
    // Predicated region
    $region6: #{classifier_forward.1} parent=1 // pred_check
      _
    $region7: #{classifier_forward.1} parent=1 // pred_check_branch
      %25 = sbr.rel (0) target = $region9
    $region8: #{classifier_forward.1} parent=1 // pred_region
      %27 = vsyncadd [#allocation7], 0
      %s28 = sshll.u32 %s1, 4
      %s29 = int_to_ptr.hbm [resolvable:$true] %s28
      %s30 = sshll.u32 [#allocation6], 4
      %s31 = int_to_ptr.vmem [resolvable:$true] %s30
      %36 = dma.hbm_to_vmem [thread:$0]  %s29, 48, %s31, [#allocation7], 16, 16, 1
    $region9: #{classifier_forward.1} parent=1 // pred_fallthru
      _
    // Predicated region
    $region10: #{classifier_forward.1} parent=1 // pred_check
      _
    $region11: #{classifier_forward.1} parent=1 // pred_check_branch
      %38 = sbr.rel (0) target = $region13
    $region12: #{classifier_forward.1} parent=1 // pred_region
      %40 = vsyncadd [#allocation10], 0
      %s42 = sshll.u32 %s2, 4
      %s43 = int_to_ptr.hbm [resolvable:$true] %s42
      %s44 = sshll.u32 [#allocation9], 4
      %s45 = int_to_ptr.vmem [resolvable:$true] %s44
      %47 = dma.hbm_to_vmem [thread:$0]  %s43, 16, %s45, [#allocation10]
    $region13: #{classifier_forward.1} parent=1 // pred_fallthru
      _
    // Predicated region
    $region14: #{classifier_forward.1} parent=1 // pred_check
      _
    $region15: #{classifier_forward.1} parent=1 // pred_check_branch
      %49 = sbr.rel (0) target = $region17
    $region16: #{classifier_forward.1} parent=1 // pred_region
      %51 = vsyncadd [#allocation10], 0
      %s52 = sshll.u32 %s3, 4
      %s53 = int_to_ptr.hbm [resolvable:$true] %s52
      %s54 = sshll.u32 [#allocation11], 4
      %s55 = int_to_ptr.vmem [resolvable:$true] %s54
      %60 = dma.hbm_to_vmem [thread:$0]  %s53, 3072, %s55, [#allocation10], 128, 128, 8
    $region17: #{classifier_forward.1} parent=1 // pred_fallthru
      _
    // Predicated region
    $region18: #{classifier_forward.1} parent=1 // pred_check
      _
    $region19: #{classifier_forward.1} parent=1 // pred_check_branch
      %62 = sbr.rel (0) target = $region21
    $region20: #{classifier_forward.1} parent=1 // pred_region
      %64 = vsyncadd [#allocation13], 0
      %s66 = sshll.u32 %s4, 4
      %s67 = int_to_ptr.hbm [resolvable:$true] %s66
      %s68 = sshll.u32 [#allocation12], 4
      %s69 = int_to_ptr.vmem [resolvable:$true] %s68
      %71 = dma.hbm_to_vmem [thread:$0]  %s67, 16, %s69, [#allocation13]
    $region21: #{classifier_forward.1} parent=1 // pred_fallthru
      _
    // Predicated region
    $region22: #{classifier_forward.1} parent=1 // pred_check
      _
    $region23: #{classifier_forward.1} parent=1 // pred_check_branch
      %73 = sbr.rel (0) target = $region25
    $region24: #{classifier_forward.1} parent=1 // pred_region
      %75 = vsyncadd [#allocation13], 0
      %s76 = sshll.u32 %s5, 4
      %s77 = int_to_ptr.hbm [resolvable:$true] %s76
      %s78 = sshll.u32 [#allocation14], 4
      %s79 = int_to_ptr.vmem [resolvable:$true] %s78
      %84 = dma.hbm_to_vmem [thread:$0]  %s77, 12288, %s79, [#allocation13], 256, 256, 16
    $region25: #{classifier_forward.1} parent=1 // pred_fallthru
      _
    // Predicated region
    $region26: #{classifier_forward.1} parent=1 // pred_check
      _
    $region27: #{classifier_forward.1} parent=1 // pred_check_branch
      %86 = sbr.rel (0) target = $region29
    $region28: #{classifier_forward.1} parent=1 // pred_region
      %88 = vsyncadd [#allocation16], 0
      %s90 = sshll.u32 %s6, 4
      %s91 = int_to_ptr.hbm [resolvable:$true] %s90
      %s92 = sshll.u32 [#allocation15], 4
      %s93 = int_to_ptr.vmem [resolvable:$true] %s92
      %95 = dma.hbm_to_vmem [thread:$0]  %s91, 32, %s93, [#allocation16]
    $region29: #{classifier_forward.1} parent=1 // pred_fallthru
      _
    // Predicated region
    $region30: #{classifier_forward.1} parent=1 // pred_check
      _
    $region31: #{classifier_forward.1} parent=1 // pred_check_branch
      %97 = sbr.rel (0) target = $region33
    $region32: #{classifier_forward.1} parent=1 // pred_region
      %99 = vsyncadd [#allocation16], 0
      %s101 = sshll.u32 %s8, 4
      %s102 = int_to_ptr.hbm [resolvable:$true] %s101
      %s103 = sshll.u32 [#allocation17], 4
      %s104 = int_to_ptr.vmem [resolvable:$true] %s103
      %106 = dma.hbm_to_vmem [thread:$0]  %s102, 32, %s104, [#allocation16]
    $region33: #{classifier_forward.1} parent=1 // pred_fallthru
      _
    // Predicated region
    $region34: #{classifier_forward.1} parent=1 // pred_check
      _
    $region35: #{classifier_forward.1} parent=1 // pred_check_branch
      %108 = sbr.rel (0) target = $region37
    $region36: #{classifier_forward.1} parent=1 // pred_region
      _
    $region37: #{classifier_forward.1} parent=1 // pred_fallthru
      _
    // Predicated region
    $region38: #{classifier_forward.1} parent=1 // pred_check
      _
    $region39: #{classifier_forward.1} parent=1 // pred_check_branch
      %110 = sbr.rel (0) target = $region41
    $region40: #{classifier_forward.1} parent=1 // pred_region
      %112 = vsyncadd [#allocation19], 0
      %s114 = sshll.u32 %s10, 4
      %s115 = int_to_ptr.hbm [resolvable:$true] %s114
      %s116 = sshll.u32 [#allocation18], 4
      %s117 = int_to_ptr.vmem [resolvable:$true] %s116
      %119 = dma.hbm_to_vmem [thread:$0]  %s115, 16, %s117, [#allocation19]
    $region41: #{classifier_forward.1} parent=1 // pred_fallthru
      _
    // Predicated region
    $region42: #{classifier_forward.1} parent=1 // pred_check
      _
    $region43: #{classifier_forward.1} parent=1 // pred_check_branch
      %121 = sbr.rel (0) target = $region45
    $region44: #{classifier_forward.1} parent=1 // pred_region
      %123 = dma.done [#allocation7], 48
    $region45: #{classifier_forward.1} parent=1 // pred_fallthru
      _
    // Predicated region
    $region46: #{classifier_forward.1} parent=1 // pred_check
      _
    $region47: #{classifier_forward.1} parent=1 // pred_check_branch
      %125 = sbr.rel (0) target = $region49
    $region48: #{classifier_forward.1} parent=1 // pred_region
      %127 = dma.done [#allocation10], 16
    $region49: #{classifier_forward.1} parent=1 // pred_fallthru
      _
    // Predicated region
    $region50: #{classifier_forward.1} parent=1 // pred_check
      _
    $region51: #{classifier_forward.1} parent=1 // pred_check_branch
      %129 = sbr.rel (0) target = $region53
    $region52: #{classifier_forward.1} parent=1 // pred_region
      %131 = dma.done [#allocation10], 3072
    $region53: #{classifier_forward.1} parent=1 // pred_fallthru
      _
    // Predicated region
    $region54: #{classifier_forward.1} parent=1 // pred_check
      _
    $region55: #{classifier_forward.1} parent=1 // pred_check_branch
      %133 = sbr.rel (0) target = $region57
    $region56: #{classifier_forward.1} parent=1 // pred_region
      %135 = dma.done [#allocation13], 16
    $region57: #{classifier_forward.1} parent=1 // pred_fallthru
      _
    // Predicated region
    $region58: #{classifier_forward.1} parent=1 // pred_check
      _
    $region59: #{classifier_forward.1} parent=1 // pred_check_branch
      %137 = sbr.rel (0) target = $region61
    $region60: #{classifier_forward.1} parent=1 // pred_region
      %139 = dma.done [#allocation13], 12288
    $region61: #{classifier_forward.1} parent=1 // pred_fallthru
      _
    // Predicated region
    $region62: #{classifier_forward.1} parent=1 // pred_check
      _
    $region63: #{classifier_forward.1} parent=1 // pred_check_branch
      %141 = sbr.rel (0) target = $region65
    $region64: #{classifier_forward.1} parent=1 // pred_region
      %143 = dma.done [#allocation16], 32
    $region65: #{classifier_forward.1} parent=1 // pred_fallthru
      _
    // Predicated region
    $region66: #{classifier_forward.1} parent=1 // pred_check
      _
    $region67: #{classifier_forward.1} parent=1 // pred_check_branch
      %145 = sbr.rel (0) target = $region69
    $region68: #{classifier_forward.1} parent=1 // pred_region
      %147 = dma.done [#allocation16], 32
    $region69: #{classifier_forward.1} parent=1 // pred_fallthru
      _
    // Predicated region
    $region70: #{classifier_forward.1} parent=1 // pred_check
      _
    $region71: #{classifier_forward.1} parent=1 // pred_check_branch
      %149 = sbr.rel (0) target = $region73
    $region72: #{classifier_forward.1} parent=1 // pred_region
      %151 = dma.done [#allocation19], 16
    $region73: #{classifier_forward.1} parent=1 // pred_fallthru
      _
    // Predicated region
    $region74: #{classifier_forward.1} parent=1 // pred_check
      _
    $region75: #{classifier_forward.1} parent=1 // pred_check_branch
      %153 = sbr.rel target = $region77
    $region76: #{classifier_forward.1} parent=1 // pred_region
      %154 = sst [smem:[#allocation23]] [#allocation22]
      %155 = sst [smem:[#allocation24]] [#allocation21]
    $region77: #{classifier_forward.1} parent=1 // pred_fallthru
      _
    %157 = shalt.err (0)
    %s159 = sshll.u32 %s7, 4
    %s160 = int_to_ptr.hbm [resolvable:$true] %s159
    %s161 = sshll.u32 [#allocation2], 4
    %s162 = int_to_ptr.vmem [resolvable:$true] %s161
    %164 = dma.hbm_to_vmem [thread:$0]  %s160, 22528, %s162, [#allocation5]
    %s165 = scalar_lea.hbm %s7, 1408
    %s166 = scalar_lea.vmem [#allocation2], 1408
    %s167 = scalar_lea.sflag [#allocation5], 1
    // Predicated region
    $region78: #{classifier_forward.1} parent=1 // pred_check
      _
    $region79: #{classifier_forward.1} parent=1 // pred_check_branch
      %169 = sbr.rel target = $region81
    $region80: #{classifier_forward.1} parent=1 // pred_region
      %170 = sst [smem:[#allocation23]] [#allocation26]
      %171 = sst [smem:[#allocation24]] [#allocation25]
    $region81: #{classifier_forward.1} parent=1 // pred_fallthru
      _
    %173 = shalt.err (0)
    %s175 = sshll.u32 %s165, 4
    %s176 = int_to_ptr.hbm [resolvable:$true] %s175
    %s177 = sshll.u32 %s166, 4
    %s178 = int_to_ptr.vmem [resolvable:$true] %s177
    %180 = dma.hbm_to_vmem [thread:$0]  %s176, 22528, %s178, %s167
    %s181 = scalar_lea.hbm %s7, 2816
    %s182 = scalar_lea.vmem [#allocation2], 2816
    %s183 = scalar_lea.sflag [#allocation5], 2
    // Predicated region
    $region82: #{classifier_forward.1} parent=1 // pred_check
      _
    $region83: #{classifier_forward.1} parent=1 // pred_check_branch
      %185 = sbr.rel target = $region85
    $region84: #{classifier_forward.1} parent=1 // pred_region
      %186 = sst [smem:[#allocation23]] [#allocation28]
      %187 = sst [smem:[#allocation24]] [#allocation27]
    $region85: #{classifier_forward.1} parent=1 // pred_fallthru
      _
    %189 = shalt.err (0)
    %s191 = sshll.u32 %s181, 4
    %s192 = int_to_ptr.hbm [resolvable:$true] %s191
    %s193 = sshll.u32 %s182, 4
    %s194 = int_to_ptr.vmem [resolvable:$true] %s193
    %196 = dma.hbm_to_vmem [thread:$0]  %s192, 22528, %s194, %s183
    %s197 = scalar_lea.hbm %s7, 4224
    %s198 = scalar_lea.vmem [#allocation2], 4224
    %s199 = scalar_lea.sflag [#allocation5], 3
    // Predicated region
    $region86: #{classifier_forward.1} parent=1 // pred_check
      _
    $region87: #{classifier_forward.1} parent=1 // pred_check_branch
      %201 = sbr.rel target = $region89
    $region88: #{classifier_forward.1} parent=1 // pred_region
      %202 = sst [smem:[#allocation23]] [#allocation30]
      %203 = sst [smem:[#allocation24]] [#allocation29]
    $region89: #{classifier_forward.1} parent=1 // pred_fallthru
      _
    %205 = shalt.err (0)
    %s207 = sshll.u32 %s197, 4
    %s208 = int_to_ptr.hbm [resolvable:$true] %s207
    %s209 = sshll.u32 %s198, 4
    %s210 = int_to_ptr.vmem [resolvable:$true] %s209
    %212 = dma.hbm_to_vmem [thread:$0]  %s208, 22528, %s210, %s199
    %v213 = vld [vmem:[%s0] sm:$0xff]
    %v214 = vld [vmem:[%s0 + $0x8] sm:$0xff]
    %v215 = vld [vmem:[%s0 + $0x10] sm:$0xff]
    %v216 = vld [vmem:[%s0 + $0x18] sm:$0xff]
    %v217 = vld [vmem:[%s0 + $0x20] sm:$0xff]
    %v218 = vld [vmem:[%s0 + $0x28] sm:$0xff]
    %v219 = vld [vmem:[%s0 + $0x30] sm:$0xff]
    %v220 = vld [vmem:[%s0 + $0x38] sm:$0xff]
    %v221 = vld [vmem:[%s0 + $0x40] sm:$0xff]
    %v222 = vld [vmem:[%s0 + $0x48] sm:$0xff]
    %v223 = vld [vmem:[%s0 + $0x50] sm:$0xff]
    %v224 = vld [vmem:[%s0 + $0x58] sm:$0xff]
    %v225 = vld [vmem:[%s0 + $0x60] sm:$0xff]
    %v226 = vld [vmem:[%s0 + $0x68] sm:$0xff]
    %v227 = vld [vmem:[%s0 + $0x70] sm:$0xff]
    %v228 = vld [vmem:[%s0 + $0x78] sm:$0xff]
    %v229 = vld [vmem:[%s0 + $0x80] sm:$0xff]
    %v230 = vld [vmem:[%s0 + $0x88] sm:$0xff]
    %v231 = vld [vmem:[%s0 + $0x90] sm:$0xff]
    %v232 = vld [vmem:[%s0 + $0x98] sm:$0xff]
    %v233 = vld [vmem:[%s0 + $0xa0] sm:$0xff]
    %v234 = vld [vmem:[%s0 + $0xa8] sm:$0xff]
    %v235 = vld [vmem:[%s0 + $0xb0] sm:$0xff]
    %v236 = vld [vmem:[%s0 + $0xb8] sm:$0xff]
    %v237 = vld [vmem:[%s0 + $0xc0] sm:$0xff]
    %v238 = vld [vmem:[%s0 + $0xc8] sm:$0xff]
    %v239 = vld [vmem:[%s0 + $0xd0] sm:$0xff]
    %v240 = vld [vmem:[%s0 + $0xd8] sm:$0xff]
    %v241 = vld [vmem:[%s0 + $0xe0] sm:$0xff]
    %v242 = vld [vmem:[%s0 + $0xe8] sm:$0xff]
    %v243 = vld [vmem:[%s0 + $0xf0] sm:$0xff]
    %v244 = vld [vmem:[%s0 + $0xf8] sm:$0xff]
    %v245 = vld [vmem:[%s0 + $0x100] sm:$0xff]
    %v246 = vld [vmem:[%s0 + $0x108] sm:$0xff]
    %v247 = vld [vmem:[%s0 + $0x110] sm:$0xff]
    %v248 = vld [vmem:[%s0 + $0x118] sm:$0xff]
    %v249 = vld [vmem:[%s0 + $0x120] sm:$0xff]
    %v250 = vld [vmem:[%s0 + $0x128] sm:$0xff]
    %v251 = vld [vmem:[%s0 + $0x130] sm:$0xff]
    %v252 = vld [vmem:[%s0 + $0x138] sm:$0xff]
    %v253 = vld [vmem:[%s0 + $0x140] sm:$0xff]
    %v254 = vld [vmem:[%s0 + $0x148] sm:$0xff]
    %v255 = vld [vmem:[%s0 + $0x150] sm:$0xff]
    %v256 = vld [vmem:[%s0 + $0x158] sm:$0xff]
    %vm301 = vcmask 1040384
    %v302 = vrot.slane %v213, 7
    %v303 = vrot.slane %v214, 7
    %v304 = vsel %vm301, %v302, %v303
    %v305 = vrot.slane %v215, 7
    %v306 = vsel %vm301, %v303, %v305
    %v307 = vrot.slane %v216, 7
    %v308 = vsel %vm301, %v305, %v307
    %v309 = vrot.slane %v217, 7
    %v310 = vsel %vm301, %v307, %v309
    %v311 = vrot.slane %v218, 7
    %v312 = vsel %vm301, %v309, %v311
    %v313 = vrot.slane %v219, 7
    %v314 = vsel %vm301, %v311, %v313
    %v315 = vrot.slane %v220, 7
    %v316 = vsel %vm301, %v313, %v315
    %v317 = vrot.slane %v221, 7
    %v318 = vsel %vm301, %v315, %v317
    %v319 = vrot.slane %v222, 7
    %v320 = vsel %vm301, %v317, %v319
    %v321 = vrot.slane %v223, 7
    %v322 = vsel %vm301, %v319, %v321
    %v323 = vrot.slane %v224, 7
    %v324 = vsel %vm301, %v321, %v323
    %v325 = vrot.slane %v225, 7
    %v326 = vsel %vm301, %v323, %v325
    %v327 = vrot.slane %v226, 7
    %v328 = vsel %vm301, %v325, %v327
    %v329 = vrot.slane %v227, 7
    %v330 = vsel %vm301, %v327, %v329
    %v331 = vrot.slane %v228, 7
    %v332 = vsel %vm301, %v329, %v331
    %v333 = vrot.slane %v229, 7
    %v334 = vsel %vm301, %v331, %v333
    %v335 = vrot.slane %v230, 7
    %v336 = vsel %vm301, %v333, %v335
    %v337 = vrot.slane %v231, 7
    %v338 = vsel %vm301, %v335, %v337
    %v339 = vrot.slane %v232, 7
    %v340 = vsel %vm301, %v337, %v339
    %v341 = vrot.slane %v233, 7
    %v342 = vsel %vm301, %v339, %v341
    %v343 = vrot.slane %v234, 7
    %v344 = vsel %vm301, %v341, %v343
    %v345 = vrot.slane %v235, 7
    %v346 = vrot.slane %v236, 7
    %v347 = vsel %vm301, %v345, %v346
    %v348 = vrot.slane %v237, 7
    %v349 = vsel %vm301, %v346, %v348
    %v350 = vrot.slane %v238, 7
    %v351 = vsel %vm301, %v348, %v350
    %v352 = vrot.slane %v239, 7
    %v353 = vsel %vm301, %v350, %v352
    %v354 = vrot.slane %v240, 7
    %v355 = vsel %vm301, %v352, %v354
    %v356 = vrot.slane %v241, 7
    %v357 = vsel %vm301, %v354, %v356
    %v358 = vrot.slane %v242, 7
    %v359 = vsel %vm301, %v356, %v358
    %v360 = vrot.slane %v243, 7
    %v361 = vsel %vm301, %v358, %v360
    %v362 = vrot.slane %v244, 7
    %v363 = vsel %vm301, %v360, %v362
    %v364 = vrot.slane %v245, 7
    %v365 = vsel %vm301, %v362, %v364
    %v366 = vrot.slane %v246, 7
    %v367 = vsel %vm301, %v364, %v366
    %v368 = vrot.slane %v247, 7
    %v369 = vsel %vm301, %v366, %v368
    %v370 = vrot.slane %v248, 7
    %v371 = vsel %vm301, %v368, %v370
    %v372 = vrot.slane %v249, 7
    %v373 = vsel %vm301, %v370, %v372
    %v374 = vrot.slane %v250, 7
    %v375 = vsel %vm301, %v372, %v374
    %v376 = vrot.slane %v251, 7
    %v377 = vsel %vm301, %v374, %v376
    %v378 = vrot.slane %v252, 7
    %v379 = vsel %vm301, %v376, %v378
    %v380 = vrot.slane %v253, 7
    %v381 = vsel %vm301, %v378, %v380
    %v382 = vrot.slane %v254, 7
    %v383 = vsel %vm301, %v380, %v382
    %v384 = vrot.slane %v255, 7
    %v385 = vsel %vm301, %v382, %v384
    %v386 = vrot.slane %v256, 7
    %v387 = vsel %vm301, %v384, %v386
    %v392 = vsel %vm301, 0.0, %v302
    %v393 = vsel %vm301, 0.0, %v345
    %v394 = vsel %vm301, %v343, 0.0
    %v395 = vsel %vm301, %v386, 0.0
    %v396 = vld [vmem:[#allocation6] sm:$0x1]
    %398 = vset.pattern.permute.xlu0 0
    %399 = vperm.xlu0 %398, %v392
    %v400 = vpop.permute.xlu0 %399
    %402 = vset.pattern.permute.xlu0 0
    %403 = vperm.xlu0 %402, %v304
    %v404 = vpop.permute.xlu0 %403
    %406 = vset.pattern.permute.xlu0 0
    %407 = vperm.xlu0 %406, %v306
    %v408 = vpop.permute.xlu0 %407
    %410 = vset.pattern.permute.xlu0 0
    %411 = vperm.xlu0 %410, %v308
    %v412 = vpop.permute.xlu0 %411
    %414 = vset.pattern.permute.xlu0 0
    %415 = vperm.xlu0 %414, %v310
    %v416 = vpop.permute.xlu0 %415
    %418 = vset.pattern.permute.xlu0 0
    %419 = vperm.xlu0 %418, %v312
    %v420 = vpop.permute.xlu0 %419
    %422 = vset.pattern.permute.xlu0 0
    %423 = vperm.xlu0 %422, %v314
    %v424 = vpop.permute.xlu0 %423
    %426 = vset.pattern.permute.xlu0 0
    %427 = vperm.xlu0 %426, %v316
    %v428 = vpop.permute.xlu0 %427
    %430 = vset.pattern.permute.xlu0 0
    %431 = vperm.xlu0 %430, %v318
    %v432 = vpop.permute.xlu0 %431
    %434 = vset.pattern.permute.xlu0 0
    %435 = vperm.xlu0 %434, %v320
    %v436 = vpop.permute.xlu0 %435
    %438 = vset.pattern.permute.xlu0 0
    %439 = vperm.xlu0 %438, %v322
    %v440 = vpop.permute.xlu0 %439
    %442 = vset.pattern.permute.xlu0 0
    %443 = vperm.xlu0 %442, %v324
    %v444 = vpop.permute.xlu0 %443
    %446 = vset.pattern.permute.xlu0 0
    %447 = vperm.xlu0 %446, %v326
    %v448 = vpop.permute.xlu0 %447
    %450 = vset.pattern.permute.xlu0 0
    %451 = vperm.xlu0 %450, %v328
    %v452 = vpop.permute.xlu0 %451
    %454 = vset.pattern.permute.xlu0 0
    %455 = vperm.xlu0 %454, %v330
    %v456 = vpop.permute.xlu0 %455
    %458 = vset.pattern.permute.xlu0 0
    %459 = vperm.xlu0 %458, %v332
    %v460 = vpop.permute.xlu0 %459
    %462 = vset.pattern.permute.xlu0 0
    %463 = vperm.xlu0 %462, %v334
    %v464 = vpop.permute.xlu0 %463
    %466 = vset.pattern.permute.xlu0 0
    %467 = vperm.xlu0 %466, %v336
    %v468 = vpop.permute.xlu0 %467
    %470 = vset.pattern.permute.xlu0 0
    %471 = vperm.xlu0 %470, %v338
    %v472 = vpop.permute.xlu0 %471
    %474 = vset.pattern.permute.xlu0 0
    %475 = vperm.xlu0 %474, %v340
    %v476 = vpop.permute.xlu0 %475
    %478 = vset.pattern.permute.xlu0 0
    %479 = vperm.xlu0 %478, %v342
    %v480 = vpop.permute.xlu0 %479
    %482 = vset.pattern.permute.xlu0 0
    %483 = vperm.xlu0 %482, %v344
    %v484 = vpop.permute.xlu0 %483
    %487 = vset.pattern.permute.xlu0 0
    %488 = vperm.xlu0 %487, %v393
    %v489 = vpop.permute.xlu0 %488
    %491 = vset.pattern.permute.xlu0 0
    %492 = vperm.xlu0 %491, %v347
    %v493 = vpop.permute.xlu0 %492
    %495 = vset.pattern.permute.xlu0 0
    %496 = vperm.xlu0 %495, %v349
    %v497 = vpop.permute.xlu0 %496
    %499 = vset.pattern.permute.xlu0 0
    %500 = vperm.xlu0 %499, %v351
    %v501 = vpop.permute.xlu0 %500
    %503 = vset.pattern.permute.xlu0 0
    %504 = vperm.xlu0 %503, %v353
    %v505 = vpop.permute.xlu0 %504
    %507 = vset.pattern.permute.xlu0 0
    %508 = vperm.xlu0 %507, %v355
    %v509 = vpop.permute.xlu0 %508
    %511 = vset.pattern.permute.xlu0 0
    %512 = vperm.xlu0 %511, %v357
    %v513 = vpop.permute.xlu0 %512
    %515 = vset.pattern.permute.xlu0 0
    %516 = vperm.xlu0 %515, %v359
    %v517 = vpop.permute.xlu0 %516
    %519 = vset.pattern.permute.xlu0 0
    %520 = vperm.xlu0 %519, %v361
    %v521 = vpop.permute.xlu0 %520
    %523 = vset.pattern.permute.xlu0 0
    %524 = vperm.xlu0 %523, %v363
    %v525 = vpop.permute.xlu0 %524
    %527 = vset.pattern.permute.xlu0 0
    %528 = vperm.xlu0 %527, %v365
    %v529 = vpop.permute.xlu0 %528
    %531 = vset.pattern.permute.xlu0 0
    %532 = vperm.xlu0 %531, %v367
    %v533 = vpop.permute.xlu0 %532
    %535 = vset.pattern.permute.xlu0 0
    %536 = vperm.xlu0 %535, %v369
    %v537 = vpop.permute.xlu0 %536
    %539 = vset.pattern.permute.xlu0 0
    %540 = vperm.xlu0 %539, %v371
    %v541 = vpop.permute.xlu0 %540
    %543 = vset.pattern.permute.xlu0 0
    %544 = vperm.xlu0 %543, %v373
    %v545 = vpop.permute.xlu0 %544
    %547 = vset.pattern.permute.xlu0 0
    %548 = vperm.xlu0 %547, %v375
    %v549 = vpop.permute.xlu0 %548
    %551 = vset.pattern.permute.xlu0 0
    %552 = vperm.xlu0 %551, %v377
    %v553 = vpop.permute.xlu0 %552
    %555 = vset.pattern.permute.xlu0 0
    %556 = vperm.xlu0 %555, %v379
    %v557 = vpop.permute.xlu0 %556
    %559 = vset.pattern.permute.xlu0 0
    %560 = vperm.xlu0 %559, %v381
    %v561 = vpop.permute.xlu0 %560
    %563 = vset.pattern.permute.xlu0 0
    %564 = vperm.xlu0 %563, %v383
    %v565 = vpop.permute.xlu0 %564
    %567 = vset.pattern.permute.xlu0 0
    %568 = vperm.xlu0 %567, %v385
    %v569 = vpop.permute.xlu0 %568
    %571 = vset.pattern.permute.xlu0 0
    %572 = vperm.xlu0 %571, %v387
    %v573 = vpop.permute.xlu0 %572
    %v576 = vperm.slane %v396, 0
    %v578 = vmul.f32 %v400, %v576
    %v579 = vmul.f32 %v404, %v576
    %v580 = vmul.f32 %v408, %v576
    %v581 = vmul.f32 %v412, %v576
    %v582 = vmul.f32 %v416, %v576
    %v583 = vmul.f32 %v420, %v576
    %v584 = vmul.f32 %v424, %v576
    %v585 = vmul.f32 %v428, %v576
    %v586 = vmul.f32 %v432, %v576
    %v587 = vmul.f32 %v436, %v576
    %v588 = vmul.f32 %v440, %v576
    %v589 = vmul.f32 %v444, %v576
    %v590 = vmul.f32 %v448, %v576
    %v591 = vmul.f32 %v452, %v576
    %v592 = vmul.f32 %v456, %v576
    %v593 = vmul.f32 %v460, %v576
    %v594 = vmul.f32 %v464, %v576
    %v595 = vmul.f32 %v468, %v576
    %v596 = vmul.f32 %v472, %v576
    %v597 = vmul.f32 %v476, %v576
    %v598 = vmul.f32 %v480, %v576
    %v599 = vmul.f32 %v484, %v576
    %v600 = vmul.f32 %v489, %v576
    %v601 = vmul.f32 %v493, %v576
    %v602 = vmul.f32 %v497, %v576
    %v603 = vmul.f32 %v501, %v576
    %v604 = vmul.f32 %v505, %v576
    %v605 = vmul.f32 %v509, %v576
    %v606 = vmul.f32 %v513, %v576
    %v607 = vmul.f32 %v517, %v576
    %v608 = vmul.f32 %v521, %v576
    %v609 = vmul.f32 %v525, %v576
    %v610 = vmul.f32 %v529, %v576
    %v611 = vmul.f32 %v533, %v576
    %v612 = vmul.f32 %v537, %v576
    %v613 = vmul.f32 %v541, %v576
    %v614 = vmul.f32 %v545, %v576
    %v615 = vmul.f32 %v549, %v576
    %v616 = vmul.f32 %v553, %v576
    %v617 = vmul.f32 %v557, %v576
    %v618 = vmul.f32 %v561, %v576
    %v619 = vmul.f32 %v565, %v576
    %v620 = vmul.f32 %v569, %v576
    %v621 = vmul.f32 %v573, %v576
    %v622 = vadd.f32 %v578, 0.0
    %v623 = vadd.f32 %v579, 0.0
    %v624 = vadd.f32 %v580, 0.0
    %v625 = vadd.f32 %v581, 0.0
    %v626 = vadd.f32 %v582, 0.0
    %v627 = vadd.f32 %v583, 0.0
    %v628 = vadd.f32 %v584, 0.0
    %v629 = vadd.f32 %v585, 0.0
    %v630 = vadd.f32 %v586, 0.0
    %v631 = vadd.f32 %v587, 0.0
    %v632 = vadd.f32 %v588, 0.0
    %v633 = vadd.f32 %v589, 0.0
    %v634 = vadd.f32 %v590, 0.0
    %v635 = vadd.f32 %v591, 0.0
    %v636 = vadd.f32 %v592, 0.0
    %v637 = vadd.f32 %v593, 0.0
    %v638 = vadd.f32 %v594, 0.0
    %v639 = vadd.f32 %v595, 0.0
    %v640 = vadd.f32 %v596, 0.0
    %v641 = vadd.f32 %v597, 0.0
    %v642 = vadd.f32 %v598, 0.0
    %v643 = vadd.f32 %v599, 0.0
    %v644 = vadd.f32 %v600, 0.0
    %v645 = vadd.f32 %v601, 0.0
    %v646 = vadd.f32 %v602, 0.0
    %v647 = vadd.f32 %v603, 0.0
    %v648 = vadd.f32 %v604, 0.0
    %v649 = vadd.f32 %v605, 0.0
    %v650 = vadd.f32 %v606, 0.0
    %v651 = vadd.f32 %v607, 0.0
    %v652 = vadd.f32 %v608, 0.0
    %v653 = vadd.f32 %v609, 0.0
    %v654 = vadd.f32 %v610, 0.0
    %v655 = vadd.f32 %v611, 0.0
    %v656 = vadd.f32 %v612, 0.0
    %v657 = vadd.f32 %v613, 0.0
    %v658 = vadd.f32 %v614, 0.0
    %v659 = vadd.f32 %v615, 0.0
    %v660 = vadd.f32 %v616, 0.0
    %v661 = vadd.f32 %v617, 0.0
    %v662 = vadd.f32 %v618, 0.0
    %v663 = vadd.f32 %v619, 0.0
    %v664 = vadd.f32 %v620, 0.0
    %v665 = vadd.f32 %v621, 0.0
    %s666 = scalar_lea.vmem [#allocation6], 1
    %v667 = vld [vmem:[%s666] sm:$0x1]
    %669 = vset.pattern.permute.xlu0 0
    %670 = vperm.xlu0 %669, %v394
    %v671 = vpop.permute.xlu0 %670
    %674 = vset.pattern.permute.xlu0 0
    %675 = vperm.xlu0 %674, %v395
    %v676 = vpop.permute.xlu0 %675
    %v679 = vperm.slane %v667, 0
    %v681 = vmul.f32 %v400, %v679
    %v682 = vmul.f32 %v404, %v679
    %v683 = vmul.f32 %v408, %v679
    %v684 = vmul.f32 %v412, %v679
    %v685 = vmul.f32 %v416, %v679
    %v686 = vmul.f32 %v420, %v679
    %v687 = vmul.f32 %v424, %v679
    %v688 = vmul.f32 %v428, %v679
    %v689 = vmul.f32 %v432, %v679
    %v690 = vmul.f32 %v436, %v679
    %v691 = vmul.f32 %v440, %v679
    %v692 = vmul.f32 %v444, %v679
    %v693 = vmul.f32 %v448, %v679
    %v694 = vmul.f32 %v452, %v679
    %v695 = vmul.f32 %v456, %v679
    %v696 = vmul.f32 %v460, %v679
    %v697 = vmul.f32 %v464, %v679
    %v698 = vmul.f32 %v468, %v679
    %v699 = vmul.f32 %v472, %v679
    %v700 = vmul.f32 %v476, %v679
    %v701 = vmul.f32 %v480, %v679
    %v702 = vmul.f32 %v484, %v679
    %v703 = vmul.f32 %v671, %v679
    %v704 = vmul.f32 %v489, %v679
    %v705 = vmul.f32 %v493, %v679
    %v706 = vmul.f32 %v497, %v679
    %v707 = vmul.f32 %v501, %v679
    %v708 = vmul.f32 %v505, %v679
    %v709 = vmul.f32 %v509, %v679
    %v710 = vmul.f32 %v513, %v679
    %v711 = vmul.f32 %v517, %v679
    %v712 = vmul.f32 %v521, %v679
    %v713 = vmul.f32 %v525, %v679
    %v714 = vmul.f32 %v529, %v679
    %v715 = vmul.f32 %v533, %v679
    %v716 = vmul.f32 %v537, %v679
    %v717 = vmul.f32 %v541, %v679
    %v718 = vmul.f32 %v545, %v679
    %v719 = vmul.f32 %v549, %v679
    %v720 = vmul.f32 %v553, %v679
    %v721 = vmul.f32 %v557, %v679
    %v722 = vmul.f32 %v561, %v679
    %v723 = vmul.f32 %v565, %v679
    %v724 = vmul.f32 %v569, %v679
    %v725 = vmul.f32 %v573, %v679
    %v726 = vmul.f32 %v676, %v679
    %vm773 = vcmask 1046528
    %v774 = vrot.slane %v681, 1
    %v775 = vrot.slane %v682, 1
    %v776 = vsel %vm773, %v774, %v775
    %v777 = vrot.slane %v683, 1
    %v778 = vsel %vm773, %v775, %v777
    %v779 = vrot.slane %v684, 1
    %v780 = vsel %vm773, %v777, %v779
    %v781 = vrot.slane %v685, 1
    %v782 = vsel %vm773, %v779, %v781
    %v783 = vrot.slane %v686, 1
    %v784 = vsel %vm773, %v781, %v783
    %v785 = vrot.slane %v687, 1
    %v786 = vsel %vm773, %v783, %v785
    %v787 = vrot.slane %v688, 1
    %v788 = vsel %vm773, %v785, %v787
    %v789 = vrot.slane %v689, 1
    %v790 = vsel %vm773, %v787, %v789
    %v791 = vrot.slane %v690, 1
    %v792 = vsel %vm773, %v789, %v791
    %v793 = vrot.slane %v691, 1
    %v794 = vsel %vm773, %v791, %v793
    %v795 = vrot.slane %v692, 1
    %v796 = vsel %vm773, %v793, %v795
    %v797 = vrot.slane %v693, 1
    %v798 = vsel %vm773, %v795, %v797
    %v799 = vrot.slane %v694, 1
    %v800 = vsel %vm773, %v797, %v799
    %v801 = vrot.slane %v695, 1
    %v802 = vsel %vm773, %v799, %v801
    %v803 = vrot.slane %v696, 1
    %v804 = vsel %vm773, %v801, %v803
    %v805 = vrot.slane %v697, 1
    %v806 = vsel %vm773, %v803, %v805
    %v807 = vrot.slane %v698, 1
    %v808 = vsel %vm773, %v805, %v807
    %v809 = vrot.slane %v699, 1
    %v810 = vsel %vm773, %v807, %v809
    %v811 = vrot.slane %v700, 1
    %v812 = vsel %vm773, %v809, %v811
    %v813 = vrot.slane %v701, 1
    %v814 = vsel %vm773, %v811, %v813
    %v815 = vrot.slane %v702, 1
    %v816 = vsel %vm773, %v813, %v815
    %v817 = vrot.slane %v703, 1
    %v818 = vsel %vm773, %v815, %v817
    %v819 = vrot.slane %v704, 1
    %v820 = vrot.slane %v705, 1
    %v821 = vsel %vm773, %v819, %v820
    %v822 = vrot.slane %v706, 1
    %v823 = vsel %vm773, %v820, %v822
    %v824 = vrot.slane %v707, 1
    %v825 = vsel %vm773, %v822, %v824
    %v826 = vrot.slane %v708, 1
    %v827 = vsel %vm773, %v824, %v826
    %v828 = vrot.slane %v709, 1
    %v829 = vsel %vm773, %v826, %v828
    %v830 = vrot.slane %v710, 1
    %v831 = vsel %vm773, %v828, %v830
    %v832 = vrot.slane %v711, 1
    %v833 = vsel %vm773, %v830, %v832
    %v834 = vrot.slane %v712, 1
    %v835 = vsel %vm773, %v832, %v834
    %v836 = vrot.slane %v713, 1
    %v837 = vsel %vm773, %v834, %v836
    %v838 = vrot.slane %v714, 1
    %v839 = vsel %vm773, %v836, %v838
    %v840 = vrot.slane %v715, 1
    %v841 = vsel %vm773, %v838, %v840
    %v842 = vrot.slane %v716, 1
    %v843 = vsel %vm773, %v840, %v842
    %v844 = vrot.slane %v717, 1
    %v845 = vsel %vm773, %v842, %v844
    %v846 = vrot.slane %v718, 1
    %v847 = vsel %vm773, %v844, %v846
    %v848 = vrot.slane %v719, 1
    %v849 = vsel %vm773, %v846, %v848
    %v850 = vrot.slane %v720, 1
    %v851 = vsel %vm773, %v848, %v850
    %v852 = vrot.slane %v721, 1
    %v853 = vsel %vm773, %v850, %v852
    %v854 = vrot.slane %v722, 1
    %v855 = vsel %vm773, %v852, %v854
    %v856 = vrot.slane %v723, 1
    %v857 = vsel %vm773, %v854, %v856
    %v858 = vrot.slane %v724, 1
    %v859 = vsel %vm773, %v856, %v858
    %v860 = vrot.slane %v725, 1
    %v861 = vsel %vm773, %v858, %v860
    %v862 = vrot.slane %v726, 1
    %v863 = vsel %vm773, %v860, %v862
    %v908 = vadd.f32 %v622, %v776
    %v909 = vadd.f32 %v623, %v778
    %v910 = vadd.f32 %v624, %v780
    %v911 = vadd.f32 %v625, %v782
    %v912 = vadd.f32 %v626, %v784
    %v913 = vadd.f32 %v627, %v786
    %v914 = vadd.f32 %v628, %v788
    %v915 = vadd.f32 %v629, %v790
    %v916 = vadd.f32 %v630, %v792
    %v917 = vadd.f32 %v631, %v794
    %v918 = vadd.f32 %v632, %v796
    %v919 = vadd.f32 %v633, %v798
    %v920 = vadd.f32 %v634, %v800
    %v921 = vadd.f32 %v635, %v802
    %v922 = vadd.f32 %v636, %v804
    %v923 = vadd.f32 %v637, %v806
    %v924 = vadd.f32 %v638, %v808
    %v925 = vadd.f32 %v639, %v810
    %v926 = vadd.f32 %v640, %v812
    %v927 = vadd.f32 %v641, %v814
    %v928 = vadd.f32 %v642, %v816
    %v929 = vadd.f32 %v643, %v818
    %v930 = vadd.f32 %v644, %v821
    %v931 = vadd.f32 %v645, %v823
    %v932 = vadd.f32 %v646, %v825
    %v933 = vadd.f32 %v647, %v827
    %v934 = vadd.f32 %v648, %v829
    %v935 = vadd.f32 %v649, %v831
    %v936 = vadd.f32 %v650, %v833
    %v937 = vadd.f32 %v651, %v835
    %v938 = vadd.f32 %v652, %v837
    %v939 = vadd.f32 %v653, %v839
    %v940 = vadd.f32 %v654, %v841
    %v941 = vadd.f32 %v655, %v843
    %v942 = vadd.f32 %v656, %v845
    %v943 = vadd.f32 %v657, %v847
    %v944 = vadd.f32 %v658, %v849
    %v945 = vadd.f32 %v659, %v851
    %v946 = vadd.f32 %v660, %v853
    %v947 = vadd.f32 %v661, %v855
    %v948 = vadd.f32 %v662, %v857
    %v949 = vadd.f32 %v663, %v859
    %v950 = vadd.f32 %v664, %v861
    %v951 = vadd.f32 %v665, %v863
    %s952 = scalar_lea.vmem [#allocation6], 2
    %v953 = vld [vmem:[%s952] sm:$0x1]
    %v955 = vperm.slane %v953, 0
    %v957 = vmul.f32 %v400, %v955
    %v958 = vmul.f32 %v404, %v955
    %v959 = vmul.f32 %v408, %v955
    %v960 = vmul.f32 %v412, %v955
    %v961 = vmul.f32 %v416, %v955
    %v962 = vmul.f32 %v420, %v955
    %v963 = vmul.f32 %v424, %v955
    %v964 = vmul.f32 %v428, %v955
    %v965 = vmul.f32 %v432, %v955
    %v966 = vmul.f32 %v436, %v955
    %v967 = vmul.f32 %v440, %v955
    %v968 = vmul.f32 %v444, %v955
    %v969 = vmul.f32 %v448, %v955
    %v970 = vmul.f32 %v452, %v955
    %v971 = vmul.f32 %v456, %v955
    %v972 = vmul.f32 %v460, %v955
    %v973 = vmul.f32 %v464, %v955
    %v974 = vmul.f32 %v468, %v955
    %v975 = vmul.f32 %v472, %v955
    %v976 = vmul.f32 %v476, %v955
    %v977 = vmul.f32 %v480, %v955
    %v978 = vmul.f32 %v484, %v955
    %v979 = vmul.f32 %v671, %v955
    %v980 = vmul.f32 %v489, %v955
    %v981 = vmul.f32 %v493, %v955
    %v982 = vmul.f32 %v497, %v955
    %v983 = vmul.f32 %v501, %v955
    %v984 = vmul.f32 %v505, %v955
    %v985 = vmul.f32 %v509, %v955
    %v986 = vmul.f32 %v513, %v955
    %v987 = vmul.f32 %v517, %v955
    %v988 = vmul.f32 %v521, %v955
    %v989 = vmul.f32 %v525, %v955
    %v990 = vmul.f32 %v529, %v955
    %v991 = vmul.f32 %v533, %v955
    %v992 = vmul.f32 %v537, %v955
    %v993 = vmul.f32 %v541, %v955
    %v994 = vmul.f32 %v545, %v955
    %v995 = vmul.f32 %v549, %v955
    %v996 = vmul.f32 %v553, %v955
    %v997 = vmul.f32 %v557, %v955
    %v998 = vmul.f32 %v561, %v955
    %v999 = vmul.f32 %v565, %v955
    %v1000 = vmul.f32 %v569, %v955
    %v1001 = vmul.f32 %v573, %v955
    %v1002 = vmul.f32 %v676, %v955
    %vm1049 = vcmask 1045504
    %v1050 = vrot.slane %v957, 2
    %v1051 = vrot.slane %v958, 2
    %v1052 = vsel %vm1049, %v1050, %v1051
    %v1053 = vrot.slane %v959, 2
    %v1054 = vsel %vm1049, %v1051, %v1053
    %v1055 = vrot.slane %v960, 2
    %v1056 = vsel %vm1049, %v1053, %v1055
    %v1057 = vrot.slane %v961, 2
    %v1058 = vsel %vm1049, %v1055, %v1057
    %v1059 = vrot.slane %v962, 2
    %v1060 = vsel %vm1049, %v1057, %v1059
    %v1061 = vrot.slane %v963, 2
    %v1062 = vsel %vm1049, %v1059, %v1061
    %v1063 = vrot.slane %v964, 2
    %v1064 = vsel %vm1049, %v1061, %v1063
    %v1065 = vrot.slane %v965, 2
    %v1066 = vsel %vm1049, %v1063, %v1065
    %v1067 = vrot.slane %v966, 2
    %v1068 = vsel %vm1049, %v1065, %v1067
    %v1069 = vrot.slane %v967, 2
    %v1070 = vsel %vm1049, %v1067, %v1069
    %v1071 = vrot.slane %v968, 2
    %v1072 = vsel %vm1049, %v1069, %v1071
    %v1073 = vrot.slane %v969, 2
    %v1074 = vsel %vm1049, %v1071, %v1073
    %v1075 = vrot.slane %v970, 2
    %v1076 = vsel %vm1049, %v1073, %v1075
    %v1077 = vrot.slane %v971, 2
    %v1078 = vsel %vm1049, %v1075, %v1077
    %v1079 = vrot.slane %v972, 2
    %v1080 = vsel %vm1049, %v1077, %v1079
    %v1081 = vrot.slane %v973, 2
    %v1082 = vsel %vm1049, %v1079, %v1081
    %v1083 = vrot.slane %v974, 2
    %v1084 = vsel %vm1049, %v1081, %v1083
    %v1085 = vrot.slane %v975, 2
    %v1086 = vsel %vm1049, %v1083, %v1085
    %v1087 = vrot.slane %v976, 2
    %v1088 = vsel %vm1049, %v1085, %v1087
    %v1089 = vrot.slane %v977, 2
    %v1090 = vsel %vm1049, %v1087, %v1089
    %v1091 = vrot.slane %v978, 2
    %v1092 = vsel %vm1049, %v1089, %v1091
    %v1093 = vrot.slane %v979, 2
    %v1094 = vsel %vm1049, %v1091, %v1093
    %v1095 = vrot.slane %v980, 2
    %v1096 = vrot.slane %v981, 2
    %v1097 = vsel %vm1049, %v1095, %v1096
    %v1098 = vrot.slane %v982, 2
    %v1099 = vsel %vm1049, %v1096, %v1098
    %v1100 = vrot.slane %v983, 2
    %v1101 = vsel %vm1049, %v1098, %v1100
    %v1102 = vrot.slane %v984, 2
    %v1103 = vsel %vm1049, %v1100, %v1102
    %v1104 = vrot.slane %v985, 2
    %v1105 = vsel %vm1049, %v1102, %v1104
    %v1106 = vrot.slane %v986, 2
    %v1107 = vsel %vm1049, %v1104, %v1106
    %v1108 = vrot.slane %v987, 2
    %v1109 = vsel %vm1049, %v1106, %v1108
    %v1110 = vrot.slane %v988, 2
    %v1111 = vsel %vm1049, %v1108, %v1110
    %v1112 = vrot.slane %v989, 2
    %v1113 = vsel %vm1049, %v1110, %v1112
    %v1114 = vrot.slane %v990, 2
    %v1115 = vsel %vm1049, %v1112, %v1114
    %v1116 = vrot.slane %v991, 2
    %v1117 = vsel %vm1049, %v1114, %v1116
    %v1118 = vrot.slane %v992, 2
    %v1119 = vsel %vm1049, %v1116, %v1118
    %v1120 = vrot.slane %v993, 2
    %v1121 = vsel %vm1049, %v1118, %v1120
    %v1122 = vrot.slane %v994, 2
    %v1123 = vsel %vm1049, %v1120, %v1122
    %v1124 = vrot.slane %v995, 2
    %v1125 = vsel %vm1049, %v1122, %v1124
    %v1126 = vrot.slane %v996, 2
    %v1127 = vsel %vm1049, %v1124, %v1126
    %v1128 = vrot.slane %v997, 2
    %v1129 = vsel %vm1049, %v1126, %v1128
    %v1130 = vrot.slane %v998, 2
    %v1131 = vsel %vm1049, %v1128, %v1130
    %v1132 = vrot.slane %v999, 2
    %v1133 = vsel %vm1049, %v1130, %v1132
    %v1134 = vrot.slane %v1000, 2
    %v1135 = vsel %vm1049, %v1132, %v1134
    %v1136 = vrot.slane %v1001, 2
    %v1137 = vsel %vm1049, %v1134, %v1136
    %v1138 = vrot.slane %v1002, 2
    %v1139 = vsel %vm1049, %v1136, %v1138
    %v1184 = vadd.f32 %v908, %v1052
    %v1185 = vadd.f32 %v909, %v1054
    %v1186 = vadd.f32 %v910, %v1056
    %v1187 = vadd.f32 %v911, %v1058
    %v1188 = vadd.f32 %v912, %v1060
    %v1189 = vadd.f32 %v913, %v1062
    %v1190 = vadd.f32 %v914, %v1064
    %v1191 = vadd.f32 %v915, %v1066
    %v1192 = vadd.f32 %v916, %v1068
    %v1193 = vadd.f32 %v917, %v1070
    %v1194 = vadd.f32 %v918, %v1072
    %v1195 = vadd.f32 %v919, %v1074
    %v1196 = vadd.f32 %v920, %v1076
    %v1197 = vadd.f32 %v921, %v1078
    %v1198 = vadd.f32 %v922, %v1080
    %v1199 = vadd.f32 %v923, %v1082
    %v1200 = vadd.f32 %v924, %v1084
    %v1201 = vadd.f32 %v925, %v1086
    %v1202 = vadd.f32 %v926, %v1088
    %v1203 = vadd.f32 %v927, %v1090
    %v1204 = vadd.f32 %v928, %v1092
    %v1205 = vadd.f32 %v929, %v1094
    %v1206 = vadd.f32 %v930, %v1097
    %v1207 = vadd.f32 %v931, %v1099
    %v1208 = vadd.f32 %v932, %v1101
    %v1209 = vadd.f32 %v933, %v1103
    %v1210 = vadd.f32 %v934, %v1105
    %v1211 = vadd.f32 %v935, %v1107
    %v1212 = vadd.f32 %v936, %v1109
    %v1213 = vadd.f32 %v937, %v1111
    %v1214 = vadd.f32 %v938, %v1113
    %v1215 = vadd.f32 %v939, %v1115
    %v1216 = vadd.f32 %v940, %v1117
    %v1217 = vadd.f32 %v941, %v1119
    %v1218 = vadd.f32 %v942, %v1121
    %v1219 = vadd.f32 %v943, %v1123
    %v1220 = vadd.f32 %v944, %v1125
    %v1221 = vadd.f32 %v945, %v1127
    %v1222 = vadd.f32 %v946, %v1129
    %v1223 = vadd.f32 %v947, %v1131
    %v1224 = vadd.f32 %v948, %v1133
    %v1225 = vadd.f32 %v949, %v1135
    %v1226 = vadd.f32 %v950, %v1137
    %v1227 = vadd.f32 %v951, %v1139
    %v1228 = vld [vmem:[#allocation9] sm:$0x1]
    %v1230 = vperm.slane %v1228, 0
    %v1232 = vadd.f32 %v1184, %v1230
    %v1233 = vadd.f32 %v1185, %v1230
    %v1234 = vadd.f32 %v1186, %v1230
    %v1235 = vadd.f32 %v1187, %v1230
    %v1236 = vadd.f32 %v1188, %v1230
    %v1237 = vadd.f32 %v1189, %v1230
    %v1238 = vadd.f32 %v1190, %v1230
    %v1239 = vadd.f32 %v1191, %v1230
    %v1240 = vadd.f32 %v1192, %v1230
    %v1241 = vadd.f32 %v1193, %v1230
    %v1242 = vadd.f32 %v1194, %v1230
    %v1243 = vadd.f32 %v1195, %v1230
    %v1244 = vadd.f32 %v1196, %v1230
    %v1245 = vadd.f32 %v1197, %v1230
    %v1246 = vadd.f32 %v1198, %v1230
    %v1247 = vadd.f32 %v1199, %v1230
    %v1248 = vadd.f32 %v1200, %v1230
    %v1249 = vadd.f32 %v1201, %v1230
    %v1250 = vadd.f32 %v1202, %v1230
    %v1251 = vadd.f32 %v1203, %v1230
    %v1252 = vadd.f32 %v1204, %v1230
    %v1253 = vadd.f32 %v1205, %v1230
    %v1254 = vadd.f32 %v1206, %v1230
    %v1255 = vadd.f32 %v1207, %v1230
    %v1256 = vadd.f32 %v1208, %v1230
    %v1257 = vadd.f32 %v1209, %v1230
    %v1258 = vadd.f32 %v1210, %v1230
    %v1259 = vadd.f32 %v1211, %v1230
    %v1260 = vadd.f32 %v1212, %v1230
    %v1261 = vadd.f32 %v1213, %v1230
    %v1262 = vadd.f32 %v1214, %v1230
    %v1263 = vadd.f32 %v1215, %v1230
    %v1264 = vadd.f32 %v1216, %v1230
    %v1265 = vadd.f32 %v1217, %v1230
    %v1266 = vadd.f32 %v1218, %v1230
    %v1267 = vadd.f32 %v1219, %v1230
    %v1268 = vadd.f32 %v1220, %v1230
    %v1269 = vadd.f32 %v1221, %v1230
    %v1270 = vadd.f32 %v1222, %v1230
    %v1271 = vadd.f32 %v1223, %v1230
    %v1272 = vadd.f32 %v1224, %v1230
    %v1273 = vadd.f32 %v1225, %v1230
    %v1274 = vadd.f32 %v1226, %v1230
    %v1275 = vadd.f32 %v1227, %v1230
    %v1276 = vmax.f32 %v1232, 0.0
    %v1277 = vmax.f32 %v1233, 0.0
    %v1278 = vmax.f32 %v1234, 0.0
    %v1279 = vmax.f32 %v1235, 0.0
    %v1280 = vmax.f32 %v1236, 0.0
    %v1281 = vmax.f32 %v1237, 0.0
    %v1282 = vmax.f32 %v1238, 0.0
    %v1283 = vmax.f32 %v1239, 0.0
    %v1284 = vmax.f32 %v1240, 0.0
    %v1285 = vmax.f32 %v1241, 0.0
    %v1286 = vmax.f32 %v1242, 0.0
    %v1287 = vmax.f32 %v1243, 0.0
    %v1288 = vmax.f32 %v1244, 0.0
    %v1289 = vmax.f32 %v1245, 0.0
    %v1290 = vmax.f32 %v1246, 0.0
    %v1291 = vmax.f32 %v1247, 0.0
    %v1292 = vmax.f32 %v1248, 0.0
    %v1293 = vmax.f32 %v1249, 0.0
    %v1294 = vmax.f32 %v1250, 0.0
    %v1295 = vmax.f32 %v1251, 0.0
    %v1296 = vmax.f32 %v1252, 0.0
    %v1297 = vmax.f32 %v1253, 0.0
    %v1298 = vmax.f32 %v1254, 0.0
    %v1299 = vmax.f32 %v1255, 0.0
    %v1300 = vmax.f32 %v1256, 0.0
    %v1301 = vmax.f32 %v1257, 0.0
    %v1302 = vmax.f32 %v1258, 0.0
    %v1303 = vmax.f32 %v1259, 0.0
    %v1304 = vmax.f32 %v1260, 0.0
    %v1305 = vmax.f32 %v1261, 0.0
    %v1306 = vmax.f32 %v1262, 0.0
    %v1307 = vmax.f32 %v1263, 0.0
    %v1308 = vmax.f32 %v1264, 0.0
    %v1309 = vmax.f32 %v1265, 0.0
    %v1310 = vmax.f32 %v1266, 0.0
    %v1311 = vmax.f32 %v1267, 0.0
    %v1312 = vmax.f32 %v1268, 0.0
    %v1313 = vmax.f32 %v1269, 0.0
    %v1314 = vmax.f32 %v1270, 0.0
    %v1315 = vmax.f32 %v1271, 0.0
    %v1316 = vmax.f32 %v1272, 0.0
    %v1317 = vmax.f32 %v1273, 0.0
    %v1318 = vmax.f32 %v1274, 0.0
    %v1319 = vmax.f32 %v1275, 0.0
    %v1364 = vrot.slane %v1276, 2
    %v1365 = vrot.slane %v1276, 4
    %v1366 = vrot.slane %v1276, 6
    %v1367 = vrot.slane %v1277, 2
    %v1368 = vrot.slane %v1277, 4
    %v1369 = vrot.slane %v1277, 6
    %v1370 = vrot.slane %v1278, 2
    %v1371 = vrot.slane %v1278, 4
    %v1372 = vrot.slane %v1278, 6
    %v1373 = vrot.slane %v1279, 2
    %v1374 = vrot.slane %v1279, 4
    %v1375 = vrot.slane %v1279, 6
    %v1376 = vrot.slane %v1280, 2
    %v1377 = vrot.slane %v1280, 4
    %v1378 = vrot.slane %v1280, 6
    %v1379 = vrot.slane %v1281, 2
    %v1380 = vrot.slane %v1281, 4
    %v1381 = vrot.slane %v1281, 6
    %v1382 = vrot.slane %v1282, 2
    %v1383 = vrot.slane %v1282, 4
    %v1384 = vrot.slane %v1282, 6
    %v1385 = vrot.slane %v1283, 2
    %v1386 = vrot.slane %v1283, 4
    %v1387 = vrot.slane %v1283, 6
    %v1388 = vrot.slane %v1284, 2
    %v1389 = vrot.slane %v1284, 4
    %v1390 = vrot.slane %v1284, 6
    %v1391 = vrot.slane %v1285, 2
    %v1392 = vrot.slane %v1285, 4
    %v1393 = vrot.slane %v1285, 6
    %v1394 = vrot.slane %v1286, 2
    %v1395 = vrot.slane %v1286, 4
    %v1396 = vrot.slane %v1286, 6
    %v1397 = vrot.slane %v1287, 2
    %v1398 = vrot.slane %v1287, 4
    %v1399 = vrot.slane %v1287, 6
    %v1400 = vrot.slane %v1288, 2
    %v1401 = vrot.slane %v1288, 4
    %v1402 = vrot.slane %v1288, 6
    %v1403 = vrot.slane %v1289, 2
    %v1404 = vrot.slane %v1289, 4
    %v1405 = vrot.slane %v1289, 6
    %v1406 = vrot.slane %v1290, 2
    %v1407 = vrot.slane %v1290, 4
    %v1408 = vrot.slane %v1290, 6
    %v1409 = vrot.slane %v1291, 2
    %v1410 = vrot.slane %v1291, 4
    %v1411 = vrot.slane %v1291, 6
    %v1412 = vrot.slane %v1292, 2
    %v1413 = vrot.slane %v1292, 4
    %v1414 = vrot.slane %v1292, 6
    %v1415 = vrot.slane %v1293, 2
    %v1416 = vrot.slane %v1293, 4
    %v1417 = vrot.slane %v1293, 6
    %v1418 = vrot.slane %v1294, 2
    %v1419 = vrot.slane %v1294, 4
    %v1420 = vrot.slane %v1294, 6
    %v1421 = vrot.slane %v1295, 2
    %v1422 = vrot.slane %v1295, 4
    %v1423 = vrot.slane %v1295, 6
    %v1424 = vrot.slane %v1296, 2
    %v1425 = vrot.slane %v1296, 4
    %v1426 = vrot.slane %v1296, 6
    %v1427 = vrot.slane %v1297, 2
    %v1428 = vrot.slane %v1297, 4
    %v1429 = vrot.slane %v1297, 6
    %v1430 = vrot.slane %v1298, 2
    %v1431 = vrot.slane %v1298, 4
    %v1432 = vrot.slane %v1298, 6
    %v1433 = vrot.slane %v1299, 2
    %v1434 = vrot.slane %v1299, 4
    %v1435 = vrot.slane %v1299, 6
    %v1436 = vrot.slane %v1300, 2
    %v1437 = vrot.slane %v1300, 4
    %v1438 = vrot.slane %v1300, 6
    %v1439 = vrot.slane %v1301, 2
    %v1440 = vrot.slane %v1301, 4
    %v1441 = vrot.slane %v1301, 6
    %v1442 = vrot.slane %v1302, 2
    %v1443 = vrot.slane %v1302, 4
    %v1444 = vrot.slane %v1302, 6
    %v1445 = vrot.slane %v1303, 2
    %v1446 = vrot.slane %v1303, 4
    %v1447 = vrot.slane %v1303, 6
    %v1448 = vrot.slane %v1304, 2
    %v1449 = vrot.slane %v1304, 4
    %v1450 = vrot.slane %v1304, 6
    %v1451 = vrot.slane %v1305, 2
    %v1452 = vrot.slane %v1305, 4
    %v1453 = vrot.slane %v1305, 6
    %v1454 = vrot.slane %v1306, 2
    %v1455 = vrot.slane %v1306, 4
    %v1456 = vrot.slane %v1306, 6
    %v1457 = vrot.slane %v1307, 2
    %v1458 = vrot.slane %v1307, 4
    %v1459 = vrot.slane %v1307, 6
    %v1460 = vrot.slane %v1308, 2
    %v1461 = vrot.slane %v1308, 4
    %v1462 = vrot.slane %v1308, 6
    %v1463 = vrot.slane %v1309, 2
    %v1464 = vrot.slane %v1309, 4
    %v1465 = vrot.slane %v1309, 6
    %v1466 = vrot.slane %v1310, 2
    %v1467 = vrot.slane %v1310, 4
    %v1468 = vrot.slane %v1310, 6
    %v1469 = vrot.slane %v1311, 2
    %v1470 = vrot.slane %v1311, 4
    %v1471 = vrot.slane %v1311, 6
    %v1472 = vrot.slane %v1312, 2
    %v1473 = vrot.slane %v1312, 4
    %v1474 = vrot.slane %v1312, 6
    %v1475 = vrot.slane %v1313, 2
    %v1476 = vrot.slane %v1313, 4
    %v1477 = vrot.slane %v1313, 6
    %v1478 = vrot.slane %v1314, 2
    %v1479 = vrot.slane %v1314, 4
    %v1480 = vrot.slane %v1314, 6
    %v1481 = vrot.slane %v1315, 2
    %v1482 = vrot.slane %v1315, 4
    %v1483 = vrot.slane %v1315, 6
    %v1484 = vrot.slane %v1316, 2
    %v1485 = vrot.slane %v1316, 4
    %v1486 = vrot.slane %v1316, 6
    %v1487 = vrot.slane %v1317, 2
    %v1488 = vrot.slane %v1317, 4
    %v1489 = vrot.slane %v1317, 6
    %v1490 = vrot.slane %v1318, 2
    %v1491 = vrot.slane %v1318, 4
    %v1492 = vrot.slane %v1318, 6
    %v1493 = vrot.slane %v1319, 2
    %v1494 = vrot.slane %v1319, 4
    %v1495 = vrot.slane %v1319, 6
    %vm1628 = vcmask 517120
    %v1629 = vsel %vm1628, %v1276, -inf
    %v1630 = vrot.slane %v1629, 4
    %v1631 = vmax.f32 %v1629, %v1630
    %v1632 = vrot.slane %v1631, 2
    %v1633 = vmax.f32 %v1631, %v1632
    %v1634 = vrot.slane %v1633, 1
    %v1635 = vmax.f32 %v1633, %v1634
    %v1636 = vsel %vm1628, %v1364, -inf
    %v1637 = vrot.slane %v1636, 4
    %v1638 = vmax.f32 %v1636, %v1637
    %v1639 = vrot.slane %v1638, 2
    %v1640 = vmax.f32 %v1638, %v1639
    %v1641 = vrot.slane %v1640, 1
    %v1642 = vmax.f32 %v1640, %v1641
    %v1643 = vsel %vm1628, %v1365, -inf
    %v1644 = vrot.slane %v1643, 4
    %v1645 = vmax.f32 %v1643, %v1644
    %v1646 = vrot.slane %v1645, 2
    %v1647 = vmax.f32 %v1645, %v1646
    %v1648 = vrot.slane %v1647, 1
    %v1649 = vmax.f32 %v1647, %v1648
    %v1650 = vsel %vm1628, %v1366, -inf
    %v1651 = vrot.slane %v1650, 4
    %v1652 = vmax.f32 %v1650, %v1651
    %v1653 = vrot.slane %v1652, 2
    %v1654 = vmax.f32 %v1652, %v1653
    %v1655 = vrot.slane %v1654, 1
    %v1656 = vmax.f32 %v1654, %v1655
    %v1657 = vsel %vm1628, %v1277, -inf
    %v1658 = vrot.slane %v1657, 4
    %v1659 = vmax.f32 %v1657, %v1658
    %v1660 = vrot.slane %v1659, 2
    %v1661 = vmax.f32 %v1659, %v1660
    %v1662 = vrot.slane %v1661, 1
    %v1663 = vmax.f32 %v1661, %v1662
    %v1664 = vsel %vm1628, %v1367, -inf
    %v1665 = vrot.slane %v1664, 4
    %v1666 = vmax.f32 %v1664, %v1665
    %v1667 = vrot.slane %v1666, 2
    %v1668 = vmax.f32 %v1666, %v1667
    %v1669 = vrot.slane %v1668, 1
    %v1670 = vmax.f32 %v1668, %v1669
    %v1671 = vsel %vm1628, %v1368, -inf
    %v1672 = vrot.slane %v1671, 4
    %v1673 = vmax.f32 %v1671, %v1672
    %v1674 = vrot.slane %v1673, 2
    %v1675 = vmax.f32 %v1673, %v1674
    %v1676 = vrot.slane %v1675, 1
    %v1677 = vmax.f32 %v1675, %v1676
    %v1678 = vsel %vm1628, %v1369, -inf
    %v1679 = vrot.slane %v1678, 4
    %v1680 = vmax.f32 %v1678, %v1679
    %v1681 = vrot.slane %v1680, 2
    %v1682 = vmax.f32 %v1680, %v1681
    %v1683 = vrot.slane %v1682, 1
    %v1684 = vmax.f32 %v1682, %v1683
    %v1685 = vsel %vm1628, %v1278, -inf
    %v1686 = vrot.slane %v1685, 4
    %v1687 = vmax.f32 %v1685, %v1686
    %v1688 = vrot.slane %v1687, 2
    %v1689 = vmax.f32 %v1687, %v1688
    %v1690 = vrot.slane %v1689, 1
    %v1691 = vmax.f32 %v1689, %v1690
    %v1692 = vsel %vm1628, %v1370, -inf
    %v1693 = vrot.slane %v1692, 4
    %v1694 = vmax.f32 %v1692, %v1693
    %v1695 = vrot.slane %v1694, 2
    %v1696 = vmax.f32 %v1694, %v1695
    %v1697 = vrot.slane %v1696, 1
    %v1698 = vmax.f32 %v1696, %v1697
    %v1699 = vsel %vm1628, %v1371, -inf
    %v1700 = vrot.slane %v1699, 4
    %v1701 = vmax.f32 %v1699, %v1700
    %v1702 = vrot.slane %v1701, 2
    %v1703 = vmax.f32 %v1701, %v1702
    %v1704 = vrot.slane %v1703, 1
    %v1705 = vmax.f32 %v1703, %v1704
    %v1706 = vsel %vm1628, %v1372, -inf
    %v1707 = vrot.slane %v1706, 4
    %v1708 = vmax.f32 %v1706, %v1707
    %v1709 = vrot.slane %v1708, 2
    %v1710 = vmax.f32 %v1708, %v1709
    %v1711 = vrot.slane %v1710, 1
    %v1712 = vmax.f32 %v1710, %v1711
    %v1713 = vsel %vm1628, %v1279, -inf
    %v1714 = vrot.slane %v1713, 4
    %v1715 = vmax.f32 %v1713, %v1714
    %v1716 = vrot.slane %v1715, 2
    %v1717 = vmax.f32 %v1715, %v1716
    %v1718 = vrot.slane %v1717, 1
    %v1719 = vmax.f32 %v1717, %v1718
    %v1720 = vsel %vm1628, %v1373, -inf
    %v1721 = vrot.slane %v1720, 4
    %v1722 = vmax.f32 %v1720, %v1721
    %v1723 = vrot.slane %v1722, 2
    %v1724 = vmax.f32 %v1722, %v1723
    %v1725 = vrot.slane %v1724, 1
    %v1726 = vmax.f32 %v1724, %v1725
    %v1727 = vsel %vm1628, %v1374, -inf
    %v1728 = vrot.slane %v1727, 4
    %v1729 = vmax.f32 %v1727, %v1728
    %v1730 = vrot.slane %v1729, 2
    %v1731 = vmax.f32 %v1729, %v1730
    %v1732 = vrot.slane %v1731, 1
    %v1733 = vmax.f32 %v1731, %v1732
    %v1734 = vsel %vm1628, %v1375, -inf
    %v1735 = vrot.slane %v1734, 4
    %v1736 = vmax.f32 %v1734, %v1735
    %v1737 = vrot.slane %v1736, 2
    %v1738 = vmax.f32 %v1736, %v1737
    %v1739 = vrot.slane %v1738, 1
    %v1740 = vmax.f32 %v1738, %v1739
    %v1741 = vsel %vm1628, %v1280, -inf
    %v1742 = vrot.slane %v1741, 4
    %v1743 = vmax.f32 %v1741, %v1742
    %v1744 = vrot.slane %v1743, 2
    %v1745 = vmax.f32 %v1743, %v1744
    %v1746 = vrot.slane %v1745, 1
    %v1747 = vmax.f32 %v1745, %v1746
    %v1748 = vsel %vm1628, %v1376, -inf
    %v1749 = vrot.slane %v1748, 4
    %v1750 = vmax.f32 %v1748, %v1749
    %v1751 = vrot.slane %v1750, 2
    %v1752 = vmax.f32 %v1750, %v1751
    %v1753 = vrot.slane %v1752, 1
    %v1754 = vmax.f32 %v1752, %v1753
    %v1755 = vsel %vm1628, %v1377, -inf
    %v1756 = vrot.slane %v1755, 4
    %v1757 = vmax.f32 %v1755, %v1756
    %v1758 = vrot.slane %v1757, 2
    %v1759 = vmax.f32 %v1757, %v1758
    %v1760 = vrot.slane %v1759, 1
    %v1761 = vmax.f32 %v1759, %v1760
    %v1762 = vsel %vm1628, %v1378, -inf
    %v1763 = vrot.slane %v1762, 4
    %v1764 = vmax.f32 %v1762, %v1763
    %v1765 = vrot.slane %v1764, 2
    %v1766 = vmax.f32 %v1764, %v1765
    %v1767 = vrot.slane %v1766, 1
    %v1768 = vmax.f32 %v1766, %v1767
    %v1769 = vsel %vm1628, %v1281, -inf
    %v1770 = vrot.slane %v1769, 4
    %v1771 = vmax.f32 %v1769, %v1770
    %v1772 = vrot.slane %v1771, 2
    %v1773 = vmax.f32 %v1771, %v1772
    %v1774 = vrot.slane %v1773, 1
    %v1775 = vmax.f32 %v1773, %v1774
    %v1776 = vsel %vm1628, %v1379, -inf
    %v1777 = vrot.slane %v1776, 4
    %v1778 = vmax.f32 %v1776, %v1777
    %v1779 = vrot.slane %v1778, 2
    %v1780 = vmax.f32 %v1778, %v1779
    %v1781 = vrot.slane %v1780, 1
    %v1782 = vmax.f32 %v1780, %v1781
    %v1783 = vsel %vm1628, %v1380, -inf
    %v1784 = vrot.slane %v1783, 4
    %v1785 = vmax.f32 %v1783, %v1784
    %v1786 = vrot.slane %v1785, 2
    %v1787 = vmax.f32 %v1785, %v1786
    %v1788 = vrot.slane %v1787, 1
    %v1789 = vmax.f32 %v1787, %v1788
    %v1790 = vsel %vm1628, %v1381, -inf
    %v1791 = vrot.slane %v1790, 4
    %v1792 = vmax.f32 %v1790, %v1791
    %v1793 = vrot.slane %v1792, 2
    %v1794 = vmax.f32 %v1792, %v1793
    %v1795 = vrot.slane %v1794, 1
    %v1796 = vmax.f32 %v1794, %v1795
    %v1797 = vsel %vm1628, %v1282, -inf
    %v1798 = vrot.slane %v1797, 4
    %v1799 = vmax.f32 %v1797, %v1798
    %v1800 = vrot.slane %v1799, 2
    %v1801 = vmax.f32 %v1799, %v1800
    %v1802 = vrot.slane %v1801, 1
    %v1803 = vmax.f32 %v1801, %v1802
    %v1804 = vsel %vm1628, %v1382, -inf
    %v1805 = vrot.slane %v1804, 4
    %v1806 = vmax.f32 %v1804, %v1805
    %v1807 = vrot.slane %v1806, 2
    %v1808 = vmax.f32 %v1806, %v1807
    %v1809 = vrot.slane %v1808, 1
    %v1810 = vmax.f32 %v1808, %v1809
    %v1811 = vsel %vm1628, %v1383, -inf
    %v1812 = vrot.slane %v1811, 4
    %v1813 = vmax.f32 %v1811, %v1812
    %v1814 = vrot.slane %v1813, 2
    %v1815 = vmax.f32 %v1813, %v1814
    %v1816 = vrot.slane %v1815, 1
    %v1817 = vmax.f32 %v1815, %v1816
    %v1818 = vsel %vm1628, %v1384, -inf
    %v1819 = vrot.slane %v1818, 4
    %v1820 = vmax.f32 %v1818, %v1819
    %v1821 = vrot.slane %v1820, 2
    %v1822 = vmax.f32 %v1820, %v1821
    %v1823 = vrot.slane %v1822, 1
    %v1824 = vmax.f32 %v1822, %v1823
    %v1825 = vsel %vm1628, %v1283, -inf
    %v1826 = vrot.slane %v1825, 4
    %v1827 = vmax.f32 %v1825, %v1826
    %v1828 = vrot.slane %v1827, 2
    %v1829 = vmax.f32 %v1827, %v1828
    %v1830 = vrot.slane %v1829, 1
    %v1831 = vmax.f32 %v1829, %v1830
    %v1832 = vsel %vm1628, %v1385, -inf
    %v1833 = vrot.slane %v1832, 4
    %v1834 = vmax.f32 %v1832, %v1833
    %v1835 = vrot.slane %v1834, 2
    %v1836 = vmax.f32 %v1834, %v1835
    %v1837 = vrot.slane %v1836, 1
    %v1838 = vmax.f32 %v1836, %v1837
    %v1839 = vsel %vm1628, %v1386, -inf
    %v1840 = vrot.slane %v1839, 4
    %v1841 = vmax.f32 %v1839, %v1840
    %v1842 = vrot.slane %v1841, 2
    %v1843 = vmax.f32 %v1841, %v1842
    %v1844 = vrot.slane %v1843, 1
    %v1845 = vmax.f32 %v1843, %v1844
    %v1846 = vsel %vm1628, %v1387, -inf
    %v1847 = vrot.slane %v1846, 4
    %v1848 = vmax.f32 %v1846, %v1847
    %v1849 = vrot.slane %v1848, 2
    %v1850 = vmax.f32 %v1848, %v1849
    %v1851 = vrot.slane %v1850, 1
    %v1852 = vmax.f32 %v1850, %v1851
    %v1853 = vsel %vm1628, %v1284, -inf
    %v1854 = vrot.slane %v1853, 4
    %v1855 = vmax.f32 %v1853, %v1854
    %v1856 = vrot.slane %v1855, 2
    %v1857 = vmax.f32 %v1855, %v1856
    %v1858 = vrot.slane %v1857, 1
    %v1859 = vmax.f32 %v1857, %v1858
    %v1860 = vsel %vm1628, %v1388, -inf
    %v1861 = vrot.slane %v1860, 4
    %v1862 = vmax.f32 %v1860, %v1861
    %v1863 = vrot.slane %v1862, 2
    %v1864 = vmax.f32 %v1862, %v1863
    %v1865 = vrot.slane %v1864, 1
    %v1866 = vmax.f32 %v1864, %v1865
    %v1867 = vsel %vm1628, %v1389, -inf
    %v1868 = vrot.slane %v1867, 4
    %v1869 = vmax.f32 %v1867, %v1868
    %v1870 = vrot.slane %v1869, 2
    %v1871 = vmax.f32 %v1869, %v1870
    %v1872 = vrot.slane %v1871, 1
    %v1873 = vmax.f32 %v1871, %v1872
    %v1874 = vsel %vm1628, %v1390, -inf
    %v1875 = vrot.slane %v1874, 4
    %v1876 = vmax.f32 %v1874, %v1875
    %v1877 = vrot.slane %v1876, 2
    %v1878 = vmax.f32 %v1876, %v1877
    %v1879 = vrot.slane %v1878, 1
    %v1880 = vmax.f32 %v1878, %v1879
    %v1881 = vsel %vm1628, %v1285, -inf
    %v1882 = vrot.slane %v1881, 4
    %v1883 = vmax.f32 %v1881, %v1882
    %v1884 = vrot.slane %v1883, 2
    %v1885 = vmax.f32 %v1883, %v1884
    %v1886 = vrot.slane %v1885, 1
    %v1887 = vmax.f32 %v1885, %v1886
    %v1888 = vsel %vm1628, %v1391, -inf
    %v1889 = vrot.slane %v1888, 4
    %v1890 = vmax.f32 %v1888, %v1889
    %v1891 = vrot.slane %v1890, 2
    %v1892 = vmax.f32 %v1890, %v1891
    %v1893 = vrot.slane %v1892, 1
    %v1894 = vmax.f32 %v1892, %v1893
    %v1895 = vsel %vm1628, %v1392, -inf
    %v1896 = vrot.slane %v1895, 4
    %v1897 = vmax.f32 %v1895, %v1896
    %v1898 = vrot.slane %v1897, 2
    %v1899 = vmax.f32 %v1897, %v1898
    %v1900 = vrot.slane %v1899, 1
    %v1901 = vmax.f32 %v1899, %v1900
    %v1902 = vsel %vm1628, %v1393, -inf
    %v1903 = vrot.slane %v1902, 4
    %v1904 = vmax.f32 %v1902, %v1903
    %v1905 = vrot.slane %v1904, 2
    %v1906 = vmax.f32 %v1904, %v1905
    %v1907 = vrot.slane %v1906, 1
    %v1908 = vmax.f32 %v1906, %v1907
    %v1909 = vsel %vm1628, %v1286, -inf
    %v1910 = vrot.slane %v1909, 4
    %v1911 = vmax.f32 %v1909, %v1910
    %v1912 = vrot.slane %v1911, 2
    %v1913 = vmax.f32 %v1911, %v1912
    %v1914 = vrot.slane %v1913, 1
    %v1915 = vmax.f32 %v1913, %v1914
    %v1916 = vsel %vm1628, %v1394, -inf
    %v1917 = vrot.slane %v1916, 4
    %v1918 = vmax.f32 %v1916, %v1917
    %v1919 = vrot.slane %v1918, 2
    %v1920 = vmax.f32 %v1918, %v1919
    %v1921 = vrot.slane %v1920, 1
    %v1922 = vmax.f32 %v1920, %v1921
    %v1923 = vsel %vm1628, %v1395, -inf
    %v1924 = vrot.slane %v1923, 4
    %v1925 = vmax.f32 %v1923, %v1924
    %v1926 = vrot.slane %v1925, 2
    %v1927 = vmax.f32 %v1925, %v1926
    %v1928 = vrot.slane %v1927, 1
    %v1929 = vmax.f32 %v1927, %v1928
    %v1930 = vsel %vm1628, %v1396, -inf
    %v1931 = vrot.slane %v1930, 4
    %v1932 = vmax.f32 %v1930, %v1931
    %v1933 = vrot.slane %v1932, 2
    %v1934 = vmax.f32 %v1932, %v1933
    %v1935 = vrot.slane %v1934, 1
    %v1936 = vmax.f32 %v1934, %v1935
    %v1937 = vsel %vm1628, %v1287, -inf
    %v1938 = vrot.slane %v1937, 4
    %v1939 = vmax.f32 %v1937, %v1938
    %v1940 = vrot.slane %v1939, 2
    %v1941 = vmax.f32 %v1939, %v1940
    %v1942 = vrot.slane %v1941, 1
    %v1943 = vmax.f32 %v1941, %v1942
    %v1944 = vsel %vm1628, %v1397, -inf
    %v1945 = vrot.slane %v1944, 4
    %v1946 = vmax.f32 %v1944, %v1945
    %v1947 = vrot.slane %v1946, 2
    %v1948 = vmax.f32 %v1946, %v1947
    %v1949 = vrot.slane %v1948, 1
    %v1950 = vmax.f32 %v1948, %v1949
    %v1951 = vsel %vm1628, %v1398, -inf
    %v1952 = vrot.slane %v1951, 4
    %v1953 = vmax.f32 %v1951, %v1952
    %v1954 = vrot.slane %v1953, 2
    %v1955 = vmax.f32 %v1953, %v1954
    %v1956 = vrot.slane %v1955, 1
    %v1957 = vmax.f32 %v1955, %v1956
    %v1958 = vsel %vm1628, %v1399, -inf
    %v1959 = vrot.slane %v1958, 4
    %v1960 = vmax.f32 %v1958, %v1959
    %v1961 = vrot.slane %v1960, 2
    %v1962 = vmax.f32 %v1960, %v1961
    %v1963 = vrot.slane %v1962, 1
    %v1964 = vmax.f32 %v1962, %v1963
    %v1965 = vsel %vm1628, %v1288, -inf
    %v1966 = vrot.slane %v1965, 4
    %v1967 = vmax.f32 %v1965, %v1966
    %v1968 = vrot.slane %v1967, 2
    %v1969 = vmax.f32 %v1967, %v1968
    %v1970 = vrot.slane %v1969, 1
    %v1971 = vmax.f32 %v1969, %v1970
    %v1972 = vsel %vm1628, %v1400, -inf
    %v1973 = vrot.slane %v1972, 4
    %v1974 = vmax.f32 %v1972, %v1973
    %v1975 = vrot.slane %v1974, 2
    %v1976 = vmax.f32 %v1974, %v1975
    %v1977 = vrot.slane %v1976, 1
    %v1978 = vmax.f32 %v1976, %v1977
    %v1979 = vsel %vm1628, %v1401, -inf
    %v1980 = vrot.slane %v1979, 4
    %v1981 = vmax.f32 %v1979, %v1980
    %v1982 = vrot.slane %v1981, 2
    %v1983 = vmax.f32 %v1981, %v1982
    %v1984 = vrot.slane %v1983, 1
    %v1985 = vmax.f32 %v1983, %v1984
    %v1986 = vsel %vm1628, %v1402, -inf
    %v1987 = vrot.slane %v1986, 4
    %v1988 = vmax.f32 %v1986, %v1987
    %v1989 = vrot.slane %v1988, 2
    %v1990 = vmax.f32 %v1988, %v1989
    %v1991 = vrot.slane %v1990, 1
    %v1992 = vmax.f32 %v1990, %v1991
    %v1993 = vsel %vm1628, %v1289, -inf
    %v1994 = vrot.slane %v1993, 4
    %v1995 = vmax.f32 %v1993, %v1994
    %v1996 = vrot.slane %v1995, 2
    %v1997 = vmax.f32 %v1995, %v1996
    %v1998 = vrot.slane %v1997, 1
    %v1999 = vmax.f32 %v1997, %v1998
    %v2000 = vsel %vm1628, %v1403, -inf
    %v2001 = vrot.slane %v2000, 4
    %v2002 = vmax.f32 %v2000, %v2001
    %v2003 = vrot.slane %v2002, 2
    %v2004 = vmax.f32 %v2002, %v2003
    %v2005 = vrot.slane %v2004, 1
    %v2006 = vmax.f32 %v2004, %v2005
    %v2007 = vsel %vm1628, %v1404, -inf
    %v2008 = vrot.slane %v2007, 4
    %v2009 = vmax.f32 %v2007, %v2008
    %v2010 = vrot.slane %v2009, 2
    %v2011 = vmax.f32 %v2009, %v2010
    %v2012 = vrot.slane %v2011, 1
    %v2013 = vmax.f32 %v2011, %v2012
    %v2014 = vsel %vm1628, %v1405, -inf
    %v2015 = vrot.slane %v2014, 4
    %v2016 = vmax.f32 %v2014, %v2015
    %v2017 = vrot.slane %v2016, 2
    %v2018 = vmax.f32 %v2016, %v2017
    %v2019 = vrot.slane %v2018, 1
    %v2020 = vmax.f32 %v2018, %v2019
    %v2021 = vsel %vm1628, %v1290, -inf
    %v2022 = vrot.slane %v2021, 4
    %v2023 = vmax.f32 %v2021, %v2022
    %v2024 = vrot.slane %v2023, 2
    %v2025 = vmax.f32 %v2023, %v2024
    %v2026 = vrot.slane %v2025, 1
    %v2027 = vmax.f32 %v2025, %v2026
    %v2028 = vsel %vm1628, %v1406, -inf
    %v2029 = vrot.slane %v2028, 4
    %v2030 = vmax.f32 %v2028, %v2029
    %v2031 = vrot.slane %v2030, 2
    %v2032 = vmax.f32 %v2030, %v2031
    %v2033 = vrot.slane %v2032, 1
    %v2034 = vmax.f32 %v2032, %v2033
    %v2035 = vsel %vm1628, %v1407, -inf
    %v2036 = vrot.slane %v2035, 4
    %v2037 = vmax.f32 %v2035, %v2036
    %v2038 = vrot.slane %v2037, 2
    %v2039 = vmax.f32 %v2037, %v2038
    %v2040 = vrot.slane %v2039, 1
    %v2041 = vmax.f32 %v2039, %v2040
    %v2042 = vsel %vm1628, %v1408, -inf
    %v2043 = vrot.slane %v2042, 4
    %v2044 = vmax.f32 %v2042, %v2043
    %v2045 = vrot.slane %v2044, 2
    %v2046 = vmax.f32 %v2044, %v2045
    %v2047 = vrot.slane %v2046, 1
    %v2048 = vmax.f32 %v2046, %v2047
    %v2049 = vsel %vm1628, %v1291, -inf
    %v2050 = vrot.slane %v2049, 4
    %v2051 = vmax.f32 %v2049, %v2050
    %v2052 = vrot.slane %v2051, 2
    %v2053 = vmax.f32 %v2051, %v2052
    %v2054 = vrot.slane %v2053, 1
    %v2055 = vmax.f32 %v2053, %v2054
    %v2056 = vsel %vm1628, %v1409, -inf
    %v2057 = vrot.slane %v2056, 4
    %v2058 = vmax.f32 %v2056, %v2057
    %v2059 = vrot.slane %v2058, 2
    %v2060 = vmax.f32 %v2058, %v2059
    %v2061 = vrot.slane %v2060, 1
    %v2062 = vmax.f32 %v2060, %v2061
    %v2063 = vsel %vm1628, %v1410, -inf
    %v2064 = vrot.slane %v2063, 4
    %v2065 = vmax.f32 %v2063, %v2064
    %v2066 = vrot.slane %v2065, 2
    %v2067 = vmax.f32 %v2065, %v2066
    %v2068 = vrot.slane %v2067, 1
    %v2069 = vmax.f32 %v2067, %v2068
    %v2070 = vsel %vm1628, %v1411, -inf
    %v2071 = vrot.slane %v2070, 4
    %v2072 = vmax.f32 %v2070, %v2071
    %v2073 = vrot.slane %v2072, 2
    %v2074 = vmax.f32 %v2072, %v2073
    %v2075 = vrot.slane %v2074, 1
    %v2076 = vmax.f32 %v2074, %v2075
    %v2077 = vsel %vm1628, %v1292, -inf
    %v2078 = vrot.slane %v2077, 4
    %v2079 = vmax.f32 %v2077, %v2078
    %v2080 = vrot.slane %v2079, 2
    %v2081 = vmax.f32 %v2079, %v2080
    %v2082 = vrot.slane %v2081, 1
    %v2083 = vmax.f32 %v2081, %v2082
    %v2084 = vsel %vm1628, %v1412, -inf
    %v2085 = vrot.slane %v2084, 4
    %v2086 = vmax.f32 %v2084, %v2085
    %v2087 = vrot.slane %v2086, 2
    %v2088 = vmax.f32 %v2086, %v2087
    %v2089 = vrot.slane %v2088, 1
    %v2090 = vmax.f32 %v2088, %v2089
    %v2091 = vsel %vm1628, %v1413, -inf
    %v2092 = vrot.slane %v2091, 4
    %v2093 = vmax.f32 %v2091, %v2092
    %v2094 = vrot.slane %v2093, 2
    %v2095 = vmax.f32 %v2093, %v2094
    %v2096 = vrot.slane %v2095, 1
    %v2097 = vmax.f32 %v2095, %v2096
    %v2098 = vsel %vm1628, %v1414, -inf
    %v2099 = vrot.slane %v2098, 4
    %v2100 = vmax.f32 %v2098, %v2099
    %v2101 = vrot.slane %v2100, 2
    %v2102 = vmax.f32 %v2100, %v2101
    %v2103 = vrot.slane %v2102, 1
    %v2104 = vmax.f32 %v2102, %v2103
    %v2105 = vsel %vm1628, %v1293, -inf
    %v2106 = vrot.slane %v2105, 4
    %v2107 = vmax.f32 %v2105, %v2106
    %v2108 = vrot.slane %v2107, 2
    %v2109 = vmax.f32 %v2107, %v2108
    %v2110 = vrot.slane %v2109, 1
    %v2111 = vmax.f32 %v2109, %v2110
    %v2112 = vsel %vm1628, %v1415, -inf
    %v2113 = vrot.slane %v2112, 4
    %v2114 = vmax.f32 %v2112, %v2113
    %v2115 = vrot.slane %v2114, 2
    %v2116 = vmax.f32 %v2114, %v2115
    %v2117 = vrot.slane %v2116, 1
    %v2118 = vmax.f32 %v2116, %v2117
    %v2119 = vsel %vm1628, %v1416, -inf
    %v2120 = vrot.slane %v2119, 4
    %v2121 = vmax.f32 %v2119, %v2120
    %v2122 = vrot.slane %v2121, 2
    %v2123 = vmax.f32 %v2121, %v2122
    %v2124 = vrot.slane %v2123, 1
    %v2125 = vmax.f32 %v2123, %v2124
    %v2126 = vsel %vm1628, %v1417, -inf
    %v2127 = vrot.slane %v2126, 4
    %v2128 = vmax.f32 %v2126, %v2127
    %v2129 = vrot.slane %v2128, 2
    %v2130 = vmax.f32 %v2128, %v2129
    %v2131 = vrot.slane %v2130, 1
    %v2132 = vmax.f32 %v2130, %v2131
    %v2133 = vsel %vm1628, %v1294, -inf
    %v2134 = vrot.slane %v2133, 4
    %v2135 = vmax.f32 %v2133, %v2134
    %v2136 = vrot.slane %v2135, 2
    %v2137 = vmax.f32 %v2135, %v2136
    %v2138 = vrot.slane %v2137, 1
    %v2139 = vmax.f32 %v2137, %v2138
    %v2140 = vsel %vm1628, %v1418, -inf
    %v2141 = vrot.slane %v2140, 4
    %v2142 = vmax.f32 %v2140, %v2141
    %v2143 = vrot.slane %v2142, 2
    %v2144 = vmax.f32 %v2142, %v2143
    %v2145 = vrot.slane %v2144, 1
    %v2146 = vmax.f32 %v2144, %v2145
    %v2147 = vsel %vm1628, %v1419, -inf
    %v2148 = vrot.slane %v2147, 4
    %v2149 = vmax.f32 %v2147, %v2148
    %v2150 = vrot.slane %v2149, 2
    %v2151 = vmax.f32 %v2149, %v2150
    %v2152 = vrot.slane %v2151, 1
    %v2153 = vmax.f32 %v2151, %v2152
    %v2154 = vsel %vm1628, %v1420, -inf
    %v2155 = vrot.slane %v2154, 4
    %v2156 = vmax.f32 %v2154, %v2155
    %v2157 = vrot.slane %v2156, 2
    %v2158 = vmax.f32 %v2156, %v2157
    %v2159 = vrot.slane %v2158, 1
    %v2160 = vmax.f32 %v2158, %v2159
    %v2161 = vsel %vm1628, %v1295, -inf
    %v2162 = vrot.slane %v2161, 4
    %v2163 = vmax.f32 %v2161, %v2162
    %v2164 = vrot.slane %v2163, 2
    %v2165 = vmax.f32 %v2163, %v2164
    %v2166 = vrot.slane %v2165, 1
    %v2167 = vmax.f32 %v2165, %v2166
    %v2168 = vsel %vm1628, %v1421, -inf
    %v2169 = vrot.slane %v2168, 4
    %v2170 = vmax.f32 %v2168, %v2169
    %v2171 = vrot.slane %v2170, 2
    %v2172 = vmax.f32 %v2170, %v2171
    %v2173 = vrot.slane %v2172, 1
    %v2174 = vmax.f32 %v2172, %v2173
    %v2175 = vsel %vm1628, %v1422, -inf
    %v2176 = vrot.slane %v2175, 4
    %v2177 = vmax.f32 %v2175, %v2176
    %v2178 = vrot.slane %v2177, 2
    %v2179 = vmax.f32 %v2177, %v2178
    %v2180 = vrot.slane %v2179, 1
    %v2181 = vmax.f32 %v2179, %v2180
    %v2182 = vsel %vm1628, %v1423, -inf
    %v2183 = vrot.slane %v2182, 4
    %v2184 = vmax.f32 %v2182, %v2183
    %v2185 = vrot.slane %v2184, 2
    %v2186 = vmax.f32 %v2184, %v2185
    %v2187 = vrot.slane %v2186, 1
    %v2188 = vmax.f32 %v2186, %v2187
    %v2189 = vsel %vm1628, %v1296, -inf
    %v2190 = vrot.slane %v2189, 4
    %v2191 = vmax.f32 %v2189, %v2190
    %v2192 = vrot.slane %v2191, 2
    %v2193 = vmax.f32 %v2191, %v2192
    %v2194 = vrot.slane %v2193, 1
    %v2195 = vmax.f32 %v2193, %v2194
    %v2196 = vsel %vm1628, %v1424, -inf
    %v2197 = vrot.slane %v2196, 4
    %v2198 = vmax.f32 %v2196, %v2197
    %v2199 = vrot.slane %v2198, 2
    %v2200 = vmax.f32 %v2198, %v2199
    %v2201 = vrot.slane %v2200, 1
    %v2202 = vmax.f32 %v2200, %v2201
    %v2203 = vsel %vm1628, %v1425, -inf
    %v2204 = vrot.slane %v2203, 4
    %v2205 = vmax.f32 %v2203, %v2204
    %v2206 = vrot.slane %v2205, 2
    %v2207 = vmax.f32 %v2205, %v2206
    %v2208 = vrot.slane %v2207, 1
    %v2209 = vmax.f32 %v2207, %v2208
    %v2210 = vsel %vm1628, %v1426, -inf
    %v2211 = vrot.slane %v2210, 4
    %v2212 = vmax.f32 %v2210, %v2211
    %v2213 = vrot.slane %v2212, 2
    %v2214 = vmax.f32 %v2212, %v2213
    %v2215 = vrot.slane %v2214, 1
    %v2216 = vmax.f32 %v2214, %v2215
    %v2217 = vsel %vm1628, %v1297, -inf
    %v2218 = vrot.slane %v2217, 4
    %v2219 = vmax.f32 %v2217, %v2218
    %v2220 = vrot.slane %v2219, 2
    %v2221 = vmax.f32 %v2219, %v2220
    %v2222 = vrot.slane %v2221, 1
    %v2223 = vmax.f32 %v2221, %v2222
    %v2224 = vsel %vm1628, %v1427, -inf
    %v2225 = vrot.slane %v2224, 4
    %v2226 = vmax.f32 %v2224, %v2225
    %v2227 = vrot.slane %v2226, 2
    %v2228 = vmax.f32 %v2226, %v2227
    %v2229 = vrot.slane %v2228, 1
    %v2230 = vmax.f32 %v2228, %v2229
    %v2231 = vsel %vm1628, %v1428, -inf
    %v2232 = vrot.slane %v2231, 4
    %v2233 = vmax.f32 %v2231, %v2232
    %v2234 = vrot.slane %v2233, 2
    %v2235 = vmax.f32 %v2233, %v2234
    %v2236 = vrot.slane %v2235, 1
    %v2237 = vmax.f32 %v2235, %v2236
    %v2238 = vsel %vm1628, %v1429, -inf
    %v2239 = vrot.slane %v2238, 4
    %v2240 = vmax.f32 %v2238, %v2239
    %v2241 = vrot.slane %v2240, 2
    %v2242 = vmax.f32 %v2240, %v2241
    %v2243 = vrot.slane %v2242, 1
    %v2244 = vmax.f32 %v2242, %v2243
    %v2245 = vsel %vm1628, %v1298, -inf
    %v2246 = vrot.slane %v2245, 4
    %v2247 = vmax.f32 %v2245, %v2246
    %v2248 = vrot.slane %v2247, 2
    %v2249 = vmax.f32 %v2247, %v2248
    %v2250 = vrot.slane %v2249, 1
    %v2251 = vmax.f32 %v2249, %v2250
    %v2252 = vsel %vm1628, %v1430, -inf
    %v2253 = vrot.slane %v2252, 4
    %v2254 = vmax.f32 %v2252, %v2253
    %v2255 = vrot.slane %v2254, 2
    %v2256 = vmax.f32 %v2254, %v2255
    %v2257 = vrot.slane %v2256, 1
    %v2258 = vmax.f32 %v2256, %v2257
    %v2259 = vsel %vm1628, %v1431, -inf
    %v2260 = vrot.slane %v2259, 4
    %v2261 = vmax.f32 %v2259, %v2260
    %v2262 = vrot.slane %v2261, 2
    %v2263 = vmax.f32 %v2261, %v2262
    %v2264 = vrot.slane %v2263, 1
    %v2265 = vmax.f32 %v2263, %v2264
    %v2266 = vsel %vm1628, %v1432, -inf
    %v2267 = vrot.slane %v2266, 4
    %v2268 = vmax.f32 %v2266, %v2267
    %v2269 = vrot.slane %v2268, 2
    %v2270 = vmax.f32 %v2268, %v2269
    %v2271 = vrot.slane %v2270, 1
    %v2272 = vmax.f32 %v2270, %v2271
    %v2273 = vsel %vm1628, %v1299, -inf
    %v2274 = vrot.slane %v2273, 4
    %v2275 = vmax.f32 %v2273, %v2274
    %v2276 = vrot.slane %v2275, 2
    %v2277 = vmax.f32 %v2275, %v2276
    %v2278 = vrot.slane %v2277, 1
    %v2279 = vmax.f32 %v2277, %v2278
    %v2280 = vsel %vm1628, %v1433, -inf
    %v2281 = vrot.slane %v2280, 4
    %v2282 = vmax.f32 %v2280, %v2281
    %v2283 = vrot.slane %v2282, 2
    %v2284 = vmax.f32 %v2282, %v2283
    %v2285 = vrot.slane %v2284, 1
    %v2286 = vmax.f32 %v2284, %v2285
    %v2287 = vsel %vm1628, %v1434, -inf
    %v2288 = vrot.slane %v2287, 4
    %v2289 = vmax.f32 %v2287, %v2288
    %v2290 = vrot.slane %v2289, 2
    %v2291 = vmax.f32 %v2289, %v2290
    %v2292 = vrot.slane %v2291, 1
    %v2293 = vmax.f32 %v2291, %v2292
    %v2294 = vsel %vm1628, %v1435, -inf
    %v2295 = vrot.slane %v2294, 4
    %v2296 = vmax.f32 %v2294, %v2295
    %v2297 = vrot.slane %v2296, 2
    %v2298 = vmax.f32 %v2296, %v2297
    %v2299 = vrot.slane %v2298, 1
    %v2300 = vmax.f32 %v2298, %v2299
    %v2301 = vsel %vm1628, %v1300, -inf
    %v2302 = vrot.slane %v2301, 4
    %v2303 = vmax.f32 %v2301, %v2302
    %v2304 = vrot.slane %v2303, 2
    %v2305 = vmax.f32 %v2303, %v2304
    %v2306 = vrot.slane %v2305, 1
    %v2307 = vmax.f32 %v2305, %v2306
    %v2308 = vsel %vm1628, %v1436, -inf
    %v2309 = vrot.slane %v2308, 4
    %v2310 = vmax.f32 %v2308, %v2309
    %v2311 = vrot.slane %v2310, 2
    %v2312 = vmax.f32 %v2310, %v2311
    %v2313 = vrot.slane %v2312, 1
    %v2314 = vmax.f32 %v2312, %v2313
    %v2315 = vsel %vm1628, %v1437, -inf
    %v2316 = vrot.slane %v2315, 4
    %v2317 = vmax.f32 %v2315, %v2316
    %v2318 = vrot.slane %v2317, 2
    %v2319 = vmax.f32 %v2317, %v2318
    %v2320 = vrot.slane %v2319, 1
    %v2321 = vmax.f32 %v2319, %v2320
    %v2322 = vsel %vm1628, %v1438, -inf
    %v2323 = vrot.slane %v2322, 4
    %v2324 = vmax.f32 %v2322, %v2323
    %v2325 = vrot.slane %v2324, 2
    %v2326 = vmax.f32 %v2324, %v2325
    %v2327 = vrot.slane %v2326, 1
    %v2328 = vmax.f32 %v2326, %v2327
    %v2329 = vsel %vm1628, %v1301, -inf
    %v2330 = vrot.slane %v2329, 4
    %v2331 = vmax.f32 %v2329, %v2330
    %v2332 = vrot.slane %v2331, 2
    %v2333 = vmax.f32 %v2331, %v2332
    %v2334 = vrot.slane %v2333, 1
    %v2335 = vmax.f32 %v2333, %v2334
    %v2336 = vsel %vm1628, %v1439, -inf
    %v2337 = vrot.slane %v2336, 4
    %v2338 = vmax.f32 %v2336, %v2337
    %v2339 = vrot.slane %v2338, 2
    %v2340 = vmax.f32 %v2338, %v2339
    %v2341 = vrot.slane %v2340, 1
    %v2342 = vmax.f32 %v2340, %v2341
    %v2343 = vsel %vm1628, %v1440, -inf
    %v2344 = vrot.slane %v2343, 4
    %v2345 = vmax.f32 %v2343, %v2344
    %v2346 = vrot.slane %v2345, 2
    %v2347 = vmax.f32 %v2345, %v2346
    %v2348 = vrot.slane %v2347, 1
    %v2349 = vmax.f32 %v2347, %v2348
    %v2350 = vsel %vm1628, %v1441, -inf
    %v2351 = vrot.slane %v2350, 4
    %v2352 = vmax.f32 %v2350, %v2351
    %v2353 = vrot.slane %v2352, 2
    %v2354 = vmax.f32 %v2352, %v2353
    %v2355 = vrot.slane %v2354, 1
    %v2356 = vmax.f32 %v2354, %v2355
    %v2357 = vsel %vm1628, %v1302, -inf
    %v2358 = vrot.slane %v2357, 4
    %v2359 = vmax.f32 %v2357, %v2358
    %v2360 = vrot.slane %v2359, 2
    %v2361 = vmax.f32 %v2359, %v2360
    %v2362 = vrot.slane %v2361, 1
    %v2363 = vmax.f32 %v2361, %v2362
    %v2364 = vsel %vm1628, %v1442, -inf
    %v2365 = vrot.slane %v2364, 4
    %v2366 = vmax.f32 %v2364, %v2365
    %v2367 = vrot.slane %v2366, 2
    %v2368 = vmax.f32 %v2366, %v2367
    %v2369 = vrot.slane %v2368, 1
    %v2370 = vmax.f32 %v2368, %v2369
    %v2371 = vsel %vm1628, %v1443, -inf
    %v2372 = vrot.slane %v2371, 4
    %v2373 = vmax.f32 %v2371, %v2372
    %v2374 = vrot.slane %v2373, 2
    %v2375 = vmax.f32 %v2373, %v2374
    %v2376 = vrot.slane %v2375, 1
    %v2377 = vmax.f32 %v2375, %v2376
    %v2378 = vsel %vm1628, %v1444, -inf
    %v2379 = vrot.slane %v2378, 4
    %v2380 = vmax.f32 %v2378, %v2379
    %v2381 = vrot.slane %v2380, 2
    %v2382 = vmax.f32 %v2380, %v2381
    %v2383 = vrot.slane %v2382, 1
    %v2384 = vmax.f32 %v2382, %v2383
    %v2385 = vsel %vm1628, %v1303, -inf
    %v2386 = vrot.slane %v2385, 4
    %v2387 = vmax.f32 %v2385, %v2386
    %v2388 = vrot.slane %v2387, 2
    %v2389 = vmax.f32 %v2387, %v2388
    %v2390 = vrot.slane %v2389, 1
    %v2391 = vmax.f32 %v2389, %v2390
    %v2392 = vsel %vm1628, %v1445, -inf
    %v2393 = vrot.slane %v2392, 4
    %v2394 = vmax.f32 %v2392, %v2393
    %v2395 = vrot.slane %v2394, 2
    %v2396 = vmax.f32 %v2394, %v2395
    %v2397 = vrot.slane %v2396, 1
    %v2398 = vmax.f32 %v2396, %v2397
    %v2399 = vsel %vm1628, %v1446, -inf
    %v2400 = vrot.slane %v2399, 4
    %v2401 = vmax.f32 %v2399, %v2400
    %v2402 = vrot.slane %v2401, 2
    %v2403 = vmax.f32 %v2401, %v2402
    %v2404 = vrot.slane %v2403, 1
    %v2405 = vmax.f32 %v2403, %v2404
    %v2406 = vsel %vm1628, %v1447, -inf
    %v2407 = vrot.slane %v2406, 4
    %v2408 = vmax.f32 %v2406, %v2407
    %v2409 = vrot.slane %v2408, 2
    %v2410 = vmax.f32 %v2408, %v2409
    %v2411 = vrot.slane %v2410, 1
    %v2412 = vmax.f32 %v2410, %v2411
    %v2413 = vsel %vm1628, %v1304, -inf
    %v2414 = vrot.slane %v2413, 4
    %v2415 = vmax.f32 %v2413, %v2414
    %v2416 = vrot.slane %v2415, 2
    %v2417 = vmax.f32 %v2415, %v2416
    %v2418 = vrot.slane %v2417, 1
    %v2419 = vmax.f32 %v2417, %v2418
    %v2420 = vsel %vm1628, %v1448, -inf
    %v2421 = vrot.slane %v2420, 4
    %v2422 = vmax.f32 %v2420, %v2421
    %v2423 = vrot.slane %v2422, 2
    %v2424 = vmax.f32 %v2422, %v2423
    %v2425 = vrot.slane %v2424, 1
    %v2426 = vmax.f32 %v2424, %v2425
    %v2427 = vsel %vm1628, %v1449, -inf
    %v2428 = vrot.slane %v2427, 4
    %v2429 = vmax.f32 %v2427, %v2428
    %v2430 = vrot.slane %v2429, 2
    %v2431 = vmax.f32 %v2429, %v2430
    %v2432 = vrot.slane %v2431, 1
    %v2433 = vmax.f32 %v2431, %v2432
    %v2434 = vsel %vm1628, %v1450, -inf
    %v2435 = vrot.slane %v2434, 4
    %v2436 = vmax.f32 %v2434, %v2435
    %v2437 = vrot.slane %v2436, 2
    %v2438 = vmax.f32 %v2436, %v2437
    %v2439 = vrot.slane %v2438, 1
    %v2440 = vmax.f32 %v2438, %v2439
    %v2441 = vsel %vm1628, %v1305, -inf
    %v2442 = vrot.slane %v2441, 4
    %v2443 = vmax.f32 %v2441, %v2442
    %v2444 = vrot.slane %v2443, 2
    %v2445 = vmax.f32 %v2443, %v2444
    %v2446 = vrot.slane %v2445, 1
    %v2447 = vmax.f32 %v2445, %v2446
    %v2448 = vsel %vm1628, %v1451, -inf
    %v2449 = vrot.slane %v2448, 4
    %v2450 = vmax.f32 %v2448, %v2449
    %v2451 = vrot.slane %v2450, 2
    %v2452 = vmax.f32 %v2450, %v2451
    %v2453 = vrot.slane %v2452, 1
    %v2454 = vmax.f32 %v2452, %v2453
    %v2455 = vsel %vm1628, %v1452, -inf
    %v2456 = vrot.slane %v2455, 4
    %v2457 = vmax.f32 %v2455, %v2456
    %v2458 = vrot.slane %v2457, 2
    %v2459 = vmax.f32 %v2457, %v2458
    %v2460 = vrot.slane %v2459, 1
    %v2461 = vmax.f32 %v2459, %v2460
    %v2462 = vsel %vm1628, %v1453, -inf
    %v2463 = vrot.slane %v2462, 4
    %v2464 = vmax.f32 %v2462, %v2463
    %v2465 = vrot.slane %v2464, 2
    %v2466 = vmax.f32 %v2464, %v2465
    %v2467 = vrot.slane %v2466, 1
    %v2468 = vmax.f32 %v2466, %v2467
    %v2469 = vsel %vm1628, %v1306, -inf
    %v2470 = vrot.slane %v2469, 4
    %v2471 = vmax.f32 %v2469, %v2470
    %v2472 = vrot.slane %v2471, 2
    %v2473 = vmax.f32 %v2471, %v2472
    %v2474 = vrot.slane %v2473, 1
    %v2475 = vmax.f32 %v2473, %v2474
    %v2476 = vsel %vm1628, %v1454, -inf
    %v2477 = vrot.slane %v2476, 4
    %v2478 = vmax.f32 %v2476, %v2477
    %v2479 = vrot.slane %v2478, 2
    %v2480 = vmax.f32 %v2478, %v2479
    %v2481 = vrot.slane %v2480, 1
    %v2482 = vmax.f32 %v2480, %v2481
    %v2483 = vsel %vm1628, %v1455, -inf
    %v2484 = vrot.slane %v2483, 4
    %v2485 = vmax.f32 %v2483, %v2484
    %v2486 = vrot.slane %v2485, 2
    %v2487 = vmax.f32 %v2485, %v2486
    %v2488 = vrot.slane %v2487, 1
    %v2489 = vmax.f32 %v2487, %v2488
    %v2490 = vsel %vm1628, %v1456, -inf
    %v2491 = vrot.slane %v2490, 4
    %v2492 = vmax.f32 %v2490, %v2491
    %v2493 = vrot.slane %v2492, 2
    %v2494 = vmax.f32 %v2492, %v2493
    %v2495 = vrot.slane %v2494, 1
    %v2496 = vmax.f32 %v2494, %v2495
    %v2497 = vsel %vm1628, %v1307, -inf
    %v2498 = vrot.slane %v2497, 4
    %v2499 = vmax.f32 %v2497, %v2498
    %v2500 = vrot.slane %v2499, 2
    %v2501 = vmax.f32 %v2499, %v2500
    %v2502 = vrot.slane %v2501, 1
    %v2503 = vmax.f32 %v2501, %v2502
    %v2504 = vsel %vm1628, %v1457, -inf
    %v2505 = vrot.slane %v2504, 4
    %v2506 = vmax.f32 %v2504, %v2505
    %v2507 = vrot.slane %v2506, 2
    %v2508 = vmax.f32 %v2506, %v2507
    %v2509 = vrot.slane %v2508, 1
    %v2510 = vmax.f32 %v2508, %v2509
    %v2511 = vsel %vm1628, %v1458, -inf
    %v2512 = vrot.slane %v2511, 4
    %v2513 = vmax.f32 %v2511, %v2512
    %v2514 = vrot.slane %v2513, 2
    %v2515 = vmax.f32 %v2513, %v2514
    %v2516 = vrot.slane %v2515, 1
    %v2517 = vmax.f32 %v2515, %v2516
    %v2518 = vsel %vm1628, %v1459, -inf
    %v2519 = vrot.slane %v2518, 4
    %v2520 = vmax.f32 %v2518, %v2519
    %v2521 = vrot.slane %v2520, 2
    %v2522 = vmax.f32 %v2520, %v2521
    %v2523 = vrot.slane %v2522, 1
    %v2524 = vmax.f32 %v2522, %v2523
    %v2525 = vsel %vm1628, %v1308, -inf
    %v2526 = vrot.slane %v2525, 4
    %v2527 = vmax.f32 %v2525, %v2526
    %v2528 = vrot.slane %v2527, 2
    %v2529 = vmax.f32 %v2527, %v2528
    %v2530 = vrot.slane %v2529, 1
    %v2531 = vmax.f32 %v2529, %v2530
    %v2532 = vsel %vm1628, %v1460, -inf
    %v2533 = vrot.slane %v2532, 4
    %v2534 = vmax.f32 %v2532, %v2533
    %v2535 = vrot.slane %v2534, 2
    %v2536 = vmax.f32 %v2534, %v2535
    %v2537 = vrot.slane %v2536, 1
    %v2538 = vmax.f32 %v2536, %v2537
    %v2539 = vsel %vm1628, %v1461, -inf
    %v2540 = vrot.slane %v2539, 4
    %v2541 = vmax.f32 %v2539, %v2540
    %v2542 = vrot.slane %v2541, 2
    %v2543 = vmax.f32 %v2541, %v2542
    %v2544 = vrot.slane %v2543, 1
    %v2545 = vmax.f32 %v2543, %v2544
    %v2546 = vsel %vm1628, %v1462, -inf
    %v2547 = vrot.slane %v2546, 4
    %v2548 = vmax.f32 %v2546, %v2547
    %v2549 = vrot.slane %v2548, 2
    %v2550 = vmax.f32 %v2548, %v2549
    %v2551 = vrot.slane %v2550, 1
    %v2552 = vmax.f32 %v2550, %v2551
    %v2553 = vsel %vm1628, %v1309, -inf
    %v2554 = vrot.slane %v2553, 4
    %v2555 = vmax.f32 %v2553, %v2554
    %v2556 = vrot.slane %v2555, 2
    %v2557 = vmax.f32 %v2555, %v2556
    %v2558 = vrot.slane %v2557, 1
    %v2559 = vmax.f32 %v2557, %v2558
    %v2560 = vsel %vm1628, %v1463, -inf
    %v2561 = vrot.slane %v2560, 4
    %v2562 = vmax.f32 %v2560, %v2561
    %v2563 = vrot.slane %v2562, 2
    %v2564 = vmax.f32 %v2562, %v2563
    %v2565 = vrot.slane %v2564, 1
    %v2566 = vmax.f32 %v2564, %v2565
    %v2567 = vsel %vm1628, %v1464, -inf
    %v2568 = vrot.slane %v2567, 4
    %v2569 = vmax.f32 %v2567, %v2568
    %v2570 = vrot.slane %v2569, 2
    %v2571 = vmax.f32 %v2569, %v2570
    %v2572 = vrot.slane %v2571, 1
    %v2573 = vmax.f32 %v2571, %v2572
    %v2574 = vsel %vm1628, %v1465, -inf
    %v2575 = vrot.slane %v2574, 4
    %v2576 = vmax.f32 %v2574, %v2575
    %v2577 = vrot.slane %v2576, 2
    %v2578 = vmax.f32 %v2576, %v2577
    %v2579 = vrot.slane %v2578, 1
    %v2580 = vmax.f32 %v2578, %v2579
    %v2581 = vsel %vm1628, %v1310, -inf
    %v2582 = vrot.slane %v2581, 4
    %v2583 = vmax.f32 %v2581, %v2582
    %v2584 = vrot.slane %v2583, 2
    %v2585 = vmax.f32 %v2583, %v2584
    %v2586 = vrot.slane %v2585, 1
    %v2587 = vmax.f32 %v2585, %v2586
    %v2588 = vsel %vm1628, %v1466, -inf
    %v2589 = vrot.slane %v2588, 4
    %v2590 = vmax.f32 %v2588, %v2589
    %v2591 = vrot.slane %v2590, 2
    %v2592 = vmax.f32 %v2590, %v2591
    %v2593 = vrot.slane %v2592, 1
    %v2594 = vmax.f32 %v2592, %v2593
    %v2595 = vsel %vm1628, %v1467, -inf
    %v2596 = vrot.slane %v2595, 4
    %v2597 = vmax.f32 %v2595, %v2596
    %v2598 = vrot.slane %v2597, 2
    %v2599 = vmax.f32 %v2597, %v2598
    %v2600 = vrot.slane %v2599, 1
    %v2601 = vmax.f32 %v2599, %v2600
    %v2602 = vsel %vm1628, %v1468, -inf
    %v2603 = vrot.slane %v2602, 4
    %v2604 = vmax.f32 %v2602, %v2603
    %v2605 = vrot.slane %v2604, 2
    %v2606 = vmax.f32 %v2604, %v2605
    %v2607 = vrot.slane %v2606, 1
    %v2608 = vmax.f32 %v2606, %v2607
    %v2609 = vsel %vm1628, %v1311, -inf
    %v2610 = vrot.slane %v2609, 4
    %v2611 = vmax.f32 %v2609, %v2610
    %v2612 = vrot.slane %v2611, 2
    %v2613 = vmax.f32 %v2611, %v2612
    %v2614 = vrot.slane %v2613, 1
    %v2615 = vmax.f32 %v2613, %v2614
    %v2616 = vsel %vm1628, %v1469, -inf
    %v2617 = vrot.slane %v2616, 4
    %v2618 = vmax.f32 %v2616, %v2617
    %v2619 = vrot.slane %v2618, 2
    %v2620 = vmax.f32 %v2618, %v2619
    %v2621 = vrot.slane %v2620, 1
    %v2622 = vmax.f32 %v2620, %v2621
    %v2623 = vsel %vm1628, %v1470, -inf
    %v2624 = vrot.slane %v2623, 4
    %v2625 = vmax.f32 %v2623, %v2624
    %v2626 = vrot.slane %v2625, 2
    %v2627 = vmax.f32 %v2625, %v2626
    %v2628 = vrot.slane %v2627, 1
    %v2629 = vmax.f32 %v2627, %v2628
    %v2630 = vsel %vm1628, %v1471, -inf
    %v2631 = vrot.slane %v2630, 4
    %v2632 = vmax.f32 %v2630, %v2631
    %v2633 = vrot.slane %v2632, 2
    %v2634 = vmax.f32 %v2632, %v2633
    %v2635 = vrot.slane %v2634, 1
    %v2636 = vmax.f32 %v2634, %v2635
    %v2637 = vsel %vm1628, %v1312, -inf
    %v2638 = vrot.slane %v2637, 4
    %v2639 = vmax.f32 %v2637, %v2638
    %v2640 = vrot.slane %v2639, 2
    %v2641 = vmax.f32 %v2639, %v2640
    %v2642 = vrot.slane %v2641, 1
    %v2643 = vmax.f32 %v2641, %v2642
    %v2644 = vsel %vm1628, %v1472, -inf
    %v2645 = vrot.slane %v2644, 4
    %v2646 = vmax.f32 %v2644, %v2645
    %v2647 = vrot.slane %v2646, 2
    %v2648 = vmax.f32 %v2646, %v2647
    %v2649 = vrot.slane %v2648, 1
    %v2650 = vmax.f32 %v2648, %v2649
    %v2651 = vsel %vm1628, %v1473, -inf
    %v2652 = vrot.slane %v2651, 4
    %v2653 = vmax.f32 %v2651, %v2652
    %v2654 = vrot.slane %v2653, 2
    %v2655 = vmax.f32 %v2653, %v2654
    %v2656 = vrot.slane %v2655, 1
    %v2657 = vmax.f32 %v2655, %v2656
    %v2658 = vsel %vm1628, %v1474, -inf
    %v2659 = vrot.slane %v2658, 4
    %v2660 = vmax.f32 %v2658, %v2659
    %v2661 = vrot.slane %v2660, 2
    %v2662 = vmax.f32 %v2660, %v2661
    %v2663 = vrot.slane %v2662, 1
    %v2664 = vmax.f32 %v2662, %v2663
    %v2665 = vsel %vm1628, %v1313, -inf
    %v2666 = vrot.slane %v2665, 4
    %v2667 = vmax.f32 %v2665, %v2666
    %v2668 = vrot.slane %v2667, 2
    %v2669 = vmax.f32 %v2667, %v2668
    %v2670 = vrot.slane %v2669, 1
    %v2671 = vmax.f32 %v2669, %v2670
    %v2672 = vsel %vm1628, %v1475, -inf
    %v2673 = vrot.slane %v2672, 4
    %v2674 = vmax.f32 %v2672, %v2673
    %v2675 = vrot.slane %v2674, 2
    %v2676 = vmax.f32 %v2674, %v2675
    %v2677 = vrot.slane %v2676, 1
    %v2678 = vmax.f32 %v2676, %v2677
    %v2679 = vsel %vm1628, %v1476, -inf
    %v2680 = vrot.slane %v2679, 4
    %v2681 = vmax.f32 %v2679, %v2680
    %v2682 = vrot.slane %v2681, 2
    %v2683 = vmax.f32 %v2681, %v2682
    %v2684 = vrot.slane %v2683, 1
    %v2685 = vmax.f32 %v2683, %v2684
    %v2686 = vsel %vm1628, %v1477, -inf
    %v2687 = vrot.slane %v2686, 4
    %v2688 = vmax.f32 %v2686, %v2687
    %v2689 = vrot.slane %v2688, 2
    %v2690 = vmax.f32 %v2688, %v2689
    %v2691 = vrot.slane %v2690, 1
    %v2692 = vmax.f32 %v2690, %v2691
    %v2693 = vsel %vm1628, %v1314, -inf
    %v2694 = vrot.slane %v2693, 4
    %v2695 = vmax.f32 %v2693, %v2694
    %v2696 = vrot.slane %v2695, 2
    %v2697 = vmax.f32 %v2695, %v2696
    %v2698 = vrot.slane %v2697, 1
    %v2699 = vmax.f32 %v2697, %v2698
    %v2700 = vsel %vm1628, %v1478, -inf
    %v2701 = vrot.slane %v2700, 4
    %v2702 = vmax.f32 %v2700, %v2701
    %v2703 = vrot.slane %v2702, 2
    %v2704 = vmax.f32 %v2702, %v2703
    %v2705 = vrot.slane %v2704, 1
    %v2706 = vmax.f32 %v2704, %v2705
    %v2707 = vsel %vm1628, %v1479, -inf
    %v2708 = vrot.slane %v2707, 4
    %v2709 = vmax.f32 %v2707, %v2708
    %v2710 = vrot.slane %v2709, 2
    %v2711 = vmax.f32 %v2709, %v2710
    %v2712 = vrot.slane %v2711, 1
    %v2713 = vmax.f32 %v2711, %v2712
    %v2714 = vsel %vm1628, %v1480, -inf
    %v2715 = vrot.slane %v2714, 4
    %v2716 = vmax.f32 %v2714, %v2715
    %v2717 = vrot.slane %v2716, 2
    %v2718 = vmax.f32 %v2716, %v2717
    %v2719 = vrot.slane %v2718, 1
    %v2720 = vmax.f32 %v2718, %v2719
    %v2721 = vsel %vm1628, %v1315, -inf
    %v2722 = vrot.slane %v2721, 4
    %v2723 = vmax.f32 %v2721, %v2722
    %v2724 = vrot.slane %v2723, 2
    %v2725 = vmax.f32 %v2723, %v2724
    %v2726 = vrot.slane %v2725, 1
    %v2727 = vmax.f32 %v2725, %v2726
    %v2728 = vsel %vm1628, %v1481, -inf
    %v2729 = vrot.slane %v2728, 4
    %v2730 = vmax.f32 %v2728, %v2729
    %v2731 = vrot.slane %v2730, 2
    %v2732 = vmax.f32 %v2730, %v2731
    %v2733 = vrot.slane %v2732, 1
    %v2734 = vmax.f32 %v2732, %v2733
    %v2735 = vsel %vm1628, %v1482, -inf
    %v2736 = vrot.slane %v2735, 4
    %v2737 = vmax.f32 %v2735, %v2736
    %v2738 = vrot.slane %v2737, 2
    %v2739 = vmax.f32 %v2737, %v2738
    %v2740 = vrot.slane %v2739, 1
    %v2741 = vmax.f32 %v2739, %v2740
    %v2742 = vsel %vm1628, %v1483, -inf
    %v2743 = vrot.slane %v2742, 4
    %v2744 = vmax.f32 %v2742, %v2743
    %v2745 = vrot.slane %v2744, 2
    %v2746 = vmax.f32 %v2744, %v2745
    %v2747 = vrot.slane %v2746, 1
    %v2748 = vmax.f32 %v2746, %v2747
    %v2749 = vsel %vm1628, %v1316, -inf
    %v2750 = vrot.slane %v2749, 4
    %v2751 = vmax.f32 %v2749, %v2750
    %v2752 = vrot.slane %v2751, 2
    %v2753 = vmax.f32 %v2751, %v2752
    %v2754 = vrot.slane %v2753, 1
    %v2755 = vmax.f32 %v2753, %v2754
    %v2756 = vsel %vm1628, %v1484, -inf
    %v2757 = vrot.slane %v2756, 4
    %v2758 = vmax.f32 %v2756, %v2757
    %v2759 = vrot.slane %v2758, 2
    %v2760 = vmax.f32 %v2758, %v2759
    %v2761 = vrot.slane %v2760, 1
    %v2762 = vmax.f32 %v2760, %v2761
    %v2763 = vsel %vm1628, %v1485, -inf
    %v2764 = vrot.slane %v2763, 4
    %v2765 = vmax.f32 %v2763, %v2764
    %v2766 = vrot.slane %v2765, 2
    %v2767 = vmax.f32 %v2765, %v2766
    %v2768 = vrot.slane %v2767, 1
    %v2769 = vmax.f32 %v2767, %v2768
    %v2770 = vsel %vm1628, %v1486, -inf
    %v2771 = vrot.slane %v2770, 4
    %v2772 = vmax.f32 %v2770, %v2771
    %v2773 = vrot.slane %v2772, 2
    %v2774 = vmax.f32 %v2772, %v2773
    %v2775 = vrot.slane %v2774, 1
    %v2776 = vmax.f32 %v2774, %v2775
    %v2777 = vsel %vm1628, %v1317, -inf
    %v2778 = vrot.slane %v2777, 4
    %v2779 = vmax.f32 %v2777, %v2778
    %v2780 = vrot.slane %v2779, 2
    %v2781 = vmax.f32 %v2779, %v2780
    %v2782 = vrot.slane %v2781, 1
    %v2783 = vmax.f32 %v2781, %v2782
    %v2784 = vsel %vm1628, %v1487, -inf
    %v2785 = vrot.slane %v2784, 4
    %v2786 = vmax.f32 %v2784, %v2785
    %v2787 = vrot.slane %v2786, 2
    %v2788 = vmax.f32 %v2786, %v2787
    %v2789 = vrot.slane %v2788, 1
    %v2790 = vmax.f32 %v2788, %v2789
    %v2791 = vsel %vm1628, %v1488, -inf
    %v2792 = vrot.slane %v2791, 4
    %v2793 = vmax.f32 %v2791, %v2792
    %v2794 = vrot.slane %v2793, 2
    %v2795 = vmax.f32 %v2793, %v2794
    %v2796 = vrot.slane %v2795, 1
    %v2797 = vmax.f32 %v2795, %v2796
    %v2798 = vsel %vm1628, %v1489, -inf
    %v2799 = vrot.slane %v2798, 4
    %v2800 = vmax.f32 %v2798, %v2799
    %v2801 = vrot.slane %v2800, 2
    %v2802 = vmax.f32 %v2800, %v2801
    %v2803 = vrot.slane %v2802, 1
    %v2804 = vmax.f32 %v2802, %v2803
    %v2805 = vsel %vm1628, %v1318, -inf
    %v2806 = vrot.slane %v2805, 4
    %v2807 = vmax.f32 %v2805, %v2806
    %v2808 = vrot.slane %v2807, 2
    %v2809 = vmax.f32 %v2807, %v2808
    %v2810 = vrot.slane %v2809, 1
    %v2811 = vmax.f32 %v2809, %v2810
    %v2812 = vsel %vm1628, %v1490, -inf
    %v2813 = vrot.slane %v2812, 4
    %v2814 = vmax.f32 %v2812, %v2813
    %v2815 = vrot.slane %v2814, 2
    %v2816 = vmax.f32 %v2814, %v2815
    %v2817 = vrot.slane %v2816, 1
    %v2818 = vmax.f32 %v2816, %v2817
    %v2819 = vsel %vm1628, %v1491, -inf
    %v2820 = vrot.slane %v2819, 4
    %v2821 = vmax.f32 %v2819, %v2820
    %v2822 = vrot.slane %v2821, 2
    %v2823 = vmax.f32 %v2821, %v2822
    %v2824 = vrot.slane %v2823, 1
    %v2825 = vmax.f32 %v2823, %v2824
    %v2826 = vsel %vm1628, %v1492, -inf
    %v2827 = vrot.slane %v2826, 4
    %v2828 = vmax.f32 %v2826, %v2827
    %v2829 = vrot.slane %v2828, 2
    %v2830 = vmax.f32 %v2828, %v2829
    %v2831 = vrot.slane %v2830, 1
    %v2832 = vmax.f32 %v2830, %v2831
    %v2833 = vsel %vm1628, %v1319, -inf
    %v2834 = vrot.slane %v2833, 4
    %v2835 = vmax.f32 %v2833, %v2834
    %v2836 = vrot.slane %v2835, 2
    %v2837 = vmax.f32 %v2835, %v2836
    %v2838 = vrot.slane %v2837, 1
    %v2839 = vmax.f32 %v2837, %v2838
    %v2840 = vsel %vm1628, %v1493, -inf
    %v2841 = vrot.slane %v2840, 4
    %v2842 = vmax.f32 %v2840, %v2841
    %v2843 = vrot.slane %v2842, 2
    %v2844 = vmax.f32 %v2842, %v2843
    %v2845 = vrot.slane %v2844, 1
    %v2846 = vmax.f32 %v2844, %v2845
    %v2847 = vsel %vm1628, %v1494, -inf
    %v2848 = vrot.slane %v2847, 4
    %v2849 = vmax.f32 %v2847, %v2848
    %v2850 = vrot.slane %v2849, 2
    %v2851 = vmax.f32 %v2849, %v2850
    %v2852 = vrot.slane %v2851, 1
    %v2853 = vmax.f32 %v2851, %v2852
    %v2854 = vsel %vm1628, %v1495, -inf
    %v2855 = vrot.slane %v2854, 4
    %v2856 = vmax.f32 %v2854, %v2855
    %v2857 = vrot.slane %v2856, 2
    %v2858 = vmax.f32 %v2856, %v2857
    %v2859 = vrot.slane %v2858, 1
    %v2860 = vmax.f32 %v2858, %v2859
    %vm3037 = vcmask 1042434
    %v3038 = vsel %vm3037, %v1642, %v1635
    %vm3039 = vcmask 1043459
    %v3040 = vsel %vm3039, %v1649, %v3038
    %vm3041 = vcmask 1044484
    %v3042 = vsel %vm3041, %v1656, %v3040
    %vm3043 = vcmask 1045509
    %v3044 = vsel %vm3043, %v1663, %v3042
    %vm3045 = vcmask 1046534
    %v3046 = vsel %vm3045, %v1670, %v3044
    %vm3047 = vcmask 1047559
    %v3048 = vsel %vm3047, %v1677, %v3046
    %vm3049 = vcmask 1041409
    %v3050 = vsel %vm3049, %v1691, %v1684
    %v3051 = vsel %vm3037, %v1698, %v3050
    %v3052 = vsel %vm3039, %v1705, %v3051
    %v3053 = vsel %vm3041, %v1712, %v3052
    %v3054 = vsel %vm3043, %v1719, %v3053
    %v3055 = vsel %vm3045, %v1726, %v3054
    %v3056 = vsel %vm3047, %v1733, %v3055
    %v3057 = vsel %vm3049, %v1747, %v1740
    %v3058 = vsel %vm3037, %v1754, %v3057
    %v3059 = vsel %vm3039, %v1761, %v3058
    %v3060 = vsel %vm3041, %v1768, %v3059
    %v3061 = vsel %vm3043, %v1775, %v3060
    %v3062 = vsel %vm3045, %v1782, %v3061
    %v3063 = vsel %vm3047, %v1789, %v3062
    %v3064 = vsel %vm3049, %v1803, %v1796
    %v3065 = vsel %vm3037, %v1810, %v3064
    %v3066 = vsel %vm3039, %v1817, %v3065
    %v3067 = vsel %vm3041, %v1824, %v3066
    %v3068 = vsel %vm3043, %v1831, %v3067
    %v3069 = vsel %vm3045, %v1838, %v3068
    %v3070 = vsel %vm3047, %v1845, %v3069
    %v3071 = vsel %vm3049, %v1859, %v1852
    %v3072 = vsel %vm3037, %v1866, %v3071
    %v3073 = vsel %vm3039, %v1873, %v3072
    %v3074 = vsel %vm3041, %v1880, %v3073
    %v3075 = vsel %vm3043, %v1887, %v3074
    %v3076 = vsel %vm3045, %v1894, %v3075
    %v3077 = vsel %vm3047, %v1901, %v3076
    %v3078 = vsel %vm3049, %v1915, %v1908
    %v3079 = vsel %vm3037, %v1922, %v3078
    %v3080 = vsel %vm3039, %v1929, %v3079
    %v3081 = vsel %vm3041, %v1936, %v3080
    %v3082 = vsel %vm3043, %v1943, %v3081
    %v3083 = vsel %vm3045, %v1950, %v3082
    %v3084 = vsel %vm3047, %v1957, %v3083
    %v3085 = vsel %vm3049, %v1971, %v1964
    %v3086 = vsel %vm3037, %v1978, %v3085
    %v3087 = vsel %vm3039, %v1985, %v3086
    %v3088 = vsel %vm3041, %v1992, %v3087
    %v3089 = vsel %vm3043, %v1999, %v3088
    %v3090 = vsel %vm3045, %v2006, %v3089
    %v3091 = vsel %vm3047, %v2013, %v3090
    %v3092 = vsel %vm3049, %v2027, %v2020
    %v3093 = vsel %vm3037, %v2034, %v3092
    %v3094 = vsel %vm3039, %v2041, %v3093
    %v3095 = vsel %vm3041, %v2048, %v3094
    %v3096 = vsel %vm3043, %v2055, %v3095
    %v3097 = vsel %vm3045, %v2062, %v3096
    %v3098 = vsel %vm3047, %v2069, %v3097
    %v3099 = vsel %vm3049, %v2083, %v2076
    %v3100 = vsel %vm3037, %v2090, %v3099
    %v3101 = vsel %vm3039, %v2097, %v3100
    %v3102 = vsel %vm3041, %v2104, %v3101
    %v3103 = vsel %vm3043, %v2111, %v3102
    %v3104 = vsel %vm3045, %v2118, %v3103
    %v3105 = vsel %vm3047, %v2125, %v3104
    %v3106 = vsel %vm3049, %v2139, %v2132
    %v3107 = vsel %vm3037, %v2146, %v3106
    %v3108 = vsel %vm3039, %v2153, %v3107
    %v3109 = vsel %vm3041, %v2160, %v3108
    %v3110 = vsel %vm3043, %v2167, %v3109
    %v3111 = vsel %vm3045, %v2174, %v3110
    %v3112 = vsel %vm3047, %v2181, %v3111
    %v3113 = vsel %vm3049, %v2195, %v2188
    %v3114 = vsel %vm3037, %v2202, %v3113
    %v3115 = vsel %vm3039, %v2209, %v3114
    %v3116 = vsel %vm3041, %v2216, %v3115
    %v3117 = vsel %vm3043, %v2223, %v3116
    %v3118 = vsel %vm3045, %v2230, %v3117
    %v3119 = vsel %vm3047, %v2237, %v3118
    %v3120 = vsel %vm3037, %v2258, %v2251
    %v3121 = vsel %vm3039, %v2265, %v3120
    %v3122 = vsel %vm3041, %v2272, %v3121
    %v3123 = vsel %vm3043, %v2279, %v3122
    %v3124 = vsel %vm3045, %v2286, %v3123
    %v3125 = vsel %vm3047, %v2293, %v3124
    %v3126 = vsel %vm3049, %v2307, %v2300
    %v3127 = vsel %vm3037, %v2314, %v3126
    %v3128 = vsel %vm3039, %v2321, %v3127
    %v3129 = vsel %vm3041, %v2328, %v3128
    %v3130 = vsel %vm3043, %v2335, %v3129
    %v3131 = vsel %vm3045, %v2342, %v3130
    %v3132 = vsel %vm3047, %v2349, %v3131
    %v3133 = vsel %vm3049, %v2363, %v2356
    %v3134 = vsel %vm3037, %v2370, %v3133
    %v3135 = vsel %vm3039, %v2377, %v3134
    %v3136 = vsel %vm3041, %v2384, %v3135
    %v3137 = vsel %vm3043, %v2391, %v3136
    %v3138 = vsel %vm3045, %v2398, %v3137
    %v3139 = vsel %vm3047, %v2405, %v3138
    %v3140 = vsel %vm3049, %v2419, %v2412
    %v3141 = vsel %vm3037, %v2426, %v3140
    %v3142 = vsel %vm3039, %v2433, %v3141
    %v3143 = vsel %vm3041, %v2440, %v3142
    %v3144 = vsel %vm3043, %v2447, %v3143
    %v3145 = vsel %vm3045, %v2454, %v3144
    %v3146 = vsel %vm3047, %v2461, %v3145
    %v3147 = vsel %vm3049, %v2475, %v2468
    %v3148 = vsel %vm3037, %v2482, %v3147
    %v3149 = vsel %vm3039, %v2489, %v3148
    %v3150 = vsel %vm3041, %v2496, %v3149
    %v3151 = vsel %vm3043, %v2503, %v3150
    %v3152 = vsel %vm3045, %v2510, %v3151
    %v3153 = vsel %vm3047, %v2517, %v3152
    %v3154 = vsel %vm3049, %v2531, %v2524
    %v3155 = vsel %vm3037, %v2538, %v3154
    %v3156 = vsel %vm3039, %v2545, %v3155
    %v3157 = vsel %vm3041, %v2552, %v3156
    %v3158 = vsel %vm3043, %v2559, %v3157
    %v3159 = vsel %vm3045, %v2566, %v3158
    %v3160 = vsel %vm3047, %v2573, %v3159
    %v3161 = vsel %vm3049, %v2587, %v2580
    %v3162 = vsel %vm3037, %v2594, %v3161
    %v3163 = vsel %vm3039, %v2601, %v3162
    %v3164 = vsel %vm3041, %v2608, %v3163
    %v3165 = vsel %vm3043, %v2615, %v3164
    %v3166 = vsel %vm3045, %v2622, %v3165
    %v3167 = vsel %vm3047, %v2629, %v3166
    %v3168 = vsel %vm3049, %v2643, %v2636
    %v3169 = vsel %vm3037, %v2650, %v3168
    %v3170 = vsel %vm3039, %v2657, %v3169
    %v3171 = vsel %vm3041, %v2664, %v3170
    %v3172 = vsel %vm3043, %v2671, %v3171
    %v3173 = vsel %vm3045, %v2678, %v3172
    %v3174 = vsel %vm3047, %v2685, %v3173
    %v3175 = vsel %vm3049, %v2699, %v2692
    %v3176 = vsel %vm3037, %v2706, %v3175
    %v3177 = vsel %vm3039, %v2713, %v3176
    %v3178 = vsel %vm3041, %v2720, %v3177
    %v3179 = vsel %vm3043, %v2727, %v3178
    %v3180 = vsel %vm3045, %v2734, %v3179
    %v3181 = vsel %vm3047, %v2741, %v3180
    %v3182 = vsel %vm3049, %v2755, %v2748
    %v3183 = vsel %vm3037, %v2762, %v3182
    %v3184 = vsel %vm3039, %v2769, %v3183
    %v3185 = vsel %vm3041, %v2776, %v3184
    %v3186 = vsel %vm3043, %v2783, %v3185
    %v3187 = vsel %vm3045, %v2790, %v3186
    %v3188 = vsel %vm3047, %v2797, %v3187
    %v3189 = vsel %vm3049, %v2811, %v2804
    %v3190 = vsel %vm3037, %v2818, %v3189
    %v3191 = vsel %vm3039, %v2825, %v3190
    %v3192 = vsel %vm3041, %v2832, %v3191
    %v3193 = vsel %vm3043, %v2839, %v3192
    %v3194 = vsel %vm3045, %v2846, %v3193
    %v3195 = vsel %vm3047, %v2853, %v3194
    %v3220 = vsel %vm301, 0.0, %v3048
    %v3221 = vsel %vm301, 0.0, %v3125
    %v3222 = vsel %vm301, %v2244, 0.0
    %v3223 = vsel %vm301, %v2860, 0.0
    %v3228 = vrot.slane %v3220, 1
    %v3229 = vrot.slane %v3056, 1
    %v3230 = vsel %vm773, %v3228, %v3229
    %v3231 = vrot.slane %v3063, 1
    %v3232 = vsel %vm773, %v3229, %v3231
    %v3233 = vrot.slane %v3070, 1
    %v3234 = vsel %vm773, %v3231, %v3233
    %v3235 = vrot.slane %v3077, 1
    %v3236 = vsel %vm773, %v3233, %v3235
    %v3237 = vrot.slane %v3084, 1
    %v3238 = vsel %vm773, %v3235, %v3237
    %v3239 = vrot.slane %v3091, 1
    %v3240 = vsel %vm773, %v3237, %v3239
    %v3241 = vrot.slane %v3098, 1
    %v3242 = vsel %vm773, %v3239, %v3241
    %v3243 = vrot.slane %v3105, 1
    %v3244 = vsel %vm773, %v3241, %v3243
    %v3245 = vrot.slane %v3112, 1
    %v3246 = vsel %vm773, %v3243, %v3245
    %v3247 = vrot.slane %v3119, 1
    %v3248 = vsel %vm773, %v3245, %v3247
    %v3249 = vrot.slane %v3222, 1
    %v3250 = vsel %vm773, %v3247, %v3249
    %v3251 = vrot.slane %v3221, 1
    %v3252 = vrot.slane %v3132, 1
    %v3253 = vsel %vm773, %v3251, %v3252
    %v3254 = vrot.slane %v3139, 1
    %v3255 = vsel %vm773, %v3252, %v3254
    %v3256 = vrot.slane %v3146, 1
    %v3257 = vsel %vm773, %v3254, %v3256
    %v3258 = vrot.slane %v3153, 1
    %v3259 = vsel %vm773, %v3256, %v3258
    %v3260 = vrot.slane %v3160, 1
    %v3261 = vsel %vm773, %v3258, %v3260
    %v3262 = vrot.slane %v3167, 1
    %v3263 = vsel %vm773, %v3260, %v3262
    %v3264 = vrot.slane %v3174, 1
    %v3265 = vsel %vm773, %v3262, %v3264
    %v3266 = vrot.slane %v3181, 1
    %v3267 = vsel %vm773, %v3264, %v3266
    %v3268 = vrot.slane %v3188, 1
    %v3269 = vsel %vm773, %v3266, %v3268
    %v3270 = vrot.slane %v3195, 1
    %v3271 = vsel %vm773, %v3268, %v3270
    %v3272 = vrot.slane %v3223, 1
    %v3273 = vsel %vm773, %v3270, %v3272
    %3274 = vrot.lane.b32.xlu0 %v3230, 64
    %v3275 = vpop.permute.xlu0 %3274
    %3276 = vrot.lane.b32.xlu0 %v3232, 64
    %v3277 = vpop.permute.xlu0 %3276
    %3278 = vrot.lane.b32.xlu0 %v3234, 64
    %v3279 = vpop.permute.xlu0 %3278
    %3280 = vrot.lane.b32.xlu0 %v3236, 64
    %v3281 = vpop.permute.xlu0 %3280
    %3282 = vrot.lane.b32.xlu0 %v3238, 64
    %v3283 = vpop.permute.xlu0 %3282
    %3284 = vrot.lane.b32.xlu0 %v3240, 64
    %v3285 = vpop.permute.xlu0 %3284
    %3286 = vrot.lane.b32.xlu0 %v3242, 64
    %v3287 = vpop.permute.xlu0 %3286
    %3288 = vrot.lane.b32.xlu0 %v3244, 64
    %v3289 = vpop.permute.xlu0 %3288
    %3290 = vrot.lane.b32.xlu0 %v3246, 64
    %v3291 = vpop.permute.xlu0 %3290
    %3292 = vrot.lane.b32.xlu0 %v3248, 64
    %v3293 = vpop.permute.xlu0 %3292
    %3294 = vrot.lane.b32.xlu0 %v3250, 64
    %v3295 = vpop.permute.xlu0 %3294
    %3296 = vrot.lane.b32.xlu0 %v3253, 64
    %v3297 = vpop.permute.xlu0 %3296
    %3298 = vrot.lane.b32.xlu0 %v3255, 64
    %v3299 = vpop.permute.xlu0 %3298
    %3300 = vrot.lane.b32.xlu0 %v3257, 64
    %v3301 = vpop.permute.xlu0 %3300
    %3302 = vrot.lane.b32.xlu0 %v3259, 64
    %v3303 = vpop.permute.xlu0 %3302
    %3304 = vrot.lane.b32.xlu0 %v3261, 64
    %v3305 = vpop.permute.xlu0 %3304
    %3306 = vrot.lane.b32.xlu0 %v3263, 64
    %v3307 = vpop.permute.xlu0 %3306
    %3308 = vrot.lane.b32.xlu0 %v3265, 64
    %v3309 = vpop.permute.xlu0 %3308
    %3310 = vrot.lane.b32.xlu0 %v3267, 64
    %v3311 = vpop.permute.xlu0 %3310
    %3312 = vrot.lane.b32.xlu0 %v3269, 64
    %v3313 = vpop.permute.xlu0 %3312
    %3314 = vrot.lane.b32.xlu0 %v3271, 64
    %v3315 = vpop.permute.xlu0 %3314
    %3316 = vrot.lane.b32.xlu0 %v3273, 64
    %v3317 = vpop.permute.xlu0 %3316
    %v3340 = vrot.slane %v3220, 2
    %v3341 = vrot.slane %v3056, 2
    %v3342 = vsel %vm1049, %v3340, %v3341
    %v3343 = vrot.slane %v3063, 2
    %v3344 = vsel %vm1049, %v3341, %v3343
    %v3345 = vrot.slane %v3070, 2
    %v3346 = vsel %vm1049, %v3343, %v3345
    %v3347 = vrot.slane %v3077, 2
    %v3348 = vsel %vm1049, %v3345, %v3347
    %v3349 = vrot.slane %v3084, 2
    %v3350 = vsel %vm1049, %v3347, %v3349
    %v3351 = vrot.slane %v3091, 2
    %v3352 = vsel %vm1049, %v3349, %v3351
    %v3353 = vrot.slane %v3098, 2
    %v3354 = vsel %vm1049, %v3351, %v3353
    %v3355 = vrot.slane %v3105, 2
    %v3356 = vsel %vm1049, %v3353, %v3355
    %v3357 = vrot.slane %v3112, 2
    %v3358 = vsel %vm1049, %v3355, %v3357
    %v3359 = vrot.slane %v3119, 2
    %v3360 = vsel %vm1049, %v3357, %v3359
    %v3361 = vrot.slane %v3222, 2
    %v3362 = vsel %vm1049, %v3359, %v3361
    %v3363 = vrot.slane %v3221, 2
    %v3364 = vrot.slane %v3132, 2
    %v3365 = vsel %vm1049, %v3363, %v3364
    %v3366 = vrot.slane %v3139, 2
    %v3367 = vsel %vm1049, %v3364, %v3366
    %v3368 = vrot.slane %v3146, 2
    %v3369 = vsel %vm1049, %v3366, %v3368
    %v3370 = vrot.slane %v3153, 2
    %v3371 = vsel %vm1049, %v3368, %v3370
    %v3372 = vrot.slane %v3160, 2
    %v3373 = vsel %vm1049, %v3370, %v3372
    %v3374 = vrot.slane %v3167, 2
    %v3375 = vsel %vm1049, %v3372, %v3374
    %v3376 = vrot.slane %v3174, 2
    %v3377 = vsel %vm1049, %v3374, %v3376
    %v3378 = vrot.slane %v3181, 2
    %v3379 = vsel %vm1049, %v3376, %v3378
    %v3380 = vrot.slane %v3188, 2
    %v3381 = vsel %vm1049, %v3378, %v3380
    %v3382 = vrot.slane %v3195, 2
    %v3383 = vsel %vm1049, %v3380, %v3382
    %v3384 = vrot.slane %v3223, 2
    %v3385 = vsel %vm1049, %v3382, %v3384
    %vm3386 = vcmask 523264
    %v3387 = vsel %vm3386, %v3220, %v3275
    %v3388 = vsel %vm3386, %v3056, %v3277
    %v3389 = vsel %vm3386, %v3063, %v3279
    %v3390 = vsel %vm3386, %v3070, %v3281
    %v3391 = vsel %vm3386, %v3077, %v3283
    %v3392 = vsel %vm3386, %v3084, %v3285
    %v3393 = vsel %vm3386, %v3091, %v3287
    %v3394 = vsel %vm3386, %v3098, %v3289
    %v3395 = vsel %vm3386, %v3105, %v3291
    %v3396 = vsel %vm3386, %v3112, %v3293
    %v3397 = vsel %vm3386, %v3119, %v3295
    %v3398 = vsel %vm3386, %v3221, %v3297
    %v3399 = vsel %vm3386, %v3132, %v3299
    %v3400 = vsel %vm3386, %v3139, %v3301
    %v3401 = vsel %vm3386, %v3146, %v3303
    %v3402 = vsel %vm3386, %v3153, %v3305
    %v3403 = vsel %vm3386, %v3160, %v3307
    %v3404 = vsel %vm3386, %v3167, %v3309
    %v3405 = vsel %vm3386, %v3174, %v3311
    %v3406 = vsel %vm3386, %v3181, %v3313
    %v3407 = vsel %vm3386, %v3188, %v3315
    %v3408 = vsel %vm3386, %v3195, %v3317
    %v3409 = vld [vmem:[#allocation11] sm:$0xff]
    %v3410 = vld [vmem:[#allocation11 + $0x8] sm:$0xff]
    %v3411 = vld [vmem:[#allocation11 + $0x10] sm:$0xff]
    %v3412 = vld [vmem:[#allocation11 + $0x18] sm:$0xff]
    %v3413 = vld [vmem:[#allocation11 + $0x20] sm:$0xff]
    %v3414 = vld [vmem:[#allocation11 + $0x28] sm:$0xff]
    %v3415 = vld [vmem:[#allocation11 + $0x30] sm:$0xff]
    %v3416 = vld [vmem:[#allocation11 + $0x38] sm:$0xff]
    %v3417 = vld [vmem:[#allocation11 + $0x40] sm:$0xff]
    %v3418 = vld [vmem:[#allocation11 + $0x48] sm:$0xff]
    %v3419 = vld [vmem:[#allocation11 + $0x50] sm:$0xff]
    %v3420 = vld [vmem:[#allocation11 + $0x58] sm:$0xff]
    %v3421 = vld [vmem:[#allocation11 + $0x60] sm:$0xff]
    %v3422 = vld [vmem:[#allocation11 + $0x68] sm:$0xff]
    %v3423 = vld [vmem:[#allocation11 + $0x70] sm:$0xff]
    %v3424 = vld [vmem:[#allocation11 + $0x78] sm:$0xff]
    %v3425 = vld [vmem:[#allocation11 + $0x80] sm:$0xff]
    %v3426 = vld [vmem:[#allocation11 + $0x88] sm:$0xff]
    %v3427 = vld [vmem:[#allocation11 + $0x90] sm:$0xff]
    %v3428 = vld [vmem:[#allocation11 + $0x98] sm:$0xff]
    %v3429 = vld [vmem:[#allocation11 + $0xa0] sm:$0xff]
    %v3430 = vld [vmem:[#allocation11 + $0xa8] sm:$0xff]
    %v3431 = vld [vmem:[#allocation11 + $0xb0] sm:$0xff]
    %v3432 = vld [vmem:[#allocation11 + $0xb8] sm:$0xff]
    %v3433 = vld [vmem:[#allocation12] sm:$0x1]
    %v3435 = vperm.slane %v3433, 0
    %v3437 = vsel %vm3386, %v3342, 0
    %v3439 = vsel %vm3386, %v3344, 0
    %v3441 = vsel %vm3386, %v3346, 0
    %v3443 = vsel %vm3386, %v3348, 0
    %v3445 = vsel %vm3386, %v3350, 0
    %v3447 = vsel %vm3386, %v3352, 0
    %v3449 = vsel %vm3386, %v3354, 0
    %v3451 = vsel %vm3386, %v3356, 0
    %v3453 = vsel %vm3386, %v3358, 0
    %v3455 = vsel %vm3386, %v3360, 0
    %v3457 = vsel %vm3386, %v3362, 0
    %v3459 = vsel %vm3386, %v3365, 0
    %v3461 = vsel %vm3386, %v3367, 0
    %v3463 = vsel %vm3386, %v3369, 0
    %v3465 = vsel %vm3386, %v3371, 0
    %v3467 = vsel %vm3386, %v3373, 0
    %v3469 = vsel %vm3386, %v3375, 0
    %v3471 = vsel %vm3386, %v3377, 0
    %v3473 = vsel %vm3386, %v3379, 0
    %v3475 = vsel %vm3386, %v3381, 0
    %v3477 = vsel %vm3386, %v3383, 0
    %v3479 = vsel %vm3386, %v3385, 0
    %3481 = vmatpush.msra.mxu0 %v3424
    %3482 = vmatpush.msra.mxu0 %v3423
    %3483 = vmatpush.msra.mxu0 %v3422
    %3484 = vmatpush.msra.mxu0 %v3421
    %3485 = vmatpush.msra.mxu0 %v3420
    %3486 = vmatpush.msra.mxu0 %v3419
    %3487 = vmatpush.msra.mxu0 %v3418
    %3488 = vmatpush.msra.mxu0 %v3417
    %3489 = vmatpush.msra.mxu0 %v3416
    %3490 = vmatpush.msra.mxu0 %v3415
    %3491 = vmatpush.msra.mxu0 %v3414
    %3492 = vmatpush.msra.mxu0 %v3413
    %3493 = vmatpush.msra.mxu0 %v3412
    %3494 = vmatpush.msra.mxu0 %v3411
    %3495 = vmatpush.msra.mxu0 %v3410
    %3496 = vmatpush.msra.mxu0 %v3409
    %3497 = vmatmul.f32.gmra.mxu0 %v3387
    %v3498 = vpop.f32.mrf.mxu0
    %v3499 = vadd.f32 %v3435, %v3498
    %3500 = vmatmul.f32.gmra.mxu0 %v3388
    %v3501 = vpop.f32.mrf.mxu0
    %v3502 = vadd.f32 %v3435, %v3501
    %3503 = vmatmul.f32.gmra.mxu0 %v3389
    %v3504 = vpop.f32.mrf.mxu0
    %v3505 = vadd.f32 %v3435, %v3504
    %3506 = vmatmul.f32.gmra.mxu0 %v3390
    %v3507 = vpop.f32.mrf.mxu0
    %v3508 = vadd.f32 %v3435, %v3507
    %3509 = vmatmul.f32.gmra.mxu0 %v3391
    %v3510 = vpop.f32.mrf.mxu0
    %v3511 = vadd.f32 %v3435, %v3510
    %3512 = vmatmul.f32.gmra.mxu0 %v3392
    %v3513 = vpop.f32.mrf.mxu0
    %v3514 = vadd.f32 %v3435, %v3513
    %3515 = vmatmul.f32.gmra.mxu0 %v3393
    %v3516 = vpop.f32.mrf.mxu0
    %v3517 = vadd.f32 %v3435, %v3516
    %3518 = vmatmul.f32.gmra.mxu0 %v3394
    %v3519 = vpop.f32.mrf.mxu0
    %v3520 = vadd.f32 %v3435, %v3519
    %3521 = vmatmul.f32.gmra.mxu0 %v3395
    %v3522 = vpop.f32.mrf.mxu0
    %v3523 = vadd.f32 %v3435, %v3522
    %3524 = vmatmul.f32.gmra.mxu0 %v3396
    %v3525 = vpop.f32.mrf.mxu0
    %v3526 = vadd.f32 %v3435, %v3525
    %3527 = vmatmul.f32.gmra.mxu0 %v3397
    %v3528 = vpop.f32.mrf.mxu0
    %v3529 = vadd.f32 %v3435, %v3528
    %3530 = vmatmul.f32.gmra.mxu0 %v3398
    %v3531 = vpop.f32.mrf.mxu0
    %v3532 = vadd.f32 %v3435, %v3531
    %3533 = vmatmul.f32.gmra.mxu0 %v3399
    %v3534 = vpop.f32.mrf.mxu0
    %v3535 = vadd.f32 %v3435, %v3534
    %3536 = vmatmul.f32.gmra.mxu0 %v3400
    %v3537 = vpop.f32.mrf.mxu0
    %v3538 = vadd.f32 %v3435, %v3537
    %3539 = vmatmul.f32.gmra.mxu0 %v3401
    %v3540 = vpop.f32.mrf.mxu0
    %v3541 = vadd.f32 %v3435, %v3540
    %3542 = vmatmul.f32.gmra.mxu0 %v3402
    %v3543 = vpop.f32.mrf.mxu0
    %v3544 = vadd.f32 %v3435, %v3543
    %3545 = vmatmul.f32.gmra.mxu0 %v3403
    %v3546 = vpop.f32.mrf.mxu0
    %v3547 = vadd.f32 %v3435, %v3546
    %3548 = vmatmul.f32.gmra.mxu0 %v3404
    %v3549 = vpop.f32.mrf.mxu0
    %v3550 = vadd.f32 %v3435, %v3549
    %3551 = vmatmul.f32.gmra.mxu0 %v3405
    %v3552 = vpop.f32.mrf.mxu0
    %v3553 = vadd.f32 %v3435, %v3552
    %3554 = vmatmul.f32.gmra.mxu0 %v3406
    %v3555 = vpop.f32.mrf.mxu0
    %v3556 = vadd.f32 %v3435, %v3555
    %3557 = vmatmul.f32.gmra.mxu0 %v3407
    %v3558 = vpop.f32.mrf.mxu0
    %v3559 = vadd.f32 %v3435, %v3558
    %3560 = vmatmul.f32.gmra.mxu0 %v3408
    %v3561 = vpop.f32.mrf.mxu0
    %v3562 = vadd.f32 %v3435, %v3561
    %3563 = vdwg.mxu0
    %3564 = vmatpush.msra.mxu0 0.0
    %3565 = vmatpush.msra.mxu0 0.0
    %3566 = vmatpush.msra.mxu0 0.0
    %3567 = vmatpush.msra.mxu0 0.0
    %3568 = vmatpush.msra.mxu0 0.0
    %3569 = vmatpush.msra.mxu0 0.0
    %3570 = vmatpush.msra.mxu0 0.0
    %3571 = vmatpush.msra.mxu0 0.0
    %3572 = vmatpush.msra.mxu0 %v3432
    %3573 = vmatpush.msra.mxu0 %v3431
    %3574 = vmatpush.msra.mxu0 %v3430
    %3575 = vmatpush.msra.mxu0 %v3429
    %3576 = vmatpush.msra.mxu0 %v3428
    %3577 = vmatpush.msra.mxu0 %v3427
    %3578 = vmatpush.msra.mxu0 %v3426
    %3579 = vmatpush.msra.mxu0 %v3425
    %3580 = vmatmul.f32.gmra.mxu0 %v3437
    %v3581 = vpop.f32.mrf.mxu0
    %v3582 = vadd.f32 %v3499, %v3581
    %3583 = vmatmul.f32.gmra.mxu0 %v3439
    %v3584 = vpop.f32.mrf.mxu0
    %v3585 = vadd.f32 %v3502, %v3584
    %3586 = vmatmul.f32.gmra.mxu0 %v3441
    %v3587 = vpop.f32.mrf.mxu0
    %v3588 = vadd.f32 %v3505, %v3587
    %3589 = vmatmul.f32.gmra.mxu0 %v3443
    %v3590 = vpop.f32.mrf.mxu0
    %v3591 = vadd.f32 %v3508, %v3590
    %3592 = vmatmul.f32.gmra.mxu0 %v3445
    %v3593 = vpop.f32.mrf.mxu0
    %v3594 = vadd.f32 %v3511, %v3593
    %3595 = vmatmul.f32.gmra.mxu0 %v3447
    %v3596 = vpop.f32.mrf.mxu0
    %v3597 = vadd.f32 %v3514, %v3596
    %3598 = vmatmul.f32.gmra.mxu0 %v3449
    %v3599 = vpop.f32.mrf.mxu0
    %v3600 = vadd.f32 %v3517, %v3599
    %3601 = vmatmul.f32.gmra.mxu0 %v3451
    %v3602 = vpop.f32.mrf.mxu0
    %v3603 = vadd.f32 %v3520, %v3602
    %3604 = vmatmul.f32.gmra.mxu0 %v3453
    %v3605 = vpop.f32.mrf.mxu0
    %v3606 = vadd.f32 %v3523, %v3605
    %3607 = vmatmul.f32.gmra.mxu0 %v3455
    %v3608 = vpop.f32.mrf.mxu0
    %v3609 = vadd.f32 %v3526, %v3608
    %3610 = vmatmul.f32.gmra.mxu0 %v3457
    %v3611 = vpop.f32.mrf.mxu0
    %v3612 = vadd.f32 %v3529, %v3611
    %3613 = vmatmul.f32.gmra.mxu0 %v3459
    %v3614 = vpop.f32.mrf.mxu0
    %v3615 = vadd.f32 %v3532, %v3614
    %3616 = vmatmul.f32.gmra.mxu0 %v3461
    %v3617 = vpop.f32.mrf.mxu0
    %v3618 = vadd.f32 %v3535, %v3617
    %3619 = vmatmul.f32.gmra.mxu0 %v3463
    %v3620 = vpop.f32.mrf.mxu0
    %v3621 = vadd.f32 %v3538, %v3620
    %3622 = vmatmul.f32.gmra.mxu0 %v3465
    %v3623 = vpop.f32.mrf.mxu0
    %v3624 = vadd.f32 %v3541, %v3623
    %3625 = vmatmul.f32.gmra.mxu0 %v3467
    %v3626 = vpop.f32.mrf.mxu0
    %v3627 = vadd.f32 %v3544, %v3626
    %3628 = vmatmul.f32.gmra.mxu0 %v3469
    %v3629 = vpop.f32.mrf.mxu0
    %v3630 = vadd.f32 %v3547, %v3629
    %3631 = vmatmul.f32.gmra.mxu0 %v3471
    %v3632 = vpop.f32.mrf.mxu0
    %v3633 = vadd.f32 %v3550, %v3632
    %3634 = vmatmul.f32.gmra.mxu0 %v3473
    %v3635 = vpop.f32.mrf.mxu0
    %v3636 = vadd.f32 %v3553, %v3635
    %3637 = vmatmul.f32.gmra.mxu0 %v3475
    %v3638 = vpop.f32.mrf.mxu0
    %v3639 = vadd.f32 %v3556, %v3638
    %3640 = vmatmul.f32.gmra.mxu0 %v3477
    %v3641 = vpop.f32.mrf.mxu0
    %v3642 = vadd.f32 %v3559, %v3641
    %3643 = vmatmul.f32.gmra.mxu0 %v3479
    %v3644 = vpop.f32.mrf.mxu0
    %v3645 = vadd.f32 %v3562, %v3644
    %3646 = vdwg.mxu0
    %v3647 = vmax.f32 %v3582, 0.0
    %v3648 = vmax.f32 %v3585, 0.0
    %v3649 = vmax.f32 %v3588, 0.0
    %v3650 = vmax.f32 %v3591, 0.0
    %v3651 = vmax.f32 %v3594, 0.0
    %v3652 = vmax.f32 %v3597, 0.0
    %v3653 = vmax.f32 %v3600, 0.0
    %v3654 = vmax.f32 %v3603, 0.0
    %v3655 = vmax.f32 %v3606, 0.0
    %v3656 = vmax.f32 %v3609, 0.0
    %v3657 = vmax.f32 %v3612, 0.0
    %v3658 = vmax.f32 %v3615, 0.0
    %v3659 = vmax.f32 %v3618, 0.0
    %v3660 = vmax.f32 %v3621, 0.0
    %v3661 = vmax.f32 %v3624, 0.0
    %v3662 = vmax.f32 %v3627, 0.0
    %v3663 = vmax.f32 %v3630, 0.0
    %v3664 = vmax.f32 %v3633, 0.0
    %v3665 = vmax.f32 %v3636, 0.0
    %v3666 = vmax.f32 %v3639, 0.0
    %v3667 = vmax.f32 %v3642, 0.0
    %v3668 = vmax.f32 %v3645, 0.0
    %v3691 = vrot.slane %v3647, 2
    %v3692 = vrot.slane %v3647, 4
    %v3693 = vrot.slane %v3647, 6
    %v3694 = vrot.slane %v3648, 2
    %v3695 = vrot.slane %v3648, 4
    %v3696 = vrot.slane %v3648, 6
    %v3697 = vrot.slane %v3649, 2
    %v3698 = vrot.slane %v3649, 4
    %v3699 = vrot.slane %v3649, 6
    %v3700 = vrot.slane %v3650, 2
    %v3701 = vrot.slane %v3650, 4
    %v3702 = vrot.slane %v3650, 6
    %v3703 = vrot.slane %v3651, 2
    %v3704 = vrot.slane %v3651, 4
    %v3705 = vrot.slane %v3651, 6
    %v3706 = vrot.slane %v3652, 2
    %v3707 = vrot.slane %v3652, 4
    %v3708 = vrot.slane %v3652, 6
    %v3709 = vrot.slane %v3653, 2
    %v3710 = vrot.slane %v3653, 4
    %v3711 = vrot.slane %v3653, 6
    %v3712 = vrot.slane %v3654, 2
    %v3713 = vrot.slane %v3654, 4
    %v3714 = vrot.slane %v3654, 6
    %v3715 = vrot.slane %v3655, 2
    %v3716 = vrot.slane %v3655, 4
    %v3717 = vrot.slane %v3655, 6
    %v3718 = vrot.slane %v3656, 2
    %v3719 = vrot.slane %v3656, 4
    %v3720 = vrot.slane %v3656, 6
    %v3721 = vrot.slane %v3657, 2
    %v3722 = vrot.slane %v3657, 4
    %v3723 = vrot.slane %v3657, 6
    %v3724 = vrot.slane %v3658, 2
    %v3725 = vrot.slane %v3658, 4
    %v3726 = vrot.slane %v3658, 6
    %v3727 = vrot.slane %v3659, 2
    %v3728 = vrot.slane %v3659, 4
    %v3729 = vrot.slane %v3659, 6
    %v3730 = vrot.slane %v3660, 2
    %v3731 = vrot.slane %v3660, 4
    %v3732 = vrot.slane %v3660, 6
    %v3733 = vrot.slane %v3661, 2
    %v3734 = vrot.slane %v3661, 4
    %v3735 = vrot.slane %v3661, 6
    %v3736 = vrot.slane %v3662, 2
    %v3737 = vrot.slane %v3662, 4
    %v3738 = vrot.slane %v3662, 6
    %v3739 = vrot.slane %v3663, 2
    %v3740 = vrot.slane %v3663, 4
    %v3741 = vrot.slane %v3663, 6
    %v3742 = vrot.slane %v3664, 2
    %v3743 = vrot.slane %v3664, 4
    %v3744 = vrot.slane %v3664, 6
    %v3745 = vrot.slane %v3665, 2
    %v3746 = vrot.slane %v3665, 4
    %v3747 = vrot.slane %v3665, 6
    %v3748 = vrot.slane %v3666, 2
    %v3749 = vrot.slane %v3666, 4
    %v3750 = vrot.slane %v3666, 6
    %v3751 = vrot.slane %v3667, 2
    %v3752 = vrot.slane %v3667, 4
    %v3753 = vrot.slane %v3667, 6
    %v3754 = vrot.slane %v3668, 2
    %v3755 = vrot.slane %v3668, 4
    %v3756 = vrot.slane %v3668, 6
    %vm3823 = vcmask 1041408
    %v3824 = vsel %vm3823, %v3647, -inf
    %v3825 = vrot.slane %v3824, 4
    %v3826 = vmax.f32 %v3824, %v3825
    %v3827 = vrot.slane %v3826, 2
    %v3828 = vmax.f32 %v3826, %v3827
    %v3829 = vrot.slane %v3828, 1
    %v3830 = vmax.f32 %v3828, %v3829
    %v3831 = vsel %vm3823, %v3691, -inf
    %v3832 = vrot.slane %v3831, 4
    %v3833 = vmax.f32 %v3831, %v3832
    %v3834 = vrot.slane %v3833, 2
    %v3835 = vmax.f32 %v3833, %v3834
    %v3836 = vrot.slane %v3835, 1
    %v3837 = vmax.f32 %v3835, %v3836
    %v3838 = vsel %vm3823, %v3692, -inf
    %v3839 = vrot.slane %v3838, 4
    %v3840 = vmax.f32 %v3838, %v3839
    %v3841 = vrot.slane %v3840, 2
    %v3842 = vmax.f32 %v3840, %v3841
    %v3843 = vrot.slane %v3842, 1
    %v3844 = vmax.f32 %v3842, %v3843
    %v3845 = vsel %vm3823, %v3693, -inf
    %v3846 = vrot.slane %v3845, 4
    %v3847 = vmax.f32 %v3845, %v3846
    %v3848 = vrot.slane %v3847, 2
    %v3849 = vmax.f32 %v3847, %v3848
    %v3850 = vrot.slane %v3849, 1
    %v3851 = vmax.f32 %v3849, %v3850
    %v3852 = vsel %vm3823, %v3648, -inf
    %v3853 = vrot.slane %v3852, 4
    %v3854 = vmax.f32 %v3852, %v3853
    %v3855 = vrot.slane %v3854, 2
    %v3856 = vmax.f32 %v3854, %v3855
    %v3857 = vrot.slane %v3856, 1
    %v3858 = vmax.f32 %v3856, %v3857
    %v3859 = vsel %vm3823, %v3694, -inf
    %v3860 = vrot.slane %v3859, 4
    %v3861 = vmax.f32 %v3859, %v3860
    %v3862 = vrot.slane %v3861, 2
    %v3863 = vmax.f32 %v3861, %v3862
    %v3864 = vrot.slane %v3863, 1
    %v3865 = vmax.f32 %v3863, %v3864
    %v3866 = vsel %vm3823, %v3695, -inf
    %v3867 = vrot.slane %v3866, 4
    %v3868 = vmax.f32 %v3866, %v3867
    %v3869 = vrot.slane %v3868, 2
    %v3870 = vmax.f32 %v3868, %v3869
    %v3871 = vrot.slane %v3870, 1
    %v3872 = vmax.f32 %v3870, %v3871
    %v3873 = vsel %vm3823, %v3696, -inf
    %v3874 = vrot.slane %v3873, 4
    %v3875 = vmax.f32 %v3873, %v3874
    %v3876 = vrot.slane %v3875, 2
    %v3877 = vmax.f32 %v3875, %v3876
    %v3878 = vrot.slane %v3877, 1
    %v3879 = vmax.f32 %v3877, %v3878
    %v3880 = vsel %vm3823, %v3649, -inf
    %v3881 = vrot.slane %v3880, 4
    %v3882 = vmax.f32 %v3880, %v3881
    %v3883 = vrot.slane %v3882, 2
    %v3884 = vmax.f32 %v3882, %v3883
    %v3885 = vrot.slane %v3884, 1
    %v3886 = vmax.f32 %v3884, %v3885
    %v3887 = vsel %vm3823, %v3697, -inf
    %v3888 = vrot.slane %v3887, 4
    %v3889 = vmax.f32 %v3887, %v3888
    %v3890 = vrot.slane %v3889, 2
    %v3891 = vmax.f32 %v3889, %v3890
    %v3892 = vrot.slane %v3891, 1
    %v3893 = vmax.f32 %v3891, %v3892
    %v3894 = vsel %vm3823, %v3698, -inf
    %v3895 = vrot.slane %v3894, 4
    %v3896 = vmax.f32 %v3894, %v3895
    %v3897 = vrot.slane %v3896, 2
    %v3898 = vmax.f32 %v3896, %v3897
    %v3899 = vrot.slane %v3898, 1
    %v3900 = vmax.f32 %v3898, %v3899
    %v3901 = vsel %vm3823, %v3699, -inf
    %v3902 = vrot.slane %v3901, 4
    %v3903 = vmax.f32 %v3901, %v3902
    %v3904 = vrot.slane %v3903, 2
    %v3905 = vmax.f32 %v3903, %v3904
    %v3906 = vrot.slane %v3905, 1
    %v3907 = vmax.f32 %v3905, %v3906
    %v3908 = vsel %vm3823, %v3650, -inf
    %v3909 = vrot.slane %v3908, 4
    %v3910 = vmax.f32 %v3908, %v3909
    %v3911 = vrot.slane %v3910, 2
    %v3912 = vmax.f32 %v3910, %v3911
    %v3913 = vrot.slane %v3912, 1
    %v3914 = vmax.f32 %v3912, %v3913
    %v3915 = vsel %vm3823, %v3700, -inf
    %v3916 = vrot.slane %v3915, 4
    %v3917 = vmax.f32 %v3915, %v3916
    %v3918 = vrot.slane %v3917, 2
    %v3919 = vmax.f32 %v3917, %v3918
    %v3920 = vrot.slane %v3919, 1
    %v3921 = vmax.f32 %v3919, %v3920
    %v3922 = vsel %vm3823, %v3701, -inf
    %v3923 = vrot.slane %v3922, 4
    %v3924 = vmax.f32 %v3922, %v3923
    %v3925 = vrot.slane %v3924, 2
    %v3926 = vmax.f32 %v3924, %v3925
    %v3927 = vrot.slane %v3926, 1
    %v3928 = vmax.f32 %v3926, %v3927
    %v3929 = vsel %vm3823, %v3702, -inf
    %v3930 = vrot.slane %v3929, 4
    %v3931 = vmax.f32 %v3929, %v3930
    %v3932 = vrot.slane %v3931, 2
    %v3933 = vmax.f32 %v3931, %v3932
    %v3934 = vrot.slane %v3933, 1
    %v3935 = vmax.f32 %v3933, %v3934
    %v3936 = vsel %vm3823, %v3651, -inf
    %v3937 = vrot.slane %v3936, 4
    %v3938 = vmax.f32 %v3936, %v3937
    %v3939 = vrot.slane %v3938, 2
    %v3940 = vmax.f32 %v3938, %v3939
    %v3941 = vrot.slane %v3940, 1
    %v3942 = vmax.f32 %v3940, %v3941
    %v3943 = vsel %vm3823, %v3703, -inf
    %v3944 = vrot.slane %v3943, 4
    %v3945 = vmax.f32 %v3943, %v3944
    %v3946 = vrot.slane %v3945, 2
    %v3947 = vmax.f32 %v3945, %v3946
    %v3948 = vrot.slane %v3947, 1
    %v3949 = vmax.f32 %v3947, %v3948
    %v3950 = vsel %vm3823, %v3704, -inf
    %v3951 = vrot.slane %v3950, 4
    %v3952 = vmax.f32 %v3950, %v3951
    %v3953 = vrot.slane %v3952, 2
    %v3954 = vmax.f32 %v3952, %v3953
    %v3955 = vrot.slane %v3954, 1
    %v3956 = vmax.f32 %v3954, %v3955
    %v3957 = vsel %vm3823, %v3705, -inf
    %v3958 = vrot.slane %v3957, 4
    %v3959 = vmax.f32 %v3957, %v3958
    %v3960 = vrot.slane %v3959, 2
    %v3961 = vmax.f32 %v3959, %v3960
    %v3962 = vrot.slane %v3961, 1
    %v3963 = vmax.f32 %v3961, %v3962
    %v3964 = vsel %vm3823, %v3652, -inf
    %v3965 = vrot.slane %v3964, 4
    %v3966 = vmax.f32 %v3964, %v3965
    %v3967 = vrot.slane %v3966, 2
    %v3968 = vmax.f32 %v3966, %v3967
    %v3969 = vrot.slane %v3968, 1
    %v3970 = vmax.f32 %v3968, %v3969
    %v3971 = vsel %vm3823, %v3706, -inf
    %v3972 = vrot.slane %v3971, 4
    %v3973 = vmax.f32 %v3971, %v3972
    %v3974 = vrot.slane %v3973, 2
    %v3975 = vmax.f32 %v3973, %v3974
    %v3976 = vrot.slane %v3975, 1
    %v3977 = vmax.f32 %v3975, %v3976
    %v3978 = vsel %vm3823, %v3707, -inf
    %v3979 = vrot.slane %v3978, 4
    %v3980 = vmax.f32 %v3978, %v3979
    %v3981 = vrot.slane %v3980, 2
    %v3982 = vmax.f32 %v3980, %v3981
    %v3983 = vrot.slane %v3982, 1
    %v3984 = vmax.f32 %v3982, %v3983
    %v3985 = vsel %vm3823, %v3708, -inf
    %v3986 = vrot.slane %v3985, 4
    %v3987 = vmax.f32 %v3985, %v3986
    %v3988 = vrot.slane %v3987, 2
    %v3989 = vmax.f32 %v3987, %v3988
    %v3990 = vrot.slane %v3989, 1
    %v3991 = vmax.f32 %v3989, %v3990
    %v3992 = vsel %vm3823, %v3653, -inf
    %v3993 = vrot.slane %v3992, 4
    %v3994 = vmax.f32 %v3992, %v3993
    %v3995 = vrot.slane %v3994, 2
    %v3996 = vmax.f32 %v3994, %v3995
    %v3997 = vrot.slane %v3996, 1
    %v3998 = vmax.f32 %v3996, %v3997
    %v3999 = vsel %vm3823, %v3709, -inf
    %v4000 = vrot.slane %v3999, 4
    %v4001 = vmax.f32 %v3999, %v4000
    %v4002 = vrot.slane %v4001, 2
    %v4003 = vmax.f32 %v4001, %v4002
    %v4004 = vrot.slane %v4003, 1
    %v4005 = vmax.f32 %v4003, %v4004
    %v4006 = vsel %vm3823, %v3710, -inf
    %v4007 = vrot.slane %v4006, 4
    %v4008 = vmax.f32 %v4006, %v4007
    %v4009 = vrot.slane %v4008, 2
    %v4010 = vmax.f32 %v4008, %v4009
    %v4011 = vrot.slane %v4010, 1
    %v4012 = vmax.f32 %v4010, %v4011
    %v4013 = vsel %vm3823, %v3711, -inf
    %v4014 = vrot.slane %v4013, 4
    %v4015 = vmax.f32 %v4013, %v4014
    %v4016 = vrot.slane %v4015, 2
    %v4017 = vmax.f32 %v4015, %v4016
    %v4018 = vrot.slane %v4017, 1
    %v4019 = vmax.f32 %v4017, %v4018
    %v4020 = vsel %vm3823, %v3654, -inf
    %v4021 = vrot.slane %v4020, 4
    %v4022 = vmax.f32 %v4020, %v4021
    %v4023 = vrot.slane %v4022, 2
    %v4024 = vmax.f32 %v4022, %v4023
    %v4025 = vrot.slane %v4024, 1
    %v4026 = vmax.f32 %v4024, %v4025
    %v4027 = vsel %vm3823, %v3712, -inf
    %v4028 = vrot.slane %v4027, 4
    %v4029 = vmax.f32 %v4027, %v4028
    %v4030 = vrot.slane %v4029, 2
    %v4031 = vmax.f32 %v4029, %v4030
    %v4032 = vrot.slane %v4031, 1
    %v4033 = vmax.f32 %v4031, %v4032
    %v4034 = vsel %vm3823, %v3713, -inf
    %v4035 = vrot.slane %v4034, 4
    %v4036 = vmax.f32 %v4034, %v4035
    %v4037 = vrot.slane %v4036, 2
    %v4038 = vmax.f32 %v4036, %v4037
    %v4039 = vrot.slane %v4038, 1
    %v4040 = vmax.f32 %v4038, %v4039
    %v4041 = vsel %vm3823, %v3714, -inf
    %v4042 = vrot.slane %v4041, 4
    %v4043 = vmax.f32 %v4041, %v4042
    %v4044 = vrot.slane %v4043, 2
    %v4045 = vmax.f32 %v4043, %v4044
    %v4046 = vrot.slane %v4045, 1
    %v4047 = vmax.f32 %v4045, %v4046
    %v4048 = vsel %vm3823, %v3655, -inf
    %v4049 = vrot.slane %v4048, 4
    %v4050 = vmax.f32 %v4048, %v4049
    %v4051 = vrot.slane %v4050, 2
    %v4052 = vmax.f32 %v4050, %v4051
    %v4053 = vrot.slane %v4052, 1
    %v4054 = vmax.f32 %v4052, %v4053
    %v4055 = vsel %vm3823, %v3715, -inf
    %v4056 = vrot.slane %v4055, 4
    %v4057 = vmax.f32 %v4055, %v4056
    %v4058 = vrot.slane %v4057, 2
    %v4059 = vmax.f32 %v4057, %v4058
    %v4060 = vrot.slane %v4059, 1
    %v4061 = vmax.f32 %v4059, %v4060
    %v4062 = vsel %vm3823, %v3716, -inf
    %v4063 = vrot.slane %v4062, 4
    %v4064 = vmax.f32 %v4062, %v4063
    %v4065 = vrot.slane %v4064, 2
    %v4066 = vmax.f32 %v4064, %v4065
    %v4067 = vrot.slane %v4066, 1
    %v4068 = vmax.f32 %v4066, %v4067
    %v4069 = vsel %vm3823, %v3717, -inf
    %v4070 = vrot.slane %v4069, 4
    %v4071 = vmax.f32 %v4069, %v4070
    %v4072 = vrot.slane %v4071, 2
    %v4073 = vmax.f32 %v4071, %v4072
    %v4074 = vrot.slane %v4073, 1
    %v4075 = vmax.f32 %v4073, %v4074
    %v4076 = vsel %vm3823, %v3656, -inf
    %v4077 = vrot.slane %v4076, 4
    %v4078 = vmax.f32 %v4076, %v4077
    %v4079 = vrot.slane %v4078, 2
    %v4080 = vmax.f32 %v4078, %v4079
    %v4081 = vrot.slane %v4080, 1
    %v4082 = vmax.f32 %v4080, %v4081
    %v4083 = vsel %vm3823, %v3718, -inf
    %v4084 = vrot.slane %v4083, 4
    %v4085 = vmax.f32 %v4083, %v4084
    %v4086 = vrot.slane %v4085, 2
    %v4087 = vmax.f32 %v4085, %v4086
    %v4088 = vrot.slane %v4087, 1
    %v4089 = vmax.f32 %v4087, %v4088
    %v4090 = vsel %vm3823, %v3719, -inf
    %v4091 = vrot.slane %v4090, 4
    %v4092 = vmax.f32 %v4090, %v4091
    %v4093 = vrot.slane %v4092, 2
    %v4094 = vmax.f32 %v4092, %v4093
    %v4095 = vrot.slane %v4094, 1
    %v4096 = vmax.f32 %v4094, %v4095
    %v4097 = vsel %vm3823, %v3720, -inf
    %v4098 = vrot.slane %v4097, 4
    %v4099 = vmax.f32 %v4097, %v4098
    %v4100 = vrot.slane %v4099, 2
    %v4101 = vmax.f32 %v4099, %v4100
    %v4102 = vrot.slane %v4101, 1
    %v4103 = vmax.f32 %v4101, %v4102
    %v4104 = vsel %vm3823, %v3657, -inf
    %v4105 = vrot.slane %v4104, 4
    %v4106 = vmax.f32 %v4104, %v4105
    %v4107 = vrot.slane %v4106, 2
    %v4108 = vmax.f32 %v4106, %v4107
    %v4109 = vrot.slane %v4108, 1
    %v4110 = vmax.f32 %v4108, %v4109
    %v4111 = vsel %vm3823, %v3721, -inf
    %v4112 = vrot.slane %v4111, 4
    %v4113 = vmax.f32 %v4111, %v4112
    %v4114 = vrot.slane %v4113, 2
    %v4115 = vmax.f32 %v4113, %v4114
    %v4116 = vrot.slane %v4115, 1
    %v4117 = vmax.f32 %v4115, %v4116
    %v4118 = vsel %vm3823, %v3722, -inf
    %v4119 = vrot.slane %v4118, 4
    %v4120 = vmax.f32 %v4118, %v4119
    %v4121 = vrot.slane %v4120, 2
    %v4122 = vmax.f32 %v4120, %v4121
    %v4123 = vrot.slane %v4122, 1
    %v4124 = vmax.f32 %v4122, %v4123
    %v4125 = vsel %vm3823, %v3723, -inf
    %v4126 = vrot.slane %v4125, 4
    %v4127 = vmax.f32 %v4125, %v4126
    %v4128 = vrot.slane %v4127, 2
    %v4129 = vmax.f32 %v4127, %v4128
    %v4130 = vrot.slane %v4129, 1
    %v4131 = vmax.f32 %v4129, %v4130
    %v4132 = vsel %vm3823, %v3658, -inf
    %v4133 = vrot.slane %v4132, 4
    %v4134 = vmax.f32 %v4132, %v4133
    %v4135 = vrot.slane %v4134, 2
    %v4136 = vmax.f32 %v4134, %v4135
    %v4137 = vrot.slane %v4136, 1
    %v4138 = vmax.f32 %v4136, %v4137
    %v4139 = vsel %vm3823, %v3724, -inf
    %v4140 = vrot.slane %v4139, 4
    %v4141 = vmax.f32 %v4139, %v4140
    %v4142 = vrot.slane %v4141, 2
    %v4143 = vmax.f32 %v4141, %v4142
    %v4144 = vrot.slane %v4143, 1
    %v4145 = vmax.f32 %v4143, %v4144
    %v4146 = vsel %vm3823, %v3725, -inf
    %v4147 = vrot.slane %v4146, 4
    %v4148 = vmax.f32 %v4146, %v4147
    %v4149 = vrot.slane %v4148, 2
    %v4150 = vmax.f32 %v4148, %v4149
    %v4151 = vrot.slane %v4150, 1
    %v4152 = vmax.f32 %v4150, %v4151
    %v4153 = vsel %vm3823, %v3726, -inf
    %v4154 = vrot.slane %v4153, 4
    %v4155 = vmax.f32 %v4153, %v4154
    %v4156 = vrot.slane %v4155, 2
    %v4157 = vmax.f32 %v4155, %v4156
    %v4158 = vrot.slane %v4157, 1
    %v4159 = vmax.f32 %v4157, %v4158
    %v4160 = vsel %vm3823, %v3659, -inf
    %v4161 = vrot.slane %v4160, 4
    %v4162 = vmax.f32 %v4160, %v4161
    %v4163 = vrot.slane %v4162, 2
    %v4164 = vmax.f32 %v4162, %v4163
    %v4165 = vrot.slane %v4164, 1
    %v4166 = vmax.f32 %v4164, %v4165
    %v4167 = vsel %vm3823, %v3727, -inf
    %v4168 = vrot.slane %v4167, 4
    %v4169 = vmax.f32 %v4167, %v4168
    %v4170 = vrot.slane %v4169, 2
    %v4171 = vmax.f32 %v4169, %v4170
    %v4172 = vrot.slane %v4171, 1
    %v4173 = vmax.f32 %v4171, %v4172
    %v4174 = vsel %vm3823, %v3728, -inf
    %v4175 = vrot.slane %v4174, 4
    %v4176 = vmax.f32 %v4174, %v4175
    %v4177 = vrot.slane %v4176, 2
    %v4178 = vmax.f32 %v4176, %v4177
    %v4179 = vrot.slane %v4178, 1
    %v4180 = vmax.f32 %v4178, %v4179
    %v4181 = vsel %vm3823, %v3729, -inf
    %v4182 = vrot.slane %v4181, 4
    %v4183 = vmax.f32 %v4181, %v4182
    %v4184 = vrot.slane %v4183, 2
    %v4185 = vmax.f32 %v4183, %v4184
    %v4186 = vrot.slane %v4185, 1
    %v4187 = vmax.f32 %v4185, %v4186
    %v4188 = vsel %vm3823, %v3660, -inf
    %v4189 = vrot.slane %v4188, 4
    %v4190 = vmax.f32 %v4188, %v4189
    %v4191 = vrot.slane %v4190, 2
    %v4192 = vmax.f32 %v4190, %v4191
    %v4193 = vrot.slane %v4192, 1
    %v4194 = vmax.f32 %v4192, %v4193
    %v4195 = vsel %vm3823, %v3730, -inf
    %v4196 = vrot.slane %v4195, 4
    %v4197 = vmax.f32 %v4195, %v4196
    %v4198 = vrot.slane %v4197, 2
    %v4199 = vmax.f32 %v4197, %v4198
    %v4200 = vrot.slane %v4199, 1
    %v4201 = vmax.f32 %v4199, %v4200
    %v4202 = vsel %vm3823, %v3731, -inf
    %v4203 = vrot.slane %v4202, 4
    %v4204 = vmax.f32 %v4202, %v4203
    %v4205 = vrot.slane %v4204, 2
    %v4206 = vmax.f32 %v4204, %v4205
    %v4207 = vrot.slane %v4206, 1
    %v4208 = vmax.f32 %v4206, %v4207
    %v4209 = vsel %vm3823, %v3732, -inf
    %v4210 = vrot.slane %v4209, 4
    %v4211 = vmax.f32 %v4209, %v4210
    %v4212 = vrot.slane %v4211, 2
    %v4213 = vmax.f32 %v4211, %v4212
    %v4214 = vrot.slane %v4213, 1
    %v4215 = vmax.f32 %v4213, %v4214
    %v4216 = vsel %vm3823, %v3661, -inf
    %v4217 = vrot.slane %v4216, 4
    %v4218 = vmax.f32 %v4216, %v4217
    %v4219 = vrot.slane %v4218, 2
    %v4220 = vmax.f32 %v4218, %v4219
    %v4221 = vrot.slane %v4220, 1
    %v4222 = vmax.f32 %v4220, %v4221
    %v4223 = vsel %vm3823, %v3733, -inf
    %v4224 = vrot.slane %v4223, 4
    %v4225 = vmax.f32 %v4223, %v4224
    %v4226 = vrot.slane %v4225, 2
    %v4227 = vmax.f32 %v4225, %v4226
    %v4228 = vrot.slane %v4227, 1
    %v4229 = vmax.f32 %v4227, %v4228
    %v4230 = vsel %vm3823, %v3734, -inf
    %v4231 = vrot.slane %v4230, 4
    %v4232 = vmax.f32 %v4230, %v4231
    %v4233 = vrot.slane %v4232, 2
    %v4234 = vmax.f32 %v4232, %v4233
    %v4235 = vrot.slane %v4234, 1
    %v4236 = vmax.f32 %v4234, %v4235
    %v4237 = vsel %vm3823, %v3735, -inf
    %v4238 = vrot.slane %v4237, 4
    %v4239 = vmax.f32 %v4237, %v4238
    %v4240 = vrot.slane %v4239, 2
    %v4241 = vmax.f32 %v4239, %v4240
    %v4242 = vrot.slane %v4241, 1
    %v4243 = vmax.f32 %v4241, %v4242
    %v4244 = vsel %vm3823, %v3662, -inf
    %v4245 = vrot.slane %v4244, 4
    %v4246 = vmax.f32 %v4244, %v4245
    %v4247 = vrot.slane %v4246, 2
    %v4248 = vmax.f32 %v4246, %v4247
    %v4249 = vrot.slane %v4248, 1
    %v4250 = vmax.f32 %v4248, %v4249
    %v4251 = vsel %vm3823, %v3736, -inf
    %v4252 = vrot.slane %v4251, 4
    %v4253 = vmax.f32 %v4251, %v4252
    %v4254 = vrot.slane %v4253, 2
    %v4255 = vmax.f32 %v4253, %v4254
    %v4256 = vrot.slane %v4255, 1
    %v4257 = vmax.f32 %v4255, %v4256
    %v4258 = vsel %vm3823, %v3737, -inf
    %v4259 = vrot.slane %v4258, 4
    %v4260 = vmax.f32 %v4258, %v4259
    %v4261 = vrot.slane %v4260, 2
    %v4262 = vmax.f32 %v4260, %v4261
    %v4263 = vrot.slane %v4262, 1
    %v4264 = vmax.f32 %v4262, %v4263
    %v4265 = vsel %vm3823, %v3738, -inf
    %v4266 = vrot.slane %v4265, 4
    %v4267 = vmax.f32 %v4265, %v4266
    %v4268 = vrot.slane %v4267, 2
    %v4269 = vmax.f32 %v4267, %v4268
    %v4270 = vrot.slane %v4269, 1
    %v4271 = vmax.f32 %v4269, %v4270
    %v4272 = vsel %vm3823, %v3663, -inf
    %v4273 = vrot.slane %v4272, 4
    %v4274 = vmax.f32 %v4272, %v4273
    %v4275 = vrot.slane %v4274, 2
    %v4276 = vmax.f32 %v4274, %v4275
    %v4277 = vrot.slane %v4276, 1
    %v4278 = vmax.f32 %v4276, %v4277
    %v4279 = vsel %vm3823, %v3739, -inf
    %v4280 = vrot.slane %v4279, 4
    %v4281 = vmax.f32 %v4279, %v4280
    %v4282 = vrot.slane %v4281, 2
    %v4283 = vmax.f32 %v4281, %v4282
    %v4284 = vrot.slane %v4283, 1
    %v4285 = vmax.f32 %v4283, %v4284
    %v4286 = vsel %vm3823, %v3740, -inf
    %v4287 = vrot.slane %v4286, 4
    %v4288 = vmax.f32 %v4286, %v4287
    %v4289 = vrot.slane %v4288, 2
    %v4290 = vmax.f32 %v4288, %v4289
    %v4291 = vrot.slane %v4290, 1
    %v4292 = vmax.f32 %v4290, %v4291
    %v4293 = vsel %vm3823, %v3741, -inf
    %v4294 = vrot.slane %v4293, 4
    %v4295 = vmax.f32 %v4293, %v4294
    %v4296 = vrot.slane %v4295, 2
    %v4297 = vmax.f32 %v4295, %v4296
    %v4298 = vrot.slane %v4297, 1
    %v4299 = vmax.f32 %v4297, %v4298
    %v4300 = vsel %vm3823, %v3664, -inf
    %v4301 = vrot.slane %v4300, 4
    %v4302 = vmax.f32 %v4300, %v4301
    %v4303 = vrot.slane %v4302, 2
    %v4304 = vmax.f32 %v4302, %v4303
    %v4305 = vrot.slane %v4304, 1
    %v4306 = vmax.f32 %v4304, %v4305
    %v4307 = vsel %vm3823, %v3742, -inf
    %v4308 = vrot.slane %v4307, 4
    %v4309 = vmax.f32 %v4307, %v4308
    %v4310 = vrot.slane %v4309, 2
    %v4311 = vmax.f32 %v4309, %v4310
    %v4312 = vrot.slane %v4311, 1
    %v4313 = vmax.f32 %v4311, %v4312
    %v4314 = vsel %vm3823, %v3743, -inf
    %v4315 = vrot.slane %v4314, 4
    %v4316 = vmax.f32 %v4314, %v4315
    %v4317 = vrot.slane %v4316, 2
    %v4318 = vmax.f32 %v4316, %v4317
    %v4319 = vrot.slane %v4318, 1
    %v4320 = vmax.f32 %v4318, %v4319
    %v4321 = vsel %vm3823, %v3744, -inf
    %v4322 = vrot.slane %v4321, 4
    %v4323 = vmax.f32 %v4321, %v4322
    %v4324 = vrot.slane %v4323, 2
    %v4325 = vmax.f32 %v4323, %v4324
    %v4326 = vrot.slane %v4325, 1
    %v4327 = vmax.f32 %v4325, %v4326
    %v4328 = vsel %vm3823, %v3665, -inf
    %v4329 = vrot.slane %v4328, 4
    %v4330 = vmax.f32 %v4328, %v4329
    %v4331 = vrot.slane %v4330, 2
    %v4332 = vmax.f32 %v4330, %v4331
    %v4333 = vrot.slane %v4332, 1
    %v4334 = vmax.f32 %v4332, %v4333
    %v4335 = vsel %vm3823, %v3745, -inf
    %v4336 = vrot.slane %v4335, 4
    %v4337 = vmax.f32 %v4335, %v4336
    %v4338 = vrot.slane %v4337, 2
    %v4339 = vmax.f32 %v4337, %v4338
    %v4340 = vrot.slane %v4339, 1
    %v4341 = vmax.f32 %v4339, %v4340
    %v4342 = vsel %vm3823, %v3746, -inf
    %v4343 = vrot.slane %v4342, 4
    %v4344 = vmax.f32 %v4342, %v4343
    %v4345 = vrot.slane %v4344, 2
    %v4346 = vmax.f32 %v4344, %v4345
    %v4347 = vrot.slane %v4346, 1
    %v4348 = vmax.f32 %v4346, %v4347
    %v4349 = vsel %vm3823, %v3747, -inf
    %v4350 = vrot.slane %v4349, 4
    %v4351 = vmax.f32 %v4349, %v4350
    %v4352 = vrot.slane %v4351, 2
    %v4353 = vmax.f32 %v4351, %v4352
    %v4354 = vrot.slane %v4353, 1
    %v4355 = vmax.f32 %v4353, %v4354
    %v4356 = vsel %vm3823, %v3666, -inf
    %v4357 = vrot.slane %v4356, 4
    %v4358 = vmax.f32 %v4356, %v4357
    %v4359 = vrot.slane %v4358, 2
    %v4360 = vmax.f32 %v4358, %v4359
    %v4361 = vrot.slane %v4360, 1
    %v4362 = vmax.f32 %v4360, %v4361
    %v4363 = vsel %vm3823, %v3748, -inf
    %v4364 = vrot.slane %v4363, 4
    %v4365 = vmax.f32 %v4363, %v4364
    %v4366 = vrot.slane %v4365, 2
    %v4367 = vmax.f32 %v4365, %v4366
    %v4368 = vrot.slane %v4367, 1
    %v4369 = vmax.f32 %v4367, %v4368
    %v4370 = vsel %vm3823, %v3749, -inf
    %v4371 = vrot.slane %v4370, 4
    %v4372 = vmax.f32 %v4370, %v4371
    %v4373 = vrot.slane %v4372, 2
    %v4374 = vmax.f32 %v4372, %v4373
    %v4375 = vrot.slane %v4374, 1
    %v4376 = vmax.f32 %v4374, %v4375
    %v4377 = vsel %vm3823, %v3750, -inf
    %v4378 = vrot.slane %v4377, 4
    %v4379 = vmax.f32 %v4377, %v4378
    %v4380 = vrot.slane %v4379, 2
    %v4381 = vmax.f32 %v4379, %v4380
    %v4382 = vrot.slane %v4381, 1
    %v4383 = vmax.f32 %v4381, %v4382
    %v4384 = vsel %vm3823, %v3667, -inf
    %v4385 = vrot.slane %v4384, 4
    %v4386 = vmax.f32 %v4384, %v4385
    %v4387 = vrot.slane %v4386, 2
    %v4388 = vmax.f32 %v4386, %v4387
    %v4389 = vrot.slane %v4388, 1
    %v4390 = vmax.f32 %v4388, %v4389
    %v4391 = vsel %vm3823, %v3751, -inf
    %v4392 = vrot.slane %v4391, 4
    %v4393 = vmax.f32 %v4391, %v4392
    %v4394 = vrot.slane %v4393, 2
    %v4395 = vmax.f32 %v4393, %v4394
    %v4396 = vrot.slane %v4395, 1
    %v4397 = vmax.f32 %v4395, %v4396
    %v4398 = vsel %vm3823, %v3752, -inf
    %v4399 = vrot.slane %v4398, 4
    %v4400 = vmax.f32 %v4398, %v4399
    %v4401 = vrot.slane %v4400, 2
    %v4402 = vmax.f32 %v4400, %v4401
    %v4403 = vrot.slane %v4402, 1
    %v4404 = vmax.f32 %v4402, %v4403
    %v4405 = vsel %vm3823, %v3753, -inf
    %v4406 = vrot.slane %v4405, 4
    %v4407 = vmax.f32 %v4405, %v4406
    %v4408 = vrot.slane %v4407, 2
    %v4409 = vmax.f32 %v4407, %v4408
    %v4410 = vrot.slane %v4409, 1
    %v4411 = vmax.f32 %v4409, %v4410
    %v4412 = vsel %vm3823, %v3668, -inf
    %v4413 = vrot.slane %v4412, 4
    %v4414 = vmax.f32 %v4412, %v4413
    %v4415 = vrot.slane %v4414, 2
    %v4416 = vmax.f32 %v4414, %v4415
    %v4417 = vrot.slane %v4416, 1
    %v4418 = vmax.f32 %v4416, %v4417
    %v4419 = vsel %vm3823, %v3754, -inf
    %v4420 = vrot.slane %v4419, 4
    %v4421 = vmax.f32 %v4419, %v4420
    %v4422 = vrot.slane %v4421, 2
    %v4423 = vmax.f32 %v4421, %v4422
    %v4424 = vrot.slane %v4423, 1
    %v4425 = vmax.f32 %v4423, %v4424
    %v4426 = vsel %vm3823, %v3755, -inf
    %v4427 = vrot.slane %v4426, 4
    %v4428 = vmax.f32 %v4426, %v4427
    %v4429 = vrot.slane %v4428, 2
    %v4430 = vmax.f32 %v4428, %v4429
    %v4431 = vrot.slane %v4430, 1
    %v4432 = vmax.f32 %v4430, %v4431
    %v4433 = vsel %vm3823, %v3756, -inf
    %v4434 = vrot.slane %v4433, 4
    %v4435 = vmax.f32 %v4433, %v4434
    %v4436 = vrot.slane %v4435, 2
    %v4437 = vmax.f32 %v4435, %v4436
    %v4438 = vrot.slane %v4437, 1
    %v4439 = vmax.f32 %v4437, %v4438
    %v4528 = vsel %vm3037, %v3837, %v3830
    %v4529 = vsel %vm3039, %v3844, %v4528
    %v4530 = vsel %vm3041, %v3851, %v4529
    %v4531 = vsel %vm3043, %v3858, %v4530
    %v4532 = vsel %vm3045, %v3865, %v4531
    %v4533 = vsel %vm3047, %v3872, %v4532
    %v4534 = vsel %vm3049, %v3886, %v3879
    %v4535 = vsel %vm3037, %v3893, %v4534
    %v4536 = vsel %vm3039, %v3900, %v4535
    %v4537 = vsel %vm3041, %v3907, %v4536
    %v4538 = vsel %vm3043, %v3914, %v4537
    %v4539 = vsel %vm3045, %v3921, %v4538
    %v4540 = vsel %vm3047, %v3928, %v4539
    %v4541 = vsel %vm3049, %v3942, %v3935
    %v4542 = vsel %vm3037, %v3949, %v4541
    %v4543 = vsel %vm3039, %v3956, %v4542
    %v4544 = vsel %vm3041, %v3963, %v4543
    %v4545 = vsel %vm3043, %v3970, %v4544
    %v4546 = vsel %vm3045, %v3977, %v4545
    %v4547 = vsel %vm3047, %v3984, %v4546
    %v4548 = vsel %vm3049, %v3998, %v3991
    %v4549 = vsel %vm3037, %v4005, %v4548
    %v4550 = vsel %vm3039, %v4012, %v4549
    %v4551 = vsel %vm3041, %v4019, %v4550
    %v4552 = vsel %vm3043, %v4026, %v4551
    %v4553 = vsel %vm3045, %v4033, %v4552
    %v4554 = vsel %vm3047, %v4040, %v4553
    %v4555 = vsel %vm3049, %v4054, %v4047
    %v4556 = vsel %vm3037, %v4061, %v4555
    %v4557 = vsel %vm3039, %v4068, %v4556
    %v4558 = vsel %vm3041, %v4075, %v4557
    %v4559 = vsel %vm3043, %v4082, %v4558
    %v4560 = vsel %vm3045, %v4089, %v4559
    %v4561 = vsel %vm3047, %v4096, %v4560
    %v4562 = vsel %vm3049, %v4110, %v4103
    %v4563 = vsel %vm3037, %v4117, %v4562
    %v4564 = vsel %vm3039, %v4124, %v4563
    %v4565 = vsel %vm3041, %v4131, %v4564
    %v4566 = vsel %vm3037, %v4145, %v4138
    %v4567 = vsel %vm3039, %v4152, %v4566
    %v4568 = vsel %vm3041, %v4159, %v4567
    %v4569 = vsel %vm3043, %v4166, %v4568
    %v4570 = vsel %vm3045, %v4173, %v4569
    %v4571 = vsel %vm3047, %v4180, %v4570
    %v4572 = vsel %vm3049, %v4194, %v4187
    %v4573 = vsel %vm3037, %v4201, %v4572
    %v4574 = vsel %vm3039, %v4208, %v4573
    %v4575 = vsel %vm3041, %v4215, %v4574
    %v4576 = vsel %vm3043, %v4222, %v4575
    %v4577 = vsel %vm3045, %v4229, %v4576
    %v4578 = vsel %vm3047, %v4236, %v4577
    %v4579 = vsel %vm3049, %v4250, %v4243
    %v4580 = vsel %vm3037, %v4257, %v4579
    %v4581 = vsel %vm3039, %v4264, %v4580
    %v4582 = vsel %vm3041, %v4271, %v4581
    %v4583 = vsel %vm3043, %v4278, %v4582
    %v4584 = vsel %vm3045, %v4285, %v4583
    %v4585 = vsel %vm3047, %v4292, %v4584
    %v4586 = vsel %vm3049, %v4306, %v4299
    %v4587 = vsel %vm3037, %v4313, %v4586
    %v4588 = vsel %vm3039, %v4320, %v4587
    %v4589 = vsel %vm3041, %v4327, %v4588
    %v4590 = vsel %vm3043, %v4334, %v4589
    %v4591 = vsel %vm3045, %v4341, %v4590
    %v4592 = vsel %vm3047, %v4348, %v4591
    %v4593 = vsel %vm3049, %v4362, %v4355
    %v4594 = vsel %vm3037, %v4369, %v4593
    %v4595 = vsel %vm3039, %v4376, %v4594
    %v4596 = vsel %vm3041, %v4383, %v4595
    %v4597 = vsel %vm3043, %v4390, %v4596
    %v4598 = vsel %vm3045, %v4397, %v4597
    %v4599 = vsel %vm3047, %v4404, %v4598
    %v4600 = vsel %vm3049, %v4418, %v4411
    %v4601 = vsel %vm3037, %v4425, %v4600
    %v4602 = vsel %vm3039, %v4432, %v4601
    %v4603 = vsel %vm3041, %v4439, %v4602
    %v4608 = vsel %vm301, 0.0, %v4533
    %v4609 = vsel %vm301, 0.0, %v4571
    %vm4610 = vcmask 1044480
    %v4611 = vsel %vm4610, %v4565, 0.0
    %v4612 = vsel %vm4610, %v4603, 0.0
    %v4617 = vrot.slane %v4608, 1
    %v4618 = vrot.slane %v4540, 1
    %v4619 = vsel %vm773, %v4617, %v4618
    %v4620 = vrot.slane %v4547, 1
    %v4621 = vsel %vm773, %v4618, %v4620
    %v4622 = vrot.slane %v4554, 1
    %v4623 = vsel %vm773, %v4620, %v4622
    %v4624 = vrot.slane %v4561, 1
    %v4625 = vsel %vm773, %v4622, %v4624
    %v4626 = vrot.slane %v4611, 1
    %v4627 = vsel %vm773, %v4624, %v4626
    %v4628 = vrot.slane %v4609, 1
    %v4629 = vrot.slane %v4578, 1
    %v4630 = vsel %vm773, %v4628, %v4629
    %v4631 = vrot.slane %v4585, 1
    %v4632 = vsel %vm773, %v4629, %v4631
    %v4633 = vrot.slane %v4592, 1
    %v4634 = vsel %vm773, %v4631, %v4633
    %v4635 = vrot.slane %v4599, 1
    %v4636 = vsel %vm773, %v4633, %v4635
    %v4637 = vrot.slane %v4612, 1
    %v4638 = vsel %vm773, %v4635, %v4637
    %v4639 = vrot.slane %v4608, 2
    %v4640 = vrot.slane %v4540, 2
    %v4641 = vsel %vm1049, %v4639, %v4640
    %v4642 = vrot.slane %v4547, 2
    %v4643 = vsel %vm1049, %v4640, %v4642
    %v4644 = vrot.slane %v4554, 2
    %v4645 = vsel %vm1049, %v4642, %v4644
    %v4646 = vrot.slane %v4561, 2
    %v4647 = vsel %vm1049, %v4644, %v4646
    %v4648 = vrot.slane %v4611, 2
    %v4649 = vsel %vm1049, %v4646, %v4648
    %v4650 = vrot.slane %v4609, 2
    %v4651 = vrot.slane %v4578, 2
    %v4652 = vsel %vm1049, %v4650, %v4651
    %v4653 = vrot.slane %v4585, 2
    %v4654 = vsel %vm1049, %v4651, %v4653
    %v4655 = vrot.slane %v4592, 2
    %v4656 = vsel %vm1049, %v4653, %v4655
    %v4657 = vrot.slane %v4599, 2
    %v4658 = vsel %vm1049, %v4655, %v4657
    %v4659 = vrot.slane %v4612, 2
    %v4660 = vsel %vm1049, %v4657, %v4659
    %v4661 = vrot.slane %v4619, 4
    %v4662 = vrot.slane %v4621, 4
    %v4663 = vrot.slane %v4623, 4
    %v4664 = vrot.slane %v4625, 4
    %v4665 = vrot.slane %v4627, 4
    %v4666 = vrot.slane %v4626, 4
    %v4667 = vrot.slane %v4630, 4
    %v4668 = vrot.slane %v4632, 4
    %v4669 = vrot.slane %v4634, 4
    %v4670 = vrot.slane %v4636, 4
    %v4671 = vrot.slane %v4638, 4
    %v4672 = vrot.slane %v4637, 4
    %vm4673 = vcmask 1043456
    %v4674 = vsel %vm4673, %v4608, %v4661
    %v4675 = vsel %vm4673, %v4661, %v4608
    %v4676 = vrot.slane %v4675, 4
    %v4677 = vrot.slane %v4641, 4
    %v4678 = vsel %vm4673, %v4540, %v4662
    %v4679 = vsel %vm4673, %v4662, %v4540
    %v4680 = vrot.slane %v4679, 4
    %v4681 = vrot.slane %v4643, 4
    %v4682 = vsel %vm4673, %v4547, %v4663
    %v4683 = vsel %vm4673, %v4663, %v4547
    %v4684 = vrot.slane %v4683, 4
    %v4685 = vrot.slane %v4645, 4
    %v4686 = vsel %vm4673, %v4554, %v4664
    %v4687 = vsel %vm4673, %v4664, %v4554
    %v4688 = vrot.slane %v4687, 4
    %v4689 = vrot.slane %v4647, 4
    %v4690 = vsel %vm4673, %v4561, %v4665
    %v4691 = vsel %vm4673, %v4665, %v4561
    %v4692 = vrot.slane %v4691, 4
    %v4693 = vrot.slane %v4649, 4
    %v4694 = vsel %vm4673, %v4611, %v4666
    %v4695 = vsel %vm4673, %v4609, %v4667
    %v4696 = vsel %vm4673, %v4667, %v4609
    %v4697 = vrot.slane %v4696, 4
    %v4698 = vrot.slane %v4652, 4
    %v4699 = vsel %vm4673, %v4578, %v4668
    %v4700 = vsel %vm4673, %v4668, %v4578
    %v4701 = vrot.slane %v4700, 4
    %v4702 = vrot.slane %v4654, 4
    %v4703 = vsel %vm4673, %v4585, %v4669
    %v4704 = vsel %vm4673, %v4669, %v4585
    %v4705 = vrot.slane %v4704, 4
    %v4706 = vrot.slane %v4656, 4
    %v4707 = vsel %vm4673, %v4592, %v4670
    %v4708 = vsel %vm4673, %v4670, %v4592
    %v4709 = vrot.slane %v4708, 4
    %v4710 = vrot.slane %v4658, 4
    %v4711 = vsel %vm4673, %v4599, %v4671
    %v4712 = vsel %vm4673, %v4671, %v4599
    %v4713 = vrot.slane %v4712, 4
    %v4714 = vrot.slane %v4660, 4
    %v4715 = vsel %vm4673, %v4612, %v4672
    %v4716 = vld [vmem:[#allocation14] sm:$0xff]
    %v4717 = vld [vmem:[#allocation14 + $0x8] sm:$0xff]
    %v4718 = vld [vmem:[#allocation14 + $0x10] sm:$0xff]
    %v4719 = vld [vmem:[#allocation14 + $0x18] sm:$0xff]
    %v4720 = vld [vmem:[#allocation14 + $0x20] sm:$0xff]
    %v4721 = vld [vmem:[#allocation14 + $0x28] sm:$0xff]
    %v4722 = vld [vmem:[#allocation14 + $0x30] sm:$0xff]
    %v4723 = vld [vmem:[#allocation14 + $0x38] sm:$0xff]
    %v4724 = vld [vmem:[#allocation14 + $0x40] sm:$0xff]
    %v4725 = vld [vmem:[#allocation14 + $0x48] sm:$0xff]
    %v4726 = vld [vmem:[#allocation14 + $0x50] sm:$0xff]
    %v4727 = vld [vmem:[#allocation14 + $0x58] sm:$0xff]
    %v4728 = vld [vmem:[#allocation14 + $0x60] sm:$0xff]
    %v4729 = vld [vmem:[#allocation14 + $0x68] sm:$0xff]
    %v4730 = vld [vmem:[#allocation14 + $0x70] sm:$0xff]
    %v4731 = vld [vmem:[#allocation14 + $0x78] sm:$0xff]
    %v4732 = vld [vmem:[#allocation14 + $0x80] sm:$0xff]
    %v4733 = vld [vmem:[#allocation14 + $0x88] sm:$0xff]
    %v4734 = vld [vmem:[#allocation14 + $0x90] sm:$0xff]
    %v4735 = vld [vmem:[#allocation14 + $0x98] sm:$0xff]
    %v4736 = vld [vmem:[#allocation14 + $0xa0] sm:$0xff]
    %v4737 = vld [vmem:[#allocation14 + $0xa8] sm:$0xff]
    %v4738 = vld [vmem:[#allocation14 + $0xb0] sm:$0xff]
    %v4739 = vld [vmem:[#allocation14 + $0xb8] sm:$0xff]
    %v4740 = vld [vmem:[#allocation14 + $0xc0] sm:$0xff]
    %v4741 = vld [vmem:[#allocation14 + $0xc8] sm:$0xff]
    %v4742 = vld [vmem:[#allocation14 + $0xd0] sm:$0xff]
    %v4743 = vld [vmem:[#allocation14 + $0xd8] sm:$0xff]
    %v4744 = vld [vmem:[#allocation14 + $0xe0] sm:$0xff]
    %v4745 = vld [vmem:[#allocation14 + $0xe8] sm:$0xff]
    %v4746 = vld [vmem:[#allocation14 + $0xf0] sm:$0xff]
    %v4747 = vld [vmem:[#allocation14 + $0xf8] sm:$0xff]
    %v4748 = vld [vmem:[#allocation14 + $0x100] sm:$0xff]
    %v4749 = vld [vmem:[#allocation14 + $0x108] sm:$0xff]
    %v4750 = vld [vmem:[#allocation14 + $0x110] sm:$0xff]
    %v4751 = vld [vmem:[#allocation14 + $0x118] sm:$0xff]
    %v4752 = vld [vmem:[#allocation14 + $0x120] sm:$0xff]
    %v4753 = vld [vmem:[#allocation14 + $0x128] sm:$0xff]
    %v4754 = vld [vmem:[#allocation14 + $0x130] sm:$0xff]
    %v4755 = vld [vmem:[#allocation14 + $0x138] sm:$0xff]
    %v4756 = vld [vmem:[#allocation14 + $0x140] sm:$0xff]
    %v4757 = vld [vmem:[#allocation14 + $0x148] sm:$0xff]
    %v4758 = vld [vmem:[#allocation14 + $0x150] sm:$0xff]
    %v4759 = vld [vmem:[#allocation14 + $0x158] sm:$0xff]
    %v4760 = vld [vmem:[#allocation14 + $0x160] sm:$0xff]
    %v4761 = vld [vmem:[#allocation14 + $0x168] sm:$0xff]
    %v4762 = vld [vmem:[#allocation14 + $0x170] sm:$0xff]
    %v4763 = vld [vmem:[#allocation14 + $0x178] sm:$0xff]
    %v4764 = vld [vmem:[#allocation14 + $0x180] sm:$0xff]
    %v4765 = vld [vmem:[#allocation14 + $0x188] sm:$0xff]
    %v4766 = vld [vmem:[#allocation14 + $0x190] sm:$0xff]
    %v4767 = vld [vmem:[#allocation14 + $0x198] sm:$0xff]
    %v4768 = vld [vmem:[#allocation14 + $0x1a0] sm:$0xff]
    %v4769 = vld [vmem:[#allocation14 + $0x1a8] sm:$0xff]
    %v4770 = vld [vmem:[#allocation14 + $0x1b0] sm:$0xff]
    %v4771 = vld [vmem:[#allocation14 + $0x1b8] sm:$0xff]
    %v4772 = vld [vmem:[#allocation14 + $0x1c0] sm:$0xff]
    %v4773 = vld [vmem:[#allocation14 + $0x1c8] sm:$0xff]
    %v4774 = vld [vmem:[#allocation14 + $0x1d0] sm:$0xff]
    %v4775 = vld [vmem:[#allocation14 + $0x1d8] sm:$0xff]
    %v4776 = vld [vmem:[#allocation14 + $0x1e0] sm:$0xff]
    %v4777 = vld [vmem:[#allocation14 + $0x1e8] sm:$0xff]
    %v4778 = vld [vmem:[#allocation14 + $0x1f0] sm:$0xff]
    %v4779 = vld [vmem:[#allocation14 + $0x1f8] sm:$0xff]
    %v4780 = vld [vmem:[#allocation14 + $0x200] sm:$0xff]
    %v4781 = vld [vmem:[#allocation14 + $0x208] sm:$0xff]
    %v4782 = vld [vmem:[#allocation14 + $0x210] sm:$0xff]
    %v4783 = vld [vmem:[#allocation14 + $0x218] sm:$0xff]
    %v4784 = vld [vmem:[#allocation14 + $0x220] sm:$0xff]
    %v4785 = vld [vmem:[#allocation14 + $0x228] sm:$0xff]
    %v4786 = vld [vmem:[#allocation14 + $0x230] sm:$0xff]
    %v4787 = vld [vmem:[#allocation14 + $0x238] sm:$0xff]
    %v4788 = vld [vmem:[#allocation14 + $0x240] sm:$0xff]
    %v4789 = vld [vmem:[#allocation14 + $0x248] sm:$0xff]
    %v4790 = vld [vmem:[#allocation14 + $0x250] sm:$0xff]
    %v4791 = vld [vmem:[#allocation14 + $0x258] sm:$0xff]
    %v4792 = vld [vmem:[#allocation14 + $0x260] sm:$0xff]
    %v4793 = vld [vmem:[#allocation14 + $0x268] sm:$0xff]
    %v4794 = vld [vmem:[#allocation14 + $0x270] sm:$0xff]
    %v4795 = vld [vmem:[#allocation14 + $0x278] sm:$0xff]
    %v4796 = vld [vmem:[#allocation14 + $0x280] sm:$0xff]
    %v4797 = vld [vmem:[#allocation14 + $0x288] sm:$0xff]
    %v4798 = vld [vmem:[#allocation14 + $0x290] sm:$0xff]
    %v4799 = vld [vmem:[#allocation14 + $0x298] sm:$0xff]
    %v4800 = vld [vmem:[#allocation14 + $0x2a0] sm:$0xff]
    %v4801 = vld [vmem:[#allocation14 + $0x2a8] sm:$0xff]
    %v4802 = vld [vmem:[#allocation14 + $0x2b0] sm:$0xff]
    %v4803 = vld [vmem:[#allocation14 + $0x2b8] sm:$0xff]
    %v4804 = vld [vmem:[#allocation14 + $0x2c0] sm:$0xff]
    %v4805 = vld [vmem:[#allocation14 + $0x2c8] sm:$0xff]
    %v4806 = vld [vmem:[#allocation14 + $0x2d0] sm:$0xff]
    %v4807 = vld [vmem:[#allocation14 + $0x2d8] sm:$0xff]
    %v4808 = vld [vmem:[#allocation14 + $0x2e0] sm:$0xff]
    %v4809 = vld [vmem:[#allocation14 + $0x2e8] sm:$0xff]
    %v4810 = vld [vmem:[#allocation14 + $0x2f0] sm:$0xff]
    %v4811 = vld [vmem:[#allocation14 + $0x2f8] sm:$0xff]
    %v4812 = vld [vmem:[#allocation15] sm:$0x3]
    %v4814 = vperm.slane %v4812, 0
    %v4815 = vperm.slane %v4812, 1
    %4818 = vst [vmem:[#allocation1] ss:$2 sm:$0xff] %v4674
    %s4819 = scalar_lea.vmem [#allocation1], 1
    %4820 = vst [vmem:[%s4819] ss:$2 sm:$0xff] %v4676
    %s4821 = scalar_lea.vmem [#allocation1], 16
    %4822 = vst [vmem:[%s4821] ss:$2 sm:$0xff] %v4641
    %s4823 = scalar_lea.vmem [#allocation1], 17
    %4824 = vst [vmem:[%s4823] ss:$2 sm:$0xff] %v4677
    %s4825 = scalar_lea.vmem [#allocation1], 32
    %4826 = vst [vmem:[%s4825] ss:$2 sm:$0xff] %v4678
    %s4827 = scalar_lea.vmem [#allocation1], 33
    %4828 = vst [vmem:[%s4827] ss:$2 sm:$0xff] %v4680
    %s4829 = scalar_lea.vmem [#allocation1], 48
    %4830 = vst [vmem:[%s4829] ss:$2 sm:$0xff] %v4643
    %s4831 = scalar_lea.vmem [#allocation1], 49
    %4832 = vst [vmem:[%s4831] ss:$2 sm:$0xff] %v4681
    %v4833 = vld.sshfl [vmem:[#allocation1] sm:$0xff pattern:$0x75316420]
    %v4834 = vld.sshfl [vmem:[#allocation1 + $0x8] sm:$0xff pattern:$0x75316420]
    %v4835 = vld.sshfl [vmem:[#allocation1 + $0x10] sm:$0xff pattern:$0x75316420]
    %v4836 = vld.sshfl [vmem:[#allocation1 + $0x20] sm:$0xff pattern:$0x75316420]
    %v4837 = vld.sshfl [vmem:[#allocation1 + $0x28] sm:$0xff pattern:$0x75316420]
    %v4838 = vld.sshfl [vmem:[#allocation1 + $0x30] sm:$0xff pattern:$0x75316420]
    %4839 = vst [vmem:[#allocation1] ss:$2 sm:$0xff] %v4682
    %4840 = vst [vmem:[%s4819] ss:$2 sm:$0xff] %v4684
    %4841 = vst [vmem:[%s4821] ss:$2 sm:$0xff] %v4645
    %4842 = vst [vmem:[%s4823] ss:$2 sm:$0xff] %v4685
    %4843 = vst [vmem:[%s4825] ss:$2 sm:$0xff] %v4686
    %4844 = vst [vmem:[%s4827] ss:$2 sm:$0xff] %v4688
    %4845 = vst [vmem:[%s4829] ss:$2 sm:$0xff] %v4647
    %4846 = vst [vmem:[%s4831] ss:$2 sm:$0xff] %v4689
    %v4847 = vld.sshfl [vmem:[#allocation1] sm:$0xff pattern:$0x75316420]
    %v4848 = vld.sshfl [vmem:[#allocation1 + $0x8] sm:$0xff pattern:$0x75316420]
    %v4849 = vld.sshfl [vmem:[#allocation1 + $0x10] sm:$0xff pattern:$0x75316420]
    %v4850 = vld.sshfl [vmem:[#allocation1 + $0x20] sm:$0xff pattern:$0x75316420]
    %v4851 = vld.sshfl [vmem:[#allocation1 + $0x28] sm:$0xff pattern:$0x75316420]
    %v4852 = vld.sshfl [vmem:[#allocation1 + $0x30] sm:$0xff pattern:$0x75316420]
    %4853 = vst [vmem:[#allocation1] ss:$2 sm:$0xff] %v4690
    %4854 = vst [vmem:[%s4819] ss:$2 sm:$0xff] %v4692
    %4855 = vst [vmem:[%s4821] ss:$2 sm:$0xff] %v4649
    %4856 = vst [vmem:[%s4823] ss:$2 sm:$0xff] %v4693
    %4857 = vst [vmem:[%s4825] ss:$2 sm:$0xff] %v4694
    %4858 = vst [vmem:[%s4827] ss:$2 sm:$0xff] %v4695
    %4859 = vst [vmem:[%s4829] ss:$2 sm:$0xff] %v4648
    %4860 = vst [vmem:[%s4831] ss:$2 sm:$0xff] %v4652
    %v4861 = vld.sshfl [vmem:[#allocation1] sm:$0xff pattern:$0x75316420]
    %v4862 = vld.sshfl [vmem:[#allocation1 + $0x8] sm:$0xff pattern:$0x75316420]
    %v4863 = vld.sshfl [vmem:[#allocation1 + $0x10] sm:$0xff pattern:$0x75316420]
    %v4864 = vld.sshfl [vmem:[#allocation1 + $0x20] sm:$0xff pattern:$0x75316420]
    %v4865 = vld.sshfl [vmem:[#allocation1 + $0x28] sm:$0xff pattern:$0x75316420]
    %v4866 = vld.sshfl [vmem:[#allocation1 + $0x30] sm:$0xff pattern:$0x75316420]
    %4867 = vst [vmem:[#allocation1] ss:$2 sm:$0xff] %v4697
    %4868 = vst [vmem:[%s4819] ss:$2 sm:$0xff] %v4699
    %4869 = vst [vmem:[%s4821] ss:$2 sm:$0xff] %v4698
    %4870 = vst [vmem:[%s4823] ss:$2 sm:$0xff] %v4654
    %4871 = vst [vmem:[%s4825] ss:$2 sm:$0xff] %v4701
    %4872 = vst [vmem:[%s4827] ss:$2 sm:$0xff] %v4703
    %4873 = vst [vmem:[%s4829] ss:$2 sm:$0xff] %v4702
    %4874 = vst [vmem:[%s4831] ss:$2 sm:$0xff] %v4656
    %v4875 = vld.sshfl [vmem:[#allocation1] sm:$0xff pattern:$0x75316420]
    %v4876 = vld.sshfl [vmem:[#allocation1 + $0x8] sm:$0xff pattern:$0x75316420]
    %v4877 = vld.sshfl [vmem:[#allocation1 + $0x10] sm:$0xff pattern:$0x75316420]
    %v4878 = vld.sshfl [vmem:[#allocation1 + $0x20] sm:$0xff pattern:$0x75316420]
    %v4879 = vld.sshfl [vmem:[#allocation1 + $0x28] sm:$0xff pattern:$0x75316420]
    %v4880 = vld.sshfl [vmem:[#allocation1 + $0x30] sm:$0xff pattern:$0x75316420]
    %4881 = vst [vmem:[#allocation1] ss:$2 sm:$0xff] %v4705
    %4882 = vst [vmem:[%s4819] ss:$2 sm:$0xff] %v4707
    %4883 = vst [vmem:[%s4821] ss:$2 sm:$0xff] %v4706
    %4884 = vst [vmem:[%s4823] ss:$2 sm:$0xff] %v4658
    %4885 = vst [vmem:[%s4825] ss:$2 sm:$0xff] %v4709
    %4886 = vst [vmem:[%s4827] ss:$2 sm:$0xff] %v4711
    %4887 = vst [vmem:[%s4829] ss:$2 sm:$0xff] %v4710
    %4888 = vst [vmem:[%s4831] ss:$2 sm:$0xff] %v4660
    %v4889 = vld.sshfl [vmem:[#allocation1] sm:$0xff pattern:$0x75316420]
    %v4890 = vld.sshfl [vmem:[#allocation1 + $0x8] sm:$0xff pattern:$0x75316420]
    %v4891 = vld.sshfl [vmem:[#allocation1 + $0x10] sm:$0xff pattern:$0x75316420]
    %v4892 = vld.sshfl [vmem:[#allocation1 + $0x20] sm:$0xff pattern:$0x75316420]
    %v4893 = vld.sshfl [vmem:[#allocation1 + $0x28] sm:$0xff pattern:$0x75316420]
    %v4894 = vld.sshfl [vmem:[#allocation1 + $0x30] sm:$0xff pattern:$0x75316420]
    %4895 = vst [vmem:[#allocation1] ss:$2 sm:$0xff] %v4713
    %4896 = vst [vmem:[%s4819] ss:$2 sm:$0xff] %v4715
    %4897 = vst [vmem:[%s4821] ss:$2 sm:$0xff] %v4714
    %4898 = vst [vmem:[%s4823] ss:$2 sm:$0xff] %v4659
    %v4899 = vld.sshfl [vmem:[#allocation1] sm:$0xff pattern:$0x75316420]
    %v4900 = vld.sshfl [vmem:[#allocation1 + $0x8] sm:$0xff pattern:$0x75316420]
    %v4901 = vld.sshfl [vmem:[#allocation1 + $0x10] sm:$0xff pattern:$0x75316420]
    %4935 = vmatpush.msra.mxu0 %v4746
    %4936 = vmatpush.msra.mxu0 %v4744
    %4937 = vmatpush.msra.mxu0 %v4742
    %4938 = vmatpush.msra.mxu0 %v4740
    %4939 = vmatpush.msra.mxu0 %v4738
    %4940 = vmatpush.msra.mxu0 %v4736
    %4941 = vmatpush.msra.mxu0 %v4734
    %4942 = vmatpush.msra.mxu0 %v4732
    %4943 = vmatpush.msra.mxu0 %v4730
    %4944 = vmatpush.msra.mxu0 %v4728
    %4945 = vmatpush.msra.mxu0 %v4726
    %4946 = vmatpush.msra.mxu0 %v4724
    %4947 = vmatpush.msra.mxu0 %v4722
    %4948 = vmatpush.msra.mxu0 %v4720
    %4949 = vmatpush.msra.mxu0 %v4718
    %4950 = vmatpush.msra.mxu0 %v4716
    %4951 = vmatmul.f32.gmra.mxu0 %v4833
    %v4952 = vpop.f32.mrf.mxu0
    %v4953 = vadd.f32 %v4814, %v4952
    %4954 = vmatmul.f32.gmra.mxu0 %v4836
    %v4955 = vpop.f32.mrf.mxu0
    %v4956 = vadd.f32 %v4814, %v4955
    %4957 = vmatmul.f32.gmra.mxu0 %v4847
    %v4958 = vpop.f32.mrf.mxu0
    %v4959 = vadd.f32 %v4814, %v4958
    %4960 = vmatmul.f32.gmra.mxu0 %v4850
    %v4961 = vpop.f32.mrf.mxu0
    %v4962 = vadd.f32 %v4814, %v4961
    %4963 = vmatmul.f32.gmra.mxu0 %v4861
    %v4964 = vpop.f32.mrf.mxu0
    %v4965 = vadd.f32 %v4814, %v4964
    %4966 = vmatmul.f32.gmra.mxu0 %v4864
    %v4967 = vpop.f32.mrf.mxu0
    %v4968 = vadd.f32 %v4814, %v4967
    %4969 = vmatmul.f32.gmra.mxu0 %v4875
    %v4970 = vpop.f32.mrf.mxu0
    %v4971 = vadd.f32 %v4814, %v4970
    %4972 = vmatmul.f32.gmra.mxu0 %v4878
    %v4973 = vpop.f32.mrf.mxu0
    %v4974 = vadd.f32 %v4814, %v4973
    %4975 = vmatmul.f32.gmra.mxu0 %v4889
    %v4976 = vpop.f32.mrf.mxu0
    %v4977 = vadd.f32 %v4814, %v4976
    %4978 = vmatmul.f32.gmra.mxu0 %v4892
    %v4979 = vpop.f32.mrf.mxu0
    %v4980 = vadd.f32 %v4814, %v4979
    %4981 = vmatmul.f32.gmra.mxu0 %v4899
    %v4982 = vpop.f32.mrf.mxu0
    %v4983 = vadd.f32 %v4814, %v4982
    %4984 = vdwg.mxu0
    %4985 = vmatpush.msra.mxu0 %v4778
    %4986 = vmatpush.msra.mxu0 %v4776
    %4987 = vmatpush.msra.mxu0 %v4774
    %4988 = vmatpush.msra.mxu0 %v4772
    %4989 = vmatpush.msra.mxu0 %v4770
    %4990 = vmatpush.msra.mxu0 %v4768
    %4991 = vmatpush.msra.mxu0 %v4766
    %4992 = vmatpush.msra.mxu0 %v4764
    %4993 = vmatpush.msra.mxu0 %v4762
    %4994 = vmatpush.msra.mxu0 %v4760
    %4995 = vmatpush.msra.mxu0 %v4758
    %4996 = vmatpush.msra.mxu0 %v4756
    %4997 = vmatpush.msra.mxu0 %v4754
    %4998 = vmatpush.msra.mxu0 %v4752
    %4999 = vmatpush.msra.mxu0 %v4750
    %5000 = vmatpush.msra.mxu0 %v4748
    %5001 = vmatmul.f32.gmra.mxu0 %v4834
    %v5002 = vpop.f32.mrf.mxu0
    %v5003 = vadd.f32 %v4953, %v5002
    %5004 = vmatmul.f32.gmra.mxu0 %v4837
    %v5005 = vpop.f32.mrf.mxu0
    %v5006 = vadd.f32 %v4956, %v5005
    %5007 = vmatmul.f32.gmra.mxu0 %v4848
    %v5008 = vpop.f32.mrf.mxu0
    %v5009 = vadd.f32 %v4959, %v5008
    %5010 = vmatmul.f32.gmra.mxu0 %v4851
    %v5011 = vpop.f32.mrf.mxu0
    %v5012 = vadd.f32 %v4962, %v5011
    %5013 = vmatmul.f32.gmra.mxu0 %v4862
    %v5014 = vpop.f32.mrf.mxu0
    %v5015 = vadd.f32 %v4965, %v5014
    %5016 = vmatmul.f32.gmra.mxu0 %v4865
    %v5017 = vpop.f32.mrf.mxu0
    %v5018 = vadd.f32 %v4968, %v5017
    %5019 = vmatmul.f32.gmra.mxu0 %v4876
    %v5020 = vpop.f32.mrf.mxu0
    %v5021 = vadd.f32 %v4971, %v5020
    %5022 = vmatmul.f32.gmra.mxu0 %v4879
    %v5023 = vpop.f32.mrf.mxu0
    %v5024 = vadd.f32 %v4974, %v5023
    %5025 = vmatmul.f32.gmra.mxu0 %v4890
    %v5026 = vpop.f32.mrf.mxu0
    %v5027 = vadd.f32 %v4977, %v5026
    %5028 = vmatmul.f32.gmra.mxu0 %v4893
    %v5029 = vpop.f32.mrf.mxu0
    %v5030 = vadd.f32 %v4980, %v5029
    %5031 = vmatmul.f32.gmra.mxu0 %v4900
    %v5032 = vpop.f32.mrf.mxu0
    %v5033 = vadd.f32 %v4983, %v5032
    %5034 = vdwg.mxu0
    %5035 = vmatpush.msra.mxu0 %v4810
    %5036 = vmatpush.msra.mxu0 %v4808
    %5037 = vmatpush.msra.mxu0 %v4806
    %5038 = vmatpush.msra.mxu0 %v4804
    %5039 = vmatpush.msra.mxu0 %v4802
    %5040 = vmatpush.msra.mxu0 %v4800
    %5041 = vmatpush.msra.mxu0 %v4798
    %5042 = vmatpush.msra.mxu0 %v4796
    %5043 = vmatpush.msra.mxu0 %v4794
    %5044 = vmatpush.msra.mxu0 %v4792
    %5045 = vmatpush.msra.mxu0 %v4790
    %5046 = vmatpush.msra.mxu0 %v4788
    %5047 = vmatpush.msra.mxu0 %v4786
    %5048 = vmatpush.msra.mxu0 %v4784
    %5049 = vmatpush.msra.mxu0 %v4782
    %5050 = vmatpush.msra.mxu0 %v4780
    %5051 = vmatmul.f32.gmra.mxu0 %v4835
    %v5052 = vpop.f32.mrf.mxu0
    %v5053 = vadd.f32 %v5003, %v5052
    %5054 = vmatmul.f32.gmra.mxu0 %v4838
    %v5055 = vpop.f32.mrf.mxu0
    %v5056 = vadd.f32 %v5006, %v5055
    %5057 = vmatmul.f32.gmra.mxu0 %v4849
    %v5058 = vpop.f32.mrf.mxu0
    %v5059 = vadd.f32 %v5009, %v5058
    %5060 = vmatmul.f32.gmra.mxu0 %v4852
    %v5061 = vpop.f32.mrf.mxu0
    %v5062 = vadd.f32 %v5012, %v5061
    %5063 = vmatmul.f32.gmra.mxu0 %v4863
    %v5064 = vpop.f32.mrf.mxu0
    %v5065 = vadd.f32 %v5015, %v5064
    %5066 = vmatmul.f32.gmra.mxu0 %v4866
    %v5067 = vpop.f32.mrf.mxu0
    %v5068 = vadd.f32 %v5018, %v5067
    %5069 = vmatmul.f32.gmra.mxu0 %v4877
    %v5070 = vpop.f32.mrf.mxu0
    %v5071 = vadd.f32 %v5021, %v5070
    %5072 = vmatmul.f32.gmra.mxu0 %v4880
    %v5073 = vpop.f32.mrf.mxu0
    %v5074 = vadd.f32 %v5024, %v5073
    %5075 = vmatmul.f32.gmra.mxu0 %v4891
    %v5076 = vpop.f32.mrf.mxu0
    %v5077 = vadd.f32 %v5027, %v5076
    %5078 = vmatmul.f32.gmra.mxu0 %v4894
    %v5079 = vpop.f32.mrf.mxu0
    %v5080 = vadd.f32 %v5030, %v5079
    %5081 = vmatmul.f32.gmra.mxu0 %v4901
    %v5082 = vpop.f32.mrf.mxu0
    %v5083 = vadd.f32 %v5033, %v5082
    %5084 = vdwg.mxu0
    %5085 = vmatpush.msra.mxu0 %v4747
    %5086 = vmatpush.msra.mxu0 %v4745
    %5087 = vmatpush.msra.mxu0 %v4743
    %5088 = vmatpush.msra.mxu0 %v4741
    %5089 = vmatpush.msra.mxu0 %v4739
    %5090 = vmatpush.msra.mxu0 %v4737
    %5091 = vmatpush.msra.mxu0 %v4735
    %5092 = vmatpush.msra.mxu0 %v4733
    %5093 = vmatpush.msra.mxu0 %v4731
    %5094 = vmatpush.msra.mxu0 %v4729
    %5095 = vmatpush.msra.mxu0 %v4727
    %5096 = vmatpush.msra.mxu0 %v4725
    %5097 = vmatpush.msra.mxu0 %v4723
    %5098 = vmatpush.msra.mxu0 %v4721
    %5099 = vmatpush.msra.mxu0 %v4719
    %5100 = vmatpush.msra.mxu0 %v4717
    %5101 = vmatmul.f32.gmra.mxu0 %v4833
    %v5102 = vpop.f32.mrf.mxu0
    %v5103 = vadd.f32 %v4815, %v5102
    %5104 = vmatmul.f32.gmra.mxu0 %v4836
    %v5105 = vpop.f32.mrf.mxu0
    %v5106 = vadd.f32 %v4815, %v5105
    %5107 = vmatmul.f32.gmra.mxu0 %v4847
    %v5108 = vpop.f32.mrf.mxu0
    %v5109 = vadd.f32 %v4815, %v5108
    %5110 = vmatmul.f32.gmra.mxu0 %v4850
    %v5111 = vpop.f32.mrf.mxu0
    %v5112 = vadd.f32 %v4815, %v5111
    %5113 = vmatmul.f32.gmra.mxu0 %v4861
    %v5114 = vpop.f32.mrf.mxu0
    %v5115 = vadd.f32 %v4815, %v5114
    %5116 = vmatmul.f32.gmra.mxu0 %v4864
    %v5117 = vpop.f32.mrf.mxu0
    %v5118 = vadd.f32 %v4815, %v5117
    %5119 = vmatmul.f32.gmra.mxu0 %v4875
    %v5120 = vpop.f32.mrf.mxu0
    %v5121 = vadd.f32 %v4815, %v5120
    %5122 = vmatmul.f32.gmra.mxu0 %v4878
    %v5123 = vpop.f32.mrf.mxu0
    %v5124 = vadd.f32 %v4815, %v5123
    %5125 = vmatmul.f32.gmra.mxu0 %v4889
    %v5126 = vpop.f32.mrf.mxu0
    %v5127 = vadd.f32 %v4815, %v5126
    %5128 = vmatmul.f32.gmra.mxu0 %v4892
    %v5129 = vpop.f32.mrf.mxu0
    %v5130 = vadd.f32 %v4815, %v5129
    %5131 = vmatmul.f32.gmra.mxu0 %v4899
    %v5132 = vpop.f32.mrf.mxu0
    %v5133 = vadd.f32 %v4815, %v5132
    %5134 = vdwg.mxu0
    %5135 = vmatpush.msra.mxu0 %v4779
    %5136 = vmatpush.msra.mxu0 %v4777
    %5137 = vmatpush.msra.mxu0 %v4775
    %5138 = vmatpush.msra.mxu0 %v4773
    %5139 = vmatpush.msra.mxu0 %v4771
    %5140 = vmatpush.msra.mxu0 %v4769
    %5141 = vmatpush.msra.mxu0 %v4767
    %5142 = vmatpush.msra.mxu0 %v4765
    %5143 = vmatpush.msra.mxu0 %v4763
    %5144 = vmatpush.msra.mxu0 %v4761
    %5145 = vmatpush.msra.mxu0 %v4759
    %5146 = vmatpush.msra.mxu0 %v4757
    %5147 = vmatpush.msra.mxu0 %v4755
    %5148 = vmatpush.msra.mxu0 %v4753
    %5149 = vmatpush.msra.mxu0 %v4751
    %5150 = vmatpush.msra.mxu0 %v4749
    %5151 = vmatmul.f32.gmra.mxu0 %v4834
    %v5152 = vpop.f32.mrf.mxu0
    %v5153 = vadd.f32 %v5103, %v5152
    %5154 = vmatmul.f32.gmra.mxu0 %v4837
    %v5155 = vpop.f32.mrf.mxu0
    %v5156 = vadd.f32 %v5106, %v5155
    %5157 = vmatmul.f32.gmra.mxu0 %v4848
    %v5158 = vpop.f32.mrf.mxu0
    %v5159 = vadd.f32 %v5109, %v5158
    %5160 = vmatmul.f32.gmra.mxu0 %v4851
    %v5161 = vpop.f32.mrf.mxu0
    %v5162 = vadd.f32 %v5112, %v5161
    %5163 = vmatmul.f32.gmra.mxu0 %v4862
    %v5164 = vpop.f32.mrf.mxu0
    %v5165 = vadd.f32 %v5115, %v5164
    %5166 = vmatmul.f32.gmra.mxu0 %v4865
    %v5167 = vpop.f32.mrf.mxu0
    %v5168 = vadd.f32 %v5118, %v5167
    %5169 = vmatmul.f32.gmra.mxu0 %v4876
    %v5170 = vpop.f32.mrf.mxu0
    %v5171 = vadd.f32 %v5121, %v5170
    %5172 = vmatmul.f32.gmra.mxu0 %v4879
    %v5173 = vpop.f32.mrf.mxu0
    %v5174 = vadd.f32 %v5124, %v5173
    %5175 = vmatmul.f32.gmra.mxu0 %v4890
    %v5176 = vpop.f32.mrf.mxu0
    %v5177 = vadd.f32 %v5127, %v5176
    %5178 = vmatmul.f32.gmra.mxu0 %v4893
    %v5179 = vpop.f32.mrf.mxu0
    %v5180 = vadd.f32 %v5130, %v5179
    %5181 = vmatmul.f32.gmra.mxu0 %v4900
    %v5182 = vpop.f32.mrf.mxu0
    %v5183 = vadd.f32 %v5133, %v5182
    %5184 = vdwg.mxu0
    %5185 = vmatpush.msra.mxu0 %v4811
    %5186 = vmatpush.msra.mxu0 %v4809
    %5187 = vmatpush.msra.mxu0 %v4807
    %5188 = vmatpush.msra.mxu0 %v4805
    %5189 = vmatpush.msra.mxu0 %v4803
    %5190 = vmatpush.msra.mxu0 %v4801
    %5191 = vmatpush.msra.mxu0 %v4799
    %5192 = vmatpush.msra.mxu0 %v4797
    %5193 = vmatpush.msra.mxu0 %v4795
    %5194 = vmatpush.msra.mxu0 %v4793
    %5195 = vmatpush.msra.mxu0 %v4791
    %5196 = vmatpush.msra.mxu0 %v4789
    %5197 = vmatpush.msra.mxu0 %v4787
    %5198 = vmatpush.msra.mxu0 %v4785
    %5199 = vmatpush.msra.mxu0 %v4783
    %5200 = vmatpush.msra.mxu0 %v4781
    %5201 = vmatmul.f32.gmra.mxu0 %v4835
    %v5202 = vpop.f32.mrf.mxu0
    %v5203 = vadd.f32 %v5153, %v5202
    %5204 = vmatmul.f32.gmra.mxu0 %v4838
    %v5205 = vpop.f32.mrf.mxu0
    %v5206 = vadd.f32 %v5156, %v5205
    %5207 = vmatmul.f32.gmra.mxu0 %v4849
    %v5208 = vpop.f32.mrf.mxu0
    %v5209 = vadd.f32 %v5159, %v5208
    %5210 = vmatmul.f32.gmra.mxu0 %v4852
    %v5211 = vpop.f32.mrf.mxu0
    %v5212 = vadd.f32 %v5162, %v5211
    %5213 = vmatmul.f32.gmra.mxu0 %v4863
    %v5214 = vpop.f32.mrf.mxu0
    %v5215 = vadd.f32 %v5165, %v5214
    %5216 = vmatmul.f32.gmra.mxu0 %v4866
    %v5217 = vpop.f32.mrf.mxu0
    %v5218 = vadd.f32 %v5168, %v5217
    %5219 = vmatmul.f32.gmra.mxu0 %v4877
    %v5220 = vpop.f32.mrf.mxu0
    %v5221 = vadd.f32 %v5171, %v5220
    %5222 = vmatmul.f32.gmra.mxu0 %v4880
    %v5223 = vpop.f32.mrf.mxu0
    %v5224 = vadd.f32 %v5174, %v5223
    %5225 = vmatmul.f32.gmra.mxu0 %v4891
    %v5226 = vpop.f32.mrf.mxu0
    %v5227 = vadd.f32 %v5177, %v5226
    %5228 = vmatmul.f32.gmra.mxu0 %v4894
    %v5229 = vpop.f32.mrf.mxu0
    %v5230 = vadd.f32 %v5180, %v5229
    %5231 = vmatmul.f32.gmra.mxu0 %v4901
    %v5232 = vpop.f32.mrf.mxu0
    %v5233 = vadd.f32 %v5183, %v5232
    %5234 = vdwg.mxu0
    %v5235 = vmax.f32 %v5053, 0.0
    %v5236 = vmax.f32 %v5203, 0.0
    %v5237 = vmax.f32 %v5056, 0.0
    %v5238 = vmax.f32 %v5206, 0.0
    %v5239 = vmax.f32 %v5059, 0.0
    %v5240 = vmax.f32 %v5209, 0.0
    %v5241 = vmax.f32 %v5062, 0.0
    %v5242 = vmax.f32 %v5212, 0.0
    %v5243 = vmax.f32 %v5065, 0.0
    %v5244 = vmax.f32 %v5215, 0.0
    %v5245 = vmax.f32 %v5068, 0.0
    %v5246 = vmax.f32 %v5218, 0.0
    %v5247 = vmax.f32 %v5071, 0.0
    %v5248 = vmax.f32 %v5221, 0.0
    %v5249 = vmax.f32 %v5074, 0.0
    %v5250 = vmax.f32 %v5224, 0.0
    %v5251 = vmax.f32 %v5077, 0.0
    %v5252 = vmax.f32 %v5227, 0.0
    %v5253 = vmax.f32 %v5080, 0.0
    %v5254 = vmax.f32 %v5230, 0.0
    %v5255 = vmax.f32 %v5083, 0.0
    %v5256 = vmax.f32 %v5233, 0.0
    %v5279 = vrot.slane %v5236, 6
    %v5280 = vrot.slane %v5238, 6
    %v5281 = vrot.slane %v5240, 6
    %v5282 = vrot.slane %v5242, 6
    %v5283 = vrot.slane %v5244, 6
    %v5284 = vrot.slane %v5246, 6
    %v5285 = vrot.slane %v5248, 6
    %v5286 = vrot.slane %v5250, 6
    %v5287 = vrot.slane %v5252, 6
    %v5288 = vrot.slane %v5254, 6
    %v5289 = vrot.slane %v5256, 6
    %v5290 = vsel %vm3823, %v5235, %v5279
    %vm5291 = vcmask 1043458
    %v5292 = vsel %vm5291, %v5235, %v5279
    %v5293 = vrot.slane %v5292, 2
    %vm5294 = vcmask 1045508
    %v5295 = vsel %vm5294, %v5235, %v5279
    %v5296 = vrot.slane %v5295, 4
    %v5297 = vsel %vm1049, %v5279, %v5235
    %v5298 = vrot.slane %v5297, 6
    %v5299 = vsel %vm3823, %v5237, %v5280
    %v5300 = vsel %vm5291, %v5237, %v5280
    %v5301 = vrot.slane %v5300, 2
    %v5302 = vsel %vm5294, %v5237, %v5280
    %v5303 = vrot.slane %v5302, 4
    %v5304 = vsel %vm1049, %v5280, %v5237
    %v5305 = vrot.slane %v5304, 6
    %v5306 = vsel %vm3823, %v5239, %v5281
    %v5307 = vsel %vm5291, %v5239, %v5281
    %v5308 = vrot.slane %v5307, 2
    %v5309 = vsel %vm5294, %v5239, %v5281
    %v5310 = vrot.slane %v5309, 4
    %v5311 = vsel %vm1049, %v5281, %v5239
    %v5312 = vrot.slane %v5311, 6
    %v5313 = vsel %vm3823, %v5241, %v5282
    %v5314 = vsel %vm5291, %v5241, %v5282
    %v5315 = vrot.slane %v5314, 2
    %v5316 = vsel %vm5294, %v5241, %v5282
    %v5317 = vrot.slane %v5316, 4
    %v5318 = vsel %vm1049, %v5282, %v5241
    %v5319 = vrot.slane %v5318, 6
    %v5320 = vsel %vm3823, %v5243, %v5283
    %v5321 = vsel %vm5291, %v5243, %v5283
    %v5322 = vrot.slane %v5321, 2
    %v5323 = vsel %vm5294, %v5243, %v5283
    %v5324 = vrot.slane %v5323, 4
    %v5325 = vsel %vm1049, %v5283, %v5243
    %v5326 = vrot.slane %v5325, 6
    %v5327 = vsel %vm3823, %v5245, %v5284
    %v5328 = vsel %vm5291, %v5245, %v5284
    %v5329 = vrot.slane %v5328, 2
    %v5330 = vsel %vm5294, %v5245, %v5284
    %v5331 = vrot.slane %v5330, 4
    %v5332 = vsel %vm1049, %v5284, %v5245
    %v5333 = vrot.slane %v5332, 6
    %v5334 = vsel %vm3823, %v5247, %v5285
    %v5335 = vsel %vm5291, %v5247, %v5285
    %v5336 = vrot.slane %v5335, 2
    %v5337 = vsel %vm5294, %v5247, %v5285
    %v5338 = vrot.slane %v5337, 4
    %v5339 = vsel %vm1049, %v5285, %v5247
    %v5340 = vrot.slane %v5339, 6
    %v5341 = vsel %vm3823, %v5249, %v5286
    %v5342 = vsel %vm5291, %v5249, %v5286
    %v5343 = vrot.slane %v5342, 2
    %v5344 = vsel %vm5294, %v5249, %v5286
    %v5345 = vrot.slane %v5344, 4
    %v5346 = vsel %vm1049, %v5286, %v5249
    %v5347 = vrot.slane %v5346, 6
    %v5348 = vsel %vm3823, %v5251, %v5287
    %v5349 = vsel %vm5291, %v5251, %v5287
    %v5350 = vrot.slane %v5349, 2
    %v5351 = vsel %vm5294, %v5251, %v5287
    %v5352 = vrot.slane %v5351, 4
    %v5353 = vsel %vm1049, %v5287, %v5251
    %v5354 = vrot.slane %v5353, 6
    %v5355 = vsel %vm3823, %v5253, %v5288
    %v5356 = vsel %vm5291, %v5253, %v5288
    %v5357 = vrot.slane %v5356, 2
    %v5358 = vsel %vm5294, %v5253, %v5288
    %v5359 = vrot.slane %v5358, 4
    %v5360 = vsel %vm1049, %v5288, %v5253
    %v5361 = vrot.slane %v5360, 6
    %v5362 = vsel %vm3823, %v5255, %v5289
    %v5363 = vsel %vm5291, %v5255, %v5289
    %v5364 = vrot.slane %v5363, 2
    %v5365 = vsel %vm5294, %v5255, %v5289
    %v5366 = vrot.slane %v5365, 4
    %v5367 = vsel %vm1049, %v5289, %v5255
    %v5368 = vrot.slane %v5367, 6
    %5369 = vst [vmem:[#allocation1] ss:$4 sm:$0xff] %v5290
    %v5370 = vld.sshfl [vmem:[#allocation1] sm:$0xff pattern:$0x73625140]
    %v5371 = vld.sshfl [vmem:[#allocation1 + $0x8] sm:$0xff pattern:$0x73625140]
    %s5372 = scalar_lea.vmem [#allocation1], 32
    %5373 = vst [vmem:[%s5372] ss:$4 sm:$0xff] %v5293
    %v5374 = vld.sshfl [vmem:[#allocation1 + $0x20] sm:$0xff pattern:$0x73625140]
    %v5375 = vld.sshfl [vmem:[#allocation1 + $0x28] sm:$0xff pattern:$0x73625140]
    %5376 = vst [vmem:[#allocation1] ss:$4 sm:$0xff] %v5296
    %v5377 = vld.sshfl [vmem:[#allocation1] sm:$0xff pattern:$0x73625140]
    %v5378 = vld.sshfl [vmem:[#allocation1 + $0x8] sm:$0xff pattern:$0x73625140]
    %5379 = vst [vmem:[%s5372] ss:$4 sm:$0xff] %v5298
    %v5380 = vld.sshfl [vmem:[#allocation1 + $0x20] sm:$0xff pattern:$0x73625140]
    %v5381 = vld.sshfl [vmem:[#allocation1 + $0x28] sm:$0xff pattern:$0x73625140]
    %5382 = vst [vmem:[#allocation1] ss:$4 sm:$0xff] %v5299
    %v5383 = vld.sshfl [vmem:[#allocation1] sm:$0xff pattern:$0x73625140]
    %v5384 = vld.sshfl [vmem:[#allocation1 + $0x8] sm:$0xff pattern:$0x73625140]
    %5385 = vst [vmem:[%s5372] ss:$4 sm:$0xff] %v5301
    %v5386 = vld.sshfl [vmem:[#allocation1 + $0x20] sm:$0xff pattern:$0x73625140]
    %v5387 = vld.sshfl [vmem:[#allocation1 + $0x28] sm:$0xff pattern:$0x73625140]
    %5388 = vst [vmem:[#allocation1] ss:$4 sm:$0xff] %v5303
    %v5389 = vld.sshfl [vmem:[#allocation1] sm:$0xff pattern:$0x73625140]
    %v5390 = vld.sshfl [vmem:[#allocation1 + $0x8] sm:$0xff pattern:$0x73625140]
    %5391 = vst [vmem:[%s5372] ss:$4 sm:$0xff] %v5305
    %v5392 = vld.sshfl [vmem:[#allocation1 + $0x20] sm:$0xff pattern:$0x73625140]
    %v5393 = vld.sshfl [vmem:[#allocation1 + $0x28] sm:$0xff pattern:$0x73625140]
    %5394 = vst [vmem:[#allocation1] ss:$4 sm:$0xff] %v5306
    %v5395 = vld.sshfl [vmem:[#allocation1] sm:$0xff pattern:$0x73625140]
    %v5396 = vld.sshfl [vmem:[#allocation1 + $0x8] sm:$0xff pattern:$0x73625140]
    %5397 = vst [vmem:[%s5372] ss:$4 sm:$0xff] %v5308
    %v5398 = vld.sshfl [vmem:[#allocation1 + $0x20] sm:$0xff pattern:$0x73625140]
    %v5399 = vld.sshfl [vmem:[#allocation1 + $0x28] sm:$0xff pattern:$0x73625140]
    %5400 = vst [vmem:[#allocation1] ss:$4 sm:$0xff] %v5310
    %v5401 = vld.sshfl [vmem:[#allocation1] sm:$0xff pattern:$0x73625140]
    %v5402 = vld.sshfl [vmem:[#allocation1 + $0x8] sm:$0xff pattern:$0x73625140]
    %5403 = vst [vmem:[%s5372] ss:$4 sm:$0xff] %v5312
    %v5404 = vld.sshfl [vmem:[#allocation1 + $0x20] sm:$0xff pattern:$0x73625140]
    %v5405 = vld.sshfl [vmem:[#allocation1 + $0x28] sm:$0xff pattern:$0x73625140]
    %5406 = vst [vmem:[#allocation1] ss:$4 sm:$0xff] %v5313
    %v5407 = vld.sshfl [vmem:[#allocation1] sm:$0xff pattern:$0x73625140]
    %v5408 = vld.sshfl [vmem:[#allocation1 + $0x8] sm:$0xff pattern:$0x73625140]
    %5409 = vst [vmem:[%s5372] ss:$4 sm:$0xff] %v5315
    %v5410 = vld.sshfl [vmem:[#allocation1 + $0x20] sm:$0xff pattern:$0x73625140]
    %v5411 = vld.sshfl [vmem:[#allocation1 + $0x28] sm:$0xff pattern:$0x73625140]
    %5412 = vst [vmem:[#allocation1] ss:$4 sm:$0xff] %v5317
    %v5413 = vld.sshfl [vmem:[#allocation1] sm:$0xff pattern:$0x73625140]
    %v5414 = vld.sshfl [vmem:[#allocation1 + $0x8] sm:$0xff pattern:$0x73625140]
    %5415 = vst [vmem:[%s5372] ss:$4 sm:$0xff] %v5319
    %v5416 = vld.sshfl [vmem:[#allocation1 + $0x20] sm:$0xff pattern:$0x73625140]
    %v5417 = vld.sshfl [vmem:[#allocation1 + $0x28] sm:$0xff pattern:$0x73625140]
    %5418 = vst [vmem:[#allocation1] ss:$4 sm:$0xff] %v5320
    %v5419 = vld.sshfl [vmem:[#allocation1] sm:$0xff pattern:$0x73625140]
    %v5420 = vld.sshfl [vmem:[#allocation1 + $0x8] sm:$0xff pattern:$0x73625140]
    %5421 = vst [vmem:[%s5372] ss:$4 sm:$0xff] %v5322
    %v5422 = vld.sshfl [vmem:[#allocation1 + $0x20] sm:$0xff pattern:$0x73625140]
    %v5423 = vld.sshfl [vmem:[#allocation1 + $0x28] sm:$0xff pattern:$0x73625140]
    %5424 = vst [vmem:[#allocation1] ss:$4 sm:$0xff] %v5324
    %v5425 = vld.sshfl [vmem:[#allocation1] sm:$0xff pattern:$0x73625140]
    %v5426 = vld.sshfl [vmem:[#allocation1 + $0x8] sm:$0xff pattern:$0x73625140]
    %5427 = vst [vmem:[%s5372] ss:$4 sm:$0xff] %v5326
    %v5428 = vld.sshfl [vmem:[#allocation1 + $0x20] sm:$0xff pattern:$0x73625140]
    %v5429 = vld.sshfl [vmem:[#allocation1 + $0x28] sm:$0xff pattern:$0x73625140]
    %5430 = vst [vmem:[#allocation1] ss:$4 sm:$0xff] %v5327
    %v5431 = vld.sshfl [vmem:[#allocation1] sm:$0xff pattern:$0x73625140]
    %v5432 = vld.sshfl [vmem:[#allocation1 + $0x8] sm:$0xff pattern:$0x73625140]
    %5433 = vst [vmem:[%s5372] ss:$4 sm:$0xff] %v5329
    %v5434 = vld.sshfl [vmem:[#allocation1 + $0x20] sm:$0xff pattern:$0x73625140]
    %v5435 = vld.sshfl [vmem:[#allocation1 + $0x28] sm:$0xff pattern:$0x73625140]
    %5436 = vst [vmem:[#allocation1] ss:$4 sm:$0xff] %v5331
    %v5437 = vld.sshfl [vmem:[#allocation1] sm:$0xff pattern:$0x73625140]
    %v5438 = vld.sshfl [vmem:[#allocation1 + $0x8] sm:$0xff pattern:$0x73625140]
    %5439 = vst [vmem:[%s5372] ss:$4 sm:$0xff] %v5333
    %v5440 = vld.sshfl [vmem:[#allocation1 + $0x20] sm:$0xff pattern:$0x73625140]
    %v5441 = vld.sshfl [vmem:[#allocation1 + $0x28] sm:$0xff pattern:$0x73625140]
    %5442 = vst [vmem:[#allocation1] ss:$4 sm:$0xff] %v5334
    %v5443 = vld.sshfl [vmem:[#allocation1] sm:$0xff pattern:$0x73625140]
    %v5444 = vld.sshfl [vmem:[#allocation1 + $0x8] sm:$0xff pattern:$0x73625140]
    %5445 = vst [vmem:[%s5372] ss:$4 sm:$0xff] %v5336
    %v5446 = vld.sshfl [vmem:[#allocation1 + $0x20] sm:$0xff pattern:$0x73625140]
    %v5447 = vld.sshfl [vmem:[#allocation1 + $0x28] sm:$0xff pattern:$0x73625140]
    %5448 = vst [vmem:[#allocation1] ss:$4 sm:$0xff] %v5338
    %v5449 = vld.sshfl [vmem:[#allocation1] sm:$0xff pattern:$0x73625140]
    %v5450 = vld.sshfl [vmem:[#allocation1 + $0x8] sm:$0xff pattern:$0x73625140]
    %5451 = vst [vmem:[%s5372] ss:$4 sm:$0xff] %v5340
    %v5452 = vld.sshfl [vmem:[#allocation1 + $0x20] sm:$0xff pattern:$0x73625140]
    %v5453 = vld.sshfl [vmem:[#allocation1 + $0x28] sm:$0xff pattern:$0x73625140]
    %5454 = vst [vmem:[#allocation1] ss:$4 sm:$0xff] %v5341
    %v5455 = vld.sshfl [vmem:[#allocation1] sm:$0xff pattern:$0x73625140]
    %v5456 = vld.sshfl [vmem:[#allocation1 + $0x8] sm:$0xff pattern:$0x73625140]
    %5457 = vst [vmem:[%s5372] ss:$4 sm:$0xff] %v5343
    %v5458 = vld.sshfl [vmem:[#allocation1 + $0x20] sm:$0xff pattern:$0x73625140]
    %v5459 = vld.sshfl [vmem:[#allocation1 + $0x28] sm:$0xff pattern:$0x73625140]
    %5460 = vst [vmem:[#allocation1] ss:$4 sm:$0xff] %v5345
    %v5461 = vld.sshfl [vmem:[#allocation1] sm:$0xff pattern:$0x73625140]
    %v5462 = vld.sshfl [vmem:[#allocation1 + $0x8] sm:$0xff pattern:$0x73625140]
    %5463 = vst [vmem:[%s5372] ss:$4 sm:$0xff] %v5347
    %v5464 = vld.sshfl [vmem:[#allocation1 + $0x20] sm:$0xff pattern:$0x73625140]
    %v5465 = vld.sshfl [vmem:[#allocation1 + $0x28] sm:$0xff pattern:$0x73625140]
    %5466 = vst [vmem:[#allocation1] ss:$4 sm:$0xff] %v5348
    %v5467 = vld.sshfl [vmem:[#allocation1] sm:$0xff pattern:$0x73625140]
    %v5468 = vld.sshfl [vmem:[#allocation1 + $0x8] sm:$0xff pattern:$0x73625140]
    %5469 = vst [vmem:[%s5372] ss:$4 sm:$0xff] %v5350
    %v5470 = vld.sshfl [vmem:[#allocation1 + $0x20] sm:$0xff pattern:$0x73625140]
    %v5471 = vld.sshfl [vmem:[#allocation1 + $0x28] sm:$0xff pattern:$0x73625140]
    %5472 = vst [vmem:[#allocation1] ss:$4 sm:$0xff] %v5352
    %v5473 = vld.sshfl [vmem:[#allocation1] sm:$0xff pattern:$0x73625140]
    %v5474 = vld.sshfl [vmem:[#allocation1 + $0x8] sm:$0xff pattern:$0x73625140]
    %5475 = vst [vmem:[%s5372] ss:$4 sm:$0xff] %v5354
    %v5476 = vld.sshfl [vmem:[#allocation1 + $0x20] sm:$0xff pattern:$0x73625140]
    %v5477 = vld.sshfl [vmem:[#allocation1 + $0x28] sm:$0xff pattern:$0x73625140]
    %5478 = vst [vmem:[#allocation1] ss:$4 sm:$0xff] %v5355
    %v5479 = vld.sshfl [vmem:[#allocation1] sm:$0xff pattern:$0x73625140]
    %v5480 = vld.sshfl [vmem:[#allocation1 + $0x8] sm:$0xff pattern:$0x73625140]
    %5481 = vst [vmem:[%s5372] ss:$4 sm:$0xff] %v5357
    %v5482 = vld.sshfl [vmem:[#allocation1 + $0x20] sm:$0xff pattern:$0x73625140]
    %v5483 = vld.sshfl [vmem:[#allocation1 + $0x28] sm:$0xff pattern:$0x73625140]
    %5484 = vst [vmem:[#allocation1] ss:$4 sm:$0xff] %v5359
    %v5485 = vld.sshfl [vmem:[#allocation1] sm:$0xff pattern:$0x73625140]
    %v5486 = vld.sshfl [vmem:[#allocation1 + $0x8] sm:$0xff pattern:$0x73625140]
    %5487 = vst [vmem:[%s5372] ss:$4 sm:$0xff] %v5361
    %v5488 = vld.sshfl [vmem:[#allocation1 + $0x20] sm:$0xff pattern:$0x73625140]
    %v5489 = vld.sshfl [vmem:[#allocation1 + $0x28] sm:$0xff pattern:$0x73625140]
    %5490 = vst [vmem:[#allocation1] ss:$4 sm:$0xff] %v5362
    %v5491 = vld.sshfl [vmem:[#allocation1] sm:$0xff pattern:$0x73625140]
    %v5492 = vld.sshfl [vmem:[#allocation1 + $0x8] sm:$0xff pattern:$0x73625140]
    %5493 = vst [vmem:[%s5372] ss:$4 sm:$0xff] %v5364
    %v5494 = vld.sshfl [vmem:[#allocation1 + $0x20] sm:$0xff pattern:$0x73625140]
    %v5495 = vld.sshfl [vmem:[#allocation1 + $0x28] sm:$0xff pattern:$0x73625140]
    %5496 = vst [vmem:[#allocation1] ss:$4 sm:$0xff] %v5366
    %v5497 = vld.sshfl [vmem:[#allocation1] sm:$0xff pattern:$0x73625140]
    %v5498 = vld.sshfl [vmem:[#allocation1 + $0x8] sm:$0xff pattern:$0x73625140]
    %5499 = vst [vmem:[%s5372] ss:$4 sm:$0xff] %v5368
    %v5500 = vld.sshfl [vmem:[#allocation1 + $0x20] sm:$0xff pattern:$0x73625140]
    %v5501 = vld.sshfl [vmem:[#allocation1 + $0x28] sm:$0xff pattern:$0x73625140]
    %v5590 = vsel %vm3823, %v5370, -inf
    %v5591 = vrot.slane %v5590, 4
    %v5592 = vmax.f32 %v5590, %v5591
    %v5593 = vrot.slane %v5592, 2
    %v5594 = vmax.f32 %v5592, %v5593
    %v5595 = vrot.slane %v5594, 1
    %v5596 = vmax.f32 %v5594, %v5595
    %v5597 = vsel %vm3823, %v5371, -inf
    %v5598 = vrot.slane %v5597, 4
    %v5599 = vmax.f32 %v5597, %v5598
    %v5600 = vrot.slane %v5599, 2
    %v5601 = vmax.f32 %v5599, %v5600
    %v5602 = vrot.slane %v5601, 1
    %v5603 = vmax.f32 %v5601, %v5602
    %v5604 = vsel %vm3823, %v5374, -inf
    %v5605 = vrot.slane %v5604, 4
    %v5606 = vmax.f32 %v5604, %v5605
    %v5607 = vrot.slane %v5606, 2
    %v5608 = vmax.f32 %v5606, %v5607
    %v5609 = vrot.slane %v5608, 1
    %v5610 = vmax.f32 %v5608, %v5609
    %v5611 = vsel %vm3823, %v5375, -inf
    %v5612 = vrot.slane %v5611, 4
    %v5613 = vmax.f32 %v5611, %v5612
    %v5614 = vrot.slane %v5613, 2
    %v5615 = vmax.f32 %v5613, %v5614
    %v5616 = vrot.slane %v5615, 1
    %v5617 = vmax.f32 %v5615, %v5616
    %v5618 = vsel %vm3823, %v5377, -inf
    %v5619 = vrot.slane %v5618, 4
    %v5620 = vmax.f32 %v5618, %v5619
    %v5621 = vrot.slane %v5620, 2
    %v5622 = vmax.f32 %v5620, %v5621
    %v5623 = vrot.slane %v5622, 1
    %v5624 = vmax.f32 %v5622, %v5623
    %v5625 = vsel %vm3823, %v5378, -inf
    %v5626 = vrot.slane %v5625, 4
    %v5627 = vmax.f32 %v5625, %v5626
    %v5628 = vrot.slane %v5627, 2
    %v5629 = vmax.f32 %v5627, %v5628
    %v5630 = vrot.slane %v5629, 1
    %v5631 = vmax.f32 %v5629, %v5630
    %v5632 = vsel %vm3823, %v5380, -inf
    %v5633 = vrot.slane %v5632, 4
    %v5634 = vmax.f32 %v5632, %v5633
    %v5635 = vrot.slane %v5634, 2
    %v5636 = vmax.f32 %v5634, %v5635
    %v5637 = vrot.slane %v5636, 1
    %v5638 = vmax.f32 %v5636, %v5637
    %v5639 = vsel %vm3823, %v5381, -inf
    %v5640 = vrot.slane %v5639, 4
    %v5641 = vmax.f32 %v5639, %v5640
    %v5642 = vrot.slane %v5641, 2
    %v5643 = vmax.f32 %v5641, %v5642
    %v5644 = vrot.slane %v5643, 1
    %v5645 = vmax.f32 %v5643, %v5644
    %v5646 = vsel %vm3823, %v5383, -inf
    %v5647 = vrot.slane %v5646, 4
    %v5648 = vmax.f32 %v5646, %v5647
    %v5649 = vrot.slane %v5648, 2
    %v5650 = vmax.f32 %v5648, %v5649
    %v5651 = vrot.slane %v5650, 1
    %v5652 = vmax.f32 %v5650, %v5651
    %v5653 = vsel %vm3823, %v5384, -inf
    %v5654 = vrot.slane %v5653, 4
    %v5655 = vmax.f32 %v5653, %v5654
    %v5656 = vrot.slane %v5655, 2
    %v5657 = vmax.f32 %v5655, %v5656
    %v5658 = vrot.slane %v5657, 1
    %v5659 = vmax.f32 %v5657, %v5658
    %v5660 = vsel %vm3823, %v5386, -inf
    %v5661 = vrot.slane %v5660, 4
    %v5662 = vmax.f32 %v5660, %v5661
    %v5663 = vrot.slane %v5662, 2
    %v5664 = vmax.f32 %v5662, %v5663
    %v5665 = vrot.slane %v5664, 1
    %v5666 = vmax.f32 %v5664, %v5665
    %v5667 = vsel %vm3823, %v5387, -inf
    %v5668 = vrot.slane %v5667, 4
    %v5669 = vmax.f32 %v5667, %v5668
    %v5670 = vrot.slane %v5669, 2
    %v5671 = vmax.f32 %v5669, %v5670
    %v5672 = vrot.slane %v5671, 1
    %v5673 = vmax.f32 %v5671, %v5672
    %v5674 = vsel %vm3823, %v5389, -inf
    %v5675 = vrot.slane %v5674, 4
    %v5676 = vmax.f32 %v5674, %v5675
    %v5677 = vrot.slane %v5676, 2
    %v5678 = vmax.f32 %v5676, %v5677
    %v5679 = vrot.slane %v5678, 1
    %v5680 = vmax.f32 %v5678, %v5679
    %v5681 = vsel %vm3823, %v5390, -inf
    %v5682 = vrot.slane %v5681, 4
    %v5683 = vmax.f32 %v5681, %v5682
    %v5684 = vrot.slane %v5683, 2
    %v5685 = vmax.f32 %v5683, %v5684
    %v5686 = vrot.slane %v5685, 1
    %v5687 = vmax.f32 %v5685, %v5686
    %v5688 = vsel %vm3823, %v5392, -inf
    %v5689 = vrot.slane %v5688, 4
    %v5690 = vmax.f32 %v5688, %v5689
    %v5691 = vrot.slane %v5690, 2
    %v5692 = vmax.f32 %v5690, %v5691
    %v5693 = vrot.slane %v5692, 1
    %v5694 = vmax.f32 %v5692, %v5693
    %v5695 = vsel %vm3823, %v5393, -inf
    %v5696 = vrot.slane %v5695, 4
    %v5697 = vmax.f32 %v5695, %v5696
    %v5698 = vrot.slane %v5697, 2
    %v5699 = vmax.f32 %v5697, %v5698
    %v5700 = vrot.slane %v5699, 1
    %v5701 = vmax.f32 %v5699, %v5700
    %v5702 = vsel %vm3823, %v5395, -inf
    %v5703 = vrot.slane %v5702, 4
    %v5704 = vmax.f32 %v5702, %v5703
    %v5705 = vrot.slane %v5704, 2
    %v5706 = vmax.f32 %v5704, %v5705
    %v5707 = vrot.slane %v5706, 1
    %v5708 = vmax.f32 %v5706, %v5707
    %v5709 = vsel %vm3823, %v5396, -inf
    %v5710 = vrot.slane %v5709, 4
    %v5711 = vmax.f32 %v5709, %v5710
    %v5712 = vrot.slane %v5711, 2
    %v5713 = vmax.f32 %v5711, %v5712
    %v5714 = vrot.slane %v5713, 1
    %v5715 = vmax.f32 %v5713, %v5714
    %v5716 = vsel %vm3823, %v5398, -inf
    %v5717 = vrot.slane %v5716, 4
    %v5718 = vmax.f32 %v5716, %v5717
    %v5719 = vrot.slane %v5718, 2
    %v5720 = vmax.f32 %v5718, %v5719
    %v5721 = vrot.slane %v5720, 1
    %v5722 = vmax.f32 %v5720, %v5721
    %v5723 = vsel %vm3823, %v5399, -inf
    %v5724 = vrot.slane %v5723, 4
    %v5725 = vmax.f32 %v5723, %v5724
    %v5726 = vrot.slane %v5725, 2
    %v5727 = vmax.f32 %v5725, %v5726
    %v5728 = vrot.slane %v5727, 1
    %v5729 = vmax.f32 %v5727, %v5728
    %v5730 = vsel %vm3823, %v5401, -inf
    %v5731 = vrot.slane %v5730, 4
    %v5732 = vmax.f32 %v5730, %v5731
    %v5733 = vrot.slane %v5732, 2
    %v5734 = vmax.f32 %v5732, %v5733
    %v5735 = vrot.slane %v5734, 1
    %v5736 = vmax.f32 %v5734, %v5735
    %v5737 = vsel %vm3823, %v5402, -inf
    %v5738 = vrot.slane %v5737, 4
    %v5739 = vmax.f32 %v5737, %v5738
    %v5740 = vrot.slane %v5739, 2
    %v5741 = vmax.f32 %v5739, %v5740
    %v5742 = vrot.slane %v5741, 1
    %v5743 = vmax.f32 %v5741, %v5742
    %v5744 = vsel %vm3823, %v5404, -inf
    %v5745 = vrot.slane %v5744, 4
    %v5746 = vmax.f32 %v5744, %v5745
    %v5747 = vrot.slane %v5746, 2
    %v5748 = vmax.f32 %v5746, %v5747
    %v5749 = vrot.slane %v5748, 1
    %v5750 = vmax.f32 %v5748, %v5749
    %v5751 = vsel %vm3823, %v5405, -inf
    %v5752 = vrot.slane %v5751, 4
    %v5753 = vmax.f32 %v5751, %v5752
    %v5754 = vrot.slane %v5753, 2
    %v5755 = vmax.f32 %v5753, %v5754
    %v5756 = vrot.slane %v5755, 1
    %v5757 = vmax.f32 %v5755, %v5756
    %v5758 = vsel %vm3823, %v5407, -inf
    %v5759 = vrot.slane %v5758, 4
    %v5760 = vmax.f32 %v5758, %v5759
    %v5761 = vrot.slane %v5760, 2
    %v5762 = vmax.f32 %v5760, %v5761
    %v5763 = vrot.slane %v5762, 1
    %v5764 = vmax.f32 %v5762, %v5763
    %v5765 = vsel %vm3823, %v5408, -inf
    %v5766 = vrot.slane %v5765, 4
    %v5767 = vmax.f32 %v5765, %v5766
    %v5768 = vrot.slane %v5767, 2
    %v5769 = vmax.f32 %v5767, %v5768
    %v5770 = vrot.slane %v5769, 1
    %v5771 = vmax.f32 %v5769, %v5770
    %v5772 = vsel %vm3823, %v5410, -inf
    %v5773 = vrot.slane %v5772, 4
    %v5774 = vmax.f32 %v5772, %v5773
    %v5775 = vrot.slane %v5774, 2
    %v5776 = vmax.f32 %v5774, %v5775
    %v5777 = vrot.slane %v5776, 1
    %v5778 = vmax.f32 %v5776, %v5777
    %v5779 = vsel %vm3823, %v5411, -inf
    %v5780 = vrot.slane %v5779, 4
    %v5781 = vmax.f32 %v5779, %v5780
    %v5782 = vrot.slane %v5781, 2
    %v5783 = vmax.f32 %v5781, %v5782
    %v5784 = vrot.slane %v5783, 1
    %v5785 = vmax.f32 %v5783, %v5784
    %v5786 = vsel %vm3823, %v5413, -inf
    %v5787 = vrot.slane %v5786, 4
    %v5788 = vmax.f32 %v5786, %v5787
    %v5789 = vrot.slane %v5788, 2
    %v5790 = vmax.f32 %v5788, %v5789
    %v5791 = vrot.slane %v5790, 1
    %v5792 = vmax.f32 %v5790, %v5791
    %v5793 = vsel %vm3823, %v5414, -inf
    %v5794 = vrot.slane %v5793, 4
    %v5795 = vmax.f32 %v5793, %v5794
    %v5796 = vrot.slane %v5795, 2
    %v5797 = vmax.f32 %v5795, %v5796
    %v5798 = vrot.slane %v5797, 1
    %v5799 = vmax.f32 %v5797, %v5798
    %v5800 = vsel %vm3823, %v5416, -inf
    %v5801 = vrot.slane %v5800, 4
    %v5802 = vmax.f32 %v5800, %v5801
    %v5803 = vrot.slane %v5802, 2
    %v5804 = vmax.f32 %v5802, %v5803
    %v5805 = vrot.slane %v5804, 1
    %v5806 = vmax.f32 %v5804, %v5805
    %v5807 = vsel %vm3823, %v5417, -inf
    %v5808 = vrot.slane %v5807, 4
    %v5809 = vmax.f32 %v5807, %v5808
    %v5810 = vrot.slane %v5809, 2
    %v5811 = vmax.f32 %v5809, %v5810
    %v5812 = vrot.slane %v5811, 1
    %v5813 = vmax.f32 %v5811, %v5812
    %v5814 = vsel %vm3823, %v5419, -inf
    %v5815 = vrot.slane %v5814, 4
    %v5816 = vmax.f32 %v5814, %v5815
    %v5817 = vrot.slane %v5816, 2
    %v5818 = vmax.f32 %v5816, %v5817
    %v5819 = vrot.slane %v5818, 1
    %v5820 = vmax.f32 %v5818, %v5819
    %v5821 = vsel %vm3823, %v5420, -inf
    %v5822 = vrot.slane %v5821, 4
    %v5823 = vmax.f32 %v5821, %v5822
    %v5824 = vrot.slane %v5823, 2
    %v5825 = vmax.f32 %v5823, %v5824
    %v5826 = vrot.slane %v5825, 1
    %v5827 = vmax.f32 %v5825, %v5826
    %v5828 = vsel %vm3823, %v5422, -inf
    %v5829 = vrot.slane %v5828, 4
    %v5830 = vmax.f32 %v5828, %v5829
    %v5831 = vrot.slane %v5830, 2
    %v5832 = vmax.f32 %v5830, %v5831
    %v5833 = vrot.slane %v5832, 1
    %v5834 = vmax.f32 %v5832, %v5833
    %v5835 = vsel %vm3823, %v5423, -inf
    %v5836 = vrot.slane %v5835, 4
    %v5837 = vmax.f32 %v5835, %v5836
    %v5838 = vrot.slane %v5837, 2
    %v5839 = vmax.f32 %v5837, %v5838
    %v5840 = vrot.slane %v5839, 1
    %v5841 = vmax.f32 %v5839, %v5840
    %v5842 = vsel %vm3823, %v5425, -inf
    %v5843 = vrot.slane %v5842, 4
    %v5844 = vmax.f32 %v5842, %v5843
    %v5845 = vrot.slane %v5844, 2
    %v5846 = vmax.f32 %v5844, %v5845
    %v5847 = vrot.slane %v5846, 1
    %v5848 = vmax.f32 %v5846, %v5847
    %v5849 = vsel %vm3823, %v5426, -inf
    %v5850 = vrot.slane %v5849, 4
    %v5851 = vmax.f32 %v5849, %v5850
    %v5852 = vrot.slane %v5851, 2
    %v5853 = vmax.f32 %v5851, %v5852
    %v5854 = vrot.slane %v5853, 1
    %v5855 = vmax.f32 %v5853, %v5854
    %v5856 = vsel %vm3823, %v5428, -inf
    %v5857 = vrot.slane %v5856, 4
    %v5858 = vmax.f32 %v5856, %v5857
    %v5859 = vrot.slane %v5858, 2
    %v5860 = vmax.f32 %v5858, %v5859
    %v5861 = vrot.slane %v5860, 1
    %v5862 = vmax.f32 %v5860, %v5861
    %v5863 = vsel %vm3823, %v5429, -inf
    %v5864 = vrot.slane %v5863, 4
    %v5865 = vmax.f32 %v5863, %v5864
    %v5866 = vrot.slane %v5865, 2
    %v5867 = vmax.f32 %v5865, %v5866
    %v5868 = vrot.slane %v5867, 1
    %v5869 = vmax.f32 %v5867, %v5868
    %v5870 = vsel %vm3823, %v5431, -inf
    %v5871 = vrot.slane %v5870, 4
    %v5872 = vmax.f32 %v5870, %v5871
    %v5873 = vrot.slane %v5872, 2
    %v5874 = vmax.f32 %v5872, %v5873
    %v5875 = vrot.slane %v5874, 1
    %v5876 = vmax.f32 %v5874, %v5875
    %v5877 = vsel %vm3823, %v5432, -inf
    %v5878 = vrot.slane %v5877, 4
    %v5879 = vmax.f32 %v5877, %v5878
    %v5880 = vrot.slane %v5879, 2
    %v5881 = vmax.f32 %v5879, %v5880
    %v5882 = vrot.slane %v5881, 1
    %v5883 = vmax.f32 %v5881, %v5882
    %v5884 = vsel %vm3823, %v5434, -inf
    %v5885 = vrot.slane %v5884, 4
    %v5886 = vmax.f32 %v5884, %v5885
    %v5887 = vrot.slane %v5886, 2
    %v5888 = vmax.f32 %v5886, %v5887
    %v5889 = vrot.slane %v5888, 1
    %v5890 = vmax.f32 %v5888, %v5889
    %v5891 = vsel %vm3823, %v5435, -inf
    %v5892 = vrot.slane %v5891, 4
    %v5893 = vmax.f32 %v5891, %v5892
    %v5894 = vrot.slane %v5893, 2
    %v5895 = vmax.f32 %v5893, %v5894
    %v5896 = vrot.slane %v5895, 1
    %v5897 = vmax.f32 %v5895, %v5896
    %v5898 = vsel %vm3823, %v5437, -inf
    %v5899 = vrot.slane %v5898, 4
    %v5900 = vmax.f32 %v5898, %v5899
    %v5901 = vrot.slane %v5900, 2
    %v5902 = vmax.f32 %v5900, %v5901
    %v5903 = vrot.slane %v5902, 1
    %v5904 = vmax.f32 %v5902, %v5903
    %v5905 = vsel %vm3823, %v5438, -inf
    %v5906 = vrot.slane %v5905, 4
    %v5907 = vmax.f32 %v5905, %v5906
    %v5908 = vrot.slane %v5907, 2
    %v5909 = vmax.f32 %v5907, %v5908
    %v5910 = vrot.slane %v5909, 1
    %v5911 = vmax.f32 %v5909, %v5910
    %v5912 = vsel %vm3823, %v5440, -inf
    %v5913 = vrot.slane %v5912, 4
    %v5914 = vmax.f32 %v5912, %v5913
    %v5915 = vrot.slane %v5914, 2
    %v5916 = vmax.f32 %v5914, %v5915
    %v5917 = vrot.slane %v5916, 1
    %v5918 = vmax.f32 %v5916, %v5917
    %v5919 = vsel %vm3823, %v5441, -inf
    %v5920 = vrot.slane %v5919, 4
    %v5921 = vmax.f32 %v5919, %v5920
    %v5922 = vrot.slane %v5921, 2
    %v5923 = vmax.f32 %v5921, %v5922
    %v5924 = vrot.slane %v5923, 1
    %v5925 = vmax.f32 %v5923, %v5924
    %v5926 = vsel %vm3823, %v5443, -inf
    %v5927 = vrot.slane %v5926, 4
    %v5928 = vmax.f32 %v5926, %v5927
    %v5929 = vrot.slane %v5928, 2
    %v5930 = vmax.f32 %v5928, %v5929
    %v5931 = vrot.slane %v5930, 1
    %v5932 = vmax.f32 %v5930, %v5931
    %v5933 = vsel %vm3823, %v5444, -inf
    %v5934 = vrot.slane %v5933, 4
    %v5935 = vmax.f32 %v5933, %v5934
    %v5936 = vrot.slane %v5935, 2
    %v5937 = vmax.f32 %v5935, %v5936
    %v5938 = vrot.slane %v5937, 1
    %v5939 = vmax.f32 %v5937, %v5938
    %v5940 = vsel %vm3823, %v5446, -inf
    %v5941 = vrot.slane %v5940, 4
    %v5942 = vmax.f32 %v5940, %v5941
    %v5943 = vrot.slane %v5942, 2
    %v5944 = vmax.f32 %v5942, %v5943
    %v5945 = vrot.slane %v5944, 1
    %v5946 = vmax.f32 %v5944, %v5945
    %v5947 = vsel %vm3823, %v5447, -inf
    %v5948 = vrot.slane %v5947, 4
    %v5949 = vmax.f32 %v5947, %v5948
    %v5950 = vrot.slane %v5949, 2
    %v5951 = vmax.f32 %v5949, %v5950
    %v5952 = vrot.slane %v5951, 1
    %v5953 = vmax.f32 %v5951, %v5952
    %v5954 = vsel %vm3823, %v5449, -inf
    %v5955 = vrot.slane %v5954, 4
    %v5956 = vmax.f32 %v5954, %v5955
    %v5957 = vrot.slane %v5956, 2
    %v5958 = vmax.f32 %v5956, %v5957
    %v5959 = vrot.slane %v5958, 1
    %v5960 = vmax.f32 %v5958, %v5959
    %v5961 = vsel %vm3823, %v5450, -inf
    %v5962 = vrot.slane %v5961, 4
    %v5963 = vmax.f32 %v5961, %v5962
    %v5964 = vrot.slane %v5963, 2
    %v5965 = vmax.f32 %v5963, %v5964
    %v5966 = vrot.slane %v5965, 1
    %v5967 = vmax.f32 %v5965, %v5966
    %v5968 = vsel %vm3823, %v5452, -inf
    %v5969 = vrot.slane %v5968, 4
    %v5970 = vmax.f32 %v5968, %v5969
    %v5971 = vrot.slane %v5970, 2
    %v5972 = vmax.f32 %v5970, %v5971
    %v5973 = vrot.slane %v5972, 1
    %v5974 = vmax.f32 %v5972, %v5973
    %v5975 = vsel %vm3823, %v5453, -inf
    %v5976 = vrot.slane %v5975, 4
    %v5977 = vmax.f32 %v5975, %v5976
    %v5978 = vrot.slane %v5977, 2
    %v5979 = vmax.f32 %v5977, %v5978
    %v5980 = vrot.slane %v5979, 1
    %v5981 = vmax.f32 %v5979, %v5980
    %v5982 = vsel %vm3823, %v5455, -inf
    %v5983 = vrot.slane %v5982, 4
    %v5984 = vmax.f32 %v5982, %v5983
    %v5985 = vrot.slane %v5984, 2
    %v5986 = vmax.f32 %v5984, %v5985
    %v5987 = vrot.slane %v5986, 1
    %v5988 = vmax.f32 %v5986, %v5987
    %v5989 = vsel %vm3823, %v5456, -inf
    %v5990 = vrot.slane %v5989, 4
    %v5991 = vmax.f32 %v5989, %v5990
    %v5992 = vrot.slane %v5991, 2
    %v5993 = vmax.f32 %v5991, %v5992
    %v5994 = vrot.slane %v5993, 1
    %v5995 = vmax.f32 %v5993, %v5994
    %v5996 = vsel %vm3823, %v5458, -inf
    %v5997 = vrot.slane %v5996, 4
    %v5998 = vmax.f32 %v5996, %v5997
    %v5999 = vrot.slane %v5998, 2
    %v6000 = vmax.f32 %v5998, %v5999
    %v6001 = vrot.slane %v6000, 1
    %v6002 = vmax.f32 %v6000, %v6001
    %v6003 = vsel %vm3823, %v5459, -inf
    %v6004 = vrot.slane %v6003, 4
    %v6005 = vmax.f32 %v6003, %v6004
    %v6006 = vrot.slane %v6005, 2
    %v6007 = vmax.f32 %v6005, %v6006
    %v6008 = vrot.slane %v6007, 1
    %v6009 = vmax.f32 %v6007, %v6008
    %v6010 = vsel %vm3823, %v5461, -inf
    %v6011 = vrot.slane %v6010, 4
    %v6012 = vmax.f32 %v6010, %v6011
    %v6013 = vrot.slane %v6012, 2
    %v6014 = vmax.f32 %v6012, %v6013
    %v6015 = vrot.slane %v6014, 1
    %v6016 = vmax.f32 %v6014, %v6015
    %v6017 = vsel %vm3823, %v5462, -inf
    %v6018 = vrot.slane %v6017, 4
    %v6019 = vmax.f32 %v6017, %v6018
    %v6020 = vrot.slane %v6019, 2
    %v6021 = vmax.f32 %v6019, %v6020
    %v6022 = vrot.slane %v6021, 1
    %v6023 = vmax.f32 %v6021, %v6022
    %v6024 = vsel %vm3823, %v5464, -inf
    %v6025 = vrot.slane %v6024, 4
    %v6026 = vmax.f32 %v6024, %v6025
    %v6027 = vrot.slane %v6026, 2
    %v6028 = vmax.f32 %v6026, %v6027
    %v6029 = vrot.slane %v6028, 1
    %v6030 = vmax.f32 %v6028, %v6029
    %v6031 = vsel %vm3823, %v5465, -inf
    %v6032 = vrot.slane %v6031, 4
    %v6033 = vmax.f32 %v6031, %v6032
    %v6034 = vrot.slane %v6033, 2
    %v6035 = vmax.f32 %v6033, %v6034
    %v6036 = vrot.slane %v6035, 1
    %v6037 = vmax.f32 %v6035, %v6036
    %v6038 = vsel %vm3823, %v5467, -inf
    %v6039 = vrot.slane %v6038, 4
    %v6040 = vmax.f32 %v6038, %v6039
    %v6041 = vrot.slane %v6040, 2
    %v6042 = vmax.f32 %v6040, %v6041
    %v6043 = vrot.slane %v6042, 1
    %v6044 = vmax.f32 %v6042, %v6043
    %v6045 = vsel %vm3823, %v5468, -inf
    %v6046 = vrot.slane %v6045, 4
    %v6047 = vmax.f32 %v6045, %v6046
    %v6048 = vrot.slane %v6047, 2
    %v6049 = vmax.f32 %v6047, %v6048
    %v6050 = vrot.slane %v6049, 1
    %v6051 = vmax.f32 %v6049, %v6050
    %v6052 = vsel %vm3823, %v5470, -inf
    %v6053 = vrot.slane %v6052, 4
    %v6054 = vmax.f32 %v6052, %v6053
    %v6055 = vrot.slane %v6054, 2
    %v6056 = vmax.f32 %v6054, %v6055
    %v6057 = vrot.slane %v6056, 1
    %v6058 = vmax.f32 %v6056, %v6057
    %v6059 = vsel %vm3823, %v5471, -inf
    %v6060 = vrot.slane %v6059, 4
    %v6061 = vmax.f32 %v6059, %v6060
    %v6062 = vrot.slane %v6061, 2
    %v6063 = vmax.f32 %v6061, %v6062
    %v6064 = vrot.slane %v6063, 1
    %v6065 = vmax.f32 %v6063, %v6064
    %v6066 = vsel %vm3823, %v5473, -inf
    %v6067 = vrot.slane %v6066, 4
    %v6068 = vmax.f32 %v6066, %v6067
    %v6069 = vrot.slane %v6068, 2
    %v6070 = vmax.f32 %v6068, %v6069
    %v6071 = vrot.slane %v6070, 1
    %v6072 = vmax.f32 %v6070, %v6071
    %v6073 = vsel %vm3823, %v5474, -inf
    %v6074 = vrot.slane %v6073, 4
    %v6075 = vmax.f32 %v6073, %v6074
    %v6076 = vrot.slane %v6075, 2
    %v6077 = vmax.f32 %v6075, %v6076
    %v6078 = vrot.slane %v6077, 1
    %v6079 = vmax.f32 %v6077, %v6078
    %v6080 = vsel %vm3823, %v5476, -inf
    %v6081 = vrot.slane %v6080, 4
    %v6082 = vmax.f32 %v6080, %v6081
    %v6083 = vrot.slane %v6082, 2
    %v6084 = vmax.f32 %v6082, %v6083
    %v6085 = vrot.slane %v6084, 1
    %v6086 = vmax.f32 %v6084, %v6085
    %v6087 = vsel %vm3823, %v5477, -inf
    %v6088 = vrot.slane %v6087, 4
    %v6089 = vmax.f32 %v6087, %v6088
    %v6090 = vrot.slane %v6089, 2
    %v6091 = vmax.f32 %v6089, %v6090
    %v6092 = vrot.slane %v6091, 1
    %v6093 = vmax.f32 %v6091, %v6092
    %v6094 = vsel %vm3823, %v5479, -inf
    %v6095 = vrot.slane %v6094, 4
    %v6096 = vmax.f32 %v6094, %v6095
    %v6097 = vrot.slane %v6096, 2
    %v6098 = vmax.f32 %v6096, %v6097
    %v6099 = vrot.slane %v6098, 1
    %v6100 = vmax.f32 %v6098, %v6099
    %v6101 = vsel %vm3823, %v5480, -inf
    %v6102 = vrot.slane %v6101, 4
    %v6103 = vmax.f32 %v6101, %v6102
    %v6104 = vrot.slane %v6103, 2
    %v6105 = vmax.f32 %v6103, %v6104
    %v6106 = vrot.slane %v6105, 1
    %v6107 = vmax.f32 %v6105, %v6106
    %v6108 = vsel %vm3823, %v5482, -inf
    %v6109 = vrot.slane %v6108, 4
    %v6110 = vmax.f32 %v6108, %v6109
    %v6111 = vrot.slane %v6110, 2
    %v6112 = vmax.f32 %v6110, %v6111
    %v6113 = vrot.slane %v6112, 1
    %v6114 = vmax.f32 %v6112, %v6113
    %v6115 = vsel %vm3823, %v5483, -inf
    %v6116 = vrot.slane %v6115, 4
    %v6117 = vmax.f32 %v6115, %v6116
    %v6118 = vrot.slane %v6117, 2
    %v6119 = vmax.f32 %v6117, %v6118
    %v6120 = vrot.slane %v6119, 1
    %v6121 = vmax.f32 %v6119, %v6120
    %v6122 = vsel %vm3823, %v5485, -inf
    %v6123 = vrot.slane %v6122, 4
    %v6124 = vmax.f32 %v6122, %v6123
    %v6125 = vrot.slane %v6124, 2
    %v6126 = vmax.f32 %v6124, %v6125
    %v6127 = vrot.slane %v6126, 1
    %v6128 = vmax.f32 %v6126, %v6127
    %v6129 = vsel %vm3823, %v5486, -inf
    %v6130 = vrot.slane %v6129, 4
    %v6131 = vmax.f32 %v6129, %v6130
    %v6132 = vrot.slane %v6131, 2
    %v6133 = vmax.f32 %v6131, %v6132
    %v6134 = vrot.slane %v6133, 1
    %v6135 = vmax.f32 %v6133, %v6134
    %v6136 = vsel %vm3823, %v5488, -inf
    %v6137 = vrot.slane %v6136, 4
    %v6138 = vmax.f32 %v6136, %v6137
    %v6139 = vrot.slane %v6138, 2
    %v6140 = vmax.f32 %v6138, %v6139
    %v6141 = vrot.slane %v6140, 1
    %v6142 = vmax.f32 %v6140, %v6141
    %v6143 = vsel %vm3823, %v5489, -inf
    %v6144 = vrot.slane %v6143, 4
    %v6145 = vmax.f32 %v6143, %v6144
    %v6146 = vrot.slane %v6145, 2
    %v6147 = vmax.f32 %v6145, %v6146
    %v6148 = vrot.slane %v6147, 1
    %v6149 = vmax.f32 %v6147, %v6148
    %v6150 = vsel %vm3823, %v5491, -inf
    %v6151 = vrot.slane %v6150, 4
    %v6152 = vmax.f32 %v6150, %v6151
    %v6153 = vrot.slane %v6152, 2
    %v6154 = vmax.f32 %v6152, %v6153
    %v6155 = vrot.slane %v6154, 1
    %v6156 = vmax.f32 %v6154, %v6155
    %v6157 = vsel %vm3823, %v5492, -inf
    %v6158 = vrot.slane %v6157, 4
    %v6159 = vmax.f32 %v6157, %v6158
    %v6160 = vrot.slane %v6159, 2
    %v6161 = vmax.f32 %v6159, %v6160
    %v6162 = vrot.slane %v6161, 1
    %v6163 = vmax.f32 %v6161, %v6162
    %v6164 = vsel %vm3823, %v5494, -inf
    %v6165 = vrot.slane %v6164, 4
    %v6166 = vmax.f32 %v6164, %v6165
    %v6167 = vrot.slane %v6166, 2
    %v6168 = vmax.f32 %v6166, %v6167
    %v6169 = vrot.slane %v6168, 1
    %v6170 = vmax.f32 %v6168, %v6169
    %v6171 = vsel %vm3823, %v5495, -inf
    %v6172 = vrot.slane %v6171, 4
    %v6173 = vmax.f32 %v6171, %v6172
    %v6174 = vrot.slane %v6173, 2
    %v6175 = vmax.f32 %v6173, %v6174
    %v6176 = vrot.slane %v6175, 1
    %v6177 = vmax.f32 %v6175, %v6176
    %v6178 = vsel %vm3823, %v5497, -inf
    %v6179 = vrot.slane %v6178, 4
    %v6180 = vmax.f32 %v6178, %v6179
    %v6181 = vrot.slane %v6180, 2
    %v6182 = vmax.f32 %v6180, %v6181
    %v6183 = vrot.slane %v6182, 1
    %v6184 = vmax.f32 %v6182, %v6183
    %v6185 = vsel %vm3823, %v5498, -inf
    %v6186 = vrot.slane %v6185, 4
    %v6187 = vmax.f32 %v6185, %v6186
    %v6188 = vrot.slane %v6187, 2
    %v6189 = vmax.f32 %v6187, %v6188
    %v6190 = vrot.slane %v6189, 1
    %v6191 = vmax.f32 %v6189, %v6190
    %v6192 = vsel %vm3823, %v5500, -inf
    %v6193 = vrot.slane %v6192, 4
    %v6194 = vmax.f32 %v6192, %v6193
    %v6195 = vrot.slane %v6194, 2
    %v6196 = vmax.f32 %v6194, %v6195
    %v6197 = vrot.slane %v6196, 1
    %v6198 = vmax.f32 %v6196, %v6197
    %v6199 = vsel %vm3823, %v5501, -inf
    %v6200 = vrot.slane %v6199, 4
    %v6201 = vmax.f32 %v6199, %v6200
    %v6202 = vrot.slane %v6201, 2
    %v6203 = vmax.f32 %v6201, %v6202
    %v6204 = vrot.slane %v6203, 1
    %v6205 = vmax.f32 %v6203, %v6204
    %v6206 = vpack.c.bf16 %v5603, %v5596
    %v6207 = vpack.c.bf16 %v5617, %v5610
    %v6208 = vpack.c.bf16 %v5631, %v5624
    %v6209 = vpack.c.bf16 %v5645, %v5638
    %v6210 = vpack.c.bf16 %v5659, %v5652
    %v6211 = vpack.c.bf16 %v5673, %v5666
    %v6212 = vpack.c.bf16 %v5687, %v5680
    %v6213 = vpack.c.bf16 %v5701, %v5694
    %v6214 = vpack.c.bf16 %v5715, %v5708
    %v6215 = vpack.c.bf16 %v5729, %v5722
    %v6216 = vpack.c.bf16 %v5743, %v5736
    %v6217 = vpack.c.bf16 %v5757, %v5750
    %v6218 = vpack.c.bf16 %v5771, %v5764
    %v6219 = vpack.c.bf16 %v5785, %v5778
    %v6220 = vpack.c.bf16 %v5799, %v5792
    %v6221 = vpack.c.bf16 %v5813, %v5806
    %v6222 = vpack.c.bf16 %v5827, %v5820
    %v6223 = vpack.c.bf16 %v5841, %v5834
    %v6224 = vpack.c.bf16 %v5855, %v5848
    %v6225 = vpack.c.bf16 %v5869, %v5862
    %v6226 = vpack.c.bf16 %v5883, %v5876
    %v6227 = vpack.c.bf16 %v5897, %v5890
    %v6228 = vpack.c.bf16 %v5911, %v5904
    %v6229 = vpack.c.bf16 %v5925, %v5918
    %v6230 = vpack.c.bf16 %v5939, %v5932
    %v6231 = vpack.c.bf16 %v5953, %v5946
    %v6232 = vpack.c.bf16 %v5967, %v5960
    %v6233 = vpack.c.bf16 %v5981, %v5974
    %v6234 = vpack.c.bf16 %v5995, %v5988
    %v6235 = vpack.c.bf16 %v6009, %v6002
    %v6236 = vpack.c.bf16 %v6023, %v6016
    %v6237 = vpack.c.bf16 %v6037, %v6030
    %v6238 = vpack.c.bf16 %v6051, %v6044
    %v6239 = vpack.c.bf16 %v6065, %v6058
    %v6240 = vpack.c.bf16 %v6079, %v6072
    %v6241 = vpack.c.bf16 %v6093, %v6086
    %v6242 = vpack.c.bf16 %v6107, %v6100
    %v6243 = vpack.c.bf16 %v6121, %v6114
    %v6244 = vpack.c.bf16 %v6135, %v6128
    %v6245 = vpack.c.bf16 %v6149, %v6142
    %v6246 = vpack.c.bf16 %v6163, %v6156
    %v6247 = vpack.c.bf16 %v6177, %v6170
    %v6248 = vpack.c.bf16 %v6191, %v6184
    %v6249 = vpack.c.bf16 %v6205, %v6198
    %v6294 = vunpack.c.l.b16 %v6206
    %v6295 = vunpack.c.h.b16 %v6206
    %v6296 = vunpack.c.l.b16 %v6207
    %v6297 = vunpack.c.h.b16 %v6207
    %v6298 = vunpack.c.l.b16 %v6208
    %v6299 = vunpack.c.h.b16 %v6208
    %v6300 = vunpack.c.l.b16 %v6209
    %v6301 = vunpack.c.h.b16 %v6209
    %v6302 = vunpack.c.l.b16 %v6210
    %v6303 = vunpack.c.h.b16 %v6210
    %v6304 = vunpack.c.l.b16 %v6211
    %v6305 = vunpack.c.h.b16 %v6211
    %v6306 = vunpack.c.l.b16 %v6212
    %v6307 = vunpack.c.h.b16 %v6212
    %v6308 = vunpack.c.l.b16 %v6213
    %v6309 = vunpack.c.h.b16 %v6213
    %v6310 = vunpack.c.l.b16 %v6214
    %v6311 = vunpack.c.h.b16 %v6214
    %v6312 = vunpack.c.l.b16 %v6215
    %v6313 = vunpack.c.h.b16 %v6215
    %v6314 = vunpack.c.l.b16 %v6216
    %v6315 = vunpack.c.h.b16 %v6216
    %v6316 = vunpack.c.l.b16 %v6217
    %v6317 = vunpack.c.h.b16 %v6217
    %v6318 = vunpack.c.l.b16 %v6218
    %v6319 = vunpack.c.h.b16 %v6218
    %v6320 = vunpack.c.l.b16 %v6219
    %v6321 = vunpack.c.h.b16 %v6219
    %v6322 = vunpack.c.l.b16 %v6220
    %v6323 = vunpack.c.h.b16 %v6220
    %v6324 = vunpack.c.l.b16 %v6221
    %v6325 = vunpack.c.h.b16 %v6221
    %v6326 = vunpack.c.l.b16 %v6222
    %v6327 = vunpack.c.h.b16 %v6222
    %v6328 = vunpack.c.l.b16 %v6223
    %v6329 = vunpack.c.h.b16 %v6223
    %v6330 = vunpack.c.l.b16 %v6224
    %v6331 = vunpack.c.h.b16 %v6224
    %v6332 = vunpack.c.l.b16 %v6225
    %v6333 = vunpack.c.h.b16 %v6225
    %v6334 = vunpack.c.l.b16 %v6226
    %v6335 = vunpack.c.h.b16 %v6226
    %v6336 = vunpack.c.l.b16 %v6227
    %v6337 = vunpack.c.h.b16 %v6227
    %v6338 = vunpack.c.l.b16 %v6228
    %v6339 = vunpack.c.h.b16 %v6228
    %v6340 = vunpack.c.l.b16 %v6229
    %v6341 = vunpack.c.h.b16 %v6229
    %v6342 = vunpack.c.l.b16 %v6230
    %v6343 = vunpack.c.h.b16 %v6230
    %v6344 = vunpack.c.l.b16 %v6231
    %v6345 = vunpack.c.h.b16 %v6231
    %v6346 = vunpack.c.l.b16 %v6232
    %v6347 = vunpack.c.h.b16 %v6232
    %v6348 = vunpack.c.l.b16 %v6233
    %v6349 = vunpack.c.h.b16 %v6233
    %v6350 = vunpack.c.l.b16 %v6234
    %v6351 = vunpack.c.h.b16 %v6234
    %v6352 = vunpack.c.l.b16 %v6235
    %v6353 = vunpack.c.h.b16 %v6235
    %v6354 = vunpack.c.l.b16 %v6236
    %v6355 = vunpack.c.h.b16 %v6236
    %v6356 = vunpack.c.l.b16 %v6237
    %v6357 = vunpack.c.h.b16 %v6237
    %v6358 = vunpack.c.l.b16 %v6238
    %v6359 = vunpack.c.h.b16 %v6238
    %v6360 = vunpack.c.l.b16 %v6239
    %v6361 = vunpack.c.h.b16 %v6239
    %v6362 = vunpack.c.l.b16 %v6240
    %v6363 = vunpack.c.h.b16 %v6240
    %v6364 = vunpack.c.l.b16 %v6241
    %v6365 = vunpack.c.h.b16 %v6241
    %v6366 = vunpack.c.l.b16 %v6242
    %v6367 = vunpack.c.h.b16 %v6242
    %v6368 = vunpack.c.l.b16 %v6243
    %v6369 = vunpack.c.h.b16 %v6243
    %v6370 = vunpack.c.l.b16 %v6244
    %v6371 = vunpack.c.h.b16 %v6244
    %v6372 = vunpack.c.l.b16 %v6245
    %v6373 = vunpack.c.h.b16 %v6245
    %v6374 = vunpack.c.l.b16 %v6246
    %v6375 = vunpack.c.h.b16 %v6246
    %v6376 = vunpack.c.l.b16 %v6247
    %v6377 = vunpack.c.h.b16 %v6247
    %v6378 = vunpack.c.l.b16 %v6248
    %v6379 = vunpack.c.h.b16 %v6248
    %v6380 = vunpack.c.l.b16 %v6249
    %v6381 = vunpack.c.h.b16 %v6249
    %v6382 = vsel %vm3049, %v6296, %v6294
    %v6383 = vsel %vm3037, %v6298, %v6382
    %v6384 = vsel %vm3039, %v6300, %v6383
    %v6385 = vsel %vm3041, %v6302, %v6384
    %v6386 = vsel %vm3043, %v6304, %v6385
    %v6387 = vsel %vm3045, %v6306, %v6386
    %v6388 = vsel %vm3047, %v6308, %v6387
    %v6389 = vsel %vm3049, %v6297, %v6295
    %v6390 = vsel %vm3037, %v6299, %v6389
    %v6391 = vsel %vm3039, %v6301, %v6390
    %v6392 = vsel %vm3041, %v6303, %v6391
    %v6393 = vsel %vm3043, %v6305, %v6392
    %v6394 = vsel %vm3045, %v6307, %v6393
    %v6395 = vsel %vm3047, %v6309, %v6394
    %v6396 = vsel %vm3049, %v6312, %v6310
    %v6397 = vsel %vm3037, %v6314, %v6396
    %v6398 = vsel %vm3039, %v6316, %v6397
    %v6399 = vsel %vm3041, %v6318, %v6398
    %v6400 = vsel %vm3043, %v6320, %v6399
    %v6401 = vsel %vm3045, %v6322, %v6400
    %v6402 = vsel %vm3047, %v6324, %v6401
    %v6403 = vsel %vm3049, %v6313, %v6311
    %v6404 = vsel %vm3037, %v6315, %v6403
    %v6405 = vsel %vm3039, %v6317, %v6404
    %v6406 = vsel %vm3041, %v6319, %v6405
    %v6407 = vsel %vm3043, %v6321, %v6406
    %v6408 = vsel %vm3045, %v6323, %v6407
    %v6409 = vsel %vm3047, %v6325, %v6408
    %v6410 = vsel %vm3049, %v6328, %v6326
    %v6411 = vsel %vm3037, %v6330, %v6410
    %v6412 = vsel %vm3039, %v6332, %v6411
    %v6413 = vsel %vm3041, %v6334, %v6412
    %v6414 = vsel %vm3043, %v6336, %v6413
    %v6415 = vsel %vm3049, %v6329, %v6327
    %v6416 = vsel %vm3037, %v6331, %v6415
    %v6417 = vsel %vm3039, %v6333, %v6416
    %v6418 = vsel %vm3041, %v6335, %v6417
    %v6419 = vsel %vm3043, %v6337, %v6418
    %v6420 = vsel %vm3049, %v6340, %v6338
    %v6421 = vsel %vm3037, %v6342, %v6420
    %v6422 = vsel %vm3039, %v6344, %v6421
    %v6423 = vsel %vm3041, %v6346, %v6422
    %v6424 = vsel %vm3043, %v6348, %v6423
    %v6425 = vsel %vm3045, %v6350, %v6424
    %v6426 = vsel %vm3047, %v6352, %v6425
    %v6427 = vsel %vm3049, %v6341, %v6339
    %v6428 = vsel %vm3037, %v6343, %v6427
    %v6429 = vsel %vm3039, %v6345, %v6428
    %v6430 = vsel %vm3041, %v6347, %v6429
    %v6431 = vsel %vm3043, %v6349, %v6430
    %v6432 = vsel %vm3045, %v6351, %v6431
    %v6433 = vsel %vm3047, %v6353, %v6432
    %v6434 = vsel %vm3049, %v6356, %v6354
    %v6435 = vsel %vm3037, %v6358, %v6434
    %v6436 = vsel %vm3039, %v6360, %v6435
    %v6437 = vsel %vm3041, %v6362, %v6436
    %v6438 = vsel %vm3043, %v6364, %v6437
    %v6439 = vsel %vm3045, %v6366, %v6438
    %v6440 = vsel %vm3047, %v6368, %v6439
    %v6441 = vsel %vm3049, %v6357, %v6355
    %v6442 = vsel %vm3037, %v6359, %v6441
    %v6443 = vsel %vm3039, %v6361, %v6442
    %v6444 = vsel %vm3041, %v6363, %v6443
    %v6445 = vsel %vm3043, %v6365, %v6444
    %v6446 = vsel %vm3045, %v6367, %v6445
    %v6447 = vsel %vm3047, %v6369, %v6446
    %v6448 = vsel %vm3049, %v6372, %v6370
    %v6449 = vsel %vm3037, %v6374, %v6448
    %v6450 = vsel %vm3039, %v6376, %v6449
    %v6451 = vsel %vm3041, %v6378, %v6450
    %v6452 = vsel %vm3043, %v6380, %v6451
    %v6453 = vsel %vm3049, %v6373, %v6371
    %v6454 = vsel %vm3037, %v6375, %v6453
    %v6455 = vsel %vm3039, %v6377, %v6454
    %v6456 = vsel %vm3041, %v6379, %v6455
    %v6457 = vsel %vm3043, %v6381, %v6456
    %v6458 = vpack.c.b16 %v6395, %v6388
    %v6459 = vpack.c.b16 %v6409, %v6402
    %v6460 = vpack.c.b16 %v6419, %v6414
    %v6461 = vpack.c.b16 %v6433, %v6426
    %v6462 = vpack.c.b16 %v6447, %v6440
    %v6463 = vpack.c.b16 %v6457, %v6452
    %6470 = vst [vmem:[#allocation3] sm:$0xff] %v6458
    %6471 = vst [vmem:[#allocation3 + $0x8] sm:$0xff] %v6459
    %6472 = vst [vmem:[#allocation3 + $0x10] sm:$0x77] %v6460
    %6473 = vst [vmem:[#allocation3 + $0x18] sm:$0xff] %v6461
    %6474 = vst [vmem:[#allocation3 + $0x20] sm:$0xff] %v6462
    %6475 = vst [vmem:[#allocation3 + $0x28] sm:$0x77] %v6463
    %v6476 = vld [vmem:[#allocation3] sm:$0x11]
    %v6477 = vld [vmem:[#allocation3 + $0x18] sm:$0x11]
    %v6480 = vrot.slane %v6476, 3
    %v6481 = vrot.slane %v6477, 3
    %v6484 = vsel %vm301, %v6476, %v6480
    %v6487 = vsel %vm301, %v6477, %v6481
    %6488 = vst [vmem:[#allocation1] ss:$4 sm:$0xff] %v6484
    %v6489 = vld [vmem:[#allocation1] sm:$0xff]
    %s6491 = scalar_lea.vmem [#allocation1], 32
    %6492 = vst [vmem:[%s6491] ss:$4 sm:$0xff] %v6487
    %v6493 = vld [vmem:[#allocation1 + $0x20] sm:$0xff]
    %v6495 = vunpack.c.l.b16 %v6489
    %v6496 = vunpack.c.h.b16 %v6489
    %v6497 = vunpack.c.l.b16 %v6493
    %v6498 = vunpack.c.h.b16 %v6493
    %v6499 = vrot.slane %v6497, 7
    %v6500 = vsel %vm3049, %v6499, %v6495
    %v6501 = vrot.slane %v6498, 7
    %v6502 = vsel %vm3049, %v6501, %v6496
    %v6503 = vpack.c.b16 %v6502, %v6500
    %v6504 = vrot.slane %v6503, 3
    %v6507 = vsel %vm301, %v6503, %v6504
    %6509 = vst [vmem:[#allocation4] sm:$0x3] %v6507
    %v6510 = vld [vmem:[#allocation3] sm:$0x11]
    %v6511 = vld [vmem:[#allocation3 + $0x18] sm:$0x11]
    %v6514 = vrot.slane %v6510, 3
    %v6515 = vrot.slane %v6511, 3
    %v6518 = vsel %vm301, %v6510, %v6514
    %v6521 = vsel %vm301, %v6511, %v6515
    %6522 = vst [vmem:[#allocation1] ss:$4 sm:$0xff] %v6518
    %v6523 = vld [vmem:[#allocation1] sm:$0xff]
    %s6525 = scalar_lea.vmem [#allocation1], 32
    %6526 = vst [vmem:[%s6525] ss:$4 sm:$0xff] %v6521
    %v6527 = vld [vmem:[#allocation1 + $0x20] sm:$0xff]
    %v6529 = vunpack.c.l.b16 %v6523
    %v6530 = vunpack.c.h.b16 %v6523
    %v6531 = vunpack.c.l.b16 %v6527
    %v6532 = vunpack.c.h.b16 %v6527
    %v6533 = vrot.slane %v6529, 1
    %v6534 = vsel %vm3049, %v6531, %v6533
    %v6535 = vrot.slane %v6530, 1
    %v6536 = vsel %vm3049, %v6532, %v6535
    %v6537 = vpack.c.b16 %v6536, %v6534
    %v6538 = vrot.slane %v6537, 3
    %v6541 = vsel %vm301, %v6537, %v6538
    %6543 = vst [vmem:[#allocation4 + $0x2] sm:$0x3] %v6541
    %v6544 = vld [vmem:[#allocation3] sm:$0x22]
    %v6545 = vld [vmem:[#allocation3 + $0x18] sm:$0x22]
    %6547 = vst [vmem:[#allocation1] sm:$0xff] %v6544
    %s6548 = scalar_lea.vmem [#allocation1], 1
    %v6549 = vld [vmem:[%s6548] ss:$4 sm:$0xff]
    %6551 = vst [vmem:[#allocation1 + $0x20] sm:$0xff] %v6545
    %s6552 = scalar_lea.vmem [#allocation1], 33
    %v6553 = vld [vmem:[%s6552] ss:$4 sm:$0xff]
    %6554 = vst [vmem:[#allocation1] ss:$4 sm:$0xff] %v6549
    %v6555 = vld [vmem:[#allocation1] sm:$0xff]
    %s6557 = scalar_lea.vmem [#allocation1], 32
    %6558 = vst [vmem:[%s6557] ss:$4 sm:$0xff] %v6553
    %v6559 = vld [vmem:[#allocation1 + $0x20] sm:$0xff]
    %v6561 = vunpack.c.l.b16 %v6555
    %v6562 = vunpack.c.h.b16 %v6555
    %v6563 = vunpack.c.l.b16 %v6559
    %v6564 = vunpack.c.h.b16 %v6559
    %v6565 = vrot.slane %v6563, 7
    %v6566 = vsel %vm3049, %v6565, %v6561
    %v6567 = vrot.slane %v6564, 7
    %v6568 = vsel %vm3049, %v6567, %v6562
    %v6569 = vpack.c.b16 %v6568, %v6566
    %v6570 = vrot.slane %v6569, 3
    %v6573 = vsel %vm301, %v6569, %v6570
    %6575 = vst [vmem:[#allocation4 + $0x4] sm:$0x3] %v6573
    %v6576 = vld [vmem:[#allocation3] sm:$0x22]
    %v6577 = vld [vmem:[#allocation3 + $0x18] sm:$0x22]
    %6579 = vst [vmem:[#allocation1] sm:$0xff] %v6576
    %s6580 = scalar_lea.vmem [#allocation1], 1
    %v6581 = vld [vmem:[%s6580] ss:$4 sm:$0xff]
    %6583 = vst [vmem:[#allocation1 + $0x20] sm:$0xff] %v6577
    %s6584 = scalar_lea.vmem [#allocation1], 33
    %v6585 = vld [vmem:[%s6584] ss:$4 sm:$0xff]
    %6586 = vst [vmem:[#allocation1] ss:$4 sm:$0xff] %v6581
    %v6587 = vld [vmem:[#allocation1] sm:$0xff]
    %s6589 = scalar_lea.vmem [#allocation1], 32
    %6590 = vst [vmem:[%s6589] ss:$4 sm:$0xff] %v6585
    %v6591 = vld [vmem:[#allocation1 + $0x20] sm:$0xff]
    %v6593 = vunpack.c.l.b16 %v6587
    %v6594 = vunpack.c.h.b16 %v6587
    %v6595 = vunpack.c.l.b16 %v6591
    %v6596 = vunpack.c.h.b16 %v6591
    %v6597 = vrot.slane %v6593, 1
    %v6598 = vsel %vm3049, %v6595, %v6597
    %v6599 = vrot.slane %v6594, 1
    %v6600 = vsel %vm3049, %v6596, %v6599
    %v6601 = vpack.c.b16 %v6600, %v6598
    %v6602 = vrot.slane %v6601, 3
    %v6605 = vsel %vm301, %v6601, %v6602
    %6607 = vst [vmem:[#allocation4 + $0x6] sm:$0x3] %v6605
    %v6608 = vld [vmem:[#allocation3] sm:$0x44]
    %v6609 = vld [vmem:[#allocation3 + $0x18] sm:$0x44]
    %6611 = vst [vmem:[#allocation1] sm:$0xff] %v6608
    %s6612 = scalar_lea.vmem [#allocation1], 2
    %v6613 = vld [vmem:[%s6612] ss:$4 sm:$0xff]
    %6615 = vst [vmem:[#allocation1 + $0x20] sm:$0xff] %v6609
    %s6616 = scalar_lea.vmem [#allocation1], 34
    %v6617 = vld [vmem:[%s6616] ss:$4 sm:$0xff]
    %6618 = vst [vmem:[#allocation1] ss:$4 sm:$0xff] %v6613
    %v6619 = vld [vmem:[#allocation1] sm:$0xff]
    %s6621 = scalar_lea.vmem [#allocation1], 32
    %6622 = vst [vmem:[%s6621] ss:$4 sm:$0xff] %v6617
    %v6623 = vld [vmem:[#allocation1 + $0x20] sm:$0xff]
    %v6625 = vunpack.c.l.b16 %v6619
    %v6626 = vunpack.c.h.b16 %v6619
    %v6627 = vunpack.c.l.b16 %v6623
    %v6628 = vunpack.c.h.b16 %v6623
    %v6629 = vrot.slane %v6627, 7
    %v6630 = vsel %vm3049, %v6629, %v6625
    %v6631 = vrot.slane %v6628, 7
    %v6632 = vsel %vm3049, %v6631, %v6626
    %v6633 = vpack.c.b16 %v6632, %v6630
    %v6634 = vrot.slane %v6633, 3
    %v6637 = vsel %vm301, %v6633, %v6634
    %6639 = vst [vmem:[#allocation4 + $0x8] sm:$0x3] %v6637
    %v6640 = vld [vmem:[#allocation3] sm:$0x44]
    %v6641 = vld [vmem:[#allocation3 + $0x18] sm:$0x44]
    %6643 = vst [vmem:[#allocation1] sm:$0xff] %v6640
    %s6644 = scalar_lea.vmem [#allocation1], 2
    %v6645 = vld [vmem:[%s6644] ss:$4 sm:$0xff]
    %6647 = vst [vmem:[#allocation1 + $0x20] sm:$0xff] %v6641
    %s6648 = scalar_lea.vmem [#allocation1], 34
    %v6649 = vld [vmem:[%s6648] ss:$4 sm:$0xff]
    %6650 = vst [vmem:[#allocation1] ss:$4 sm:$0xff] %v6645
    %v6651 = vld [vmem:[#allocation1] sm:$0xff]
    %s6653 = scalar_lea.vmem [#allocation1], 32
    %6654 = vst [vmem:[%s6653] ss:$4 sm:$0xff] %v6649
    %v6655 = vld [vmem:[#allocation1 + $0x20] sm:$0xff]
    %v6657 = vunpack.c.l.b16 %v6651
    %v6658 = vunpack.c.h.b16 %v6651
    %v6659 = vunpack.c.l.b16 %v6655
    %v6660 = vunpack.c.h.b16 %v6655
    %v6661 = vrot.slane %v6657, 1
    %v6662 = vsel %vm3049, %v6659, %v6661
    %v6663 = vrot.slane %v6658, 1
    %v6664 = vsel %vm3049, %v6660, %v6663
    %v6665 = vpack.c.b16 %v6664, %v6662
    %v6666 = vrot.slane %v6665, 3
    %v6669 = vsel %vm301, %v6665, %v6666
    %6671 = vst [vmem:[#allocation4 + $0xa] sm:$0x3] %v6669
    %v6672 = vld [vmem:[#allocation3] sm:$0x88]
    %v6673 = vld [vmem:[#allocation3 + $0x18] sm:$0x88]
    %6675 = vst [vmem:[#allocation1] sm:$0xff] %v6672
    %s6676 = scalar_lea.vmem [#allocation1], 3
    %v6677 = vld [vmem:[%s6676] ss:$4 sm:$0xff]
    %6679 = vst [vmem:[#allocation1 + $0x20] sm:$0xff] %v6673
    %s6680 = scalar_lea.vmem [#allocation1], 35
    %v6681 = vld [vmem:[%s6680] ss:$4 sm:$0xff]
    %6682 = vst [vmem:[#allocation1] ss:$4 sm:$0xff] %v6677
    %v6683 = vld [vmem:[#allocation1] sm:$0xff]
    %s6685 = scalar_lea.vmem [#allocation1], 32
    %6686 = vst [vmem:[%s6685] ss:$4 sm:$0xff] %v6681
    %v6687 = vld [vmem:[#allocation1 + $0x20] sm:$0xff]
    %v6689 = vunpack.c.l.b16 %v6683
    %v6690 = vunpack.c.h.b16 %v6683
    %v6691 = vunpack.c.l.b16 %v6687
    %v6692 = vunpack.c.h.b16 %v6687
    %v6693 = vrot.slane %v6691, 7
    %v6694 = vsel %vm3049, %v6693, %v6689
    %v6695 = vrot.slane %v6692, 7
    %v6696 = vsel %vm3049, %v6695, %v6690
    %v6697 = vpack.c.b16 %v6696, %v6694
    %v6698 = vrot.slane %v6697, 3
    %v6701 = vsel %vm301, %v6697, %v6698
    %6703 = vst [vmem:[#allocation4 + $0xc] sm:$0x3] %v6701
    %v6704 = vld [vmem:[#allocation3] sm:$0x88]
    %v6705 = vld [vmem:[#allocation3 + $0x18] sm:$0x88]
    %6707 = vst [vmem:[#allocation1] sm:$0xff] %v6704
    %s6708 = scalar_lea.vmem [#allocation1], 3
    %v6709 = vld [vmem:[%s6708] ss:$4 sm:$0xff]
    %6711 = vst [vmem:[#allocation1 + $0x20] sm:$0xff] %v6705
    %s6712 = scalar_lea.vmem [#allocation1], 35
    %v6713 = vld [vmem:[%s6712] ss:$4 sm:$0xff]
    %6714 = vst [vmem:[#allocation1] ss:$4 sm:$0xff] %v6709
    %v6715 = vld [vmem:[#allocation1] sm:$0xff]
    %s6717 = scalar_lea.vmem [#allocation1], 32
    %6718 = vst [vmem:[%s6717] ss:$4 sm:$0xff] %v6713
    %v6719 = vld [vmem:[#allocation1 + $0x20] sm:$0xff]
    %v6721 = vunpack.c.l.b16 %v6715
    %v6722 = vunpack.c.h.b16 %v6715
    %v6723 = vunpack.c.l.b16 %v6719
    %v6724 = vunpack.c.h.b16 %v6719
    %v6725 = vrot.slane %v6721, 1
    %v6726 = vsel %vm3049, %v6723, %v6725
    %v6727 = vrot.slane %v6722, 1
    %v6728 = vsel %vm3049, %v6724, %v6727
    %v6729 = vpack.c.b16 %v6728, %v6726
    %v6730 = vrot.slane %v6729, 3
    %v6733 = vsel %vm301, %v6729, %v6730
    %6735 = vst [vmem:[#allocation4 + $0xe] sm:$0x3] %v6733
    %v6736 = vld [vmem:[#allocation3 + $0x8] sm:$0x11]
    %v6737 = vld [vmem:[#allocation3 + $0x20] sm:$0x11]
    %v6740 = vrot.slane %v6736, 3
    %v6741 = vrot.slane %v6737, 3
    %v6744 = vsel %vm301, %v6736, %v6740
    %v6747 = vsel %vm301, %v6737, %v6741
    %6748 = vst [vmem:[#allocation1] ss:$4 sm:$0xff] %v6744
    %v6749 = vld [vmem:[#allocation1] sm:$0xff]
    %s6751 = scalar_lea.vmem [#allocation1], 32
    %6752 = vst [vmem:[%s6751] ss:$4 sm:$0xff] %v6747
    %v6753 = vld [vmem:[#allocation1 + $0x20] sm:$0xff]
    %v6755 = vunpack.c.l.b16 %v6749
    %v6756 = vunpack.c.h.b16 %v6749
    %v6757 = vunpack.c.l.b16 %v6753
    %v6758 = vunpack.c.h.b16 %v6753
    %v6759 = vrot.slane %v6757, 7
    %v6760 = vsel %vm3049, %v6759, %v6755
    %v6761 = vrot.slane %v6758, 7
    %v6762 = vsel %vm3049, %v6761, %v6756
    %v6763 = vpack.c.b16 %v6762, %v6760
    %v6764 = vrot.slane %v6763, 3
    %v6767 = vsel %vm301, %v6763, %v6764
    %6769 = vst [vmem:[#allocation4 + $0x10] sm:$0x3] %v6767
    %v6770 = vld [vmem:[#allocation3 + $0x8] sm:$0x11]
    %v6771 = vld [vmem:[#allocation3 + $0x20] sm:$0x11]
    %v6774 = vrot.slane %v6770, 3
    %v6775 = vrot.slane %v6771, 3
    %v6778 = vsel %vm301, %v6770, %v6774
    %v6781 = vsel %vm301, %v6771, %v6775
    %6782 = vst [vmem:[#allocation1] ss:$4 sm:$0xff] %v6778
    %v6783 = vld [vmem:[#allocation1] sm:$0xff]
    %s6785 = scalar_lea.vmem [#allocation1], 32
    %6786 = vst [vmem:[%s6785] ss:$4 sm:$0xff] %v6781
    %v6787 = vld [vmem:[#allocation1 + $0x20] sm:$0xff]
    %v6789 = vunpack.c.l.b16 %v6783
    %v6790 = vunpack.c.h.b16 %v6783
    %v6791 = vunpack.c.l.b16 %v6787
    %v6792 = vunpack.c.h.b16 %v6787
    %v6793 = vrot.slane %v6789, 1
    %v6794 = vsel %vm3049, %v6791, %v6793
    %v6795 = vrot.slane %v6790, 1
    %v6796 = vsel %vm3049, %v6792, %v6795
    %v6797 = vpack.c.b16 %v6796, %v6794
    %v6798 = vrot.slane %v6797, 3
    %v6801 = vsel %vm301, %v6797, %v6798
    %6803 = vst [vmem:[#allocation4 + $0x12] sm:$0x3] %v6801
    %v6804 = vld [vmem:[#allocation3 + $0x8] sm:$0x22]
    %v6805 = vld [vmem:[#allocation3 + $0x20] sm:$0x22]
    %6807 = vst [vmem:[#allocation1] sm:$0xff] %v6804
    %s6808 = scalar_lea.vmem [#allocation1], 1
    %v6809 = vld [vmem:[%s6808] ss:$4 sm:$0xff]
    %6811 = vst [vmem:[#allocation1 + $0x20] sm:$0xff] %v6805
    %s6812 = scalar_lea.vmem [#allocation1], 33
    %v6813 = vld [vmem:[%s6812] ss:$4 sm:$0xff]
    %6814 = vst [vmem:[#allocation1] ss:$4 sm:$0xff] %v6809
    %v6815 = vld [vmem:[#allocation1] sm:$0xff]
    %s6817 = scalar_lea.vmem [#allocation1], 32
    %6818 = vst [vmem:[%s6817] ss:$4 sm:$0xff] %v6813
    %v6819 = vld [vmem:[#allocation1 + $0x20] sm:$0xff]
    %v6821 = vunpack.c.l.b16 %v6815
    %v6822 = vunpack.c.h.b16 %v6815
    %v6823 = vunpack.c.l.b16 %v6819
    %v6824 = vunpack.c.h.b16 %v6819
    %v6825 = vrot.slane %v6823, 7
    %v6826 = vsel %vm3049, %v6825, %v6821
    %v6827 = vrot.slane %v6824, 7
    %v6828 = vsel %vm3049, %v6827, %v6822
    %v6829 = vpack.c.b16 %v6828, %v6826
    %v6830 = vrot.slane %v6829, 3
    %v6833 = vsel %vm301, %v6829, %v6830
    %6835 = vst [vmem:[#allocation4 + $0x14] sm:$0x3] %v6833
    %v6836 = vld [vmem:[#allocation3 + $0x8] sm:$0x22]
    %v6837 = vld [vmem:[#allocation3 + $0x20] sm:$0x22]
    %6839 = vst [vmem:[#allocation1] sm:$0xff] %v6836
    %s6840 = scalar_lea.vmem [#allocation1], 1
    %v6841 = vld [vmem:[%s6840] ss:$4 sm:$0xff]
    %6843 = vst [vmem:[#allocation1 + $0x20] sm:$0xff] %v6837
    %s6844 = scalar_lea.vmem [#allocation1], 33
    %v6845 = vld [vmem:[%s6844] ss:$4 sm:$0xff]
    %6846 = vst [vmem:[#allocation1] ss:$4 sm:$0xff] %v6841
    %v6847 = vld [vmem:[#allocation1] sm:$0xff]
    %s6849 = scalar_lea.vmem [#allocation1], 32
    %6850 = vst [vmem:[%s6849] ss:$4 sm:$0xff] %v6845
    %v6851 = vld [vmem:[#allocation1 + $0x20] sm:$0xff]
    %v6853 = vunpack.c.l.b16 %v6847
    %v6854 = vunpack.c.h.b16 %v6847
    %v6855 = vunpack.c.l.b16 %v6851
    %v6856 = vunpack.c.h.b16 %v6851
    %v6857 = vrot.slane %v6853, 1
    %v6858 = vsel %vm3049, %v6855, %v6857
    %v6859 = vrot.slane %v6854, 1
    %v6860 = vsel %vm3049, %v6856, %v6859
    %v6861 = vpack.c.b16 %v6860, %v6858
    %v6862 = vrot.slane %v6861, 3
    %v6865 = vsel %vm301, %v6861, %v6862
    %6867 = vst [vmem:[#allocation4 + $0x16] sm:$0x3] %v6865
    %v6868 = vld [vmem:[#allocation3 + $0x8] sm:$0x44]
    %v6869 = vld [vmem:[#allocation3 + $0x20] sm:$0x44]
    %6871 = vst [vmem:[#allocation1] sm:$0xff] %v6868
    %s6872 = scalar_lea.vmem [#allocation1], 2
    %v6873 = vld [vmem:[%s6872] ss:$4 sm:$0xff]
    %6875 = vst [vmem:[#allocation1 + $0x20] sm:$0xff] %v6869
    %s6876 = scalar_lea.vmem [#allocation1], 34
    %v6877 = vld [vmem:[%s6876] ss:$4 sm:$0xff]
    %6878 = vst [vmem:[#allocation1] ss:$4 sm:$0xff] %v6873
    %v6879 = vld [vmem:[#allocation1] sm:$0xff]
    %s6881 = scalar_lea.vmem [#allocation1], 32
    %6882 = vst [vmem:[%s6881] ss:$4 sm:$0xff] %v6877
    %v6883 = vld [vmem:[#allocation1 + $0x20] sm:$0xff]
    %v6885 = vunpack.c.l.b16 %v6879
    %v6886 = vunpack.c.h.b16 %v6879
    %v6887 = vunpack.c.l.b16 %v6883
    %v6888 = vunpack.c.h.b16 %v6883
    %v6889 = vrot.slane %v6887, 7
    %v6890 = vsel %vm3049, %v6889, %v6885
    %v6891 = vrot.slane %v6888, 7
    %v6892 = vsel %vm3049, %v6891, %v6886
    %v6893 = vpack.c.b16 %v6892, %v6890
    %v6894 = vrot.slane %v6893, 3
    %v6897 = vsel %vm301, %v6893, %v6894
    %6899 = vst [vmem:[#allocation4 + $0x18] sm:$0x3] %v6897
    %v6900 = vld [vmem:[#allocation3 + $0x8] sm:$0x44]
    %v6901 = vld [vmem:[#allocation3 + $0x20] sm:$0x44]
    %6903 = vst [vmem:[#allocation1] sm:$0xff] %v6900
    %s6904 = scalar_lea.vmem [#allocation1], 2
    %v6905 = vld [vmem:[%s6904] ss:$4 sm:$0xff]
    %6907 = vst [vmem:[#allocation1 + $0x20] sm:$0xff] %v6901
    %s6908 = scalar_lea.vmem [#allocation1], 34
    %v6909 = vld [vmem:[%s6908] ss:$4 sm:$0xff]
    %6910 = vst [vmem:[#allocation1] ss:$4 sm:$0xff] %v6905
    %v6911 = vld [vmem:[#allocation1] sm:$0xff]
    %s6913 = scalar_lea.vmem [#allocation1], 32
    %6914 = vst [vmem:[%s6913] ss:$4 sm:$0xff] %v6909
    %v6915 = vld [vmem:[#allocation1 + $0x20] sm:$0xff]
    %v6917 = vunpack.c.l.b16 %v6911
    %v6918 = vunpack.c.h.b16 %v6911
    %v6919 = vunpack.c.l.b16 %v6915
    %v6920 = vunpack.c.h.b16 %v6915
    %v6921 = vrot.slane %v6917, 1
    %v6922 = vsel %vm3049, %v6919, %v6921
    %v6923 = vrot.slane %v6918, 1
    %v6924 = vsel %vm3049, %v6920, %v6923
    %v6925 = vpack.c.b16 %v6924, %v6922
    %v6926 = vrot.slane %v6925, 3
    %v6929 = vsel %vm301, %v6925, %v6926
    %6931 = vst [vmem:[#allocation4 + $0x1a] sm:$0x3] %v6929
    %v6932 = vld [vmem:[#allocation3 + $0x8] sm:$0x88]
    %v6933 = vld [vmem:[#allocation3 + $0x20] sm:$0x88]
    %6935 = vst [vmem:[#allocation1] sm:$0xff] %v6932
    %s6936 = scalar_lea.vmem [#allocation1], 3
    %v6937 = vld [vmem:[%s6936] ss:$4 sm:$0xff]
    %6939 = vst [vmem:[#allocation1 + $0x20] sm:$0xff] %v6933
    %s6940 = scalar_lea.vmem [#allocation1], 35
    %v6941 = vld [vmem:[%s6940] ss:$4 sm:$0xff]
    %6942 = vst [vmem:[#allocation1] ss:$4 sm:$0xff] %v6937
    %v6943 = vld [vmem:[#allocation1] sm:$0xff]
    %s6945 = scalar_lea.vmem [#allocation1], 32
    %6946 = vst [vmem:[%s6945] ss:$4 sm:$0xff] %v6941
    %v6947 = vld [vmem:[#allocation1 + $0x20] sm:$0xff]
    %v6949 = vunpack.c.l.b16 %v6943
    %v6950 = vunpack.c.h.b16 %v6943
    %v6951 = vunpack.c.l.b16 %v6947
    %v6952 = vunpack.c.h.b16 %v6947
    %v6953 = vrot.slane %v6951, 7
    %v6954 = vsel %vm3049, %v6953, %v6949
    %v6955 = vrot.slane %v6952, 7
    %v6956 = vsel %vm3049, %v6955, %v6950
    %v6957 = vpack.c.b16 %v6956, %v6954
    %v6958 = vrot.slane %v6957, 3
    %v6961 = vsel %vm301, %v6957, %v6958
    %6963 = vst [vmem:[#allocation4 + $0x1c] sm:$0x3] %v6961
    %v6964 = vld [vmem:[#allocation3 + $0x8] sm:$0x88]
    %v6965 = vld [vmem:[#allocation3 + $0x20] sm:$0x88]
    %6967 = vst [vmem:[#allocation1] sm:$0xff] %v6964
    %s6968 = scalar_lea.vmem [#allocation1], 3
    %v6969 = vld [vmem:[%s6968] ss:$4 sm:$0xff]
    %6971 = vst [vmem:[#allocation1 + $0x20] sm:$0xff] %v6965
    %s6972 = scalar_lea.vmem [#allocation1], 35
    %v6973 = vld [vmem:[%s6972] ss:$4 sm:$0xff]
    %6974 = vst [vmem:[#allocation1] ss:$4 sm:$0xff] %v6969
    %v6975 = vld [vmem:[#allocation1] sm:$0xff]
    %s6977 = scalar_lea.vmem [#allocation1], 32
    %6978 = vst [vmem:[%s6977] ss:$4 sm:$0xff] %v6973
    %v6979 = vld [vmem:[#allocation1 + $0x20] sm:$0xff]
    %v6981 = vunpack.c.l.b16 %v6975
    %v6982 = vunpack.c.h.b16 %v6975
    %v6983 = vunpack.c.l.b16 %v6979
    %v6984 = vunpack.c.h.b16 %v6979
    %v6985 = vrot.slane %v6981, 1
    %v6986 = vsel %vm3049, %v6983, %v6985
    %v6987 = vrot.slane %v6982, 1
    %v6988 = vsel %vm3049, %v6984, %v6987
    %v6989 = vpack.c.b16 %v6988, %v6986
    %v6990 = vrot.slane %v6989, 3
    %v6993 = vsel %vm301, %v6989, %v6990
    %6995 = vst [vmem:[#allocation4 + $0x1e] sm:$0x3] %v6993
    %v6996 = vld [vmem:[#allocation3 + $0x10] sm:$0x11]
    %v6997 = vld [vmem:[#allocation3 + $0x28] sm:$0x11]
    %v7000 = vrot.slane %v6996, 3
    %v7001 = vrot.slane %v6997, 3
    %v7004 = vsel %vm301, %v6996, %v7000
    %v7007 = vsel %vm301, %v6997, %v7001
    %7008 = vst [vmem:[#allocation1] ss:$4 sm:$0xff] %v7004
    %v7009 = vld [vmem:[#allocation1] sm:$0xff]
    %s7011 = scalar_lea.vmem [#allocation1], 32
    %7012 = vst [vmem:[%s7011] ss:$4 sm:$0xff] %v7007
    %v7013 = vld [vmem:[#allocation1 + $0x20] sm:$0xff]
    %v7015 = vunpack.c.l.b16 %v7009
    %v7016 = vunpack.c.h.b16 %v7009
    %v7017 = vunpack.c.l.b16 %v7013
    %v7018 = vunpack.c.h.b16 %v7013
    %v7019 = vrot.slane %v7017, 7
    %v7020 = vsel %vm3049, %v7019, %v7015
    %v7021 = vrot.slane %v7018, 7
    %v7022 = vsel %vm3049, %v7021, %v7016
    %v7023 = vpack.c.b16 %v7022, %v7020
    %v7024 = vrot.slane %v7023, 3
    %v7027 = vsel %vm301, %v7023, %v7024
    %7029 = vst [vmem:[#allocation4 + $0x20] sm:$0x3] %v7027
    %v7030 = vld [vmem:[#allocation3 + $0x10] sm:$0x11]
    %v7031 = vld [vmem:[#allocation3 + $0x28] sm:$0x11]
    %v7034 = vrot.slane %v7030, 3
    %v7035 = vrot.slane %v7031, 3
    %v7038 = vsel %vm301, %v7030, %v7034
    %v7041 = vsel %vm301, %v7031, %v7035
    %7042 = vst [vmem:[#allocation1] ss:$4 sm:$0xff] %v7038
    %v7043 = vld [vmem:[#allocation1] sm:$0xff]
    %s7045 = scalar_lea.vmem [#allocation1], 32
    %7046 = vst [vmem:[%s7045] ss:$4 sm:$0xff] %v7041
    %v7047 = vld [vmem:[#allocation1 + $0x20] sm:$0xff]
    %v7049 = vunpack.c.l.b16 %v7043
    %v7050 = vunpack.c.h.b16 %v7043
    %v7051 = vunpack.c.l.b16 %v7047
    %v7052 = vunpack.c.h.b16 %v7047
    %v7053 = vrot.slane %v7049, 1
    %v7054 = vsel %vm3049, %v7051, %v7053
    %v7055 = vrot.slane %v7050, 1
    %v7056 = vsel %vm3049, %v7052, %v7055
    %v7057 = vpack.c.b16 %v7056, %v7054
    %v7058 = vrot.slane %v7057, 3
    %v7061 = vsel %vm301, %v7057, %v7058
    %7063 = vst [vmem:[#allocation4 + $0x22] sm:$0x3] %v7061
    %v7064 = vld [vmem:[#allocation3 + $0x10] sm:$0x22]
    %v7065 = vld [vmem:[#allocation3 + $0x28] sm:$0x22]
    %7067 = vst [vmem:[#allocation1] sm:$0xff] %v7064
    %s7068 = scalar_lea.vmem [#allocation1], 1
    %v7069 = vld [vmem:[%s7068] ss:$4 sm:$0xff]
    %7071 = vst [vmem:[#allocation1 + $0x20] sm:$0xff] %v7065
    %s7072 = scalar_lea.vmem [#allocation1], 33
    %v7073 = vld [vmem:[%s7072] ss:$4 sm:$0xff]
    %7074 = vst [vmem:[#allocation1] ss:$4 sm:$0xff] %v7069
    %v7075 = vld [vmem:[#allocation1] sm:$0xff]
    %s7077 = scalar_lea.vmem [#allocation1], 32
    %7078 = vst [vmem:[%s7077] ss:$4 sm:$0xff] %v7073
    %v7079 = vld [vmem:[#allocation1 + $0x20] sm:$0xff]
    %v7081 = vunpack.c.l.b16 %v7075
    %v7082 = vunpack.c.h.b16 %v7075
    %v7083 = vunpack.c.l.b16 %v7079
    %v7084 = vunpack.c.h.b16 %v7079
    %v7085 = vrot.slane %v7083, 7
    %v7086 = vsel %vm3049, %v7085, %v7081
    %v7087 = vrot.slane %v7084, 7
    %v7088 = vsel %vm3049, %v7087, %v7082
    %v7089 = vpack.c.b16 %v7088, %v7086
    %v7090 = vrot.slane %v7089, 3
    %v7093 = vsel %vm301, %v7089, %v7090
    %7095 = vst [vmem:[#allocation4 + $0x24] sm:$0x3] %v7093
    %v7096 = vld [vmem:[#allocation3 + $0x10] sm:$0x22]
    %v7097 = vld [vmem:[#allocation3 + $0x28] sm:$0x22]
    %7099 = vst [vmem:[#allocation1] sm:$0xff] %v7096
    %s7100 = scalar_lea.vmem [#allocation1], 1
    %v7101 = vld [vmem:[%s7100] ss:$4 sm:$0xff]
    %7103 = vst [vmem:[#allocation1 + $0x20] sm:$0xff] %v7097
    %s7104 = scalar_lea.vmem [#allocation1], 33
    %v7105 = vld [vmem:[%s7104] ss:$4 sm:$0xff]
    %7106 = vst [vmem:[#allocation1] ss:$4 sm:$0xff] %v7101
    %v7107 = vld [vmem:[#allocation1] sm:$0xff]
    %s7109 = scalar_lea.vmem [#allocation1], 32
    %7110 = vst [vmem:[%s7109] ss:$4 sm:$0xff] %v7105
    %v7111 = vld [vmem:[#allocation1 + $0x20] sm:$0xff]
    %v7113 = vunpack.c.l.b16 %v7107
    %v7114 = vunpack.c.h.b16 %v7107
    %v7115 = vunpack.c.l.b16 %v7111
    %v7116 = vunpack.c.h.b16 %v7111
    %v7117 = vrot.slane %v7113, 1
    %v7118 = vsel %vm3049, %v7115, %v7117
    %v7119 = vrot.slane %v7114, 1
    %v7120 = vsel %vm3049, %v7116, %v7119
    %v7121 = vpack.c.b16 %v7120, %v7118
    %v7122 = vrot.slane %v7121, 3
    %v7125 = vsel %vm301, %v7121, %v7122
    %7127 = vst [vmem:[#allocation4 + $0x26] sm:$0x3] %v7125
    %v7128 = vld [vmem:[#allocation3 + $0x10] sm:$0x44]
    %v7129 = vld [vmem:[#allocation3 + $0x28] sm:$0x44]
    %7131 = vst [vmem:[#allocation1] sm:$0xff] %v7128
    %s7132 = scalar_lea.vmem [#allocation1], 2
    %v7133 = vld [vmem:[%s7132] ss:$4 sm:$0xff]
    %7135 = vst [vmem:[#allocation1 + $0x20] sm:$0xff] %v7129
    %s7136 = scalar_lea.vmem [#allocation1], 34
    %v7137 = vld [vmem:[%s7136] ss:$4 sm:$0xff]
    %7138 = vst [vmem:[#allocation1] ss:$4 sm:$0xff] %v7133
    %v7139 = vld [vmem:[#allocation1] sm:$0xff]
    %s7141 = scalar_lea.vmem [#allocation1], 32
    %7142 = vst [vmem:[%s7141] ss:$4 sm:$0xff] %v7137
    %v7143 = vld [vmem:[#allocation1 + $0x20] sm:$0xff]
    %v7145 = vunpack.c.l.b16 %v7139
    %v7146 = vunpack.c.h.b16 %v7139
    %v7147 = vunpack.c.l.b16 %v7143
    %v7148 = vunpack.c.h.b16 %v7143
    %v7149 = vrot.slane %v7147, 7
    %v7150 = vsel %vm3049, %v7149, %v7145
    %v7151 = vrot.slane %v7148, 7
    %v7152 = vsel %vm3049, %v7151, %v7146
    %v7153 = vpack.c.b16 %v7152, %v7150
    %v7154 = vrot.slane %v7153, 3
    %v7157 = vsel %vm301, %v7153, %v7154
    %7159 = vst [vmem:[#allocation4 + $0x28] sm:$0x3] %v7157
    %v7160 = vld [vmem:[#allocation3 + $0x10] sm:$0x44]
    %v7161 = vld [vmem:[#allocation3 + $0x28] sm:$0x44]
    %7163 = vst [vmem:[#allocation1] sm:$0xff] %v7160
    %s7164 = scalar_lea.vmem [#allocation1], 2
    %v7165 = vld [vmem:[%s7164] ss:$4 sm:$0xff]
    %7167 = vst [vmem:[#allocation1 + $0x20] sm:$0xff] %v7161
    %s7168 = scalar_lea.vmem [#allocation1], 34
    %v7169 = vld [vmem:[%s7168] ss:$4 sm:$0xff]
    %7170 = vst [vmem:[#allocation1] ss:$4 sm:$0xff] %v7165
    %v7171 = vld [vmem:[#allocation1] sm:$0xff]
    %s7173 = scalar_lea.vmem [#allocation1], 32
    %7174 = vst [vmem:[%s7173] ss:$4 sm:$0xff] %v7169
    %v7175 = vld [vmem:[#allocation1 + $0x20] sm:$0xff]
    %v7177 = vunpack.c.l.b16 %v7171
    %v7178 = vunpack.c.h.b16 %v7171
    %v7179 = vunpack.c.l.b16 %v7175
    %v7180 = vunpack.c.h.b16 %v7175
    %v7181 = vrot.slane %v7177, 1
    %v7182 = vsel %vm3049, %v7179, %v7181
    %v7183 = vrot.slane %v7178, 1
    %v7184 = vsel %vm3049, %v7180, %v7183
    %v7185 = vpack.c.b16 %v7184, %v7182
    %v7186 = vrot.slane %v7185, 3
    %v7189 = vsel %vm301, %v7185, %v7186
    %7191 = vst [vmem:[#allocation4 + $0x2a] sm:$0x3] %v7189
    %s7192 = smul.u32 4, 176
    %s7193 = smul.u32 %s7192, 2
    %s7194 = sshll.u32 %s7193, 4
    %7195 = dma.done [#allocation5], %s7194
    %v7196 = vld [vmem:[#allocation4] sm:$0xff]
    %v7197 = vld [vmem:[#allocation4 + $0x8] sm:$0x7]
    %v7198 = vld [vmem:[#allocation2] sm:$0xff]
    %v7199 = vld [vmem:[#allocation2 + $0x8] sm:$0xff]
    %v7200 = vld [vmem:[#allocation2 + $0x10] sm:$0xff]
    %v7201 = vld [vmem:[#allocation2 + $0x18] sm:$0xff]
    %v7202 = vld [vmem:[#allocation2 + $0x20] sm:$0xff]
    %v7203 = vld [vmem:[#allocation2 + $0x28] sm:$0xff]
    %v7204 = vld [vmem:[#allocation2 + $0x30] sm:$0xff]
    %v7205 = vld [vmem:[#allocation2 + $0x38] sm:$0xff]
    %v7206 = vld [vmem:[#allocation2 + $0x40] sm:$0xff]
    %v7207 = vld [vmem:[#allocation2 + $0x48] sm:$0xff]
    %v7208 = vld [vmem:[#allocation2 + $0x50] sm:$0xff]
    %v7209 = vld [vmem:[#allocation2 + $0x58] sm:$0xff]
    %v7210 = vld [vmem:[#allocation2 + $0x60] sm:$0xff]
    %v7211 = vld [vmem:[#allocation2 + $0x68] sm:$0xff]
    %v7212 = vld [vmem:[#allocation2 + $0x70] sm:$0xff]
    %v7213 = vld [vmem:[#allocation2 + $0x78] sm:$0xff]
    %v7214 = vld [vmem:[#allocation2 + $0x80] sm:$0xff]
    %v7215 = vld [vmem:[#allocation2 + $0x88] sm:$0xff]
    %v7216 = vld [vmem:[#allocation2 + $0x90] sm:$0xff]
    %v7217 = vld [vmem:[#allocation2 + $0x98] sm:$0xff]
    %v7218 = vld [vmem:[#allocation2 + $0xa0] sm:$0xff]
    %v7219 = vld [vmem:[#allocation2 + $0xa8] sm:$0xff]
    %v7220 = vld [vmem:[#allocation2 + $0xb0] sm:$0xff]
    %v7221 = vld [vmem:[#allocation2 + $0xb8] sm:$0xff]
    %v7222 = vld [vmem:[#allocation2 + $0xc0] sm:$0xff]
    %v7223 = vld [vmem:[#allocation2 + $0xc8] sm:$0xff]
    %v7224 = vld [vmem:[#allocation2 + $0xd0] sm:$0xff]
    %v7225 = vld [vmem:[#allocation2 + $0xd8] sm:$0xff]
    %v7226 = vld [vmem:[#allocation2 + $0xe0] sm:$0xff]
    %v7227 = vld [vmem:[#allocation2 + $0xe8] sm:$0xff]
    %v7228 = vld [vmem:[#allocation2 + $0xf0] sm:$0xff]
    %v7229 = vld [vmem:[#allocation2 + $0xf8] sm:$0xff]
    %v7230 = vld [vmem:[#allocation2 + $0x100] sm:$0xff]
    %v7231 = vld [vmem:[#allocation2 + $0x108] sm:$0xff]
    %v7232 = vld [vmem:[#allocation2 + $0x110] sm:$0xff]
    %v7233 = vld [vmem:[#allocation2 + $0x118] sm:$0xff]
    %v7234 = vld [vmem:[#allocation2 + $0x120] sm:$0xff]
    %v7235 = vld [vmem:[#allocation2 + $0x128] sm:$0xff]
    %v7236 = vld [vmem:[#allocation2 + $0x130] sm:$0xff]
    %v7237 = vld [vmem:[#allocation2 + $0x138] sm:$0xff]
    %v7238 = vld [vmem:[#allocation2 + $0x140] sm:$0xff]
    %v7239 = vld [vmem:[#allocation2 + $0x148] sm:$0xff]
    %v7240 = vld [vmem:[#allocation2 + $0x150] sm:$0xff]
    %v7241 = vld [vmem:[#allocation2 + $0x158] sm:$0xff]
    %v7242 = vld [vmem:[#allocation2 + $0x160] sm:$0xff]
    %v7243 = vld [vmem:[#allocation2 + $0x168] sm:$0xff]
    %v7244 = vld [vmem:[#allocation2 + $0x170] sm:$0xff]
    %v7245 = vld [vmem:[#allocation2 + $0x178] sm:$0xff]
    %v7246 = vld [vmem:[#allocation2 + $0x180] sm:$0xff]
    %v7247 = vld [vmem:[#allocation2 + $0x188] sm:$0xff]
    %v7248 = vld [vmem:[#allocation2 + $0x190] sm:$0xff]
    %v7249 = vld [vmem:[#allocation2 + $0x198] sm:$0xff]
    %v7250 = vld [vmem:[#allocation2 + $0x1a0] sm:$0xff]
    %v7251 = vld [vmem:[#allocation2 + $0x1a8] sm:$0xff]
    %v7252 = vld [vmem:[#allocation2 + $0x1b0] sm:$0xff]
    %v7253 = vld [vmem:[#allocation2 + $0x1b8] sm:$0xff]
    %v7254 = vld [vmem:[#allocation2 + $0x1c0] sm:$0xff]
    %v7255 = vld [vmem:[#allocation2 + $0x1c8] sm:$0xff]
    %v7256 = vld [vmem:[#allocation2 + $0x1d0] sm:$0xff]
    %v7257 = vld [vmem:[#allocation2 + $0x1d8] sm:$0xff]
    %v7258 = vld [vmem:[#allocation2 + $0x1e0] sm:$0xff]
    %v7259 = vld [vmem:[#allocation2 + $0x1e8] sm:$0xff]
    %v7260 = vld [vmem:[#allocation2 + $0x1f0] sm:$0xff]
    %v7261 = vld [vmem:[#allocation2 + $0x1f8] sm:$0xff]
    %v7262 = vld [vmem:[#allocation2 + $0x200] sm:$0xff]
    %v7263 = vld [vmem:[#allocation2 + $0x208] sm:$0xff]
    %v7264 = vld [vmem:[#allocation2 + $0x210] sm:$0xff]
    %v7265 = vld [vmem:[#allocation2 + $0x218] sm:$0xff]
    %v7266 = vld [vmem:[#allocation2 + $0x220] sm:$0xff]
    %v7267 = vld [vmem:[#allocation2 + $0x228] sm:$0xff]
    %v7268 = vld [vmem:[#allocation2 + $0x230] sm:$0xff]
    %v7269 = vld [vmem:[#allocation2 + $0x238] sm:$0xff]
    %v7270 = vld [vmem:[#allocation2 + $0x240] sm:$0xff]
    %v7271 = vld [vmem:[#allocation2 + $0x248] sm:$0xff]
    %v7272 = vld [vmem:[#allocation2 + $0x250] sm:$0xff]
    %v7273 = vld [vmem:[#allocation2 + $0x258] sm:$0xff]
    %v7274 = vld [vmem:[#allocation2 + $0x260] sm:$0xff]
    %v7275 = vld [vmem:[#allocation2 + $0x268] sm:$0xff]
    %v7276 = vld [vmem:[#allocation2 + $0x270] sm:$0xff]
    %v7277 = vld [vmem:[#allocation2 + $0x278] sm:$0xff]
    %v7278 = vld [vmem:[#allocation2 + $0x280] sm:$0xff]
    %v7279 = vld [vmem:[#allocation2 + $0x288] sm:$0xff]
    %v7280 = vld [vmem:[#allocation2 + $0x290] sm:$0xff]
    %v7281 = vld [vmem:[#allocation2 + $0x298] sm:$0xff]
    %v7282 = vld [vmem:[#allocation2 + $0x2a0] sm:$0xff]
    %v7283 = vld [vmem:[#allocation2 + $0x2a8] sm:$0xff]
    %v7284 = vld [vmem:[#allocation2 + $0x2b0] sm:$0xff]
    %v7285 = vld [vmem:[#allocation2 + $0x2b8] sm:$0xff]
    %v7286 = vld [vmem:[#allocation2 + $0x2c0] sm:$0xff]
    %v7287 = vld [vmem:[#allocation2 + $0x2c8] sm:$0xff]
    %v7288 = vld [vmem:[#allocation2 + $0x2d0] sm:$0xff]
    %v7289 = vld [vmem:[#allocation2 + $0x2d8] sm:$0xff]
    %v7290 = vld [vmem:[#allocation2 + $0x2e0] sm:$0xff]
    %v7291 = vld [vmem:[#allocation2 + $0x2e8] sm:$0xff]
    %v7292 = vld [vmem:[#allocation2 + $0x2f0] sm:$0xff]
    %v7293 = vld [vmem:[#allocation2 + $0x2f8] sm:$0xff]
    %v7294 = vld [vmem:[#allocation2 + $0x300] sm:$0xff]
    %v7295 = vld [vmem:[#allocation2 + $0x308] sm:$0xff]
    %v7296 = vld [vmem:[#allocation2 + $0x310] sm:$0xff]
    %v7297 = vld [vmem:[#allocation2 + $0x318] sm:$0xff]
    %v7298 = vld [vmem:[#allocation2 + $0x320] sm:$0xff]
    %v7299 = vld [vmem:[#allocation2 + $0x328] sm:$0xff]
    %v7300 = vld [vmem:[#allocation2 + $0x330] sm:$0xff]
    %v7301 = vld [vmem:[#allocation2 + $0x338] sm:$0xff]
    %v7302 = vld [vmem:[#allocation2 + $0x340] sm:$0xff]
    %v7303 = vld [vmem:[#allocation2 + $0x348] sm:$0xff]
    %v7304 = vld [vmem:[#allocation2 + $0x350] sm:$0xff]
    %v7305 = vld [vmem:[#allocation2 + $0x358] sm:$0xff]
    %v7306 = vld [vmem:[#allocation2 + $0x360] sm:$0xff]
    %v7307 = vld [vmem:[#allocation2 + $0x368] sm:$0xff]
    %v7308 = vld [vmem:[#allocation2 + $0x370] sm:$0xff]
    %v7309 = vld [vmem:[#allocation2 + $0x378] sm:$0xff]
    %v7310 = vld [vmem:[#allocation2 + $0x380] sm:$0xff]
    %v7311 = vld [vmem:[#allocation2 + $0x388] sm:$0xff]
    %v7312 = vld [vmem:[#allocation2 + $0x390] sm:$0xff]
    %v7313 = vld [vmem:[#allocation2 + $0x398] sm:$0xff]
    %v7314 = vld [vmem:[#allocation2 + $0x3a0] sm:$0xff]
    %v7315 = vld [vmem:[#allocation2 + $0x3a8] sm:$0xff]
    %v7316 = vld [vmem:[#allocation2 + $0x3b0] sm:$0xff]
    %v7317 = vld [vmem:[#allocation2 + $0x3b8] sm:$0xff]
    %v7318 = vld [vmem:[#allocation2 + $0x3c0] sm:$0xff]
    %v7319 = vld [vmem:[#allocation2 + $0x3c8] sm:$0xff]
    %v7320 = vld [vmem:[#allocation2 + $0x3d0] sm:$0xff]
    %v7321 = vld [vmem:[#allocation2 + $0x3d8] sm:$0xff]
    %v7322 = vld [vmem:[#allocation2 + $0x3e0] sm:$0xff]
    %v7323 = vld [vmem:[#allocation2 + $0x3e8] sm:$0xff]
    %v7324 = vld [vmem:[#allocation2 + $0x3f0] sm:$0xff]
    %v7325 = vld [vmem:[#allocation2 + $0x3f8] sm:$0xff]
    %v7326 = vld [vmem:[#allocation2 + $0x400] sm:$0xff]
    %v7327 = vld [vmem:[#allocation2 + $0x408] sm:$0xff]
    %v7328 = vld [vmem:[#allocation2 + $0x410] sm:$0xff]
    %v7329 = vld [vmem:[#allocation2 + $0x418] sm:$0xff]
    %v7330 = vld [vmem:[#allocation2 + $0x420] sm:$0xff]
    %v7331 = vld [vmem:[#allocation2 + $0x428] sm:$0xff]
    %v7332 = vld [vmem:[#allocation2 + $0x430] sm:$0xff]
    %v7333 = vld [vmem:[#allocation2 + $0x438] sm:$0xff]
    %v7334 = vld [vmem:[#allocation2 + $0x440] sm:$0xff]
    %v7335 = vld [vmem:[#allocation2 + $0x448] sm:$0xff]
    %v7336 = vld [vmem:[#allocation2 + $0x450] sm:$0xff]
    %v7337 = vld [vmem:[#allocation2 + $0x458] sm:$0xff]
    %v7338 = vld [vmem:[#allocation2 + $0x460] sm:$0xff]
    %v7339 = vld [vmem:[#allocation2 + $0x468] sm:$0xff]
    %v7340 = vld [vmem:[#allocation2 + $0x470] sm:$0xff]
    %v7341 = vld [vmem:[#allocation2 + $0x478] sm:$0xff]
    %v7342 = vld [vmem:[#allocation2 + $0x480] sm:$0xff]
    %v7343 = vld [vmem:[#allocation2 + $0x488] sm:$0xff]
    %v7344 = vld [vmem:[#allocation2 + $0x490] sm:$0xff]
    %v7345 = vld [vmem:[#allocation2 + $0x498] sm:$0xff]
    %v7346 = vld [vmem:[#allocation2 + $0x4a0] sm:$0xff]
    %v7347 = vld [vmem:[#allocation2 + $0x4a8] sm:$0xff]
    %v7348 = vld [vmem:[#allocation2 + $0x4b0] sm:$0xff]
    %v7349 = vld [vmem:[#allocation2 + $0x4b8] sm:$0xff]
    %v7350 = vld [vmem:[#allocation2 + $0x4c0] sm:$0xff]
    %v7351 = vld [vmem:[#allocation2 + $0x4c8] sm:$0xff]
    %v7352 = vld [vmem:[#allocation2 + $0x4d0] sm:$0xff]
    %v7353 = vld [vmem:[#allocation2 + $0x4d8] sm:$0xff]
    %v7354 = vld [vmem:[#allocation2 + $0x4e0] sm:$0xff]
    %v7355 = vld [vmem:[#allocation2 + $0x4e8] sm:$0xff]
    %v7356 = vld [vmem:[#allocation2 + $0x4f0] sm:$0xff]
    %v7357 = vld [vmem:[#allocation2 + $0x4f8] sm:$0xff]
    %v7358 = vld [vmem:[#allocation2 + $0x500] sm:$0xff]
    %v7359 = vld [vmem:[#allocation2 + $0x508] sm:$0xff]
    %v7360 = vld [vmem:[#allocation2 + $0x510] sm:$0xff]
    %v7361 = vld [vmem:[#allocation2 + $0x518] sm:$0xff]
    %v7362 = vld [vmem:[#allocation2 + $0x520] sm:$0xff]
    %v7363 = vld [vmem:[#allocation2 + $0x528] sm:$0xff]
    %v7364 = vld [vmem:[#allocation2 + $0x530] sm:$0xff]
    %v7365 = vld [vmem:[#allocation2 + $0x538] sm:$0xff]
    %v7366 = vld [vmem:[#allocation2 + $0x540] sm:$0xff]
    %v7367 = vld [vmem:[#allocation2 + $0x548] sm:$0xff]
    %v7368 = vld [vmem:[#allocation2 + $0x550] sm:$0xff]
    %v7369 = vld [vmem:[#allocation2 + $0x558] sm:$0xff]
    %v7370 = vld [vmem:[#allocation2 + $0x560] sm:$0xff]
    %v7371 = vld [vmem:[#allocation2 + $0x568] sm:$0xff]
    %v7372 = vld [vmem:[#allocation2 + $0x570] sm:$0xff]
    %v7373 = vld [vmem:[#allocation2 + $0x578] sm:$0xff]
    %s7374 = sshll.u32 %s7193, 4
    %7375 = dma.done %s167, %s7374
    %v7376 = vld [vmem:[#allocation4 + $0xb] sm:$0xff]
    %v7377 = vld [vmem:[#allocation4 + $0x13] sm:$0x7]
    %v7378 = vld [vmem:[#allocation2 + $0x580] sm:$0xff]
    %v7379 = vld [vmem:[#allocation2 + $0x588] sm:$0xff]
    %v7380 = vld [vmem:[#allocation2 + $0x590] sm:$0xff]
    %v7381 = vld [vmem:[#allocation2 + $0x598] sm:$0xff]
    %v7382 = vld [vmem:[#allocation2 + $0x5a0] sm:$0xff]
    %v7383 = vld [vmem:[#allocation2 + $0x5a8] sm:$0xff]
    %v7384 = vld [vmem:[#allocation2 + $0x5b0] sm:$0xff]
    %v7385 = vld [vmem:[#allocation2 + $0x5b8] sm:$0xff]
    %v7386 = vld [vmem:[#allocation2 + $0x5c0] sm:$0xff]
    %v7387 = vld [vmem:[#allocation2 + $0x5c8] sm:$0xff]
    %v7388 = vld [vmem:[#allocation2 + $0x5d0] sm:$0xff]
    %v7389 = vld [vmem:[#allocation2 + $0x5d8] sm:$0xff]
    %v7390 = vld [vmem:[#allocation2 + $0x5e0] sm:$0xff]
    %v7391 = vld [vmem:[#allocation2 + $0x5e8] sm:$0xff]
    %v7392 = vld [vmem:[#allocation2 + $0x5f0] sm:$0xff]
    %v7393 = vld [vmem:[#allocation2 + $0x5f8] sm:$0xff]
    %v7394 = vld [vmem:[#allocation2 + $0x600] sm:$0xff]
    %v7395 = vld [vmem:[#allocation2 + $0x608] sm:$0xff]
    %v7396 = vld [vmem:[#allocation2 + $0x610] sm:$0xff]
    %v7397 = vld [vmem:[#allocation2 + $0x618] sm:$0xff]
    %v7398 = vld [vmem:[#allocation2 + $0x620] sm:$0xff]
    %v7399 = vld [vmem:[#allocation2 + $0x628] sm:$0xff]
    %v7400 = vld [vmem:[#allocation2 + $0x630] sm:$0xff]
    %v7401 = vld [vmem:[#allocation2 + $0x638] sm:$0xff]
    %v7402 = vld [vmem:[#allocation2 + $0x640] sm:$0xff]
    %v7403 = vld [vmem:[#allocation2 + $0x648] sm:$0xff]
    %v7404 = vld [vmem:[#allocation2 + $0x650] sm:$0xff]
    %v7405 = vld [vmem:[#allocation2 + $0x658] sm:$0xff]
    %v7406 = vld [vmem:[#allocation2 + $0x660] sm:$0xff]
    %v7407 = vld [vmem:[#allocation2 + $0x668] sm:$0xff]
    %v7408 = vld [vmem:[#allocation2 + $0x670] sm:$0xff]
    %v7409 = vld [vmem:[#allocation2 + $0x678] sm:$0xff]
    %v7410 = vld [vmem:[#allocation2 + $0x680] sm:$0xff]
    %v7411 = vld [vmem:[#allocation2 + $0x688] sm:$0xff]
    %v7412 = vld [vmem:[#allocation2 + $0x690] sm:$0xff]
    %v7413 = vld [vmem:[#allocation2 + $0x698] sm:$0xff]
    %v7414 = vld [vmem:[#allocation2 + $0x6a0] sm:$0xff]
    %v7415 = vld [vmem:[#allocation2 + $0x6a8] sm:$0xff]
    %v7416 = vld [vmem:[#allocation2 + $0x6b0] sm:$0xff]
    %v7417 = vld [vmem:[#allocation2 + $0x6b8] sm:$0xff]
    %v7418 = vld [vmem:[#allocation2 + $0x6c0] sm:$0xff]
    %v7419 = vld [vmem:[#allocation2 + $0x6c8] sm:$0xff]
    %v7420 = vld [vmem:[#allocation2 + $0x6d0] sm:$0xff]
    %v7421 = vld [vmem:[#allocation2 + $0x6d8] sm:$0xff]
    %v7422 = vld [vmem:[#allocation2 + $0x6e0] sm:$0xff]
    %v7423 = vld [vmem:[#allocation2 + $0x6e8] sm:$0xff]
    %v7424 = vld [vmem:[#allocation2 + $0x6f0] sm:$0xff]
    %v7425 = vld [vmem:[#allocation2 + $0x6f8] sm:$0xff]
    %v7426 = vld [vmem:[#allocation2 + $0x700] sm:$0xff]
    %v7427 = vld [vmem:[#allocation2 + $0x708] sm:$0xff]
    %v7428 = vld [vmem:[#allocation2 + $0x710] sm:$0xff]
    %v7429 = vld [vmem:[#allocation2 + $0x718] sm:$0xff]
    %v7430 = vld [vmem:[#allocation2 + $0x720] sm:$0xff]
    %v7431 = vld [vmem:[#allocation2 + $0x728] sm:$0xff]
    %v7432 = vld [vmem:[#allocation2 + $0x730] sm:$0xff]
    %v7433 = vld [vmem:[#allocation2 + $0x738] sm:$0xff]
    %v7434 = vld [vmem:[#allocation2 + $0x740] sm:$0xff]
    %v7435 = vld [vmem:[#allocation2 + $0x748] sm:$0xff]
    %v7436 = vld [vmem:[#allocation2 + $0x750] sm:$0xff]
    %v7437 = vld [vmem:[#allocation2 + $0x758] sm:$0xff]
    %v7438 = vld [vmem:[#allocation2 + $0x760] sm:$0xff]
    %v7439 = vld [vmem:[#allocation2 + $0x768] sm:$0xff]
    %v7440 = vld [vmem:[#allocation2 + $0x770] sm:$0xff]
    %v7441 = vld [vmem:[#allocation2 + $0x778] sm:$0xff]
    %v7442 = vld [vmem:[#allocation2 + $0x780] sm:$0xff]
    %v7443 = vld [vmem:[#allocation2 + $0x788] sm:$0xff]
    %v7444 = vld [vmem:[#allocation2 + $0x790] sm:$0xff]
    %v7445 = vld [vmem:[#allocation2 + $0x798] sm:$0xff]
    %v7446 = vld [vmem:[#allocation2 + $0x7a0] sm:$0xff]
    %v7447 = vld [vmem:[#allocation2 + $0x7a8] sm:$0xff]
    %v7448 = vld [vmem:[#allocation2 + $0x7b0] sm:$0xff]
    %v7449 = vld [vmem:[#allocation2 + $0x7b8] sm:$0xff]
    %v7450 = vld [vmem:[#allocation2 + $0x7c0] sm:$0xff]
    %v7451 = vld [vmem:[#allocation2 + $0x7c8] sm:$0xff]
    %v7452 = vld [vmem:[#allocation2 + $0x7d0] sm:$0xff]
    %v7453 = vld [vmem:[#allocation2 + $0x7d8] sm:$0xff]
    %v7454 = vld [vmem:[#allocation2 + $0x7e0] sm:$0xff]
    %v7455 = vld [vmem:[#allocation2 + $0x7e8] sm:$0xff]
    %v7456 = vld [vmem:[#allocation2 + $0x7f0] sm:$0xff]
    %v7457 = vld [vmem:[#allocation2 + $0x7f8] sm:$0xff]
    %v7458 = vld [vmem:[#allocation2 + $0x800] sm:$0xff]
    %v7459 = vld [vmem:[#allocation2 + $0x808] sm:$0xff]
    %v7460 = vld [vmem:[#allocation2 + $0x810] sm:$0xff]
    %v7461 = vld [vmem:[#allocation2 + $0x818] sm:$0xff]
    %v7462 = vld [vmem:[#allocation2 + $0x820] sm:$0xff]
    %v7463 = vld [vmem:[#allocation2 + $0x828] sm:$0xff]
    %v7464 = vld [vmem:[#allocation2 + $0x830] sm:$0xff]
    %v7465 = vld [vmem:[#allocation2 + $0x838] sm:$0xff]
    %v7466 = vld [vmem:[#allocation2 + $0x840] sm:$0xff]
    %v7467 = vld [vmem:[#allocation2 + $0x848] sm:$0xff]
    %v7468 = vld [vmem:[#allocation2 + $0x850] sm:$0xff]
    %v7469 = vld [vmem:[#allocation2 + $0x858] sm:$0xff]
    %v7470 = vld [vmem:[#allocation2 + $0x860] sm:$0xff]
    %v7471 = vld [vmem:[#allocation2 + $0x868] sm:$0xff]
    %v7472 = vld [vmem:[#allocation2 + $0x870] sm:$0xff]
    %v7473 = vld [vmem:[#allocation2 + $0x878] sm:$0xff]
    %v7474 = vld [vmem:[#allocation2 + $0x880] sm:$0xff]
    %v7475 = vld [vmem:[#allocation2 + $0x888] sm:$0xff]
    %v7476 = vld [vmem:[#allocation2 + $0x890] sm:$0xff]
    %v7477 = vld [vmem:[#allocation2 + $0x898] sm:$0xff]
    %v7478 = vld [vmem:[#allocation2 + $0x8a0] sm:$0xff]
    %v7479 = vld [vmem:[#allocation2 + $0x8a8] sm:$0xff]
    %v7480 = vld [vmem:[#allocation2 + $0x8b0] sm:$0xff]
    %v7481 = vld [vmem:[#allocation2 + $0x8b8] sm:$0xff]
    %v7482 = vld [vmem:[#allocation2 + $0x8c0] sm:$0xff]
    %v7483 = vld [vmem:[#allocation2 + $0x8c8] sm:$0xff]
    %v7484 = vld [vmem:[#allocation2 + $0x8d0] sm:$0xff]
    %v7485 = vld [vmem:[#allocation2 + $0x8d8] sm:$0xff]
    %v7486 = vld [vmem:[#allocation2 + $0x8e0] sm:$0xff]
    %v7487 = vld [vmem:[#allocation2 + $0x8e8] sm:$0xff]
    %v7488 = vld [vmem:[#allocation2 + $0x8f0] sm:$0xff]
    %v7489 = vld [vmem:[#allocation2 + $0x8f8] sm:$0xff]
    %v7490 = vld [vmem:[#allocation2 + $0x900] sm:$0xff]
    %v7491 = vld [vmem:[#allocation2 + $0x908] sm:$0xff]
    %v7492 = vld [vmem:[#allocation2 + $0x910] sm:$0xff]
    %v7493 = vld [vmem:[#allocation2 + $0x918] sm:$0xff]
    %v7494 = vld [vmem:[#allocation2 + $0x920] sm:$0xff]
    %v7495 = vld [vmem:[#allocation2 + $0x928] sm:$0xff]
    %v7496 = vld [vmem:[#allocation2 + $0x930] sm:$0xff]
    %v7497 = vld [vmem:[#allocation2 + $0x938] sm:$0xff]
    %v7498 = vld [vmem:[#allocation2 + $0x940] sm:$0xff]
    %v7499 = vld [vmem:[#allocation2 + $0x948] sm:$0xff]
    %v7500 = vld [vmem:[#allocation2 + $0x950] sm:$0xff]
    %v7501 = vld [vmem:[#allocation2 + $0x958] sm:$0xff]
    %v7502 = vld [vmem:[#allocation2 + $0x960] sm:$0xff]
    %v7503 = vld [vmem:[#allocation2 + $0x968] sm:$0xff]
    %v7504 = vld [vmem:[#allocation2 + $0x970] sm:$0xff]
    %v7505 = vld [vmem:[#allocation2 + $0x978] sm:$0xff]
    %v7506 = vld [vmem:[#allocation2 + $0x980] sm:$0xff]
    %v7507 = vld [vmem:[#allocation2 + $0x988] sm:$0xff]
    %v7508 = vld [vmem:[#allocation2 + $0x990] sm:$0xff]
    %v7509 = vld [vmem:[#allocation2 + $0x998] sm:$0xff]
    %v7510 = vld [vmem:[#allocation2 + $0x9a0] sm:$0xff]
    %v7511 = vld [vmem:[#allocation2 + $0x9a8] sm:$0xff]
    %v7512 = vld [vmem:[#allocation2 + $0x9b0] sm:$0xff]
    %v7513 = vld [vmem:[#allocation2 + $0x9b8] sm:$0xff]
    %v7514 = vld [vmem:[#allocation2 + $0x9c0] sm:$0xff]
    %v7515 = vld [vmem:[#allocation2 + $0x9c8] sm:$0xff]
    %v7516 = vld [vmem:[#allocation2 + $0x9d0] sm:$0xff]
    %v7517 = vld [vmem:[#allocation2 + $0x9d8] sm:$0xff]
    %v7518 = vld [vmem:[#allocation2 + $0x9e0] sm:$0xff]
    %v7519 = vld [vmem:[#allocation2 + $0x9e8] sm:$0xff]
    %v7520 = vld [vmem:[#allocation2 + $0x9f0] sm:$0xff]
    %v7521 = vld [vmem:[#allocation2 + $0x9f8] sm:$0xff]
    %v7522 = vld [vmem:[#allocation2 + $0xa00] sm:$0xff]
    %v7523 = vld [vmem:[#allocation2 + $0xa08] sm:$0xff]
    %v7524 = vld [vmem:[#allocation2 + $0xa10] sm:$0xff]
    %v7525 = vld [vmem:[#allocation2 + $0xa18] sm:$0xff]
    %v7526 = vld [vmem:[#allocation2 + $0xa20] sm:$0xff]
    %v7527 = vld [vmem:[#allocation2 + $0xa28] sm:$0xff]
    %v7528 = vld [vmem:[#allocation2 + $0xa30] sm:$0xff]
    %v7529 = vld [vmem:[#allocation2 + $0xa38] sm:$0xff]
    %v7530 = vld [vmem:[#allocation2 + $0xa40] sm:$0xff]
    %v7531 = vld [vmem:[#allocation2 + $0xa48] sm:$0xff]
    %v7532 = vld [vmem:[#allocation2 + $0xa50] sm:$0xff]
    %v7533 = vld [vmem:[#allocation2 + $0xa58] sm:$0xff]
    %v7534 = vld [vmem:[#allocation2 + $0xa60] sm:$0xff]
    %v7535 = vld [vmem:[#allocation2 + $0xa68] sm:$0xff]
    %v7536 = vld [vmem:[#allocation2 + $0xa70] sm:$0xff]
    %v7537 = vld [vmem:[#allocation2 + $0xa78] sm:$0xff]
    %v7538 = vld [vmem:[#allocation2 + $0xa80] sm:$0xff]
    %v7539 = vld [vmem:[#allocation2 + $0xa88] sm:$0xff]
    %v7540 = vld [vmem:[#allocation2 + $0xa90] sm:$0xff]
    %v7541 = vld [vmem:[#allocation2 + $0xa98] sm:$0xff]
    %v7542 = vld [vmem:[#allocation2 + $0xaa0] sm:$0xff]
    %v7543 = vld [vmem:[#allocation2 + $0xaa8] sm:$0xff]
    %v7544 = vld [vmem:[#allocation2 + $0xab0] sm:$0xff]
    %v7545 = vld [vmem:[#allocation2 + $0xab8] sm:$0xff]
    %v7546 = vld [vmem:[#allocation2 + $0xac0] sm:$0xff]
    %v7547 = vld [vmem:[#allocation2 + $0xac8] sm:$0xff]
    %v7548 = vld [vmem:[#allocation2 + $0xad0] sm:$0xff]
    %v7549 = vld [vmem:[#allocation2 + $0xad8] sm:$0xff]
    %v7550 = vld [vmem:[#allocation2 + $0xae0] sm:$0xff]
    %v7551 = vld [vmem:[#allocation2 + $0xae8] sm:$0xff]
    %v7552 = vld [vmem:[#allocation2 + $0xaf0] sm:$0xff]
    %v7553 = vld [vmem:[#allocation2 + $0xaf8] sm:$0xff]
    %7555 = vst [vmem:[#allocation1] ss:$9 sm:$0xff] %v7376
    %v7556 = vld [vmem:[#allocation1] sm:$0xff]
    %v7557 = vld [vmem:[#allocation1 + $0x9] sm:$0xff]
    %v7558 = vld [vmem:[#allocation1 + $0x12] sm:$0xff]
    %v7559 = vld [vmem:[#allocation1 + $0x1b] sm:$0xff]
    %v7560 = vld [vmem:[#allocation1 + $0x24] sm:$0xff]
    %v7561 = vld [vmem:[#allocation1 + $0x2d] sm:$0xff]
    %v7562 = vld [vmem:[#allocation1 + $0x36] sm:$0xff]
    %v7563 = vld [vmem:[#allocation1 + $0x3f] sm:$0xff]
    %7565 = vst [vmem:[#allocation1] ss:$9 sm:$0xff] %v7377
    %v7566 = vld [vmem:[#allocation1] sm:$0xff]
    %v7567 = vld [vmem:[#allocation1 + $0x9] sm:$0xff]
    %v7568 = vld [vmem:[#allocation1 + $0x12] sm:$0xff]
    %v7756 = vunpack.c.l.b16 %v7378
    %v7757 = vunpack.c.h.b16 %v7378
    %v7758 = vunpack.c.l.b16 %v7379
    %v7759 = vunpack.c.h.b16 %v7379
    %v7760 = vunpack.c.l.b16 %v7380
    %v7761 = vunpack.c.h.b16 %v7380
    %v7762 = vunpack.c.l.b16 %v7381
    %v7763 = vunpack.c.h.b16 %v7381
    %v7764 = vunpack.c.l.b16 %v7382
    %v7765 = vunpack.c.h.b16 %v7382
    %v7766 = vunpack.c.l.b16 %v7383
    %v7767 = vunpack.c.h.b16 %v7383
    %v7768 = vunpack.c.l.b16 %v7384
    %v7769 = vunpack.c.h.b16 %v7384
    %v7770 = vunpack.c.l.b16 %v7385
    %v7771 = vunpack.c.h.b16 %v7385
    %v7772 = vunpack.c.l.b16 %v7386
    %v7773 = vunpack.c.h.b16 %v7386
    %v7774 = vunpack.c.l.b16 %v7387
    %v7775 = vunpack.c.h.b16 %v7387
    %v7776 = vunpack.c.l.b16 %v7388
    %v7777 = vunpack.c.h.b16 %v7388
    %v7778 = vunpack.c.l.b16 %v7389
    %v7779 = vunpack.c.h.b16 %v7389
    %v7780 = vunpack.c.l.b16 %v7390
    %v7781 = vunpack.c.h.b16 %v7390
    %v7782 = vunpack.c.l.b16 %v7391
    %v7783 = vunpack.c.h.b16 %v7391
    %v7784 = vunpack.c.l.b16 %v7392
    %v7785 = vunpack.c.h.b16 %v7392
    %v7786 = vunpack.c.l.b16 %v7393
    %v7787 = vunpack.c.h.b16 %v7393
    %v7788 = vunpack.c.l.b16 %v7394
    %v7789 = vunpack.c.h.b16 %v7394
    %v7790 = vunpack.c.l.b16 %v7395
    %v7791 = vunpack.c.h.b16 %v7395
    %v7792 = vunpack.c.l.b16 %v7396
    %v7793 = vunpack.c.h.b16 %v7396
    %v7794 = vunpack.c.l.b16 %v7397
    %v7795 = vunpack.c.h.b16 %v7397
    %v7796 = vunpack.c.l.b16 %v7398
    %v7797 = vunpack.c.h.b16 %v7398
    %v7798 = vunpack.c.l.b16 %v7399
    %v7799 = vunpack.c.h.b16 %v7399
    %v7800 = vunpack.c.l.b16 %v7400
    %v7801 = vunpack.c.h.b16 %v7400
    %v7802 = vunpack.c.l.b16 %v7401
    %v7803 = vunpack.c.h.b16 %v7401
    %v7804 = vunpack.c.l.b16 %v7402
    %v7805 = vunpack.c.h.b16 %v7402
    %v7806 = vunpack.c.l.b16 %v7403
    %v7807 = vunpack.c.h.b16 %v7403
    %v7808 = vunpack.c.l.b16 %v7404
    %v7809 = vunpack.c.h.b16 %v7404
    %v7810 = vunpack.c.l.b16 %v7405
    %v7811 = vunpack.c.h.b16 %v7405
    %v7812 = vunpack.c.l.b16 %v7406
    %v7813 = vunpack.c.h.b16 %v7406
    %v7814 = vunpack.c.l.b16 %v7407
    %v7815 = vunpack.c.h.b16 %v7407
    %v7816 = vunpack.c.l.b16 %v7408
    %v7817 = vunpack.c.h.b16 %v7408
    %v7818 = vunpack.c.l.b16 %v7409
    %v7819 = vunpack.c.h.b16 %v7409
    %v7820 = vunpack.c.l.b16 %v7410
    %v7821 = vunpack.c.h.b16 %v7410
    %v7822 = vunpack.c.l.b16 %v7411
    %v7823 = vunpack.c.h.b16 %v7411
    %v7824 = vunpack.c.l.b16 %v7412
    %v7825 = vunpack.c.h.b16 %v7412
    %v7826 = vunpack.c.l.b16 %v7413
    %v7827 = vunpack.c.h.b16 %v7413
    %v7828 = vunpack.c.l.b16 %v7414
    %v7829 = vunpack.c.h.b16 %v7414
    %v7830 = vunpack.c.l.b16 %v7415
    %v7831 = vunpack.c.h.b16 %v7415
    %v7832 = vunpack.c.l.b16 %v7416
    %v7833 = vunpack.c.h.b16 %v7416
    %v7834 = vunpack.c.l.b16 %v7417
    %v7835 = vunpack.c.h.b16 %v7417
    %v7836 = vunpack.c.l.b16 %v7418
    %v7837 = vunpack.c.h.b16 %v7418
    %v7838 = vunpack.c.l.b16 %v7419
    %v7839 = vunpack.c.h.b16 %v7419
    %v7840 = vunpack.c.l.b16 %v7420
    %v7841 = vunpack.c.h.b16 %v7420
    %v7842 = vunpack.c.l.b16 %v7421
    %v7843 = vunpack.c.h.b16 %v7421
    %v7844 = vunpack.c.l.b16 %v7422
    %v7845 = vunpack.c.h.b16 %v7422
    %v7846 = vunpack.c.l.b16 %v7423
    %v7847 = vunpack.c.h.b16 %v7423
    %v7848 = vunpack.c.l.b16 %v7424
    %v7849 = vunpack.c.h.b16 %v7424
    %v7850 = vunpack.c.l.b16 %v7425
    %v7851 = vunpack.c.h.b16 %v7425
    %v7852 = vunpack.c.l.b16 %v7426
    %v7853 = vunpack.c.h.b16 %v7426
    %v7854 = vunpack.c.l.b16 %v7427
    %v7855 = vunpack.c.h.b16 %v7427
    %v7856 = vunpack.c.l.b16 %v7428
    %v7857 = vunpack.c.h.b16 %v7428
    %v7858 = vunpack.c.l.b16 %v7429
    %v7859 = vunpack.c.h.b16 %v7429
    %v7860 = vunpack.c.l.b16 %v7430
    %v7861 = vunpack.c.h.b16 %v7430
    %v7862 = vunpack.c.l.b16 %v7431
    %v7863 = vunpack.c.h.b16 %v7431
    %v7864 = vunpack.c.l.b16 %v7432
    %v7865 = vunpack.c.h.b16 %v7432
    %v7866 = vunpack.c.l.b16 %v7433
    %v7867 = vunpack.c.h.b16 %v7433
    %v7868 = vunpack.c.l.b16 %v7434
    %v7869 = vunpack.c.h.b16 %v7434
    %v7870 = vunpack.c.l.b16 %v7435
    %v7871 = vunpack.c.h.b16 %v7435
    %v7872 = vunpack.c.l.b16 %v7436
    %v7873 = vunpack.c.h.b16 %v7436
    %v7874 = vunpack.c.l.b16 %v7437
    %v7875 = vunpack.c.h.b16 %v7437
    %v7876 = vunpack.c.l.b16 %v7438
    %v7877 = vunpack.c.h.b16 %v7438
    %v7878 = vunpack.c.l.b16 %v7439
    %v7879 = vunpack.c.h.b16 %v7439
    %v7880 = vunpack.c.l.b16 %v7440
    %v7881 = vunpack.c.h.b16 %v7440
    %v7882 = vunpack.c.l.b16 %v7441
    %v7883 = vunpack.c.h.b16 %v7441
    %v7884 = vunpack.c.l.b16 %v7442
    %v7885 = vunpack.c.h.b16 %v7442
    %v7886 = vunpack.c.l.b16 %v7443
    %v7887 = vunpack.c.h.b16 %v7443
    %v7888 = vunpack.c.l.b16 %v7444
    %v7889 = vunpack.c.h.b16 %v7444
    %v7890 = vunpack.c.l.b16 %v7445
    %v7891 = vunpack.c.h.b16 %v7445
    %v7892 = vunpack.c.l.b16 %v7446
    %v7893 = vunpack.c.h.b16 %v7446
    %v7894 = vunpack.c.l.b16 %v7447
    %v7895 = vunpack.c.h.b16 %v7447
    %v7896 = vunpack.c.l.b16 %v7448
    %v7897 = vunpack.c.h.b16 %v7448
    %v7898 = vunpack.c.l.b16 %v7449
    %v7899 = vunpack.c.h.b16 %v7449
    %v7900 = vunpack.c.l.b16 %v7450
    %v7901 = vunpack.c.h.b16 %v7450
    %v7902 = vunpack.c.l.b16 %v7451
    %v7903 = vunpack.c.h.b16 %v7451
    %v7904 = vunpack.c.l.b16 %v7452
    %v7905 = vunpack.c.h.b16 %v7452
    %v7906 = vunpack.c.l.b16 %v7453
    %v7907 = vunpack.c.h.b16 %v7453
    %v7908 = vunpack.c.l.b16 %v7454
    %v7909 = vunpack.c.h.b16 %v7454
    %v7910 = vunpack.c.l.b16 %v7455
    %v7911 = vunpack.c.h.b16 %v7455
    %v7912 = vunpack.c.l.b16 %v7456
    %v7913 = vunpack.c.h.b16 %v7456
    %v7914 = vunpack.c.l.b16 %v7457
    %v7915 = vunpack.c.h.b16 %v7457
    %v7916 = vunpack.c.l.b16 %v7458
    %v7917 = vunpack.c.h.b16 %v7458
    %v7918 = vunpack.c.l.b16 %v7459
    %v7919 = vunpack.c.h.b16 %v7459
    %v7920 = vunpack.c.l.b16 %v7460
    %v7921 = vunpack.c.h.b16 %v7460
    %v7922 = vunpack.c.l.b16 %v7461
    %v7923 = vunpack.c.h.b16 %v7461
    %v7924 = vunpack.c.l.b16 %v7462
    %v7925 = vunpack.c.h.b16 %v7462
    %v7926 = vunpack.c.l.b16 %v7463
    %v7927 = vunpack.c.h.b16 %v7463
    %v7928 = vunpack.c.l.b16 %v7464
    %v7929 = vunpack.c.h.b16 %v7464
    %v7930 = vunpack.c.l.b16 %v7465
    %v7931 = vunpack.c.h.b16 %v7465
    %v7932 = vunpack.c.l.b16 %v7466
    %v7933 = vunpack.c.h.b16 %v7466
    %v7934 = vunpack.c.l.b16 %v7467
    %v7935 = vunpack.c.h.b16 %v7467
    %v7936 = vunpack.c.l.b16 %v7468
    %v7937 = vunpack.c.h.b16 %v7468
    %v7938 = vunpack.c.l.b16 %v7469
    %v7939 = vunpack.c.h.b16 %v7469
    %v7940 = vunpack.c.l.b16 %v7470
    %v7941 = vunpack.c.h.b16 %v7470
    %v7942 = vunpack.c.l.b16 %v7471
    %v7943 = vunpack.c.h.b16 %v7471
    %v7944 = vunpack.c.l.b16 %v7472
    %v7945 = vunpack.c.h.b16 %v7472
    %v7946 = vunpack.c.l.b16 %v7473
    %v7947 = vunpack.c.h.b16 %v7473
    %v7948 = vunpack.c.l.b16 %v7474
    %v7949 = vunpack.c.h.b16 %v7474
    %v7950 = vunpack.c.l.b16 %v7475
    %v7951 = vunpack.c.h.b16 %v7475
    %v7952 = vunpack.c.l.b16 %v7476
    %v7953 = vunpack.c.h.b16 %v7476
    %v7954 = vunpack.c.l.b16 %v7477
    %v7955 = vunpack.c.h.b16 %v7477
    %v7956 = vunpack.c.l.b16 %v7478
    %v7957 = vunpack.c.h.b16 %v7478
    %v7958 = vunpack.c.l.b16 %v7479
    %v7959 = vunpack.c.h.b16 %v7479
    %v7960 = vunpack.c.l.b16 %v7480
    %v7961 = vunpack.c.h.b16 %v7480
    %v7962 = vunpack.c.l.b16 %v7481
    %v7963 = vunpack.c.h.b16 %v7481
    %v7964 = vunpack.c.l.b16 %v7482
    %v7965 = vunpack.c.h.b16 %v7482
    %v7966 = vunpack.c.l.b16 %v7483
    %v7967 = vunpack.c.h.b16 %v7483
    %v7968 = vunpack.c.l.b16 %v7484
    %v7969 = vunpack.c.h.b16 %v7484
    %v7970 = vunpack.c.l.b16 %v7485
    %v7971 = vunpack.c.h.b16 %v7485
    %v7972 = vunpack.c.l.b16 %v7486
    %v7973 = vunpack.c.h.b16 %v7486
    %v7974 = vunpack.c.l.b16 %v7487
    %v7975 = vunpack.c.h.b16 %v7487
    %v7976 = vunpack.c.l.b16 %v7488
    %v7977 = vunpack.c.h.b16 %v7488
    %v7978 = vunpack.c.l.b16 %v7489
    %v7979 = vunpack.c.h.b16 %v7489
    %v7980 = vunpack.c.l.b16 %v7490
    %v7981 = vunpack.c.h.b16 %v7490
    %v7982 = vunpack.c.l.b16 %v7491
    %v7983 = vunpack.c.h.b16 %v7491
    %v7984 = vunpack.c.l.b16 %v7492
    %v7985 = vunpack.c.h.b16 %v7492
    %v7986 = vunpack.c.l.b16 %v7493
    %v7987 = vunpack.c.h.b16 %v7493
    %v7988 = vunpack.c.l.b16 %v7494
    %v7989 = vunpack.c.h.b16 %v7494
    %v7990 = vunpack.c.l.b16 %v7495
    %v7991 = vunpack.c.h.b16 %v7495
    %v7992 = vunpack.c.l.b16 %v7496
    %v7993 = vunpack.c.h.b16 %v7496
    %v7994 = vunpack.c.l.b16 %v7497
    %v7995 = vunpack.c.h.b16 %v7497
    %v7996 = vunpack.c.l.b16 %v7498
    %v7997 = vunpack.c.h.b16 %v7498
    %v7998 = vunpack.c.l.b16 %v7499
    %v7999 = vunpack.c.h.b16 %v7499
    %v8000 = vunpack.c.l.b16 %v7500
    %v8001 = vunpack.c.h.b16 %v7500
    %v8002 = vunpack.c.l.b16 %v7501
    %v8003 = vunpack.c.h.b16 %v7501
    %v8004 = vunpack.c.l.b16 %v7502
    %v8005 = vunpack.c.h.b16 %v7502
    %v8006 = vunpack.c.l.b16 %v7503
    %v8007 = vunpack.c.h.b16 %v7503
    %v8008 = vunpack.c.l.b16 %v7504
    %v8009 = vunpack.c.h.b16 %v7504
    %v8010 = vunpack.c.l.b16 %v7505
    %v8011 = vunpack.c.h.b16 %v7505
    %v8012 = vunpack.c.l.b16 %v7506
    %v8013 = vunpack.c.h.b16 %v7506
    %v8014 = vunpack.c.l.b16 %v7507
    %v8015 = vunpack.c.h.b16 %v7507
    %v8016 = vunpack.c.l.b16 %v7508
    %v8017 = vunpack.c.h.b16 %v7508
    %v8018 = vunpack.c.l.b16 %v7509
    %v8019 = vunpack.c.h.b16 %v7509
    %v8020 = vunpack.c.l.b16 %v7510
    %v8021 = vunpack.c.h.b16 %v7510
    %v8022 = vunpack.c.l.b16 %v7511
    %v8023 = vunpack.c.h.b16 %v7511
    %v8024 = vunpack.c.l.b16 %v7512
    %v8025 = vunpack.c.h.b16 %v7512
    %v8026 = vunpack.c.l.b16 %v7513
    %v8027 = vunpack.c.h.b16 %v7513
    %v8028 = vunpack.c.l.b16 %v7514
    %v8029 = vunpack.c.h.b16 %v7514
    %v8030 = vunpack.c.l.b16 %v7515
    %v8031 = vunpack.c.h.b16 %v7515
    %v8032 = vunpack.c.l.b16 %v7516
    %v8033 = vunpack.c.h.b16 %v7516
    %v8034 = vunpack.c.l.b16 %v7517
    %v8035 = vunpack.c.h.b16 %v7517
    %v8036 = vunpack.c.l.b16 %v7518
    %v8037 = vunpack.c.h.b16 %v7518
    %v8038 = vunpack.c.l.b16 %v7519
    %v8039 = vunpack.c.h.b16 %v7519
    %v8040 = vunpack.c.l.b16 %v7520
    %v8041 = vunpack.c.h.b16 %v7520
    %v8042 = vunpack.c.l.b16 %v7521
    %v8043 = vunpack.c.h.b16 %v7521
    %v8044 = vunpack.c.l.b16 %v7522
    %v8045 = vunpack.c.h.b16 %v7522
    %v8046 = vunpack.c.l.b16 %v7523
    %v8047 = vunpack.c.h.b16 %v7523
    %v8048 = vunpack.c.l.b16 %v7524
    %v8049 = vunpack.c.h.b16 %v7524
    %v8050 = vunpack.c.l.b16 %v7525
    %v8051 = vunpack.c.h.b16 %v7525
    %v8052 = vunpack.c.l.b16 %v7526
    %v8053 = vunpack.c.h.b16 %v7526
    %v8054 = vunpack.c.l.b16 %v7527
    %v8055 = vunpack.c.h.b16 %v7527
    %v8056 = vunpack.c.l.b16 %v7528
    %v8057 = vunpack.c.h.b16 %v7528
    %v8058 = vunpack.c.l.b16 %v7529
    %v8059 = vunpack.c.h.b16 %v7529
    %v8060 = vunpack.c.l.b16 %v7530
    %v8061 = vunpack.c.h.b16 %v7530
    %v8062 = vunpack.c.l.b16 %v7531
    %v8063 = vunpack.c.h.b16 %v7531
    %v8064 = vunpack.c.l.b16 %v7532
    %v8065 = vunpack.c.h.b16 %v7532
    %v8066 = vunpack.c.l.b16 %v7533
    %v8067 = vunpack.c.h.b16 %v7533
    %v8068 = vunpack.c.l.b16 %v7534
    %v8069 = vunpack.c.h.b16 %v7534
    %v8070 = vunpack.c.l.b16 %v7535
    %v8071 = vunpack.c.h.b16 %v7535
    %v8072 = vunpack.c.l.b16 %v7536
    %v8073 = vunpack.c.h.b16 %v7536
    %v8074 = vunpack.c.l.b16 %v7537
    %v8075 = vunpack.c.h.b16 %v7537
    %v8076 = vunpack.c.l.b16 %v7538
    %v8077 = vunpack.c.h.b16 %v7538
    %v8078 = vunpack.c.l.b16 %v7539
    %v8079 = vunpack.c.h.b16 %v7539
    %v8080 = vunpack.c.l.b16 %v7540
    %v8081 = vunpack.c.h.b16 %v7540
    %v8082 = vunpack.c.l.b16 %v7541
    %v8083 = vunpack.c.h.b16 %v7541
    %v8084 = vunpack.c.l.b16 %v7542
    %v8085 = vunpack.c.h.b16 %v7542
    %v8086 = vunpack.c.l.b16 %v7543
    %v8087 = vunpack.c.h.b16 %v7543
    %v8088 = vunpack.c.l.b16 %v7544
    %v8089 = vunpack.c.h.b16 %v7544
    %v8090 = vunpack.c.l.b16 %v7545
    %v8091 = vunpack.c.h.b16 %v7545
    %v8092 = vunpack.c.l.b16 %v7546
    %v8093 = vunpack.c.h.b16 %v7546
    %v8094 = vunpack.c.l.b16 %v7547
    %v8095 = vunpack.c.h.b16 %v7547
    %v8096 = vunpack.c.l.b16 %v7548
    %v8097 = vunpack.c.h.b16 %v7548
    %v8098 = vunpack.c.l.b16 %v7549
    %v8099 = vunpack.c.h.b16 %v7549
    %v8100 = vunpack.c.l.b16 %v7550
    %v8101 = vunpack.c.h.b16 %v7550
    %v8102 = vunpack.c.l.b16 %v7551
    %v8103 = vunpack.c.h.b16 %v7551
    %v8104 = vunpack.c.l.b16 %v7552
    %v8105 = vunpack.c.h.b16 %v7552
    %v8106 = vunpack.c.l.b16 %v7553
    %v8107 = vunpack.c.h.b16 %v7553
    %v8108 = vpack.c.b16 %v7758, %v7756
    %v8109 = vpack.c.b16 %v7759, %v7757
    %v8110 = vpack.c.b16 %v7762, %v7760
    %v8111 = vpack.c.b16 %v7763, %v7761
    %v8112 = vpack.c.b16 %v7766, %v7764
    %v8113 = vpack.c.b16 %v7767, %v7765
    %v8114 = vpack.c.b16 %v7770, %v7768
    %v8115 = vpack.c.b16 %v7771, %v7769
    %v8116 = vpack.c.b16 %v7774, %v7772
    %v8117 = vpack.c.b16 %v7775, %v7773
    %v8118 = vpack.c.b16 %v7778, %v7776
    %v8119 = vpack.c.b16 %v7779, %v7777
    %v8120 = vpack.c.b16 %v7782, %v7780
    %v8121 = vpack.c.b16 %v7783, %v7781
    %v8122 = vpack.c.b16 %v7786, %v7784
    %v8123 = vpack.c.b16 %v7787, %v7785
    %v8124 = vpack.c.b16 %v7790, %v7788
    %v8125 = vpack.c.b16 %v7791, %v7789
    %v8126 = vpack.c.b16 %v7794, %v7792
    %v8127 = vpack.c.b16 %v7795, %v7793
    %v8128 = vpack.c.b16 %v7798, %v7796
    %v8129 = vpack.c.b16 %v7799, %v7797
    %v8130 = vpack.c.b16 %v7802, %v7800
    %v8131 = vpack.c.b16 %v7803, %v7801
    %v8132 = vpack.c.b16 %v7806, %v7804
    %v8133 = vpack.c.b16 %v7807, %v7805
    %v8134 = vpack.c.b16 %v7810, %v7808
    %v8135 = vpack.c.b16 %v7811, %v7809
    %v8136 = vpack.c.b16 %v7814, %v7812
    %v8137 = vpack.c.b16 %v7815, %v7813
    %v8138 = vpack.c.b16 %v7818, %v7816
    %v8139 = vpack.c.b16 %v7819, %v7817
    %v8140 = vpack.c.b16 %v7822, %v7820
    %v8141 = vpack.c.b16 %v7823, %v7821
    %v8142 = vpack.c.b16 %v7826, %v7824
    %v8143 = vpack.c.b16 %v7827, %v7825
    %v8144 = vpack.c.b16 %v7830, %v7828
    %v8145 = vpack.c.b16 %v7831, %v7829
    %v8146 = vpack.c.b16 %v7834, %v7832
    %v8147 = vpack.c.b16 %v7835, %v7833
    %v8148 = vpack.c.b16 %v7838, %v7836
    %v8149 = vpack.c.b16 %v7839, %v7837
    %v8150 = vpack.c.b16 %v7842, %v7840
    %v8151 = vpack.c.b16 %v7843, %v7841
    %v8152 = vpack.c.b16 %v7846, %v7844
    %v8153 = vpack.c.b16 %v7847, %v7845
    %v8154 = vpack.c.b16 %v7850, %v7848
    %v8155 = vpack.c.b16 %v7851, %v7849
    %v8156 = vpack.c.b16 %v7854, %v7852
    %v8157 = vpack.c.b16 %v7855, %v7853
    %v8158 = vpack.c.b16 %v7858, %v7856
    %v8159 = vpack.c.b16 %v7859, %v7857
    %v8160 = vpack.c.b16 %v7862, %v7860
    %v8161 = vpack.c.b16 %v7863, %v7861
    %v8162 = vpack.c.b16 %v7866, %v7864
    %v8163 = vpack.c.b16 %v7867, %v7865
    %v8164 = vpack.c.b16 %v7870, %v7868
    %v8165 = vpack.c.b16 %v7871, %v7869
    %v8166 = vpack.c.b16 %v7874, %v7872
    %v8167 = vpack.c.b16 %v7875, %v7873
    %v8168 = vpack.c.b16 %v7878, %v7876
    %v8169 = vpack.c.b16 %v7879, %v7877
    %v8170 = vpack.c.b16 %v7882, %v7880
    %v8171 = vpack.c.b16 %v7883, %v7881
    %v8172 = vpack.c.b16 %v7886, %v7884
    %v8173 = vpack.c.b16 %v7887, %v7885
    %v8174 = vpack.c.b16 %v7890, %v7888
    %v8175 = vpack.c.b16 %v7891, %v7889
    %v8176 = vpack.c.b16 %v7894, %v7892
    %v8177 = vpack.c.b16 %v7895, %v7893
    %v8178 = vpack.c.b16 %v7898, %v7896
    %v8179 = vpack.c.b16 %v7899, %v7897
    %v8180 = vpack.c.b16 %v7902, %v7900
    %v8181 = vpack.c.b16 %v7903, %v7901
    %v8182 = vpack.c.b16 %v7906, %v7904
    %v8183 = vpack.c.b16 %v7907, %v7905
    %v8184 = vpack.c.b16 %v7910, %v7908
    %v8185 = vpack.c.b16 %v7911, %v7909
    %v8186 = vpack.c.b16 %v7914, %v7912
    %v8187 = vpack.c.b16 %v7915, %v7913
    %v8188 = vpack.c.b16 %v7918, %v7916
    %v8189 = vpack.c.b16 %v7919, %v7917
    %v8190 = vpack.c.b16 %v7922, %v7920
    %v8191 = vpack.c.b16 %v7923, %v7921
    %v8192 = vpack.c.b16 %v7926, %v7924
    %v8193 = vpack.c.b16 %v7927, %v7925
    %v8194 = vpack.c.b16 %v7930, %v7928
    %v8195 = vpack.c.b16 %v7931, %v7929
    %v8196 = vpack.c.b16 %v7934, %v7932
    %v8197 = vpack.c.b16 %v7935, %v7933
    %v8198 = vpack.c.b16 %v7938, %v7936
    %v8199 = vpack.c.b16 %v7939, %v7937
    %v8200 = vpack.c.b16 %v7942, %v7940
    %v8201 = vpack.c.b16 %v7943, %v7941
    %v8202 = vpack.c.b16 %v7946, %v7944
    %v8203 = vpack.c.b16 %v7947, %v7945
    %v8204 = vpack.c.b16 %v7950, %v7948
    %v8205 = vpack.c.b16 %v7951, %v7949
    %v8206 = vpack.c.b16 %v7954, %v7952
    %v8207 = vpack.c.b16 %v7955, %v7953
    %v8208 = vpack.c.b16 %v7958, %v7956
    %v8209 = vpack.c.b16 %v7959, %v7957
    %v8210 = vpack.c.b16 %v7962, %v7960
    %v8211 = vpack.c.b16 %v7963, %v7961
    %v8212 = vpack.c.b16 %v7966, %v7964
    %v8213 = vpack.c.b16 %v7967, %v7965
    %v8214 = vpack.c.b16 %v7970, %v7968
    %v8215 = vpack.c.b16 %v7971, %v7969
    %v8216 = vpack.c.b16 %v7974, %v7972
    %v8217 = vpack.c.b16 %v7975, %v7973
    %v8218 = vpack.c.b16 %v7978, %v7976
    %v8219 = vpack.c.b16 %v7979, %v7977
    %v8220 = vpack.c.b16 %v7982, %v7980
    %v8221 = vpack.c.b16 %v7983, %v7981
    %v8222 = vpack.c.b16 %v7986, %v7984
    %v8223 = vpack.c.b16 %v7987, %v7985
    %v8224 = vpack.c.b16 %v7990, %v7988
    %v8225 = vpack.c.b16 %v7991, %v7989
    %v8226 = vpack.c.b16 %v7994, %v7992
    %v8227 = vpack.c.b16 %v7995, %v7993
    %v8228 = vpack.c.b16 %v7998, %v7996
    %v8229 = vpack.c.b16 %v7999, %v7997
    %v8230 = vpack.c.b16 %v8002, %v8000
    %v8231 = vpack.c.b16 %v8003, %v8001
    %v8232 = vpack.c.b16 %v8006, %v8004
    %v8233 = vpack.c.b16 %v8007, %v8005
    %v8234 = vpack.c.b16 %v8010, %v8008
    %v8235 = vpack.c.b16 %v8011, %v8009
    %v8236 = vpack.c.b16 %v8014, %v8012
    %v8237 = vpack.c.b16 %v8015, %v8013
    %v8238 = vpack.c.b16 %v8018, %v8016
    %v8239 = vpack.c.b16 %v8019, %v8017
    %v8240 = vpack.c.b16 %v8022, %v8020
    %v8241 = vpack.c.b16 %v8023, %v8021
    %v8242 = vpack.c.b16 %v8026, %v8024
    %v8243 = vpack.c.b16 %v8027, %v8025
    %v8244 = vpack.c.b16 %v8030, %v8028
    %v8245 = vpack.c.b16 %v8031, %v8029
    %v8246 = vpack.c.b16 %v8034, %v8032
    %v8247 = vpack.c.b16 %v8035, %v8033
    %v8248 = vpack.c.b16 %v8038, %v8036
    %v8249 = vpack.c.b16 %v8039, %v8037
    %v8250 = vpack.c.b16 %v8042, %v8040
    %v8251 = vpack.c.b16 %v8043, %v8041
    %v8252 = vpack.c.b16 %v8046, %v8044
    %v8253 = vpack.c.b16 %v8047, %v8045
    %v8254 = vpack.c.b16 %v8050, %v8048
    %v8255 = vpack.c.b16 %v8051, %v8049
    %v8256 = vpack.c.b16 %v8054, %v8052
    %v8257 = vpack.c.b16 %v8055, %v8053
    %v8258 = vpack.c.b16 %v8058, %v8056
    %v8259 = vpack.c.b16 %v8059, %v8057
    %v8260 = vpack.c.b16 %v8062, %v8060
    %v8261 = vpack.c.b16 %v8063, %v8061
    %v8262 = vpack.c.b16 %v8066, %v8064
    %v8263 = vpack.c.b16 %v8067, %v8065
    %v8264 = vpack.c.b16 %v8070, %v8068
    %v8265 = vpack.c.b16 %v8071, %v8069
    %v8266 = vpack.c.b16 %v8074, %v8072
    %v8267 = vpack.c.b16 %v8075, %v8073
    %v8268 = vpack.c.b16 %v8078, %v8076
    %v8269 = vpack.c.b16 %v8079, %v8077
    %v8270 = vpack.c.b16 %v8082, %v8080
    %v8271 = vpack.c.b16 %v8083, %v8081
    %v8272 = vpack.c.b16 %v8086, %v8084
    %v8273 = vpack.c.b16 %v8087, %v8085
    %v8274 = vpack.c.b16 %v8090, %v8088
    %v8275 = vpack.c.b16 %v8091, %v8089
    %v8276 = vpack.c.b16 %v8094, %v8092
    %v8277 = vpack.c.b16 %v8095, %v8093
    %v8278 = vpack.c.b16 %v8098, %v8096
    %v8279 = vpack.c.b16 %v8099, %v8097
    %v8280 = vpack.c.b16 %v8102, %v8100
    %v8281 = vpack.c.b16 %v8103, %v8101
    %v8282 = vpack.c.b16 %v8106, %v8104
    %v8283 = vpack.c.b16 %v8107, %v8105
    %8460 = vmatpush.bf16.msra.mxu0 %v8122
    %8461 = vmatpush.bf16.msra.mxu0 %v8120
    %8462 = vmatpush.bf16.msra.mxu0 %v8118
    %8463 = vmatpush.bf16.msra.mxu0 %v8116
    %8464 = vmatpush.bf16.msra.mxu0 %v8114
    %8465 = vmatpush.bf16.msra.mxu0 %v8112
    %8466 = vmatpush.bf16.msra.mxu0 %v8110
    %8467 = vmatpush.bf16.msra.mxu0 %v8108
    %8468 = vmatmul.bf16.gmra.mxu0 %v7556
    %v8469 = vpop.f32.mrf.mxu0
    %v8470 = vadd.f32 0.0, %v8469
    %v8471 = vpop.f32.mrf.mxu0
    %8472 = vdwg.mxu0
    %8473 = vmatpush.bf16.msra.mxu0 %v8138
    %8474 = vmatpush.bf16.msra.mxu0 %v8136
    %8475 = vmatpush.bf16.msra.mxu0 %v8134
    %8476 = vmatpush.bf16.msra.mxu0 %v8132
    %8477 = vmatpush.bf16.msra.mxu0 %v8130
    %8478 = vmatpush.bf16.msra.mxu0 %v8128
    %8479 = vmatpush.bf16.msra.mxu0 %v8126
    %8480 = vmatpush.bf16.msra.mxu0 %v8124
    %8481 = vmatmul.bf16.gmra.mxu0 %v7557
    %v8482 = vpop.f32.mrf.mxu0
    %v8483 = vadd.f32 %v8470, %v8482
    %v8484 = vpop.f32.mrf.mxu0
    %8485 = vdwg.mxu0
    %8486 = vmatpush.bf16.msra.mxu0 %v8154
    %8487 = vmatpush.bf16.msra.mxu0 %v8152
    %8488 = vmatpush.bf16.msra.mxu0 %v8150
    %8489 = vmatpush.bf16.msra.mxu0 %v8148
    %8490 = vmatpush.bf16.msra.mxu0 %v8146
    %8491 = vmatpush.bf16.msra.mxu0 %v8144
    %8492 = vmatpush.bf16.msra.mxu0 %v8142
    %8493 = vmatpush.bf16.msra.mxu0 %v8140
    %8494 = vmatmul.bf16.gmra.mxu0 %v7558
    %v8495 = vpop.f32.mrf.mxu0
    %v8496 = vadd.f32 %v8483, %v8495
    %v8497 = vpop.f32.mrf.mxu0
    %8498 = vdwg.mxu0
    %8499 = vmatpush.bf16.msra.mxu0 %v8170
    %8500 = vmatpush.bf16.msra.mxu0 %v8168
    %8501 = vmatpush.bf16.msra.mxu0 %v8166
    %8502 = vmatpush.bf16.msra.mxu0 %v8164
    %8503 = vmatpush.bf16.msra.mxu0 %v8162
    %8504 = vmatpush.bf16.msra.mxu0 %v8160
    %8505 = vmatpush.bf16.msra.mxu0 %v8158
    %8506 = vmatpush.bf16.msra.mxu0 %v8156
    %8507 = vmatmul.bf16.gmra.mxu0 %v7559
    %v8508 = vpop.f32.mrf.mxu0
    %v8509 = vadd.f32 %v8496, %v8508
    %v8510 = vpop.f32.mrf.mxu0
    %8511 = vdwg.mxu0
    %8512 = vmatpush.bf16.msra.mxu0 %v8186
    %8513 = vmatpush.bf16.msra.mxu0 %v8184
    %8514 = vmatpush.bf16.msra.mxu0 %v8182
    %8515 = vmatpush.bf16.msra.mxu0 %v8180
    %8516 = vmatpush.bf16.msra.mxu0 %v8178
    %8517 = vmatpush.bf16.msra.mxu0 %v8176
    %8518 = vmatpush.bf16.msra.mxu0 %v8174
    %8519 = vmatpush.bf16.msra.mxu0 %v8172
    %8520 = vmatmul.bf16.gmra.mxu0 %v7560
    %v8521 = vpop.f32.mrf.mxu0
    %v8522 = vadd.f32 %v8509, %v8521
    %v8523 = vpop.f32.mrf.mxu0
    %8524 = vdwg.mxu0
    %8525 = vmatpush.bf16.msra.mxu0 %v8202
    %8526 = vmatpush.bf16.msra.mxu0 %v8200
    %8527 = vmatpush.bf16.msra.mxu0 %v8198
    %8528 = vmatpush.bf16.msra.mxu0 %v8196
    %8529 = vmatpush.bf16.msra.mxu0 %v8194
    %8530 = vmatpush.bf16.msra.mxu0 %v8192
    %8531 = vmatpush.bf16.msra.mxu0 %v8190
    %8532 = vmatpush.bf16.msra.mxu0 %v8188
    %8533 = vmatmul.bf16.gmra.mxu0 %v7561
    %v8534 = vpop.f32.mrf.mxu0
    %v8535 = vadd.f32 %v8522, %v8534
    %v8536 = vpop.f32.mrf.mxu0
    %8537 = vdwg.mxu0
    %8538 = vmatpush.bf16.msra.mxu0 %v8218
    %8539 = vmatpush.bf16.msra.mxu0 %v8216
    %8540 = vmatpush.bf16.msra.mxu0 %v8214
    %8541 = vmatpush.bf16.msra.mxu0 %v8212
    %8542 = vmatpush.bf16.msra.mxu0 %v8210
    %8543 = vmatpush.bf16.msra.mxu0 %v8208
    %8544 = vmatpush.bf16.msra.mxu0 %v8206
    %8545 = vmatpush.bf16.msra.mxu0 %v8204
    %8546 = vmatmul.bf16.gmra.mxu0 %v7562
    %v8547 = vpop.f32.mrf.mxu0
    %v8548 = vadd.f32 %v8535, %v8547
    %v8549 = vpop.f32.mrf.mxu0
    %8550 = vdwg.mxu0
    %8551 = vmatpush.bf16.msra.mxu0 %v8234
    %8552 = vmatpush.bf16.msra.mxu0 %v8232
    %8553 = vmatpush.bf16.msra.mxu0 %v8230
    %8554 = vmatpush.bf16.msra.mxu0 %v8228
    %8555 = vmatpush.bf16.msra.mxu0 %v8226
    %8556 = vmatpush.bf16.msra.mxu0 %v8224
    %8557 = vmatpush.bf16.msra.mxu0 %v8222
    %8558 = vmatpush.bf16.msra.mxu0 %v8220
    %8559 = vmatmul.bf16.gmra.mxu0 %v7563
    %v8560 = vpop.f32.mrf.mxu0
    %v8561 = vadd.f32 %v8548, %v8560
    %v8562 = vpop.f32.mrf.mxu0
    %8563 = vdwg.mxu0
    %8564 = vmatpush.bf16.msra.mxu0 %v8250
    %8565 = vmatpush.bf16.msra.mxu0 %v8248
    %8566 = vmatpush.bf16.msra.mxu0 %v8246
    %8567 = vmatpush.bf16.msra.mxu0 %v8244
    %8568 = vmatpush.bf16.msra.mxu0 %v8242
    %8569 = vmatpush.bf16.msra.mxu0 %v8240
    %8570 = vmatpush.bf16.msra.mxu0 %v8238
    %8571 = vmatpush.bf16.msra.mxu0 %v8236
    %8572 = vmatmul.bf16.gmra.mxu0 %v7566
    %v8573 = vpop.f32.mrf.mxu0
    %v8574 = vadd.f32 %v8561, %v8573
    %v8575 = vpop.f32.mrf.mxu0
    %8576 = vdwg.mxu0
    %8577 = vmatpush.bf16.msra.mxu0 %v8266
    %8578 = vmatpush.bf16.msra.mxu0 %v8264
    %8579 = vmatpush.bf16.msra.mxu0 %v8262
    %8580 = vmatpush.bf16.msra.mxu0 %v8260
    %8581 = vmatpush.bf16.msra.mxu0 %v8258
    %8582 = vmatpush.bf16.msra.mxu0 %v8256
    %8583 = vmatpush.bf16.msra.mxu0 %v8254
    %8584 = vmatpush.bf16.msra.mxu0 %v8252
    %8585 = vmatmul.bf16.gmra.mxu0 %v7567
    %v8586 = vpop.f32.mrf.mxu0
    %v8587 = vadd.f32 %v8574, %v8586
    %v8588 = vpop.f32.mrf.mxu0
    %8589 = vdwg.mxu0
    %8590 = vmatpush.bf16.msra.mxu0 %v8282
    %8591 = vmatpush.bf16.msra.mxu0 %v8280
    %8592 = vmatpush.bf16.msra.mxu0 %v8278
    %8593 = vmatpush.bf16.msra.mxu0 %v8276
    %8594 = vmatpush.bf16.msra.mxu0 %v8274
    %8595 = vmatpush.bf16.msra.mxu0 %v8272
    %8596 = vmatpush.bf16.msra.mxu0 %v8270
    %8597 = vmatpush.bf16.msra.mxu0 %v8268
    %8598 = vmatmul.bf16.gmra.mxu0 %v7568
    %v8599 = vpop.f32.mrf.mxu0
    %v8600 = vadd.f32 %v8587, %v8599
    %v8601 = vpop.f32.mrf.mxu0
    %8602 = vdwg.mxu0
    %8603 = vmatpush.bf16.msra.mxu0 %v8123
    %8604 = vmatpush.bf16.msra.mxu0 %v8121
    %8605 = vmatpush.bf16.msra.mxu0 %v8119
    %8606 = vmatpush.bf16.msra.mxu0 %v8117
    %8607 = vmatpush.bf16.msra.mxu0 %v8115
    %8608 = vmatpush.bf16.msra.mxu0 %v8113
    %8609 = vmatpush.bf16.msra.mxu0 %v8111
    %8610 = vmatpush.bf16.msra.mxu0 %v8109
    %8611 = vmatmul.bf16.gmra.mxu0 %v7556
    %v8612 = vpop.f32.mrf.mxu0
    %v8613 = vadd.f32 0.0, %v8612
    %v8614 = vpop.f32.mrf.mxu0
    %8615 = vdwg.mxu0
    %8616 = vmatpush.bf16.msra.mxu0 %v8139
    %8617 = vmatpush.bf16.msra.mxu0 %v8137
    %8618 = vmatpush.bf16.msra.mxu0 %v8135
    %8619 = vmatpush.bf16.msra.mxu0 %v8133
    %8620 = vmatpush.bf16.msra.mxu0 %v8131
    %8621 = vmatpush.bf16.msra.mxu0 %v8129
    %8622 = vmatpush.bf16.msra.mxu0 %v8127
    %8623 = vmatpush.bf16.msra.mxu0 %v8125
    %8624 = vmatmul.bf16.gmra.mxu0 %v7557
    %v8625 = vpop.f32.mrf.mxu0
    %v8626 = vadd.f32 %v8613, %v8625
    %v8627 = vpop.f32.mrf.mxu0
    %8628 = vdwg.mxu0
    %8629 = vmatpush.bf16.msra.mxu0 %v8155
    %8630 = vmatpush.bf16.msra.mxu0 %v8153
    %8631 = vmatpush.bf16.msra.mxu0 %v8151
    %8632 = vmatpush.bf16.msra.mxu0 %v8149
    %8633 = vmatpush.bf16.msra.mxu0 %v8147
    %8634 = vmatpush.bf16.msra.mxu0 %v8145
    %8635 = vmatpush.bf16.msra.mxu0 %v8143
    %8636 = vmatpush.bf16.msra.mxu0 %v8141
    %8637 = vmatmul.bf16.gmra.mxu0 %v7558
    %v8638 = vpop.f32.mrf.mxu0
    %v8639 = vadd.f32 %v8626, %v8638
    %v8640 = vpop.f32.mrf.mxu0
    %8641 = vdwg.mxu0
    %8642 = vmatpush.bf16.msra.mxu0 %v8171
    %8643 = vmatpush.bf16.msra.mxu0 %v8169
    %8644 = vmatpush.bf16.msra.mxu0 %v8167
    %8645 = vmatpush.bf16.msra.mxu0 %v8165
    %8646 = vmatpush.bf16.msra.mxu0 %v8163
    %8647 = vmatpush.bf16.msra.mxu0 %v8161
    %8648 = vmatpush.bf16.msra.mxu0 %v8159
    %8649 = vmatpush.bf16.msra.mxu0 %v8157
    %8650 = vmatmul.bf16.gmra.mxu0 %v7559
    %v8651 = vpop.f32.mrf.mxu0
    %v8652 = vadd.f32 %v8639, %v8651
    %v8653 = vpop.f32.mrf.mxu0
    %8654 = vdwg.mxu0
    %8655 = vmatpush.bf16.msra.mxu0 %v8187
    %8656 = vmatpush.bf16.msra.mxu0 %v8185
    %8657 = vmatpush.bf16.msra.mxu0 %v8183
    %8658 = vmatpush.bf16.msra.mxu0 %v8181
    %8659 = vmatpush.bf16.msra.mxu0 %v8179
    %8660 = vmatpush.bf16.msra.mxu0 %v8177
    %8661 = vmatpush.bf16.msra.mxu0 %v8175
    %8662 = vmatpush.bf16.msra.mxu0 %v8173
    %8663 = vmatmul.bf16.gmra.mxu0 %v7560
    %v8664 = vpop.f32.mrf.mxu0
    %v8665 = vadd.f32 %v8652, %v8664
    %v8666 = vpop.f32.mrf.mxu0
    %8667 = vdwg.mxu0
    %8668 = vmatpush.bf16.msra.mxu0 %v8203
    %8669 = vmatpush.bf16.msra.mxu0 %v8201
    %8670 = vmatpush.bf16.msra.mxu0 %v8199
    %8671 = vmatpush.bf16.msra.mxu0 %v8197
    %8672 = vmatpush.bf16.msra.mxu0 %v8195
    %8673 = vmatpush.bf16.msra.mxu0 %v8193
    %8674 = vmatpush.bf16.msra.mxu0 %v8191
    %8675 = vmatpush.bf16.msra.mxu0 %v8189
    %8676 = vmatmul.bf16.gmra.mxu0 %v7561
    %v8677 = vpop.f32.mrf.mxu0
    %v8678 = vadd.f32 %v8665, %v8677
    %v8679 = vpop.f32.mrf.mxu0
    %8680 = vdwg.mxu0
    %8681 = vmatpush.bf16.msra.mxu0 %v8219
    %8682 = vmatpush.bf16.msra.mxu0 %v8217
    %8683 = vmatpush.bf16.msra.mxu0 %v8215
    %8684 = vmatpush.bf16.msra.mxu0 %v8213
    %8685 = vmatpush.bf16.msra.mxu0 %v8211
    %8686 = vmatpush.bf16.msra.mxu0 %v8209
    %8687 = vmatpush.bf16.msra.mxu0 %v8207
    %8688 = vmatpush.bf16.msra.mxu0 %v8205
    %8689 = vmatmul.bf16.gmra.mxu0 %v7562
    %v8690 = vpop.f32.mrf.mxu0
    %v8691 = vadd.f32 %v8678, %v8690
    %v8692 = vpop.f32.mrf.mxu0
    %8693 = vdwg.mxu0
    %8694 = vmatpush.bf16.msra.mxu0 %v8235
    %8695 = vmatpush.bf16.msra.mxu0 %v8233
    %8696 = vmatpush.bf16.msra.mxu0 %v8231
    %8697 = vmatpush.bf16.msra.mxu0 %v8229
    %8698 = vmatpush.bf16.msra.mxu0 %v8227
    %8699 = vmatpush.bf16.msra.mxu0 %v8225
    %8700 = vmatpush.bf16.msra.mxu0 %v8223
    %8701 = vmatpush.bf16.msra.mxu0 %v8221
    %8702 = vmatmul.bf16.gmra.mxu0 %v7563
    %v8703 = vpop.f32.mrf.mxu0
    %v8704 = vadd.f32 %v8691, %v8703
    %v8705 = vpop.f32.mrf.mxu0
    %8706 = vdwg.mxu0
    %8707 = vmatpush.bf16.msra.mxu0 %v8251
    %8708 = vmatpush.bf16.msra.mxu0 %v8249
    %8709 = vmatpush.bf16.msra.mxu0 %v8247
    %8710 = vmatpush.bf16.msra.mxu0 %v8245
    %8711 = vmatpush.bf16.msra.mxu0 %v8243
    %8712 = vmatpush.bf16.msra.mxu0 %v8241
    %8713 = vmatpush.bf16.msra.mxu0 %v8239
    %8714 = vmatpush.bf16.msra.mxu0 %v8237
    %8715 = vmatmul.bf16.gmra.mxu0 %v7566
    %v8716 = vpop.f32.mrf.mxu0
    %v8717 = vadd.f32 %v8704, %v8716
    %v8718 = vpop.f32.mrf.mxu0
    %8719 = vdwg.mxu0
    %8720 = vmatpush.bf16.msra.mxu0 %v8267
    %8721 = vmatpush.bf16.msra.mxu0 %v8265
    %8722 = vmatpush.bf16.msra.mxu0 %v8263
    %8723 = vmatpush.bf16.msra.mxu0 %v8261
    %8724 = vmatpush.bf16.msra.mxu0 %v8259
    %8725 = vmatpush.bf16.msra.mxu0 %v8257
    %8726 = vmatpush.bf16.msra.mxu0 %v8255
    %8727 = vmatpush.bf16.msra.mxu0 %v8253
    %8728 = vmatmul.bf16.gmra.mxu0 %v7567
    %v8729 = vpop.f32.mrf.mxu0
    %v8730 = vadd.f32 %v8717, %v8729
    %v8731 = vpop.f32.mrf.mxu0
    %8732 = vdwg.mxu0
    %8733 = vmatpush.bf16.msra.mxu0 %v8283
    %8734 = vmatpush.bf16.msra.mxu0 %v8281
    %8735 = vmatpush.bf16.msra.mxu0 %v8279
    %8736 = vmatpush.bf16.msra.mxu0 %v8277
    %8737 = vmatpush.bf16.msra.mxu0 %v8275
    %8738 = vmatpush.bf16.msra.mxu0 %v8273
    %8739 = vmatpush.bf16.msra.mxu0 %v8271
    %8740 = vmatpush.bf16.msra.mxu0 %v8269
    %8741 = vmatmul.bf16.gmra.mxu0 %v7568
    %v8742 = vpop.f32.mrf.mxu0
    %v8743 = vadd.f32 %v8730, %v8742
    %v8744 = vpop.f32.mrf.mxu0
    %8745 = vdwg.mxu0
    %8747 = vst [vmem:[#allocation1] ss:$9 sm:$0xff] %v7196
    %v8748 = vld [vmem:[#allocation1] sm:$0xff]
    %v8749 = vld [vmem:[#allocation1 + $0x9] sm:$0xff]
    %v8750 = vld [vmem:[#allocation1 + $0x12] sm:$0xff]
    %v8751 = vld [vmem:[#allocation1 + $0x1b] sm:$0xff]
    %v8752 = vld [vmem:[#allocation1 + $0x24] sm:$0xff]
    %v8753 = vld [vmem:[#allocation1 + $0x2d] sm:$0xff]
    %v8754 = vld [vmem:[#allocation1 + $0x36] sm:$0xff]
    %v8755 = vld [vmem:[#allocation1 + $0x3f] sm:$0xff]
    %8757 = vst [vmem:[#allocation1] ss:$9 sm:$0xff] %v7197
    %v8758 = vld [vmem:[#allocation1] sm:$0xff]
    %v8759 = vld [vmem:[#allocation1 + $0x9] sm:$0xff]
    %v8760 = vld [vmem:[#allocation1 + $0x12] sm:$0xff]
    %v8948 = vunpack.c.l.b16 %v7198
    %v8949 = vunpack.c.h.b16 %v7198
    %v8950 = vunpack.c.l.b16 %v7199
    %v8951 = vunpack.c.h.b16 %v7199
    %v8952 = vunpack.c.l.b16 %v7200
    %v8953 = vunpack.c.h.b16 %v7200
    %v8954 = vunpack.c.l.b16 %v7201
    %v8955 = vunpack.c.h.b16 %v7201
    %v8956 = vunpack.c.l.b16 %v7202
    %v8957 = vunpack.c.h.b16 %v7202
    %v8958 = vunpack.c.l.b16 %v7203
    %v8959 = vunpack.c.h.b16 %v7203
    %v8960 = vunpack.c.l.b16 %v7204
    %v8961 = vunpack.c.h.b16 %v7204
    %v8962 = vunpack.c.l.b16 %v7205
    %v8963 = vunpack.c.h.b16 %v7205
    %v8964 = vunpack.c.l.b16 %v7206
    %v8965 = vunpack.c.h.b16 %v7206
    %v8966 = vunpack.c.l.b16 %v7207
    %v8967 = vunpack.c.h.b16 %v7207
    %v8968 = vunpack.c.l.b16 %v7208
    %v8969 = vunpack.c.h.b16 %v7208
    %v8970 = vunpack.c.l.b16 %v7209
    %v8971 = vunpack.c.h.b16 %v7209
    %v8972 = vunpack.c.l.b16 %v7210
    %v8973 = vunpack.c.h.b16 %v7210
    %v8974 = vunpack.c.l.b16 %v7211
    %v8975 = vunpack.c.h.b16 %v7211
    %v8976 = vunpack.c.l.b16 %v7212
    %v8977 = vunpack.c.h.b16 %v7212
    %v8978 = vunpack.c.l.b16 %v7213
    %v8979 = vunpack.c.h.b16 %v7213
    %v8980 = vunpack.c.l.b16 %v7214
    %v8981 = vunpack.c.h.b16 %v7214
    %v8982 = vunpack.c.l.b16 %v7215
    %v8983 = vunpack.c.h.b16 %v7215
    %v8984 = vunpack.c.l.b16 %v7216
    %v8985 = vunpack.c.h.b16 %v7216
    %v8986 = vunpack.c.l.b16 %v7217
    %v8987 = vunpack.c.h.b16 %v7217
    %v8988 = vunpack.c.l.b16 %v7218
    %v8989 = vunpack.c.h.b16 %v7218
    %v8990 = vunpack.c.l.b16 %v7219
    %v8991 = vunpack.c.h.b16 %v7219
    %v8992 = vunpack.c.l.b16 %v7220
    %v8993 = vunpack.c.h.b16 %v7220
    %v8994 = vunpack.c.l.b16 %v7221
    %v8995 = vunpack.c.h.b16 %v7221
    %v8996 = vunpack.c.l.b16 %v7222
    %v8997 = vunpack.c.h.b16 %v7222
    %v8998 = vunpack.c.l.b16 %v7223
    %v8999 = vunpack.c.h.b16 %v7223
    %v9000 = vunpack.c.l.b16 %v7224
    %v9001 = vunpack.c.h.b16 %v7224
    %v9002 = vunpack.c.l.b16 %v7225
    %v9003 = vunpack.c.h.b16 %v7225
    %v9004 = vunpack.c.l.b16 %v7226
    %v9005 = vunpack.c.h.b16 %v7226
    %v9006 = vunpack.c.l.b16 %v7227
    %v9007 = vunpack.c.h.b16 %v7227
    %v9008 = vunpack.c.l.b16 %v7228
    %v9009 = vunpack.c.h.b16 %v7228
    %v9010 = vunpack.c.l.b16 %v7229
    %v9011 = vunpack.c.h.b16 %v7229
    %v9012 = vunpack.c.l.b16 %v7230
    %v9013 = vunpack.c.h.b16 %v7230
    %v9014 = vunpack.c.l.b16 %v7231
    %v9015 = vunpack.c.h.b16 %v7231
    %v9016 = vunpack.c.l.b16 %v7232
    %v9017 = vunpack.c.h.b16 %v7232
    %v9018 = vunpack.c.l.b16 %v7233
    %v9019 = vunpack.c.h.b16 %v7233
    %v9020 = vunpack.c.l.b16 %v7234
    %v9021 = vunpack.c.h.b16 %v7234
    %v9022 = vunpack.c.l.b16 %v7235
    %v9023 = vunpack.c.h.b16 %v7235
    %v9024 = vunpack.c.l.b16 %v7236
    %v9025 = vunpack.c.h.b16 %v7236
    %v9026 = vunpack.c.l.b16 %v7237
    %v9027 = vunpack.c.h.b16 %v7237
    %v9028 = vunpack.c.l.b16 %v7238
    %v9029 = vunpack.c.h.b16 %v7238
    %v9030 = vunpack.c.l.b16 %v7239
    %v9031 = vunpack.c.h.b16 %v7239
    %v9032 = vunpack.c.l.b16 %v7240
    %v9033 = vunpack.c.h.b16 %v7240
    %v9034 = vunpack.c.l.b16 %v7241
    %v9035 = vunpack.c.h.b16 %v7241
    %v9036 = vunpack.c.l.b16 %v7242
    %v9037 = vunpack.c.h.b16 %v7242
    %v9038 = vunpack.c.l.b16 %v7243
    %v9039 = vunpack.c.h.b16 %v7243
    %v9040 = vunpack.c.l.b16 %v7244
    %v9041 = vunpack.c.h.b16 %v7244
    %v9042 = vunpack.c.l.b16 %v7245
    %v9043 = vunpack.c.h.b16 %v7245
    %v9044 = vunpack.c.l.b16 %v7246
    %v9045 = vunpack.c.h.b16 %v7246
    %v9046 = vunpack.c.l.b16 %v7247
    %v9047 = vunpack.c.h.b16 %v7247
    %v9048 = vunpack.c.l.b16 %v7248
    %v9049 = vunpack.c.h.b16 %v7248
    %v9050 = vunpack.c.l.b16 %v7249
    %v9051 = vunpack.c.h.b16 %v7249
    %v9052 = vunpack.c.l.b16 %v7250
    %v9053 = vunpack.c.h.b16 %v7250
    %v9054 = vunpack.c.l.b16 %v7251
    %v9055 = vunpack.c.h.b16 %v7251
    %v9056 = vunpack.c.l.b16 %v7252
    %v9057 = vunpack.c.h.b16 %v7252
    %v9058 = vunpack.c.l.b16 %v7253
    %v9059 = vunpack.c.h.b16 %v7253
    %v9060 = vunpack.c.l.b16 %v7254
    %v9061 = vunpack.c.h.b16 %v7254
    %v9062 = vunpack.c.l.b16 %v7255
    %v9063 = vunpack.c.h.b16 %v7255
    %v9064 = vunpack.c.l.b16 %v7256
    %v9065 = vunpack.c.h.b16 %v7256
    %v9066 = vunpack.c.l.b16 %v7257
    %v9067 = vunpack.c.h.b16 %v7257
    %v9068 = vunpack.c.l.b16 %v7258
    %v9069 = vunpack.c.h.b16 %v7258
    %v9070 = vunpack.c.l.b16 %v7259
    %v9071 = vunpack.c.h.b16 %v7259
    %v9072 = vunpack.c.l.b16 %v7260
    %v9073 = vunpack.c.h.b16 %v7260
    %v9074 = vunpack.c.l.b16 %v7261
    %v9075 = vunpack.c.h.b16 %v7261
    %v9076 = vunpack.c.l.b16 %v7262
    %v9077 = vunpack.c.h.b16 %v7262
    %v9078 = vunpack.c.l.b16 %v7263
    %v9079 = vunpack.c.h.b16 %v7263
    %v9080 = vunpack.c.l.b16 %v7264
    %v9081 = vunpack.c.h.b16 %v7264
    %v9082 = vunpack.c.l.b16 %v7265
    %v9083 = vunpack.c.h.b16 %v7265
    %v9084 = vunpack.c.l.b16 %v7266
    %v9085 = vunpack.c.h.b16 %v7266
    %v9086 = vunpack.c.l.b16 %v7267
    %v9087 = vunpack.c.h.b16 %v7267
    %v9088 = vunpack.c.l.b16 %v7268
    %v9089 = vunpack.c.h.b16 %v7268
    %v9090 = vunpack.c.l.b16 %v7269
    %v9091 = vunpack.c.h.b16 %v7269
    %v9092 = vunpack.c.l.b16 %v7270
    %v9093 = vunpack.c.h.b16 %v7270
    %v9094 = vunpack.c.l.b16 %v7271
    %v9095 = vunpack.c.h.b16 %v7271
    %v9096 = vunpack.c.l.b16 %v7272
    %v9097 = vunpack.c.h.b16 %v7272
    %v9098 = vunpack.c.l.b16 %v7273
    %v9099 = vunpack.c.h.b16 %v7273
    %v9100 = vunpack.c.l.b16 %v7274
    %v9101 = vunpack.c.h.b16 %v7274
    %v9102 = vunpack.c.l.b16 %v7275
    %v9103 = vunpack.c.h.b16 %v7275
    %v9104 = vunpack.c.l.b16 %v7276
    %v9105 = vunpack.c.h.b16 %v7276
    %v9106 = vunpack.c.l.b16 %v7277
    %v9107 = vunpack.c.h.b16 %v7277
    %v9108 = vunpack.c.l.b16 %v7278
    %v9109 = vunpack.c.h.b16 %v7278
    %v9110 = vunpack.c.l.b16 %v7279
    %v9111 = vunpack.c.h.b16 %v7279
    %v9112 = vunpack.c.l.b16 %v7280
    %v9113 = vunpack.c.h.b16 %v7280
    %v9114 = vunpack.c.l.b16 %v7281
    %v9115 = vunpack.c.h.b16 %v7281
    %v9116 = vunpack.c.l.b16 %v7282
    %v9117 = vunpack.c.h.b16 %v7282
    %v9118 = vunpack.c.l.b16 %v7283
    %v9119 = vunpack.c.h.b16 %v7283
    %v9120 = vunpack.c.l.b16 %v7284
    %v9121 = vunpack.c.h.b16 %v7284
    %v9122 = vunpack.c.l.b16 %v7285
    %v9123 = vunpack.c.h.b16 %v7285
    %v9124 = vunpack.c.l.b16 %v7286
    %v9125 = vunpack.c.h.b16 %v7286
    %v9126 = vunpack.c.l.b16 %v7287
    %v9127 = vunpack.c.h.b16 %v7287
    %v9128 = vunpack.c.l.b16 %v7288
    %v9129 = vunpack.c.h.b16 %v7288
    %v9130 = vunpack.c.l.b16 %v7289
    %v9131 = vunpack.c.h.b16 %v7289
    %v9132 = vunpack.c.l.b16 %v7290
    %v9133 = vunpack.c.h.b16 %v7290
    %v9134 = vunpack.c.l.b16 %v7291
    %v9135 = vunpack.c.h.b16 %v7291
    %v9136 = vunpack.c.l.b16 %v7292
    %v9137 = vunpack.c.h.b16 %v7292
    %v9138 = vunpack.c.l.b16 %v7293
    %v9139 = vunpack.c.h.b16 %v7293
    %v9140 = vunpack.c.l.b16 %v7294
    %v9141 = vunpack.c.h.b16 %v7294
    %v9142 = vunpack.c.l.b16 %v7295
    %v9143 = vunpack.c.h.b16 %v7295
    %v9144 = vunpack.c.l.b16 %v7296
    %v9145 = vunpack.c.h.b16 %v7296
    %v9146 = vunpack.c.l.b16 %v7297
    %v9147 = vunpack.c.h.b16 %v7297
    %v9148 = vunpack.c.l.b16 %v7298
    %v9149 = vunpack.c.h.b16 %v7298
    %v9150 = vunpack.c.l.b16 %v7299
    %v9151 = vunpack.c.h.b16 %v7299
    %v9152 = vunpack.c.l.b16 %v7300
    %v9153 = vunpack.c.h.b16 %v7300
    %v9154 = vunpack.c.l.b16 %v7301
    %v9155 = vunpack.c.h.b16 %v7301
    %v9156 = vunpack.c.l.b16 %v7302
    %v9157 = vunpack.c.h.b16 %v7302
    %v9158 = vunpack.c.l.b16 %v7303
    %v9159 = vunpack.c.h.b16 %v7303
    %v9160 = vunpack.c.l.b16 %v7304
    %v9161 = vunpack.c.h.b16 %v7304
    %v9162 = vunpack.c.l.b16 %v7305
    %v9163 = vunpack.c.h.b16 %v7305
    %v9164 = vunpack.c.l.b16 %v7306
    %v9165 = vunpack.c.h.b16 %v7306
    %v9166 = vunpack.c.l.b16 %v7307
    %v9167 = vunpack.c.h.b16 %v7307
    %v9168 = vunpack.c.l.b16 %v7308
    %v9169 = vunpack.c.h.b16 %v7308
    %v9170 = vunpack.c.l.b16 %v7309
    %v9171 = vunpack.c.h.b16 %v7309
    %v9172 = vunpack.c.l.b16 %v7310
    %v9173 = vunpack.c.h.b16 %v7310
    %v9174 = vunpack.c.l.b16 %v7311
    %v9175 = vunpack.c.h.b16 %v7311
    %v9176 = vunpack.c.l.b16 %v7312
    %v9177 = vunpack.c.h.b16 %v7312
    %v9178 = vunpack.c.l.b16 %v7313
    %v9179 = vunpack.c.h.b16 %v7313
    %v9180 = vunpack.c.l.b16 %v7314
    %v9181 = vunpack.c.h.b16 %v7314
    %v9182 = vunpack.c.l.b16 %v7315
    %v9183 = vunpack.c.h.b16 %v7315
    %v9184 = vunpack.c.l.b16 %v7316
    %v9185 = vunpack.c.h.b16 %v7316
    %v9186 = vunpack.c.l.b16 %v7317
    %v9187 = vunpack.c.h.b16 %v7317
    %v9188 = vunpack.c.l.b16 %v7318
    %v9189 = vunpack.c.h.b16 %v7318
    %v9190 = vunpack.c.l.b16 %v7319
    %v9191 = vunpack.c.h.b16 %v7319
    %v9192 = vunpack.c.l.b16 %v7320
    %v9193 = vunpack.c.h.b16 %v7320
    %v9194 = vunpack.c.l.b16 %v7321
    %v9195 = vunpack.c.h.b16 %v7321
    %v9196 = vunpack.c.l.b16 %v7322
    %v9197 = vunpack.c.h.b16 %v7322
    %v9198 = vunpack.c.l.b16 %v7323
    %v9199 = vunpack.c.h.b16 %v7323
    %v9200 = vunpack.c.l.b16 %v7324
    %v9201 = vunpack.c.h.b16 %v7324
    %v9202 = vunpack.c.l.b16 %v7325
    %v9203 = vunpack.c.h.b16 %v7325
    %v9204 = vunpack.c.l.b16 %v7326
    %v9205 = vunpack.c.h.b16 %v7326
    %v9206 = vunpack.c.l.b16 %v7327
    %v9207 = vunpack.c.h.b16 %v7327
    %v9208 = vunpack.c.l.b16 %v7328
    %v9209 = vunpack.c.h.b16 %v7328
    %v9210 = vunpack.c.l.b16 %v7329
    %v9211 = vunpack.c.h.b16 %v7329
    %v9212 = vunpack.c.l.b16 %v7330
    %v9213 = vunpack.c.h.b16 %v7330
    %v9214 = vunpack.c.l.b16 %v7331
    %v9215 = vunpack.c.h.b16 %v7331
    %v9216 = vunpack.c.l.b16 %v7332
    %v9217 = vunpack.c.h.b16 %v7332
    %v9218 = vunpack.c.l.b16 %v7333
    %v9219 = vunpack.c.h.b16 %v7333
    %v9220 = vunpack.c.l.b16 %v7334
    %v9221 = vunpack.c.h.b16 %v7334
    %v9222 = vunpack.c.l.b16 %v7335
    %v9223 = vunpack.c.h.b16 %v7335
    %v9224 = vunpack.c.l.b16 %v7336
    %v9225 = vunpack.c.h.b16 %v7336
    %v9226 = vunpack.c.l.b16 %v7337
    %v9227 = vunpack.c.h.b16 %v7337
    %v9228 = vunpack.c.l.b16 %v7338
    %v9229 = vunpack.c.h.b16 %v7338
    %v9230 = vunpack.c.l.b16 %v7339
    %v9231 = vunpack.c.h.b16 %v7339
    %v9232 = vunpack.c.l.b16 %v7340
    %v9233 = vunpack.c.h.b16 %v7340
    %v9234 = vunpack.c.l.b16 %v7341
    %v9235 = vunpack.c.h.b16 %v7341
    %v9236 = vunpack.c.l.b16 %v7342
    %v9237 = vunpack.c.h.b16 %v7342
    %v9238 = vunpack.c.l.b16 %v7343
    %v9239 = vunpack.c.h.b16 %v7343
    %v9240 = vunpack.c.l.b16 %v7344
    %v9241 = vunpack.c.h.b16 %v7344
    %v9242 = vunpack.c.l.b16 %v7345
    %v9243 = vunpack.c.h.b16 %v7345
    %v9244 = vunpack.c.l.b16 %v7346
    %v9245 = vunpack.c.h.b16 %v7346
    %v9246 = vunpack.c.l.b16 %v7347
    %v9247 = vunpack.c.h.b16 %v7347
    %v9248 = vunpack.c.l.b16 %v7348
    %v9249 = vunpack.c.h.b16 %v7348
    %v9250 = vunpack.c.l.b16 %v7349
    %v9251 = vunpack.c.h.b16 %v7349
    %v9252 = vunpack.c.l.b16 %v7350
    %v9253 = vunpack.c.h.b16 %v7350
    %v9254 = vunpack.c.l.b16 %v7351
    %v9255 = vunpack.c.h.b16 %v7351
    %v9256 = vunpack.c.l.b16 %v7352
    %v9257 = vunpack.c.h.b16 %v7352
    %v9258 = vunpack.c.l.b16 %v7353
    %v9259 = vunpack.c.h.b16 %v7353
    %v9260 = vunpack.c.l.b16 %v7354
    %v9261 = vunpack.c.h.b16 %v7354
    %v9262 = vunpack.c.l.b16 %v7355
    %v9263 = vunpack.c.h.b16 %v7355
    %v9264 = vunpack.c.l.b16 %v7356
    %v9265 = vunpack.c.h.b16 %v7356
    %v9266 = vunpack.c.l.b16 %v7357
    %v9267 = vunpack.c.h.b16 %v7357
    %v9268 = vunpack.c.l.b16 %v7358
    %v9269 = vunpack.c.h.b16 %v7358
    %v9270 = vunpack.c.l.b16 %v7359
    %v9271 = vunpack.c.h.b16 %v7359
    %v9272 = vunpack.c.l.b16 %v7360
    %v9273 = vunpack.c.h.b16 %v7360
    %v9274 = vunpack.c.l.b16 %v7361
    %v9275 = vunpack.c.h.b16 %v7361
    %v9276 = vunpack.c.l.b16 %v7362
    %v9277 = vunpack.c.h.b16 %v7362
    %v9278 = vunpack.c.l.b16 %v7363
    %v9279 = vunpack.c.h.b16 %v7363
    %v9280 = vunpack.c.l.b16 %v7364
    %v9281 = vunpack.c.h.b16 %v7364
    %v9282 = vunpack.c.l.b16 %v7365
    %v9283 = vunpack.c.h.b16 %v7365
    %v9284 = vunpack.c.l.b16 %v7366
    %v9285 = vunpack.c.h.b16 %v7366
    %v9286 = vunpack.c.l.b16 %v7367
    %v9287 = vunpack.c.h.b16 %v7367
    %v9288 = vunpack.c.l.b16 %v7368
    %v9289 = vunpack.c.h.b16 %v7368
    %v9290 = vunpack.c.l.b16 %v7369
    %v9291 = vunpack.c.h.b16 %v7369
    %v9292 = vunpack.c.l.b16 %v7370
    %v9293 = vunpack.c.h.b16 %v7370
    %v9294 = vunpack.c.l.b16 %v7371
    %v9295 = vunpack.c.h.b16 %v7371
    %v9296 = vunpack.c.l.b16 %v7372
    %v9297 = vunpack.c.h.b16 %v7372
    %v9298 = vunpack.c.l.b16 %v7373
    %v9299 = vunpack.c.h.b16 %v7373
    %v9300 = vpack.c.b16 %v8950, %v8948
    %v9301 = vpack.c.b16 %v8951, %v8949
    %v9302 = vpack.c.b16 %v8954, %v8952
    %v9303 = vpack.c.b16 %v8955, %v8953
    %v9304 = vpack.c.b16 %v8958, %v8956
    %v9305 = vpack.c.b16 %v8959, %v8957
    %v9306 = vpack.c.b16 %v8962, %v8960
    %v9307 = vpack.c.b16 %v8963, %v8961
    %v9308 = vpack.c.b16 %v8966, %v8964
    %v9309 = vpack.c.b16 %v8967, %v8965
    %v9310 = vpack.c.b16 %v8970, %v8968
    %v9311 = vpack.c.b16 %v8971, %v8969
    %v9312 = vpack.c.b16 %v8974, %v8972
    %v9313 = vpack.c.b16 %v8975, %v8973
    %v9314 = vpack.c.b16 %v8978, %v8976
    %v9315 = vpack.c.b16 %v8979, %v8977
    %v9316 = vpack.c.b16 %v8982, %v8980
    %v9317 = vpack.c.b16 %v8983, %v8981
    %v9318 = vpack.c.b16 %v8986, %v8984
    %v9319 = vpack.c.b16 %v8987, %v8985
    %v9320 = vpack.c.b16 %v8990, %v8988
    %v9321 = vpack.c.b16 %v8991, %v8989
    %v9322 = vpack.c.b16 %v8994, %v8992
    %v9323 = vpack.c.b16 %v8995, %v8993
    %v9324 = vpack.c.b16 %v8998, %v8996
    %v9325 = vpack.c.b16 %v8999, %v8997
    %v9326 = vpack.c.b16 %v9002, %v9000
    %v9327 = vpack.c.b16 %v9003, %v9001
    %v9328 = vpack.c.b16 %v9006, %v9004
    %v9329 = vpack.c.b16 %v9007, %v9005
    %v9330 = vpack.c.b16 %v9010, %v9008
    %v9331 = vpack.c.b16 %v9011, %v9009
    %v9332 = vpack.c.b16 %v9014, %v9012
    %v9333 = vpack.c.b16 %v9015, %v9013
    %v9334 = vpack.c.b16 %v9018, %v9016
    %v9335 = vpack.c.b16 %v9019, %v9017
    %v9336 = vpack.c.b16 %v9022, %v9020
    %v9337 = vpack.c.b16 %v9023, %v9021
    %v9338 = vpack.c.b16 %v9026, %v9024
    %v9339 = vpack.c.b16 %v9027, %v9025
    %v9340 = vpack.c.b16 %v9030, %v9028
    %v9341 = vpack.c.b16 %v9031, %v9029
    %v9342 = vpack.c.b16 %v9034, %v9032
    %v9343 = vpack.c.b16 %v9035, %v9033
    %v9344 = vpack.c.b16 %v9038, %v9036
    %v9345 = vpack.c.b16 %v9039, %v9037
    %v9346 = vpack.c.b16 %v9042, %v9040
    %v9347 = vpack.c.b16 %v9043, %v9041
    %v9348 = vpack.c.b16 %v9046, %v9044
    %v9349 = vpack.c.b16 %v9047, %v9045
    %v9350 = vpack.c.b16 %v9050, %v9048
    %v9351 = vpack.c.b16 %v9051, %v9049
    %v9352 = vpack.c.b16 %v9054, %v9052
    %v9353 = vpack.c.b16 %v9055, %v9053
    %v9354 = vpack.c.b16 %v9058, %v9056
    %v9355 = vpack.c.b16 %v9059, %v9057
    %v9356 = vpack.c.b16 %v9062, %v9060
    %v9357 = vpack.c.b16 %v9063, %v9061
    %v9358 = vpack.c.b16 %v9066, %v9064
    %v9359 = vpack.c.b16 %v9067, %v9065
    %v9360 = vpack.c.b16 %v9070, %v9068
    %v9361 = vpack.c.b16 %v9071, %v9069
    %v9362 = vpack.c.b16 %v9074, %v9072
    %v9363 = vpack.c.b16 %v9075, %v9073
    %v9364 = vpack.c.b16 %v9078, %v9076
    %v9365 = vpack.c.b16 %v9079, %v9077
    %v9366 = vpack.c.b16 %v9082, %v9080
    %v9367 = vpack.c.b16 %v9083, %v9081
    %v9368 = vpack.c.b16 %v9086, %v9084
    %v9369 = vpack.c.b16 %v9087, %v9085
    %v9370 = vpack.c.b16 %v9090, %v9088
    %v9371 = vpack.c.b16 %v9091, %v9089
    %v9372 = vpack.c.b16 %v9094, %v9092
    %v9373 = vpack.c.b16 %v9095, %v9093
    %v9374 = vpack.c.b16 %v9098, %v9096
    %v9375 = vpack.c.b16 %v9099, %v9097
    %v9376 = vpack.c.b16 %v9102, %v9100
    %v9377 = vpack.c.b16 %v9103, %v9101
    %v9378 = vpack.c.b16 %v9106, %v9104
    %v9379 = vpack.c.b16 %v9107, %v9105
    %v9380 = vpack.c.b16 %v9110, %v9108
    %v9381 = vpack.c.b16 %v9111, %v9109
    %v9382 = vpack.c.b16 %v9114, %v9112
    %v9383 = vpack.c.b16 %v9115, %v9113
    %v9384 = vpack.c.b16 %v9118, %v9116
    %v9385 = vpack.c.b16 %v9119, %v9117
    %v9386 = vpack.c.b16 %v9122, %v9120
    %v9387 = vpack.c.b16 %v9123, %v9121
    %v9388 = vpack.c.b16 %v9126, %v9124
    %v9389 = vpack.c.b16 %v9127, %v9125
    %v9390 = vpack.c.b16 %v9130, %v9128
    %v9391 = vpack.c.b16 %v9131, %v9129
    %v9392 = vpack.c.b16 %v9134, %v9132
    %v9393 = vpack.c.b16 %v9135, %v9133
    %v9394 = vpack.c.b16 %v9138, %v9136
    %v9395 = vpack.c.b16 %v9139, %v9137
    %v9396 = vpack.c.b16 %v9142, %v9140
    %v9397 = vpack.c.b16 %v9143, %v9141
    %v9398 = vpack.c.b16 %v9146, %v9144
    %v9399 = vpack.c.b16 %v9147, %v9145
    %v9400 = vpack.c.b16 %v9150, %v9148
    %v9401 = vpack.c.b16 %v9151, %v9149
    %v9402 = vpack.c.b16 %v9154, %v9152
    %v9403 = vpack.c.b16 %v9155, %v9153
    %v9404 = vpack.c.b16 %v9158, %v9156
    %v9405 = vpack.c.b16 %v9159, %v9157
    %v9406 = vpack.c.b16 %v9162, %v9160
    %v9407 = vpack.c.b16 %v9163, %v9161
    %v9408 = vpack.c.b16 %v9166, %v9164
    %v9409 = vpack.c.b16 %v9167, %v9165
    %v9410 = vpack.c.b16 %v9170, %v9168
    %v9411 = vpack.c.b16 %v9171, %v9169
    %v9412 = vpack.c.b16 %v9174, %v9172
    %v9413 = vpack.c.b16 %v9175, %v9173
    %v9414 = vpack.c.b16 %v9178, %v9176
    %v9415 = vpack.c.b16 %v9179, %v9177
    %v9416 = vpack.c.b16 %v9182, %v9180
    %v9417 = vpack.c.b16 %v9183, %v9181
    %v9418 = vpack.c.b16 %v9186, %v9184
    %v9419 = vpack.c.b16 %v9187, %v9185
    %v9420 = vpack.c.b16 %v9190, %v9188
    %v9421 = vpack.c.b16 %v9191, %v9189
    %v9422 = vpack.c.b16 %v9194, %v9192
    %v9423 = vpack.c.b16 %v9195, %v9193
    %v9424 = vpack.c.b16 %v9198, %v9196
    %v9425 = vpack.c.b16 %v9199, %v9197
    %v9426 = vpack.c.b16 %v9202, %v9200
    %v9427 = vpack.c.b16 %v9203, %v9201
    %v9428 = vpack.c.b16 %v9206, %v9204
    %v9429 = vpack.c.b16 %v9207, %v9205
    %v9430 = vpack.c.b16 %v9210, %v9208
    %v9431 = vpack.c.b16 %v9211, %v9209
    %v9432 = vpack.c.b16 %v9214, %v9212
    %v9433 = vpack.c.b16 %v9215, %v9213
    %v9434 = vpack.c.b16 %v9218, %v9216
    %v9435 = vpack.c.b16 %v9219, %v9217
    %v9436 = vpack.c.b16 %v9222, %v9220
    %v9437 = vpack.c.b16 %v9223, %v9221
    %v9438 = vpack.c.b16 %v9226, %v9224
    %v9439 = vpack.c.b16 %v9227, %v9225
    %v9440 = vpack.c.b16 %v9230, %v9228
    %v9441 = vpack.c.b16 %v9231, %v9229
    %v9442 = vpack.c.b16 %v9234, %v9232
    %v9443 = vpack.c.b16 %v9235, %v9233
    %v9444 = vpack.c.b16 %v9238, %v9236
    %v9445 = vpack.c.b16 %v9239, %v9237
    %v9446 = vpack.c.b16 %v9242, %v9240
    %v9447 = vpack.c.b16 %v9243, %v9241
    %v9448 = vpack.c.b16 %v9246, %v9244
    %v9449 = vpack.c.b16 %v9247, %v9245
    %v9450 = vpack.c.b16 %v9250, %v9248
    %v9451 = vpack.c.b16 %v9251, %v9249
    %v9452 = vpack.c.b16 %v9254, %v9252
    %v9453 = vpack.c.b16 %v9255, %v9253
    %v9454 = vpack.c.b16 %v9258, %v9256
    %v9455 = vpack.c.b16 %v9259, %v9257
    %v9456 = vpack.c.b16 %v9262, %v9260
    %v9457 = vpack.c.b16 %v9263, %v9261
    %v9458 = vpack.c.b16 %v9266, %v9264
    %v9459 = vpack.c.b16 %v9267, %v9265
    %v9460 = vpack.c.b16 %v9270, %v9268
    %v9461 = vpack.c.b16 %v9271, %v9269
    %v9462 = vpack.c.b16 %v9274, %v9272
    %v9463 = vpack.c.b16 %v9275, %v9273
    %v9464 = vpack.c.b16 %v9278, %v9276
    %v9465 = vpack.c.b16 %v9279, %v9277
    %v9466 = vpack.c.b16 %v9282, %v9280
    %v9467 = vpack.c.b16 %v9283, %v9281
    %v9468 = vpack.c.b16 %v9286, %v9284
    %v9469 = vpack.c.b16 %v9287, %v9285
    %v9470 = vpack.c.b16 %v9290, %v9288
    %v9471 = vpack.c.b16 %v9291, %v9289
    %v9472 = vpack.c.b16 %v9294, %v9292
    %v9473 = vpack.c.b16 %v9295, %v9293
    %v9474 = vpack.c.b16 %v9298, %v9296
    %v9475 = vpack.c.b16 %v9299, %v9297
    %9652 = vmatpush.bf16.msra.mxu0 %v9314
    %9653 = vmatpush.bf16.msra.mxu0 %v9312
    %9654 = vmatpush.bf16.msra.mxu0 %v9310
    %9655 = vmatpush.bf16.msra.mxu0 %v9308
    %9656 = vmatpush.bf16.msra.mxu0 %v9306
    %9657 = vmatpush.bf16.msra.mxu0 %v9304
    %9658 = vmatpush.bf16.msra.mxu0 %v9302
    %9659 = vmatpush.bf16.msra.mxu0 %v9300
    %9660 = vmatmul.bf16.gmra.mxu0 %v8748
    %v9661 = vpop.f32.mrf.mxu0
    %v9662 = vadd.f32 %v8600, %v9661
    %v9663 = vpop.f32.mrf.mxu0
    %9664 = vdwg.mxu0
    %9665 = vmatpush.bf16.msra.mxu0 %v9330
    %9666 = vmatpush.bf16.msra.mxu0 %v9328
    %9667 = vmatpush.bf16.msra.mxu0 %v9326
    %9668 = vmatpush.bf16.msra.mxu0 %v9324
    %9669 = vmatpush.bf16.msra.mxu0 %v9322
    %9670 = vmatpush.bf16.msra.mxu0 %v9320
    %9671 = vmatpush.bf16.msra.mxu0 %v9318
    %9672 = vmatpush.bf16.msra.mxu0 %v9316
    %9673 = vmatmul.bf16.gmra.mxu0 %v8749
    %v9674 = vpop.f32.mrf.mxu0
    %v9675 = vadd.f32 %v9662, %v9674
    %v9676 = vpop.f32.mrf.mxu0
    %9677 = vdwg.mxu0
    %9678 = vmatpush.bf16.msra.mxu0 %v9346
    %9679 = vmatpush.bf16.msra.mxu0 %v9344
    %9680 = vmatpush.bf16.msra.mxu0 %v9342
    %9681 = vmatpush.bf16.msra.mxu0 %v9340
    %9682 = vmatpush.bf16.msra.mxu0 %v9338
    %9683 = vmatpush.bf16.msra.mxu0 %v9336
    %9684 = vmatpush.bf16.msra.mxu0 %v9334
    %9685 = vmatpush.bf16.msra.mxu0 %v9332
    %9686 = vmatmul.bf16.gmra.mxu0 %v8750
    %v9687 = vpop.f32.mrf.mxu0
    %v9688 = vadd.f32 %v9675, %v9687
    %v9689 = vpop.f32.mrf.mxu0
    %9690 = vdwg.mxu0
    %9691 = vmatpush.bf16.msra.mxu0 %v9362
    %9692 = vmatpush.bf16.msra.mxu0 %v9360
    %9693 = vmatpush.bf16.msra.mxu0 %v9358
    %9694 = vmatpush.bf16.msra.mxu0 %v9356
    %9695 = vmatpush.bf16.msra.mxu0 %v9354
    %9696 = vmatpush.bf16.msra.mxu0 %v9352
    %9697 = vmatpush.bf16.msra.mxu0 %v9350
    %9698 = vmatpush.bf16.msra.mxu0 %v9348
    %9699 = vmatmul.bf16.gmra.mxu0 %v8751
    %v9700 = vpop.f32.mrf.mxu0
    %v9701 = vadd.f32 %v9688, %v9700
    %v9702 = vpop.f32.mrf.mxu0
    %9703 = vdwg.mxu0
    %9704 = vmatpush.bf16.msra.mxu0 %v9378
    %9705 = vmatpush.bf16.msra.mxu0 %v9376
    %9706 = vmatpush.bf16.msra.mxu0 %v9374
    %9707 = vmatpush.bf16.msra.mxu0 %v9372
    %9708 = vmatpush.bf16.msra.mxu0 %v9370
    %9709 = vmatpush.bf16.msra.mxu0 %v9368
    %9710 = vmatpush.bf16.msra.mxu0 %v9366
    %9711 = vmatpush.bf16.msra.mxu0 %v9364
    %9712 = vmatmul.bf16.gmra.mxu0 %v8752
    %v9713 = vpop.f32.mrf.mxu0
    %v9714 = vadd.f32 %v9701, %v9713
    %v9715 = vpop.f32.mrf.mxu0
    %9716 = vdwg.mxu0
    %9717 = vmatpush.bf16.msra.mxu0 %v9394
    %9718 = vmatpush.bf16.msra.mxu0 %v9392
    %9719 = vmatpush.bf16.msra.mxu0 %v9390
    %9720 = vmatpush.bf16.msra.mxu0 %v9388
    %9721 = vmatpush.bf16.msra.mxu0 %v9386
    %9722 = vmatpush.bf16.msra.mxu0 %v9384
    %9723 = vmatpush.bf16.msra.mxu0 %v9382
    %9724 = vmatpush.bf16.msra.mxu0 %v9380
    %9725 = vmatmul.bf16.gmra.mxu0 %v8753
    %v9726 = vpop.f32.mrf.mxu0
    %v9727 = vadd.f32 %v9714, %v9726
    %v9728 = vpop.f32.mrf.mxu0
    %9729 = vdwg.mxu0
    %9730 = vmatpush.bf16.msra.mxu0 %v9410
    %9731 = vmatpush.bf16.msra.mxu0 %v9408
    %9732 = vmatpush.bf16.msra.mxu0 %v9406
    %9733 = vmatpush.bf16.msra.mxu0 %v9404
    %9734 = vmatpush.bf16.msra.mxu0 %v9402
    %9735 = vmatpush.bf16.msra.mxu0 %v9400
    %9736 = vmatpush.bf16.msra.mxu0 %v9398
    %9737 = vmatpush.bf16.msra.mxu0 %v9396
    %9738 = vmatmul.bf16.gmra.mxu0 %v8754
    %v9739 = vpop.f32.mrf.mxu0
    %v9740 = vadd.f32 %v9727, %v9739
    %v9741 = vpop.f32.mrf.mxu0
    %9742 = vdwg.mxu0
    %9743 = vmatpush.bf16.msra.mxu0 %v9426
    %9744 = vmatpush.bf16.msra.mxu0 %v9424
    %9745 = vmatpush.bf16.msra.mxu0 %v9422
    %9746 = vmatpush.bf16.msra.mxu0 %v9420
    %9747 = vmatpush.bf16.msra.mxu0 %v9418
    %9748 = vmatpush.bf16.msra.mxu0 %v9416
    %9749 = vmatpush.bf16.msra.mxu0 %v9414
    %9750 = vmatpush.bf16.msra.mxu0 %v9412
    %9751 = vmatmul.bf16.gmra.mxu0 %v8755
    %v9752 = vpop.f32.mrf.mxu0
    %v9753 = vadd.f32 %v9740, %v9752
    %v9754 = vpop.f32.mrf.mxu0
    %9755 = vdwg.mxu0
    %9756 = vmatpush.bf16.msra.mxu0 %v9442
    %9757 = vmatpush.bf16.msra.mxu0 %v9440
    %9758 = vmatpush.bf16.msra.mxu0 %v9438
    %9759 = vmatpush.bf16.msra.mxu0 %v9436
    %9760 = vmatpush.bf16.msra.mxu0 %v9434
    %9761 = vmatpush.bf16.msra.mxu0 %v9432
    %9762 = vmatpush.bf16.msra.mxu0 %v9430
    %9763 = vmatpush.bf16.msra.mxu0 %v9428
    %9764 = vmatmul.bf16.gmra.mxu0 %v8758
    %v9765 = vpop.f32.mrf.mxu0
    %v9766 = vadd.f32 %v9753, %v9765
    %v9767 = vpop.f32.mrf.mxu0
    %9768 = vdwg.mxu0
    %9769 = vmatpush.bf16.msra.mxu0 %v9458
    %9770 = vmatpush.bf16.msra.mxu0 %v9456
    %9771 = vmatpush.bf16.msra.mxu0 %v9454
    %9772 = vmatpush.bf16.msra.mxu0 %v9452
    %9773 = vmatpush.bf16.msra.mxu0 %v9450
    %9774 = vmatpush.bf16.msra.mxu0 %v9448
    %9775 = vmatpush.bf16.msra.mxu0 %v9446
    %9776 = vmatpush.bf16.msra.mxu0 %v9444
    %9777 = vmatmul.bf16.gmra.mxu0 %v8759
    %v9778 = vpop.f32.mrf.mxu0
    %v9779 = vadd.f32 %v9766, %v9778
    %v9780 = vpop.f32.mrf.mxu0
    %9781 = vdwg.mxu0
    %9782 = vmatpush.bf16.msra.mxu0 %v9474
    %9783 = vmatpush.bf16.msra.mxu0 %v9472
    %9784 = vmatpush.bf16.msra.mxu0 %v9470
    %9785 = vmatpush.bf16.msra.mxu0 %v9468
    %9786 = vmatpush.bf16.msra.mxu0 %v9466
    %9787 = vmatpush.bf16.msra.mxu0 %v9464
    %9788 = vmatpush.bf16.msra.mxu0 %v9462
    %9789 = vmatpush.bf16.msra.mxu0 %v9460
    %9790 = vmatmul.bf16.gmra.mxu0 %v8760
    %v9791 = vpop.f32.mrf.mxu0
    %v9792 = vadd.f32 %v9779, %v9791
    %v9793 = vpop.f32.mrf.mxu0
    %9794 = vdwg.mxu0
    %9795 = vmatpush.bf16.msra.mxu0 %v9315
    %9796 = vmatpush.bf16.msra.mxu0 %v9313
    %9797 = vmatpush.bf16.msra.mxu0 %v9311
    %9798 = vmatpush.bf16.msra.mxu0 %v9309
    %9799 = vmatpush.bf16.msra.mxu0 %v9307
    %9800 = vmatpush.bf16.msra.mxu0 %v9305
    %9801 = vmatpush.bf16.msra.mxu0 %v9303
    %9802 = vmatpush.bf16.msra.mxu0 %v9301
    %9803 = vmatmul.bf16.gmra.mxu0 %v8748
    %v9804 = vpop.f32.mrf.mxu0
    %v9805 = vadd.f32 %v8743, %v9804
    %v9806 = vpop.f32.mrf.mxu0
    %9807 = vdwg.mxu0
    %9808 = vmatpush.bf16.msra.mxu0 %v9331
    %9809 = vmatpush.bf16.msra.mxu0 %v9329
    %9810 = vmatpush.bf16.msra.mxu0 %v9327
    %9811 = vmatpush.bf16.msra.mxu0 %v9325
    %9812 = vmatpush.bf16.msra.mxu0 %v9323
    %9813 = vmatpush.bf16.msra.mxu0 %v9321
    %9814 = vmatpush.bf16.msra.mxu0 %v9319
    %9815 = vmatpush.bf16.msra.mxu0 %v9317
    %9816 = vmatmul.bf16.gmra.mxu0 %v8749
    %v9817 = vpop.f32.mrf.mxu0
    %v9818 = vadd.f32 %v9805, %v9817
    %v9819 = vpop.f32.mrf.mxu0
    %9820 = vdwg.mxu0
    %9821 = vmatpush.bf16.msra.mxu0 %v9347
    %9822 = vmatpush.bf16.msra.mxu0 %v9345
    %9823 = vmatpush.bf16.msra.mxu0 %v9343
    %9824 = vmatpush.bf16.msra.mxu0 %v9341
    %9825 = vmatpush.bf16.msra.mxu0 %v9339
    %9826 = vmatpush.bf16.msra.mxu0 %v9337
    %9827 = vmatpush.bf16.msra.mxu0 %v9335
    %9828 = vmatpush.bf16.msra.mxu0 %v9333
    %9829 = vmatmul.bf16.gmra.mxu0 %v8750
    %v9830 = vpop.f32.mrf.mxu0
    %v9831 = vadd.f32 %v9818, %v9830
    %v9832 = vpop.f32.mrf.mxu0
    %9833 = vdwg.mxu0
    %9834 = vmatpush.bf16.msra.mxu0 %v9363
    %9835 = vmatpush.bf16.msra.mxu0 %v9361
    %9836 = vmatpush.bf16.msra.mxu0 %v9359
    %9837 = vmatpush.bf16.msra.mxu0 %v9357
    %9838 = vmatpush.bf16.msra.mxu0 %v9355
    %9839 = vmatpush.bf16.msra.mxu0 %v9353
    %9840 = vmatpush.bf16.msra.mxu0 %v9351
    %9841 = vmatpush.bf16.msra.mxu0 %v9349
    %9842 = vmatmul.bf16.gmra.mxu0 %v8751
    %v9843 = vpop.f32.mrf.mxu0
    %v9844 = vadd.f32 %v9831, %v9843
    %v9845 = vpop.f32.mrf.mxu0
    %9846 = vdwg.mxu0
    %9847 = vmatpush.bf16.msra.mxu0 %v9379
    %9848 = vmatpush.bf16.msra.mxu0 %v9377
    %9849 = vmatpush.bf16.msra.mxu0 %v9375
    %9850 = vmatpush.bf16.msra.mxu0 %v9373
    %9851 = vmatpush.bf16.msra.mxu0 %v9371
    %9852 = vmatpush.bf16.msra.mxu0 %v9369
    %9853 = vmatpush.bf16.msra.mxu0 %v9367
    %9854 = vmatpush.bf16.msra.mxu0 %v9365
    %9855 = vmatmul.bf16.gmra.mxu0 %v8752
    %v9856 = vpop.f32.mrf.mxu0
    %v9857 = vadd.f32 %v9844, %v9856
    %v9858 = vpop.f32.mrf.mxu0
    %9859 = vdwg.mxu0
    %9860 = vmatpush.bf16.msra.mxu0 %v9395
    %9861 = vmatpush.bf16.msra.mxu0 %v9393
    %9862 = vmatpush.bf16.msra.mxu0 %v9391
    %9863 = vmatpush.bf16.msra.mxu0 %v9389
    %9864 = vmatpush.bf16.msra.mxu0 %v9387
    %9865 = vmatpush.bf16.msra.mxu0 %v9385
    %9866 = vmatpush.bf16.msra.mxu0 %v9383
    %9867 = vmatpush.bf16.msra.mxu0 %v9381
    %9868 = vmatmul.bf16.gmra.mxu0 %v8753
    %v9869 = vpop.f32.mrf.mxu0
    %v9870 = vadd.f32 %v9857, %v9869
    %v9871 = vpop.f32.mrf.mxu0
    %9872 = vdwg.mxu0
    %9873 = vmatpush.bf16.msra.mxu0 %v9411
    %9874 = vmatpush.bf16.msra.mxu0 %v9409
    %9875 = vmatpush.bf16.msra.mxu0 %v9407
    %9876 = vmatpush.bf16.msra.mxu0 %v9405
    %9877 = vmatpush.bf16.msra.mxu0 %v9403
    %9878 = vmatpush.bf16.msra.mxu0 %v9401
    %9879 = vmatpush.bf16.msra.mxu0 %v9399
    %9880 = vmatpush.bf16.msra.mxu0 %v9397
    %9881 = vmatmul.bf16.gmra.mxu0 %v8754
    %v9882 = vpop.f32.mrf.mxu0
    %v9883 = vadd.f32 %v9870, %v9882
    %v9884 = vpop.f32.mrf.mxu0
    %9885 = vdwg.mxu0
    %9886 = vmatpush.bf16.msra.mxu0 %v9427
    %9887 = vmatpush.bf16.msra.mxu0 %v9425
    %9888 = vmatpush.bf16.msra.mxu0 %v9423
    %9889 = vmatpush.bf16.msra.mxu0 %v9421
    %9890 = vmatpush.bf16.msra.mxu0 %v9419
    %9891 = vmatpush.bf16.msra.mxu0 %v9417
    %9892 = vmatpush.bf16.msra.mxu0 %v9415
    %9893 = vmatpush.bf16.msra.mxu0 %v9413
    %9894 = vmatmul.bf16.gmra.mxu0 %v8755
    %v9895 = vpop.f32.mrf.mxu0
    %v9896 = vadd.f32 %v9883, %v9895
    %v9897 = vpop.f32.mrf.mxu0
    %9898 = vdwg.mxu0
    %9899 = vmatpush.bf16.msra.mxu0 %v9443
    %9900 = vmatpush.bf16.msra.mxu0 %v9441
    %9901 = vmatpush.bf16.msra.mxu0 %v9439
    %9902 = vmatpush.bf16.msra.mxu0 %v9437
    %9903 = vmatpush.bf16.msra.mxu0 %v9435
    %9904 = vmatpush.bf16.msra.mxu0 %v9433
    %9905 = vmatpush.bf16.msra.mxu0 %v9431
    %9906 = vmatpush.bf16.msra.mxu0 %v9429
    %9907 = vmatmul.bf16.gmra.mxu0 %v8758
    %v9908 = vpop.f32.mrf.mxu0
    %v9909 = vadd.f32 %v9896, %v9908
    %v9910 = vpop.f32.mrf.mxu0
    %9911 = vdwg.mxu0
    %9912 = vmatpush.bf16.msra.mxu0 %v9459
    %9913 = vmatpush.bf16.msra.mxu0 %v9457
    %9914 = vmatpush.bf16.msra.mxu0 %v9455
    %9915 = vmatpush.bf16.msra.mxu0 %v9453
    %9916 = vmatpush.bf16.msra.mxu0 %v9451
    %9917 = vmatpush.bf16.msra.mxu0 %v9449
    %9918 = vmatpush.bf16.msra.mxu0 %v9447
    %9919 = vmatpush.bf16.msra.mxu0 %v9445
    %9920 = vmatmul.bf16.gmra.mxu0 %v8759
    %v9921 = vpop.f32.mrf.mxu0
    %v9922 = vadd.f32 %v9909, %v9921
    %v9923 = vpop.f32.mrf.mxu0
    %9924 = vdwg.mxu0
    %9925 = vmatpush.bf16.msra.mxu0 %v9475
    %9926 = vmatpush.bf16.msra.mxu0 %v9473
    %9927 = vmatpush.bf16.msra.mxu0 %v9471
    %9928 = vmatpush.bf16.msra.mxu0 %v9469
    %9929 = vmatpush.bf16.msra.mxu0 %v9467
    %9930 = vmatpush.bf16.msra.mxu0 %v9465
    %9931 = vmatpush.bf16.msra.mxu0 %v9463
    %9932 = vmatpush.bf16.msra.mxu0 %v9461
    %9933 = vmatmul.bf16.gmra.mxu0 %v8760
    %v9934 = vpop.f32.mrf.mxu0
    %v9935 = vadd.f32 %v9922, %v9934
    %v9936 = vpop.f32.mrf.mxu0
    %9937 = vdwg.mxu0
    %s9938 = sshll.u32 %s7193, 4
    %9939 = dma.done %s183, %s9938
    %v9940 = vld [vmem:[#allocation4 + $0x16] sm:$0xff]
    %v9941 = vld [vmem:[#allocation4 + $0x1e] sm:$0x7]
    %v9942 = vld [vmem:[#allocation2 + $0xb00] sm:$0xff]
    %v9943 = vld [vmem:[#allocation2 + $0xb08] sm:$0xff]
    %v9944 = vld [vmem:[#allocation2 + $0xb10] sm:$0xff]
    %v9945 = vld [vmem:[#allocation2 + $0xb18] sm:$0xff]
    %v9946 = vld [vmem:[#allocation2 + $0xb20] sm:$0xff]
    %v9947 = vld [vmem:[#allocation2 + $0xb28] sm:$0xff]
    %v9948 = vld [vmem:[#allocation2 + $0xb30] sm:$0xff]
    %v9949 = vld [vmem:[#allocation2 + $0xb38] sm:$0xff]
    %v9950 = vld [vmem:[#allocation2 + $0xb40] sm:$0xff]
    %v9951 = vld [vmem:[#allocation2 + $0xb48] sm:$0xff]
    %v9952 = vld [vmem:[#allocation2 + $0xb50] sm:$0xff]
    %v9953 = vld [vmem:[#allocation2 + $0xb58] sm:$0xff]
    %v9954 = vld [vmem:[#allocation2 + $0xb60] sm:$0xff]
    %v9955 = vld [vmem:[#allocation2 + $0xb68] sm:$0xff]
    %v9956 = vld [vmem:[#allocation2 + $0xb70] sm:$0xff]
    %v9957 = vld [vmem:[#allocation2 + $0xb78] sm:$0xff]
    %v9958 = vld [vmem:[#allocation2 + $0xb80] sm:$0xff]
    %v9959 = vld [vmem:[#allocation2 + $0xb88] sm:$0xff]
    %v9960 = vld [vmem:[#allocation2 + $0xb90] sm:$0xff]
    %v9961 = vld [vmem:[#allocation2 + $0xb98] sm:$0xff]
    %v9962 = vld [vmem:[#allocation2 + $0xba0] sm:$0xff]
    %v9963 = vld [vmem:[#allocation2 + $0xba8] sm:$0xff]
    %v9964 = vld [vmem:[#allocation2 + $0xbb0] sm:$0xff]
    %v9965 = vld [vmem:[#allocation2 + $0xbb8] sm:$0xff]
    %v9966 = vld [vmem:[#allocation2 + $0xbc0] sm:$0xff]
    %v9967 = vld [vmem:[#allocation2 + $0xbc8] sm:$0xff]
    %v9968 = vld [vmem:[#allocation2 + $0xbd0] sm:$0xff]
    %v9969 = vld [vmem:[#allocation2 + $0xbd8] sm:$0xff]
    %v9970 = vld [vmem:[#allocation2 + $0xbe0] sm:$0xff]
    %v9971 = vld [vmem:[#allocation2 + $0xbe8] sm:$0xff]
    %v9972 = vld [vmem:[#allocation2 + $0xbf0] sm:$0xff]
    %v9973 = vld [vmem:[#allocation2 + $0xbf8] sm:$0xff]
    %v9974 = vld [vmem:[#allocation2 + $0xc00] sm:$0xff]
    %v9975 = vld [vmem:[#allocation2 + $0xc08] sm:$0xff]
    %v9976 = vld [vmem:[#allocation2 + $0xc10] sm:$0xff]
    %v9977 = vld [vmem:[#allocation2 + $0xc18] sm:$0xff]
    %v9978 = vld [vmem:[#allocation2 + $0xc20] sm:$0xff]
    %v9979 = vld [vmem:[#allocation2 + $0xc28] sm:$0xff]
    %v9980 = vld [vmem:[#allocation2 + $0xc30] sm:$0xff]
    %v9981 = vld [vmem:[#allocation2 + $0xc38] sm:$0xff]
    %v9982 = vld [vmem:[#allocation2 + $0xc40] sm:$0xff]
    %v9983 = vld [vmem:[#allocation2 + $0xc48] sm:$0xff]
    %v9984 = vld [vmem:[#allocation2 + $0xc50] sm:$0xff]
    %v9985 = vld [vmem:[#allocation2 + $0xc58] sm:$0xff]
    %v9986 = vld [vmem:[#allocation2 + $0xc60] sm:$0xff]
    %v9987 = vld [vmem:[#allocation2 + $0xc68] sm:$0xff]
    %v9988 = vld [vmem:[#allocation2 + $0xc70] sm:$0xff]
    %v9989 = vld [vmem:[#allocation2 + $0xc78] sm:$0xff]
    %v9990 = vld [vmem:[#allocation2 + $0xc80] sm:$0xff]
    %v9991 = vld [vmem:[#allocation2 + $0xc88] sm:$0xff]
    %v9992 = vld [vmem:[#allocation2 + $0xc90] sm:$0xff]
    %v9993 = vld [vmem:[#allocation2 + $0xc98] sm:$0xff]
    %v9994 = vld [vmem:[#allocation2 + $0xca0] sm:$0xff]
    %v9995 = vld [vmem:[#allocation2 + $0xca8] sm:$0xff]
    %v9996 = vld [vmem:[#allocation2 + $0xcb0] sm:$0xff]
    %v9997 = vld [vmem:[#allocation2 + $0xcb8] sm:$0xff]
    %v9998 = vld [vmem:[#allocation2 + $0xcc0] sm:$0xff]
    %v9999 = vld [vmem:[#allocation2 + $0xcc8] sm:$0xff]
    %v10000 = vld [vmem:[#allocation2 + $0xcd0] sm:$0xff]
    %v10001 = vld [vmem:[#allocation2 + $0xcd8] sm:$0xff]
    %v10002 = vld [vmem:[#allocation2 + $0xce0] sm:$0xff]
    %v10003 = vld [vmem:[#allocation2 + $0xce8] sm:$0xff]
    %v10004 = vld [vmem:[#allocation2 + $0xcf0] sm:$0xff]
    %v10005 = vld [vmem:[#allocation2 + $0xcf8] sm:$0xff]
    %v10006 = vld [vmem:[#allocation2 + $0xd00] sm:$0xff]
    %v10007 = vld [vmem:[#allocation2 + $0xd08] sm:$0xff]
    %v10008 = vld [vmem:[#allocation2 + $0xd10] sm:$0xff]
    %v10009 = vld [vmem:[#allocation2 + $0xd18] sm:$0xff]
    %v10010 = vld [vmem:[#allocation2 + $0xd20] sm:$0xff]
    %v10011 = vld [vmem:[#allocation2 + $0xd28] sm:$0xff]
    %v10012 = vld [vmem:[#allocation2 + $0xd30] sm:$0xff]
    %v10013 = vld [vmem:[#allocation2 + $0xd38] sm:$0xff]
    %v10014 = vld [vmem:[#allocation2 + $0xd40] sm:$0xff]
    %v10015 = vld [vmem:[#allocation2 + $0xd48] sm:$0xff]
    %v10016 = vld [vmem:[#allocation2 + $0xd50] sm:$0xff]
    %v10017 = vld [vmem:[#allocation2 + $0xd58] sm:$0xff]
    %v10018 = vld [vmem:[#allocation2 + $0xd60] sm:$0xff]
    %v10019 = vld [vmem:[#allocation2 + $0xd68] sm:$0xff]
    %v10020 = vld [vmem:[#allocation2 + $0xd70] sm:$0xff]
    %v10021 = vld [vmem:[#allocation2 + $0xd78] sm:$0xff]
    %v10022 = vld [vmem:[#allocation2 + $0xd80] sm:$0xff]
    %v10023 = vld [vmem:[#allocation2 + $0xd88] sm:$0xff]
    %v10024 = vld [vmem:[#allocation2 + $0xd90] sm:$0xff]
    %v10025 = vld [vmem:[#allocation2 + $0xd98] sm:$0xff]
    %v10026 = vld [vmem:[#allocation2 + $0xda0] sm:$0xff]
    %v10027 = vld [vmem:[#allocation2 + $0xda8] sm:$0xff]
    %v10028 = vld [vmem:[#allocation2 + $0xdb0] sm:$0xff]
    %v10029 = vld [vmem:[#allocation2 + $0xdb8] sm:$0xff]
    %v10030 = vld [vmem:[#allocation2 + $0xdc0] sm:$0xff]
    %v10031 = vld [vmem:[#allocation2 + $0xdc8] sm:$0xff]
    %v10032 = vld [vmem:[#allocation2 + $0xdd0] sm:$0xff]
    %v10033 = vld [vmem:[#allocation2 + $0xdd8] sm:$0xff]
    %v10034 = vld [vmem:[#allocation2 + $0xde0] sm:$0xff]
    %v10035 = vld [vmem:[#allocation2 + $0xde8] sm:$0xff]
    %v10036 = vld [vmem:[#allocation2 + $0xdf0] sm:$0xff]
    %v10037 = vld [vmem:[#allocation2 + $0xdf8] sm:$0xff]
    %v10038 = vld [vmem:[#allocation2 + $0xe00] sm:$0xff]
    %v10039 = vld [vmem:[#allocation2 + $0xe08] sm:$0xff]
    %v10040 = vld [vmem:[#allocation2 + $0xe10] sm:$0xff]
    %v10041 = vld [vmem:[#allocation2 + $0xe18] sm:$0xff]
    %v10042 = vld [vmem:[#allocation2 + $0xe20] sm:$0xff]
    %v10043 = vld [vmem:[#allocation2 + $0xe28] sm:$0xff]
    %v10044 = vld [vmem:[#allocation2 + $0xe30] sm:$0xff]
    %v10045 = vld [vmem:[#allocation2 + $0xe38] sm:$0xff]
    %v10046 = vld [vmem:[#allocation2 + $0xe40] sm:$0xff]
    %v10047 = vld [vmem:[#allocation2 + $0xe48] sm:$0xff]
    %v10048 = vld [vmem:[#allocation2 + $0xe50] sm:$0xff]
    %v10049 = vld [vmem:[#allocation2 + $0xe58] sm:$0xff]
    %v10050 = vld [vmem:[#allocation2 + $0xe60] sm:$0xff]
    %v10051 = vld [vmem:[#allocation2 + $0xe68] sm:$0xff]
    %v10052 = vld [vmem:[#allocation2 + $0xe70] sm:$0xff]
    %v10053 = vld [vmem:[#allocation2 + $0xe78] sm:$0xff]
    %v10054 = vld [vmem:[#allocation2 + $0xe80] sm:$0xff]
    %v10055 = vld [vmem:[#allocation2 + $0xe88] sm:$0xff]
    %v10056 = vld [vmem:[#allocation2 + $0xe90] sm:$0xff]
    %v10057 = vld [vmem:[#allocation2 + $0xe98] sm:$0xff]
    %v10058 = vld [vmem:[#allocation2 + $0xea0] sm:$0xff]
    %v10059 = vld [vmem:[#allocation2 + $0xea8] sm:$0xff]
    %v10060 = vld [vmem:[#allocation2 + $0xeb0] sm:$0xff]
    %v10061 = vld [vmem:[#allocation2 + $0xeb8] sm:$0xff]
    %v10062 = vld [vmem:[#allocation2 + $0xec0] sm:$0xff]
    %v10063 = vld [vmem:[#allocation2 + $0xec8] sm:$0xff]
    %v10064 = vld [vmem:[#allocation2 + $0xed0] sm:$0xff]
    %v10065 = vld [vmem:[#allocation2 + $0xed8] sm:$0xff]
    %v10066 = vld [vmem:[#allocation2 + $0xee0] sm:$0xff]
    %v10067 = vld [vmem:[#allocation2 + $0xee8] sm:$0xff]
    %v10068 = vld [vmem:[#allocation2 + $0xef0] sm:$0xff]
    %v10069 = vld [vmem:[#allocation2 + $0xef8] sm:$0xff]
    %v10070 = vld [vmem:[#allocation2 + $0xf00] sm:$0xff]
    %v10071 = vld [vmem:[#allocation2 + $0xf08] sm:$0xff]
    %v10072 = vld [vmem:[#allocation2 + $0xf10] sm:$0xff]
    %v10073 = vld [vmem:[#allocation2 + $0xf18] sm:$0xff]
    %v10074 = vld [vmem:[#allocation2 + $0xf20] sm:$0xff]
    %v10075 = vld [vmem:[#allocation2 + $0xf28] sm:$0xff]
    %v10076 = vld [vmem:[#allocation2 + $0xf30] sm:$0xff]
    %v10077 = vld [vmem:[#allocation2 + $0xf38] sm:$0xff]
    %v10078 = vld [vmem:[#allocation2 + $0xf40] sm:$0xff]
    %v10079 = vld [vmem:[#allocation2 + $0xf48] sm:$0xff]
    %v10080 = vld [vmem:[#allocation2 + $0xf50] sm:$0xff]
    %v10081 = vld [vmem:[#allocation2 + $0xf58] sm:$0xff]
    %v10082 = vld [vmem:[#allocation2 + $0xf60] sm:$0xff]
    %v10083 = vld [vmem:[#allocation2 + $0xf68] sm:$0xff]
    %v10084 = vld [vmem:[#allocation2 + $0xf70] sm:$0xff]
    %v10085 = vld [vmem:[#allocation2 + $0xf78] sm:$0xff]
    %v10086 = vld [vmem:[#allocation2 + $0xf80] sm:$0xff]
    %v10087 = vld [vmem:[#allocation2 + $0xf88] sm:$0xff]
    %v10088 = vld [vmem:[#allocation2 + $0xf90] sm:$0xff]
    %v10089 = vld [vmem:[#allocation2 + $0xf98] sm:$0xff]
    %v10090 = vld [vmem:[#allocation2 + $0xfa0] sm:$0xff]
    %v10091 = vld [vmem:[#allocation2 + $0xfa8] sm:$0xff]
    %v10092 = vld [vmem:[#allocation2 + $0xfb0] sm:$0xff]
    %v10093 = vld [vmem:[#allocation2 + $0xfb8] sm:$0xff]
    %v10094 = vld [vmem:[#allocation2 + $0xfc0] sm:$0xff]
    %v10095 = vld [vmem:[#allocation2 + $0xfc8] sm:$0xff]
    %v10096 = vld [vmem:[#allocation2 + $0xfd0] sm:$0xff]
    %v10097 = vld [vmem:[#allocation2 + $0xfd8] sm:$0xff]
    %v10098 = vld [vmem:[#allocation2 + $0xfe0] sm:$0xff]
    %v10099 = vld [vmem:[#allocation2 + $0xfe8] sm:$0xff]
    %v10100 = vld [vmem:[#allocation2 + $0xff0] sm:$0xff]
    %v10101 = vld [vmem:[#allocation2 + $0xff8] sm:$0xff]
    %v10102 = vld [vmem:[#allocation2 + $0x1000] sm:$0xff]
    %v10103 = vld [vmem:[#allocation2 + $0x1008] sm:$0xff]
    %v10104 = vld [vmem:[#allocation2 + $0x1010] sm:$0xff]
    %v10105 = vld [vmem:[#allocation2 + $0x1018] sm:$0xff]
    %v10106 = vld [vmem:[#allocation2 + $0x1020] sm:$0xff]
    %v10107 = vld [vmem:[#allocation2 + $0x1028] sm:$0xff]
    %v10108 = vld [vmem:[#allocation2 + $0x1030] sm:$0xff]
    %v10109 = vld [vmem:[#allocation2 + $0x1038] sm:$0xff]
    %v10110 = vld [vmem:[#allocation2 + $0x1040] sm:$0xff]
    %v10111 = vld [vmem:[#allocation2 + $0x1048] sm:$0xff]
    %v10112 = vld [vmem:[#allocation2 + $0x1050] sm:$0xff]
    %v10113 = vld [vmem:[#allocation2 + $0x1058] sm:$0xff]
    %v10114 = vld [vmem:[#allocation2 + $0x1060] sm:$0xff]
    %v10115 = vld [vmem:[#allocation2 + $0x1068] sm:$0xff]
    %v10116 = vld [vmem:[#allocation2 + $0x1070] sm:$0xff]
    %v10117 = vld [vmem:[#allocation2 + $0x1078] sm:$0xff]
    %10119 = vst [vmem:[#allocation1] ss:$9 sm:$0xff] %v9940
    %v10120 = vld [vmem:[#allocation1] sm:$0xff]
    %v10121 = vld [vmem:[#allocation1 + $0x9] sm:$0xff]
    %v10122 = vld [vmem:[#allocation1 + $0x12] sm:$0xff]
    %v10123 = vld [vmem:[#allocation1 + $0x1b] sm:$0xff]
    %v10124 = vld [vmem:[#allocation1 + $0x24] sm:$0xff]
    %v10125 = vld [vmem:[#allocation1 + $0x2d] sm:$0xff]
    %v10126 = vld [vmem:[#allocation1 + $0x36] sm:$0xff]
    %v10127 = vld [vmem:[#allocation1 + $0x3f] sm:$0xff]
    %10129 = vst [vmem:[#allocation1] ss:$9 sm:$0xff] %v9941
    %v10130 = vld [vmem:[#allocation1] sm:$0xff]
    %v10131 = vld [vmem:[#allocation1 + $0x9] sm:$0xff]
    %v10132 = vld [vmem:[#allocation1 + $0x12] sm:$0xff]
    %v10320 = vunpack.c.l.b16 %v9942
    %v10321 = vunpack.c.h.b16 %v9942
    %v10322 = vunpack.c.l.b16 %v9943
    %v10323 = vunpack.c.h.b16 %v9943
    %v10324 = vunpack.c.l.b16 %v9944
    %v10325 = vunpack.c.h.b16 %v9944
    %v10326 = vunpack.c.l.b16 %v9945
    %v10327 = vunpack.c.h.b16 %v9945
    %v10328 = vunpack.c.l.b16 %v9946
    %v10329 = vunpack.c.h.b16 %v9946
    %v10330 = vunpack.c.l.b16 %v9947
    %v10331 = vunpack.c.h.b16 %v9947
    %v10332 = vunpack.c.l.b16 %v9948
    %v10333 = vunpack.c.h.b16 %v9948
    %v10334 = vunpack.c.l.b16 %v9949
    %v10335 = vunpack.c.h.b16 %v9949
    %v10336 = vunpack.c.l.b16 %v9950
    %v10337 = vunpack.c.h.b16 %v9950
    %v10338 = vunpack.c.l.b16 %v9951
    %v10339 = vunpack.c.h.b16 %v9951
    %v10340 = vunpack.c.l.b16 %v9952
    %v10341 = vunpack.c.h.b16 %v9952
    %v10342 = vunpack.c.l.b16 %v9953
    %v10343 = vunpack.c.h.b16 %v9953
    %v10344 = vunpack.c.l.b16 %v9954
    %v10345 = vunpack.c.h.b16 %v9954
    %v10346 = vunpack.c.l.b16 %v9955
    %v10347 = vunpack.c.h.b16 %v9955
    %v10348 = vunpack.c.l.b16 %v9956
    %v10349 = vunpack.c.h.b16 %v9956
    %v10350 = vunpack.c.l.b16 %v9957
    %v10351 = vunpack.c.h.b16 %v9957
    %v10352 = vunpack.c.l.b16 %v9958
    %v10353 = vunpack.c.h.b16 %v9958
    %v10354 = vunpack.c.l.b16 %v9959
    %v10355 = vunpack.c.h.b16 %v9959
    %v10356 = vunpack.c.l.b16 %v9960
    %v10357 = vunpack.c.h.b16 %v9960
    %v10358 = vunpack.c.l.b16 %v9961
    %v10359 = vunpack.c.h.b16 %v9961
    %v10360 = vunpack.c.l.b16 %v9962
    %v10361 = vunpack.c.h.b16 %v9962
    %v10362 = vunpack.c.l.b16 %v9963
    %v10363 = vunpack.c.h.b16 %v9963
    %v10364 = vunpack.c.l.b16 %v9964
    %v10365 = vunpack.c.h.b16 %v9964
    %v10366 = vunpack.c.l.b16 %v9965
    %v10367 = vunpack.c.h.b16 %v9965
    %v10368 = vunpack.c.l.b16 %v9966
    %v10369 = vunpack.c.h.b16 %v9966
    %v10370 = vunpack.c.l.b16 %v9967
    %v10371 = vunpack.c.h.b16 %v9967
    %v10372 = vunpack.c.l.b16 %v9968
    %v10373 = vunpack.c.h.b16 %v9968
    %v10374 = vunpack.c.l.b16 %v9969
    %v10375 = vunpack.c.h.b16 %v9969
    %v10376 = vunpack.c.l.b16 %v9970
    %v10377 = vunpack.c.h.b16 %v9970
    %v10378 = vunpack.c.l.b16 %v9971
    %v10379 = vunpack.c.h.b16 %v9971
    %v10380 = vunpack.c.l.b16 %v9972
    %v10381 = vunpack.c.h.b16 %v9972
    %v10382 = vunpack.c.l.b16 %v9973
    %v10383 = vunpack.c.h.b16 %v9973
    %v10384 = vunpack.c.l.b16 %v9974
    %v10385 = vunpack.c.h.b16 %v9974
    %v10386 = vunpack.c.l.b16 %v9975
    %v10387 = vunpack.c.h.b16 %v9975
    %v10388 = vunpack.c.l.b16 %v9976
    %v10389 = vunpack.c.h.b16 %v9976
    %v10390 = vunpack.c.l.b16 %v9977
    %v10391 = vunpack.c.h.b16 %v9977
    %v10392 = vunpack.c.l.b16 %v9978
    %v10393 = vunpack.c.h.b16 %v9978
    %v10394 = vunpack.c.l.b16 %v9979
    %v10395 = vunpack.c.h.b16 %v9979
    %v10396 = vunpack.c.l.b16 %v9980
    %v10397 = vunpack.c.h.b16 %v9980
    %v10398 = vunpack.c.l.b16 %v9981
    %v10399 = vunpack.c.h.b16 %v9981
    %v10400 = vunpack.c.l.b16 %v9982
    %v10401 = vunpack.c.h.b16 %v9982
    %v10402 = vunpack.c.l.b16 %v9983
    %v10403 = vunpack.c.h.b16 %v9983
    %v10404 = vunpack.c.l.b16 %v9984
    %v10405 = vunpack.c.h.b16 %v9984
    %v10406 = vunpack.c.l.b16 %v9985
    %v10407 = vunpack.c.h.b16 %v9985
    %v10408 = vunpack.c.l.b16 %v9986
    %v10409 = vunpack.c.h.b16 %v9986
    %v10410 = vunpack.c.l.b16 %v9987
    %v10411 = vunpack.c.h.b16 %v9987
    %v10412 = vunpack.c.l.b16 %v9988
    %v10413 = vunpack.c.h.b16 %v9988
    %v10414 = vunpack.c.l.b16 %v9989
    %v10415 = vunpack.c.h.b16 %v9989
    %v10416 = vunpack.c.l.b16 %v9990
    %v10417 = vunpack.c.h.b16 %v9990
    %v10418 = vunpack.c.l.b16 %v9991
    %v10419 = vunpack.c.h.b16 %v9991
    %v10420 = vunpack.c.l.b16 %v9992
    %v10421 = vunpack.c.h.b16 %v9992
    %v10422 = vunpack.c.l.b16 %v9993
    %v10423 = vunpack.c.h.b16 %v9993
    %v10424 = vunpack.c.l.b16 %v9994
    %v10425 = vunpack.c.h.b16 %v9994
    %v10426 = vunpack.c.l.b16 %v9995
    %v10427 = vunpack.c.h.b16 %v9995
    %v10428 = vunpack.c.l.b16 %v9996
    %v10429 = vunpack.c.h.b16 %v9996
    %v10430 = vunpack.c.l.b16 %v9997
    %v10431 = vunpack.c.h.b16 %v9997
    %v10432 = vunpack.c.l.b16 %v9998
    %v10433 = vunpack.c.h.b16 %v9998
    %v10434 = vunpack.c.l.b16 %v9999
    %v10435 = vunpack.c.h.b16 %v9999
    %v10436 = vunpack.c.l.b16 %v10000
    %v10437 = vunpack.c.h.b16 %v10000
    %v10438 = vunpack.c.l.b16 %v10001
    %v10439 = vunpack.c.h.b16 %v10001
    %v10440 = vunpack.c.l.b16 %v10002
    %v10441 = vunpack.c.h.b16 %v10002
    %v10442 = vunpack.c.l.b16 %v10003
    %v10443 = vunpack.c.h.b16 %v10003
    %v10444 = vunpack.c.l.b16 %v10004
    %v10445 = vunpack.c.h.b16 %v10004
    %v10446 = vunpack.c.l.b16 %v10005
    %v10447 = vunpack.c.h.b16 %v10005
    %v10448 = vunpack.c.l.b16 %v10006
    %v10449 = vunpack.c.h.b16 %v10006
    %v10450 = vunpack.c.l.b16 %v10007
    %v10451 = vunpack.c.h.b16 %v10007
    %v10452 = vunpack.c.l.b16 %v10008
    %v10453 = vunpack.c.h.b16 %v10008
    %v10454 = vunpack.c.l.b16 %v10009
    %v10455 = vunpack.c.h.b16 %v10009
    %v10456 = vunpack.c.l.b16 %v10010
    %v10457 = vunpack.c.h.b16 %v10010
    %v10458 = vunpack.c.l.b16 %v10011
    %v10459 = vunpack.c.h.b16 %v10011
    %v10460 = vunpack.c.l.b16 %v10012
    %v10461 = vunpack.c.h.b16 %v10012
    %v10462 = vunpack.c.l.b16 %v10013
    %v10463 = vunpack.c.h.b16 %v10013
    %v10464 = vunpack.c.l.b16 %v10014
    %v10465 = vunpack.c.h.b16 %v10014
    %v10466 = vunpack.c.l.b16 %v10015
    %v10467 = vunpack.c.h.b16 %v10015
    %v10468 = vunpack.c.l.b16 %v10016
    %v10469 = vunpack.c.h.b16 %v10016
    %v10470 = vunpack.c.l.b16 %v10017
    %v10471 = vunpack.c.h.b16 %v10017
    %v10472 = vunpack.c.l.b16 %v10018
    %v10473 = vunpack.c.h.b16 %v10018
    %v10474 = vunpack.c.l.b16 %v10019
    %v10475 = vunpack.c.h.b16 %v10019
    %v10476 = vunpack.c.l.b16 %v10020
    %v10477 = vunpack.c.h.b16 %v10020
    %v10478 = vunpack.c.l.b16 %v10021
    %v10479 = vunpack.c.h.b16 %v10021
    %v10480 = vunpack.c.l.b16 %v10022
    %v10481 = vunpack.c.h.b16 %v10022
    %v10482 = vunpack.c.l.b16 %v10023
    %v10483 = vunpack.c.h.b16 %v10023
    %v10484 = vunpack.c.l.b16 %v10024
    %v10485 = vunpack.c.h.b16 %v10024
    %v10486 = vunpack.c.l.b16 %v10025
    %v10487 = vunpack.c.h.b16 %v10025
    %v10488 = vunpack.c.l.b16 %v10026
    %v10489 = vunpack.c.h.b16 %v10026
    %v10490 = vunpack.c.l.b16 %v10027
    %v10491 = vunpack.c.h.b16 %v10027
    %v10492 = vunpack.c.l.b16 %v10028
    %v10493 = vunpack.c.h.b16 %v10028
    %v10494 = vunpack.c.l.b16 %v10029
    %v10495 = vunpack.c.h.b16 %v10029
    %v10496 = vunpack.c.l.b16 %v10030
    %v10497 = vunpack.c.h.b16 %v10030
    %v10498 = vunpack.c.l.b16 %v10031
    %v10499 = vunpack.c.h.b16 %v10031
    %v10500 = vunpack.c.l.b16 %v10032
    %v10501 = vunpack.c.h.b16 %v10032
    %v10502 = vunpack.c.l.b16 %v10033
    %v10503 = vunpack.c.h.b16 %v10033
    %v10504 = vunpack.c.l.b16 %v10034
    %v10505 = vunpack.c.h.b16 %v10034
    %v10506 = vunpack.c.l.b16 %v10035
    %v10507 = vunpack.c.h.b16 %v10035
    %v10508 = vunpack.c.l.b16 %v10036
    %v10509 = vunpack.c.h.b16 %v10036
    %v10510 = vunpack.c.l.b16 %v10037
    %v10511 = vunpack.c.h.b16 %v10037
    %v10512 = vunpack.c.l.b16 %v10038
    %v10513 = vunpack.c.h.b16 %v10038
    %v10514 = vunpack.c.l.b16 %v10039
    %v10515 = vunpack.c.h.b16 %v10039
    %v10516 = vunpack.c.l.b16 %v10040
    %v10517 = vunpack.c.h.b16 %v10040
    %v10518 = vunpack.c.l.b16 %v10041
    %v10519 = vunpack.c.h.b16 %v10041
    %v10520 = vunpack.c.l.b16 %v10042
    %v10521 = vunpack.c.h.b16 %v10042
    %v10522 = vunpack.c.l.b16 %v10043
    %v10523 = vunpack.c.h.b16 %v10043
    %v10524 = vunpack.c.l.b16 %v10044
    %v10525 = vunpack.c.h.b16 %v10044
    %v10526 = vunpack.c.l.b16 %v10045
    %v10527 = vunpack.c.h.b16 %v10045
    %v10528 = vunpack.c.l.b16 %v10046
    %v10529 = vunpack.c.h.b16 %v10046
    %v10530 = vunpack.c.l.b16 %v10047
    %v10531 = vunpack.c.h.b16 %v10047
    %v10532 = vunpack.c.l.b16 %v10048
    %v10533 = vunpack.c.h.b16 %v10048
    %v10534 = vunpack.c.l.b16 %v10049
    %v10535 = vunpack.c.h.b16 %v10049
    %v10536 = vunpack.c.l.b16 %v10050
    %v10537 = vunpack.c.h.b16 %v10050
    %v10538 = vunpack.c.l.b16 %v10051
    %v10539 = vunpack.c.h.b16 %v10051
    %v10540 = vunpack.c.l.b16 %v10052
    %v10541 = vunpack.c.h.b16 %v10052
    %v10542 = vunpack.c.l.b16 %v10053
    %v10543 = vunpack.c.h.b16 %v10053
    %v10544 = vunpack.c.l.b16 %v10054
    %v10545 = vunpack.c.h.b16 %v10054
    %v10546 = vunpack.c.l.b16 %v10055
    %v10547 = vunpack.c.h.b16 %v10055
    %v10548 = vunpack.c.l.b16 %v10056
    %v10549 = vunpack.c.h.b16 %v10056
    %v10550 = vunpack.c.l.b16 %v10057
    %v10551 = vunpack.c.h.b16 %v10057
    %v10552 = vunpack.c.l.b16 %v10058
    %v10553 = vunpack.c.h.b16 %v10058
    %v10554 = vunpack.c.l.b16 %v10059
    %v10555 = vunpack.c.h.b16 %v10059
    %v10556 = vunpack.c.l.b16 %v10060
    %v10557 = vunpack.c.h.b16 %v10060
    %v10558 = vunpack.c.l.b16 %v10061
    %v10559 = vunpack.c.h.b16 %v10061
    %v10560 = vunpack.c.l.b16 %v10062
    %v10561 = vunpack.c.h.b16 %v10062
    %v10562 = vunpack.c.l.b16 %v10063
    %v10563 = vunpack.c.h.b16 %v10063
    %v10564 = vunpack.c.l.b16 %v10064
    %v10565 = vunpack.c.h.b16 %v10064
    %v10566 = vunpack.c.l.b16 %v10065
    %v10567 = vunpack.c.h.b16 %v10065
    %v10568 = vunpack.c.l.b16 %v10066
    %v10569 = vunpack.c.h.b16 %v10066
    %v10570 = vunpack.c.l.b16 %v10067
    %v10571 = vunpack.c.h.b16 %v10067
    %v10572 = vunpack.c.l.b16 %v10068
    %v10573 = vunpack.c.h.b16 %v10068
    %v10574 = vunpack.c.l.b16 %v10069
    %v10575 = vunpack.c.h.b16 %v10069
    %v10576 = vunpack.c.l.b16 %v10070
    %v10577 = vunpack.c.h.b16 %v10070
    %v10578 = vunpack.c.l.b16 %v10071
    %v10579 = vunpack.c.h.b16 %v10071
    %v10580 = vunpack.c.l.b16 %v10072
    %v10581 = vunpack.c.h.b16 %v10072
    %v10582 = vunpack.c.l.b16 %v10073
    %v10583 = vunpack.c.h.b16 %v10073
    %v10584 = vunpack.c.l.b16 %v10074
    %v10585 = vunpack.c.h.b16 %v10074
    %v10586 = vunpack.c.l.b16 %v10075
    %v10587 = vunpack.c.h.b16 %v10075
    %v10588 = vunpack.c.l.b16 %v10076
    %v10589 = vunpack.c.h.b16 %v10076
    %v10590 = vunpack.c.l.b16 %v10077
    %v10591 = vunpack.c.h.b16 %v10077
    %v10592 = vunpack.c.l.b16 %v10078
    %v10593 = vunpack.c.h.b16 %v10078
    %v10594 = vunpack.c.l.b16 %v10079
    %v10595 = vunpack.c.h.b16 %v10079
    %v10596 = vunpack.c.l.b16 %v10080
    %v10597 = vunpack.c.h.b16 %v10080
    %v10598 = vunpack.c.l.b16 %v10081
    %v10599 = vunpack.c.h.b16 %v10081
    %v10600 = vunpack.c.l.b16 %v10082
    %v10601 = vunpack.c.h.b16 %v10082
    %v10602 = vunpack.c.l.b16 %v10083
    %v10603 = vunpack.c.h.b16 %v10083
    %v10604 = vunpack.c.l.b16 %v10084
    %v10605 = vunpack.c.h.b16 %v10084
    %v10606 = vunpack.c.l.b16 %v10085
    %v10607 = vunpack.c.h.b16 %v10085
    %v10608 = vunpack.c.l.b16 %v10086
    %v10609 = vunpack.c.h.b16 %v10086
    %v10610 = vunpack.c.l.b16 %v10087
    %v10611 = vunpack.c.h.b16 %v10087
    %v10612 = vunpack.c.l.b16 %v10088
    %v10613 = vunpack.c.h.b16 %v10088
    %v10614 = vunpack.c.l.b16 %v10089
    %v10615 = vunpack.c.h.b16 %v10089
    %v10616 = vunpack.c.l.b16 %v10090
    %v10617 = vunpack.c.h.b16 %v10090
    %v10618 = vunpack.c.l.b16 %v10091
    %v10619 = vunpack.c.h.b16 %v10091
    %v10620 = vunpack.c.l.b16 %v10092
    %v10621 = vunpack.c.h.b16 %v10092
    %v10622 = vunpack.c.l.b16 %v10093
    %v10623 = vunpack.c.h.b16 %v10093
    %v10624 = vunpack.c.l.b16 %v10094
    %v10625 = vunpack.c.h.b16 %v10094
    %v10626 = vunpack.c.l.b16 %v10095
    %v10627 = vunpack.c.h.b16 %v10095
    %v10628 = vunpack.c.l.b16 %v10096
    %v10629 = vunpack.c.h.b16 %v10096
    %v10630 = vunpack.c.l.b16 %v10097
    %v10631 = vunpack.c.h.b16 %v10097
    %v10632 = vunpack.c.l.b16 %v10098
    %v10633 = vunpack.c.h.b16 %v10098
    %v10634 = vunpack.c.l.b16 %v10099
    %v10635 = vunpack.c.h.b16 %v10099
    %v10636 = vunpack.c.l.b16 %v10100
    %v10637 = vunpack.c.h.b16 %v10100
    %v10638 = vunpack.c.l.b16 %v10101
    %v10639 = vunpack.c.h.b16 %v10101
    %v10640 = vunpack.c.l.b16 %v10102
    %v10641 = vunpack.c.h.b16 %v10102
    %v10642 = vunpack.c.l.b16 %v10103
    %v10643 = vunpack.c.h.b16 %v10103
    %v10644 = vunpack.c.l.b16 %v10104
    %v10645 = vunpack.c.h.b16 %v10104
    %v10646 = vunpack.c.l.b16 %v10105
    %v10647 = vunpack.c.h.b16 %v10105
    %v10648 = vunpack.c.l.b16 %v10106
    %v10649 = vunpack.c.h.b16 %v10106
    %v10650 = vunpack.c.l.b16 %v10107
    %v10651 = vunpack.c.h.b16 %v10107
    %v10652 = vunpack.c.l.b16 %v10108
    %v10653 = vunpack.c.h.b16 %v10108
    %v10654 = vunpack.c.l.b16 %v10109
    %v10655 = vunpack.c.h.b16 %v10109
    %v10656 = vunpack.c.l.b16 %v10110
    %v10657 = vunpack.c.h.b16 %v10110
    %v10658 = vunpack.c.l.b16 %v10111
    %v10659 = vunpack.c.h.b16 %v10111
    %v10660 = vunpack.c.l.b16 %v10112
    %v10661 = vunpack.c.h.b16 %v10112
    %v10662 = vunpack.c.l.b16 %v10113
    %v10663 = vunpack.c.h.b16 %v10113
    %v10664 = vunpack.c.l.b16 %v10114
    %v10665 = vunpack.c.h.b16 %v10114
    %v10666 = vunpack.c.l.b16 %v10115
    %v10667 = vunpack.c.h.b16 %v10115
    %v10668 = vunpack.c.l.b16 %v10116
    %v10669 = vunpack.c.h.b16 %v10116
    %v10670 = vunpack.c.l.b16 %v10117
    %v10671 = vunpack.c.h.b16 %v10117
    %v10672 = vpack.c.b16 %v10322, %v10320
    %v10673 = vpack.c.b16 %v10323, %v10321
    %v10674 = vpack.c.b16 %v10326, %v10324
    %v10675 = vpack.c.b16 %v10327, %v10325
    %v10676 = vpack.c.b16 %v10330, %v10328
    %v10677 = vpack.c.b16 %v10331, %v10329
    %v10678 = vpack.c.b16 %v10334, %v10332
    %v10679 = vpack.c.b16 %v10335, %v10333
    %v10680 = vpack.c.b16 %v10338, %v10336
    %v10681 = vpack.c.b16 %v10339, %v10337
    %v10682 = vpack.c.b16 %v10342, %v10340
    %v10683 = vpack.c.b16 %v10343, %v10341
    %v10684 = vpack.c.b16 %v10346, %v10344
    %v10685 = vpack.c.b16 %v10347, %v10345
    %v10686 = vpack.c.b16 %v10350, %v10348
    %v10687 = vpack.c.b16 %v10351, %v10349
    %v10688 = vpack.c.b16 %v10354, %v10352
    %v10689 = vpack.c.b16 %v10355, %v10353
    %v10690 = vpack.c.b16 %v10358, %v10356
    %v10691 = vpack.c.b16 %v10359, %v10357
    %v10692 = vpack.c.b16 %v10362, %v10360
    %v10693 = vpack.c.b16 %v10363, %v10361
    %v10694 = vpack.c.b16 %v10366, %v10364
    %v10695 = vpack.c.b16 %v10367, %v10365
    %v10696 = vpack.c.b16 %v10370, %v10368
    %v10697 = vpack.c.b16 %v10371, %v10369
    %v10698 = vpack.c.b16 %v10374, %v10372
    %v10699 = vpack.c.b16 %v10375, %v10373
    %v10700 = vpack.c.b16 %v10378, %v10376
    %v10701 = vpack.c.b16 %v10379, %v10377
    %v10702 = vpack.c.b16 %v10382, %v10380
    %v10703 = vpack.c.b16 %v10383, %v10381
    %v10704 = vpack.c.b16 %v10386, %v10384
    %v10705 = vpack.c.b16 %v10387, %v10385
    %v10706 = vpack.c.b16 %v10390, %v10388
    %v10707 = vpack.c.b16 %v10391, %v10389
    %v10708 = vpack.c.b16 %v10394, %v10392
    %v10709 = vpack.c.b16 %v10395, %v10393
    %v10710 = vpack.c.b16 %v10398, %v10396
    %v10711 = vpack.c.b16 %v10399, %v10397
    %v10712 = vpack.c.b16 %v10402, %v10400
    %v10713 = vpack.c.b16 %v10403, %v10401
    %v10714 = vpack.c.b16 %v10406, %v10404
    %v10715 = vpack.c.b16 %v10407, %v10405
    %v10716 = vpack.c.b16 %v10410, %v10408
    %v10717 = vpack.c.b16 %v10411, %v10409
    %v10718 = vpack.c.b16 %v10414, %v10412
    %v10719 = vpack.c.b16 %v10415, %v10413
    %v10720 = vpack.c.b16 %v10418, %v10416
    %v10721 = vpack.c.b16 %v10419, %v10417
    %v10722 = vpack.c.b16 %v10422, %v10420
    %v10723 = vpack.c.b16 %v10423, %v10421
    %v10724 = vpack.c.b16 %v10426, %v10424
    %v10725 = vpack.c.b16 %v10427, %v10425
    %v10726 = vpack.c.b16 %v10430, %v10428
    %v10727 = vpack.c.b16 %v10431, %v10429
    %v10728 = vpack.c.b16 %v10434, %v10432
    %v10729 = vpack.c.b16 %v10435, %v10433
    %v10730 = vpack.c.b16 %v10438, %v10436
    %v10731 = vpack.c.b16 %v10439, %v10437
    %v10732 = vpack.c.b16 %v10442, %v10440
    %v10733 = vpack.c.b16 %v10443, %v10441
    %v10734 = vpack.c.b16 %v10446, %v10444
    %v10735 = vpack.c.b16 %v10447, %v10445
    %v10736 = vpack.c.b16 %v10450, %v10448
    %v10737 = vpack.c.b16 %v10451, %v10449
    %v10738 = vpack.c.b16 %v10454, %v10452
    %v10739 = vpack.c.b16 %v10455, %v10453
    %v10740 = vpack.c.b16 %v10458, %v10456
    %v10741 = vpack.c.b16 %v10459, %v10457
    %v10742 = vpack.c.b16 %v10462, %v10460
    %v10743 = vpack.c.b16 %v10463, %v10461
    %v10744 = vpack.c.b16 %v10466, %v10464
    %v10745 = vpack.c.b16 %v10467, %v10465
    %v10746 = vpack.c.b16 %v10470, %v10468
    %v10747 = vpack.c.b16 %v10471, %v10469
    %v10748 = vpack.c.b16 %v10474, %v10472
    %v10749 = vpack.c.b16 %v10475, %v10473
    %v10750 = vpack.c.b16 %v10478, %v10476
    %v10751 = vpack.c.b16 %v10479, %v10477
    %v10752 = vpack.c.b16 %v10482, %v10480
    %v10753 = vpack.c.b16 %v10483, %v10481
    %v10754 = vpack.c.b16 %v10486, %v10484
    %v10755 = vpack.c.b16 %v10487, %v10485
    %v10756 = vpack.c.b16 %v10490, %v10488
    %v10757 = vpack.c.b16 %v10491, %v10489
    %v10758 = vpack.c.b16 %v10494, %v10492
    %v10759 = vpack.c.b16 %v10495, %v10493
    %v10760 = vpack.c.b16 %v10498, %v10496
    %v10761 = vpack.c.b16 %v10499, %v10497
    %v10762 = vpack.c.b16 %v10502, %v10500
    %v10763 = vpack.c.b16 %v10503, %v10501
    %v10764 = vpack.c.b16 %v10506, %v10504
    %v10765 = vpack.c.b16 %v10507, %v10505
    %v10766 = vpack.c.b16 %v10510, %v10508
    %v10767 = vpack.c.b16 %v10511, %v10509
    %v10768 = vpack.c.b16 %v10514, %v10512
    %v10769 = vpack.c.b16 %v10515, %v10513
    %v10770 = vpack.c.b16 %v10518, %v10516
    %v10771 = vpack.c.b16 %v10519, %v10517
    %v10772 = vpack.c.b16 %v10522, %v10520
    %v10773 = vpack.c.b16 %v10523, %v10521
    %v10774 = vpack.c.b16 %v10526, %v10524
    %v10775 = vpack.c.b16 %v10527, %v10525
    %v10776 = vpack.c.b16 %v10530, %v10528
    %v10777 = vpack.c.b16 %v10531, %v10529
    %v10778 = vpack.c.b16 %v10534, %v10532
    %v10779 = vpack.c.b16 %v10535, %v10533
    %v10780 = vpack.c.b16 %v10538, %v10536
    %v10781 = vpack.c.b16 %v10539, %v10537
    %v10782 = vpack.c.b16 %v10542, %v10540
    %v10783 = vpack.c.b16 %v10543, %v10541
    %v10784 = vpack.c.b16 %v10546, %v10544
    %v10785 = vpack.c.b16 %v10547, %v10545
    %v10786 = vpack.c.b16 %v10550, %v10548
    %v10787 = vpack.c.b16 %v10551, %v10549
    %v10788 = vpack.c.b16 %v10554, %v10552
    %v10789 = vpack.c.b16 %v10555, %v10553
    %v10790 = vpack.c.b16 %v10558, %v10556
    %v10791 = vpack.c.b16 %v10559, %v10557
    %v10792 = vpack.c.b16 %v10562, %v10560
    %v10793 = vpack.c.b16 %v10563, %v10561
    %v10794 = vpack.c.b16 %v10566, %v10564
    %v10795 = vpack.c.b16 %v10567, %v10565
    %v10796 = vpack.c.b16 %v10570, %v10568
    %v10797 = vpack.c.b16 %v10571, %v10569
    %v10798 = vpack.c.b16 %v10574, %v10572
    %v10799 = vpack.c.b16 %v10575, %v10573
    %v10800 = vpack.c.b16 %v10578, %v10576
    %v10801 = vpack.c.b16 %v10579, %v10577
    %v10802 = vpack.c.b16 %v10582, %v10580
    %v10803 = vpack.c.b16 %v10583, %v10581
    %v10804 = vpack.c.b16 %v10586, %v10584
    %v10805 = vpack.c.b16 %v10587, %v10585
    %v10806 = vpack.c.b16 %v10590, %v10588
    %v10807 = vpack.c.b16 %v10591, %v10589
    %v10808 = vpack.c.b16 %v10594, %v10592
    %v10809 = vpack.c.b16 %v10595, %v10593
    %v10810 = vpack.c.b16 %v10598, %v10596
    %v10811 = vpack.c.b16 %v10599, %v10597
    %v10812 = vpack.c.b16 %v10602, %v10600
    %v10813 = vpack.c.b16 %v10603, %v10601
    %v10814 = vpack.c.b16 %v10606, %v10604
    %v10815 = vpack.c.b16 %v10607, %v10605
    %v10816 = vpack.c.b16 %v10610, %v10608
    %v10817 = vpack.c.b16 %v10611, %v10609
    %v10818 = vpack.c.b16 %v10614, %v10612
    %v10819 = vpack.c.b16 %v10615, %v10613
    %v10820 = vpack.c.b16 %v10618, %v10616
    %v10821 = vpack.c.b16 %v10619, %v10617
    %v10822 = vpack.c.b16 %v10622, %v10620
    %v10823 = vpack.c.b16 %v10623, %v10621
    %v10824 = vpack.c.b16 %v10626, %v10624
    %v10825 = vpack.c.b16 %v10627, %v10625
    %v10826 = vpack.c.b16 %v10630, %v10628
    %v10827 = vpack.c.b16 %v10631, %v10629
    %v10828 = vpack.c.b16 %v10634, %v10632
    %v10829 = vpack.c.b16 %v10635, %v10633
    %v10830 = vpack.c.b16 %v10638, %v10636
    %v10831 = vpack.c.b16 %v10639, %v10637
    %v10832 = vpack.c.b16 %v10642, %v10640
    %v10833 = vpack.c.b16 %v10643, %v10641
    %v10834 = vpack.c.b16 %v10646, %v10644
    %v10835 = vpack.c.b16 %v10647, %v10645
    %v10836 = vpack.c.b16 %v10650, %v10648
    %v10837 = vpack.c.b16 %v10651, %v10649
    %v10838 = vpack.c.b16 %v10654, %v10652
    %v10839 = vpack.c.b16 %v10655, %v10653
    %v10840 = vpack.c.b16 %v10658, %v10656
    %v10841 = vpack.c.b16 %v10659, %v10657
    %v10842 = vpack.c.b16 %v10662, %v10660
    %v10843 = vpack.c.b16 %v10663, %v10661
    %v10844 = vpack.c.b16 %v10666, %v10664
    %v10845 = vpack.c.b16 %v10667, %v10665
    %v10846 = vpack.c.b16 %v10670, %v10668
    %v10847 = vpack.c.b16 %v10671, %v10669
    %11024 = vmatpush.bf16.msra.mxu0 %v10686
    %11025 = vmatpush.bf16.msra.mxu0 %v10684
    %11026 = vmatpush.bf16.msra.mxu0 %v10682
    %11027 = vmatpush.bf16.msra.mxu0 %v10680
    %11028 = vmatpush.bf16.msra.mxu0 %v10678
    %11029 = vmatpush.bf16.msra.mxu0 %v10676
    %11030 = vmatpush.bf16.msra.mxu0 %v10674
    %11031 = vmatpush.bf16.msra.mxu0 %v10672
    %11032 = vmatmul.bf16.gmra.mxu0 %v10120
    %v11033 = vpop.f32.mrf.mxu0
    %v11034 = vadd.f32 0.0, %v11033
    %v11035 = vpop.f32.mrf.mxu0
    %11036 = vdwg.mxu0
    %11037 = vmatpush.bf16.msra.mxu0 %v10702
    %11038 = vmatpush.bf16.msra.mxu0 %v10700
    %11039 = vmatpush.bf16.msra.mxu0 %v10698
    %11040 = vmatpush.bf16.msra.mxu0 %v10696
    %11041 = vmatpush.bf16.msra.mxu0 %v10694
    %11042 = vmatpush.bf16.msra.mxu0 %v10692
    %11043 = vmatpush.bf16.msra.mxu0 %v10690
    %11044 = vmatpush.bf16.msra.mxu0 %v10688
    %11045 = vmatmul.bf16.gmra.mxu0 %v10121
    %v11046 = vpop.f32.mrf.mxu0
    %v11047 = vadd.f32 %v11034, %v11046
    %v11048 = vpop.f32.mrf.mxu0
    %11049 = vdwg.mxu0
    %11050 = vmatpush.bf16.msra.mxu0 %v10718
    %11051 = vmatpush.bf16.msra.mxu0 %v10716
    %11052 = vmatpush.bf16.msra.mxu0 %v10714
    %11053 = vmatpush.bf16.msra.mxu0 %v10712
    %11054 = vmatpush.bf16.msra.mxu0 %v10710
    %11055 = vmatpush.bf16.msra.mxu0 %v10708
    %11056 = vmatpush.bf16.msra.mxu0 %v10706
    %11057 = vmatpush.bf16.msra.mxu0 %v10704
    %11058 = vmatmul.bf16.gmra.mxu0 %v10122
    %v11059 = vpop.f32.mrf.mxu0
    %v11060 = vadd.f32 %v11047, %v11059
    %v11061 = vpop.f32.mrf.mxu0
    %11062 = vdwg.mxu0
    %11063 = vmatpush.bf16.msra.mxu0 %v10734
    %11064 = vmatpush.bf16.msra.mxu0 %v10732
    %11065 = vmatpush.bf16.msra.mxu0 %v10730
    %11066 = vmatpush.bf16.msra.mxu0 %v10728
    %11067 = vmatpush.bf16.msra.mxu0 %v10726
    %11068 = vmatpush.bf16.msra.mxu0 %v10724
    %11069 = vmatpush.bf16.msra.mxu0 %v10722
    %11070 = vmatpush.bf16.msra.mxu0 %v10720
    %11071 = vmatmul.bf16.gmra.mxu0 %v10123
    %v11072 = vpop.f32.mrf.mxu0
    %v11073 = vadd.f32 %v11060, %v11072
    %v11074 = vpop.f32.mrf.mxu0
    %11075 = vdwg.mxu0
    %11076 = vmatpush.bf16.msra.mxu0 %v10750
    %11077 = vmatpush.bf16.msra.mxu0 %v10748
    %11078 = vmatpush.bf16.msra.mxu0 %v10746
    %11079 = vmatpush.bf16.msra.mxu0 %v10744
    %11080 = vmatpush.bf16.msra.mxu0 %v10742
    %11081 = vmatpush.bf16.msra.mxu0 %v10740
    %11082 = vmatpush.bf16.msra.mxu0 %v10738
    %11083 = vmatpush.bf16.msra.mxu0 %v10736
    %11084 = vmatmul.bf16.gmra.mxu0 %v10124
    %v11085 = vpop.f32.mrf.mxu0
    %v11086 = vadd.f32 %v11073, %v11085
    %v11087 = vpop.f32.mrf.mxu0
    %11088 = vdwg.mxu0
    %11089 = vmatpush.bf16.msra.mxu0 %v10766
    %11090 = vmatpush.bf16.msra.mxu0 %v10764
    %11091 = vmatpush.bf16.msra.mxu0 %v10762
    %11092 = vmatpush.bf16.msra.mxu0 %v10760
    %11093 = vmatpush.bf16.msra.mxu0 %v10758
    %11094 = vmatpush.bf16.msra.mxu0 %v10756
    %11095 = vmatpush.bf16.msra.mxu0 %v10754
    %11096 = vmatpush.bf16.msra.mxu0 %v10752
    %11097 = vmatmul.bf16.gmra.mxu0 %v10125
    %v11098 = vpop.f32.mrf.mxu0
    %v11099 = vadd.f32 %v11086, %v11098
    %v11100 = vpop.f32.mrf.mxu0
    %11101 = vdwg.mxu0
    %11102 = vmatpush.bf16.msra.mxu0 %v10782
    %11103 = vmatpush.bf16.msra.mxu0 %v10780
    %11104 = vmatpush.bf16.msra.mxu0 %v10778
    %11105 = vmatpush.bf16.msra.mxu0 %v10776
    %11106 = vmatpush.bf16.msra.mxu0 %v10774
    %11107 = vmatpush.bf16.msra.mxu0 %v10772
    %11108 = vmatpush.bf16.msra.mxu0 %v10770
    %11109 = vmatpush.bf16.msra.mxu0 %v10768
    %11110 = vmatmul.bf16.gmra.mxu0 %v10126
    %v11111 = vpop.f32.mrf.mxu0
    %v11112 = vadd.f32 %v11099, %v11111
    %v11113 = vpop.f32.mrf.mxu0
    %11114 = vdwg.mxu0
    %11115 = vmatpush.bf16.msra.mxu0 %v10798
    %11116 = vmatpush.bf16.msra.mxu0 %v10796
    %11117 = vmatpush.bf16.msra.mxu0 %v10794
    %11118 = vmatpush.bf16.msra.mxu0 %v10792
    %11119 = vmatpush.bf16.msra.mxu0 %v10790
    %11120 = vmatpush.bf16.msra.mxu0 %v10788
    %11121 = vmatpush.bf16.msra.mxu0 %v10786
    %11122 = vmatpush.bf16.msra.mxu0 %v10784
    %11123 = vmatmul.bf16.gmra.mxu0 %v10127
    %v11124 = vpop.f32.mrf.mxu0
    %v11125 = vadd.f32 %v11112, %v11124
    %v11126 = vpop.f32.mrf.mxu0
    %11127 = vdwg.mxu0
    %11128 = vmatpush.bf16.msra.mxu0 %v10814
    %11129 = vmatpush.bf16.msra.mxu0 %v10812
    %11130 = vmatpush.bf16.msra.mxu0 %v10810
    %11131 = vmatpush.bf16.msra.mxu0 %v10808
    %11132 = vmatpush.bf16.msra.mxu0 %v10806
    %11133 = vmatpush.bf16.msra.mxu0 %v10804
    %11134 = vmatpush.bf16.msra.mxu0 %v10802
    %11135 = vmatpush.bf16.msra.mxu0 %v10800
    %11136 = vmatmul.bf16.gmra.mxu0 %v10130
    %v11137 = vpop.f32.mrf.mxu0
    %v11138 = vadd.f32 %v11125, %v11137
    %v11139 = vpop.f32.mrf.mxu0
    %11140 = vdwg.mxu0
    %11141 = vmatpush.bf16.msra.mxu0 %v10830
    %11142 = vmatpush.bf16.msra.mxu0 %v10828
    %11143 = vmatpush.bf16.msra.mxu0 %v10826
    %11144 = vmatpush.bf16.msra.mxu0 %v10824
    %11145 = vmatpush.bf16.msra.mxu0 %v10822
    %11146 = vmatpush.bf16.msra.mxu0 %v10820
    %11147 = vmatpush.bf16.msra.mxu0 %v10818
    %11148 = vmatpush.bf16.msra.mxu0 %v10816
    %11149 = vmatmul.bf16.gmra.mxu0 %v10131
    %v11150 = vpop.f32.mrf.mxu0
    %v11151 = vadd.f32 %v11138, %v11150
    %v11152 = vpop.f32.mrf.mxu0
    %11153 = vdwg.mxu0
    %11154 = vmatpush.bf16.msra.mxu0 %v10846
    %11155 = vmatpush.bf16.msra.mxu0 %v10844
    %11156 = vmatpush.bf16.msra.mxu0 %v10842
    %11157 = vmatpush.bf16.msra.mxu0 %v10840
    %11158 = vmatpush.bf16.msra.mxu0 %v10838
    %11159 = vmatpush.bf16.msra.mxu0 %v10836
    %11160 = vmatpush.bf16.msra.mxu0 %v10834
    %11161 = vmatpush.bf16.msra.mxu0 %v10832
    %11162 = vmatmul.bf16.gmra.mxu0 %v10132
    %v11163 = vpop.f32.mrf.mxu0
    %v11164 = vadd.f32 %v11151, %v11163
    %v11165 = vpop.f32.mrf.mxu0
    %11166 = vdwg.mxu0
    %11167 = vmatpush.bf16.msra.mxu0 %v10687
    %11168 = vmatpush.bf16.msra.mxu0 %v10685
    %11169 = vmatpush.bf16.msra.mxu0 %v10683
    %11170 = vmatpush.bf16.msra.mxu0 %v10681
    %11171 = vmatpush.bf16.msra.mxu0 %v10679
    %11172 = vmatpush.bf16.msra.mxu0 %v10677
    %11173 = vmatpush.bf16.msra.mxu0 %v10675
    %11174 = vmatpush.bf16.msra.mxu0 %v10673
    %11175 = vmatmul.bf16.gmra.mxu0 %v10120
    %v11176 = vpop.f32.mrf.mxu0
    %v11177 = vadd.f32 0.0, %v11176
    %v11178 = vpop.f32.mrf.mxu0
    %11179 = vdwg.mxu0
    %11180 = vmatpush.bf16.msra.mxu0 %v10703
    %11181 = vmatpush.bf16.msra.mxu0 %v10701
    %11182 = vmatpush.bf16.msra.mxu0 %v10699
    %11183 = vmatpush.bf16.msra.mxu0 %v10697
    %11184 = vmatpush.bf16.msra.mxu0 %v10695
    %11185 = vmatpush.bf16.msra.mxu0 %v10693
    %11186 = vmatpush.bf16.msra.mxu0 %v10691
    %11187 = vmatpush.bf16.msra.mxu0 %v10689
    %11188 = vmatmul.bf16.gmra.mxu0 %v10121
    %v11189 = vpop.f32.mrf.mxu0
    %v11190 = vadd.f32 %v11177, %v11189
    %v11191 = vpop.f32.mrf.mxu0
    %11192 = vdwg.mxu0
    %11193 = vmatpush.bf16.msra.mxu0 %v10719
    %11194 = vmatpush.bf16.msra.mxu0 %v10717
    %11195 = vmatpush.bf16.msra.mxu0 %v10715
    %11196 = vmatpush.bf16.msra.mxu0 %v10713
    %11197 = vmatpush.bf16.msra.mxu0 %v10711
    %11198 = vmatpush.bf16.msra.mxu0 %v10709
    %11199 = vmatpush.bf16.msra.mxu0 %v10707
    %11200 = vmatpush.bf16.msra.mxu0 %v10705
    %11201 = vmatmul.bf16.gmra.mxu0 %v10122
    %v11202 = vpop.f32.mrf.mxu0
    %v11203 = vadd.f32 %v11190, %v11202
    %v11204 = vpop.f32.mrf.mxu0
    %11205 = vdwg.mxu0
    %11206 = vmatpush.bf16.msra.mxu0 %v10735
    %11207 = vmatpush.bf16.msra.mxu0 %v10733
    %11208 = vmatpush.bf16.msra.mxu0 %v10731
    %11209 = vmatpush.bf16.msra.mxu0 %v10729
    %11210 = vmatpush.bf16.msra.mxu0 %v10727
    %11211 = vmatpush.bf16.msra.mxu0 %v10725
    %11212 = vmatpush.bf16.msra.mxu0 %v10723
    %11213 = vmatpush.bf16.msra.mxu0 %v10721
    %11214 = vmatmul.bf16.gmra.mxu0 %v10123
    %v11215 = vpop.f32.mrf.mxu0
    %v11216 = vadd.f32 %v11203, %v11215
    %v11217 = vpop.f32.mrf.mxu0
    %11218 = vdwg.mxu0
    %11219 = vmatpush.bf16.msra.mxu0 %v10751
    %11220 = vmatpush.bf16.msra.mxu0 %v10749
    %11221 = vmatpush.bf16.msra.mxu0 %v10747
    %11222 = vmatpush.bf16.msra.mxu0 %v10745
    %11223 = vmatpush.bf16.msra.mxu0 %v10743
    %11224 = vmatpush.bf16.msra.mxu0 %v10741
    %11225 = vmatpush.bf16.msra.mxu0 %v10739
    %11226 = vmatpush.bf16.msra.mxu0 %v10737
    %11227 = vmatmul.bf16.gmra.mxu0 %v10124
    %v11228 = vpop.f32.mrf.mxu0
    %v11229 = vadd.f32 %v11216, %v11228
    %v11230 = vpop.f32.mrf.mxu0
    %11231 = vdwg.mxu0
    %11232 = vmatpush.bf16.msra.mxu0 %v10767
    %11233 = vmatpush.bf16.msra.mxu0 %v10765
    %11234 = vmatpush.bf16.msra.mxu0 %v10763
    %11235 = vmatpush.bf16.msra.mxu0 %v10761
    %11236 = vmatpush.bf16.msra.mxu0 %v10759
    %11237 = vmatpush.bf16.msra.mxu0 %v10757
    %11238 = vmatpush.bf16.msra.mxu0 %v10755
    %11239 = vmatpush.bf16.msra.mxu0 %v10753
    %11240 = vmatmul.bf16.gmra.mxu0 %v10125
    %v11241 = vpop.f32.mrf.mxu0
    %v11242 = vadd.f32 %v11229, %v11241
    %v11243 = vpop.f32.mrf.mxu0
    %11244 = vdwg.mxu0
    %11245 = vmatpush.bf16.msra.mxu0 %v10783
    %11246 = vmatpush.bf16.msra.mxu0 %v10781
    %11247 = vmatpush.bf16.msra.mxu0 %v10779
    %11248 = vmatpush.bf16.msra.mxu0 %v10777
    %11249 = vmatpush.bf16.msra.mxu0 %v10775
    %11250 = vmatpush.bf16.msra.mxu0 %v10773
    %11251 = vmatpush.bf16.msra.mxu0 %v10771
    %11252 = vmatpush.bf16.msra.mxu0 %v10769
    %11253 = vmatmul.bf16.gmra.mxu0 %v10126
    %v11254 = vpop.f32.mrf.mxu0
    %v11255 = vadd.f32 %v11242, %v11254
    %v11256 = vpop.f32.mrf.mxu0
    %11257 = vdwg.mxu0
    %11258 = vmatpush.bf16.msra.mxu0 %v10799
    %11259 = vmatpush.bf16.msra.mxu0 %v10797
    %11260 = vmatpush.bf16.msra.mxu0 %v10795
    %11261 = vmatpush.bf16.msra.mxu0 %v10793
    %11262 = vmatpush.bf16.msra.mxu0 %v10791
    %11263 = vmatpush.bf16.msra.mxu0 %v10789
    %11264 = vmatpush.bf16.msra.mxu0 %v10787
    %11265 = vmatpush.bf16.msra.mxu0 %v10785
    %11266 = vmatmul.bf16.gmra.mxu0 %v10127
    %v11267 = vpop.f32.mrf.mxu0
    %v11268 = vadd.f32 %v11255, %v11267
    %v11269 = vpop.f32.mrf.mxu0
    %11270 = vdwg.mxu0
    %11271 = vmatpush.bf16.msra.mxu0 %v10815
    %11272 = vmatpush.bf16.msra.mxu0 %v10813
    %11273 = vmatpush.bf16.msra.mxu0 %v10811
    %11274 = vmatpush.bf16.msra.mxu0 %v10809
    %11275 = vmatpush.bf16.msra.mxu0 %v10807
    %11276 = vmatpush.bf16.msra.mxu0 %v10805
    %11277 = vmatpush.bf16.msra.mxu0 %v10803
    %11278 = vmatpush.bf16.msra.mxu0 %v10801
    %11279 = vmatmul.bf16.gmra.mxu0 %v10130
    %v11280 = vpop.f32.mrf.mxu0
    %v11281 = vadd.f32 %v11268, %v11280
    %v11282 = vpop.f32.mrf.mxu0
    %11283 = vdwg.mxu0
    %11284 = vmatpush.bf16.msra.mxu0 %v10831
    %11285 = vmatpush.bf16.msra.mxu0 %v10829
    %11286 = vmatpush.bf16.msra.mxu0 %v10827
    %11287 = vmatpush.bf16.msra.mxu0 %v10825
    %11288 = vmatpush.bf16.msra.mxu0 %v10823
    %11289 = vmatpush.bf16.msra.mxu0 %v10821
    %11290 = vmatpush.bf16.msra.mxu0 %v10819
    %11291 = vmatpush.bf16.msra.mxu0 %v10817
    %11292 = vmatmul.bf16.gmra.mxu0 %v10131
    %v11293 = vpop.f32.mrf.mxu0
    %v11294 = vadd.f32 %v11281, %v11293
    %v11295 = vpop.f32.mrf.mxu0
    %11296 = vdwg.mxu0
    %11297 = vmatpush.bf16.msra.mxu0 %v10847
    %11298 = vmatpush.bf16.msra.mxu0 %v10845
    %11299 = vmatpush.bf16.msra.mxu0 %v10843
    %11300 = vmatpush.bf16.msra.mxu0 %v10841
    %11301 = vmatpush.bf16.msra.mxu0 %v10839
    %11302 = vmatpush.bf16.msra.mxu0 %v10837
    %11303 = vmatpush.bf16.msra.mxu0 %v10835
    %11304 = vmatpush.bf16.msra.mxu0 %v10833
    %11305 = vmatmul.bf16.gmra.mxu0 %v10132
    %v11306 = vpop.f32.mrf.mxu0
    %v11307 = vadd.f32 %v11294, %v11306
    %v11308 = vpop.f32.mrf.mxu0
    %11309 = vdwg.mxu0
    %v11310 = vadd.f32 %v9792, %v11164
    %v11311 = vadd.f32 %v9935, %v11307
    %s11312 = sshll.u32 %s7193, 4
    %11313 = dma.done %s199, %s11312
    %v11314 = vld [vmem:[#allocation4 + $0x21] sm:$0xff]
    %v11315 = vld [vmem:[#allocation4 + $0x29] sm:$0x7]
    %v11316 = vld [vmem:[#allocation2 + $0x1080] sm:$0xff]
    %v11317 = vld [vmem:[#allocation2 + $0x1088] sm:$0xff]
    %v11318 = vld [vmem:[#allocation2 + $0x1090] sm:$0xff]
    %v11319 = vld [vmem:[#allocation2 + $0x1098] sm:$0xff]
    %v11320 = vld [vmem:[#allocation2 + $0x10a0] sm:$0xff]
    %v11321 = vld [vmem:[#allocation2 + $0x10a8] sm:$0xff]
    %v11322 = vld [vmem:[#allocation2 + $0x10b0] sm:$0xff]
    %v11323 = vld [vmem:[#allocation2 + $0x10b8] sm:$0xff]
    %v11324 = vld [vmem:[#allocation2 + $0x10c0] sm:$0xff]
    %v11325 = vld [vmem:[#allocation2 + $0x10c8] sm:$0xff]
    %v11326 = vld [vmem:[#allocation2 + $0x10d0] sm:$0xff]
    %v11327 = vld [vmem:[#allocation2 + $0x10d8] sm:$0xff]
    %v11328 = vld [vmem:[#allocation2 + $0x10e0] sm:$0xff]
    %v11329 = vld [vmem:[#allocation2 + $0x10e8] sm:$0xff]
    %v11330 = vld [vmem:[#allocation2 + $0x10f0] sm:$0xff]
    %v11331 = vld [vmem:[#allocation2 + $0x10f8] sm:$0xff]
    %v11332 = vld [vmem:[#allocation2 + $0x1100] sm:$0xff]
    %v11333 = vld [vmem:[#allocation2 + $0x1108] sm:$0xff]
    %v11334 = vld [vmem:[#allocation2 + $0x1110] sm:$0xff]
    %v11335 = vld [vmem:[#allocation2 + $0x1118] sm:$0xff]
    %v11336 = vld [vmem:[#allocation2 + $0x1120] sm:$0xff]
    %v11337 = vld [vmem:[#allocation2 + $0x1128] sm:$0xff]
    %v11338 = vld [vmem:[#allocation2 + $0x1130] sm:$0xff]
    %v11339 = vld [vmem:[#allocation2 + $0x1138] sm:$0xff]
    %v11340 = vld [vmem:[#allocation2 + $0x1140] sm:$0xff]
    %v11341 = vld [vmem:[#allocation2 + $0x1148] sm:$0xff]
    %v11342 = vld [vmem:[#allocation2 + $0x1150] sm:$0xff]
    %v11343 = vld [vmem:[#allocation2 + $0x1158] sm:$0xff]
    %v11344 = vld [vmem:[#allocation2 + $0x1160] sm:$0xff]
    %v11345 = vld [vmem:[#allocation2 + $0x1168] sm:$0xff]
    %v11346 = vld [vmem:[#allocation2 + $0x1170] sm:$0xff]
    %v11347 = vld [vmem:[#allocation2 + $0x1178] sm:$0xff]
    %v11348 = vld [vmem:[#allocation2 + $0x1180] sm:$0xff]
    %v11349 = vld [vmem:[#allocation2 + $0x1188] sm:$0xff]
    %v11350 = vld [vmem:[#allocation2 + $0x1190] sm:$0xff]
    %v11351 = vld [vmem:[#allocation2 + $0x1198] sm:$0xff]
    %v11352 = vld [vmem:[#allocation2 + $0x11a0] sm:$0xff]
    %v11353 = vld [vmem:[#allocation2 + $0x11a8] sm:$0xff]
    %v11354 = vld [vmem:[#allocation2 + $0x11b0] sm:$0xff]
    %v11355 = vld [vmem:[#allocation2 + $0x11b8] sm:$0xff]
    %v11356 = vld [vmem:[#allocation2 + $0x11c0] sm:$0xff]
    %v11357 = vld [vmem:[#allocation2 + $0x11c8] sm:$0xff]
    %v11358 = vld [vmem:[#allocation2 + $0x11d0] sm:$0xff]
    %v11359 = vld [vmem:[#allocation2 + $0x11d8] sm:$0xff]
    %v11360 = vld [vmem:[#allocation2 + $0x11e0] sm:$0xff]
    %v11361 = vld [vmem:[#allocation2 + $0x11e8] sm:$0xff]
    %v11362 = vld [vmem:[#allocation2 + $0x11f0] sm:$0xff]
    %v11363 = vld [vmem:[#allocation2 + $0x11f8] sm:$0xff]
    %v11364 = vld [vmem:[#allocation2 + $0x1200] sm:$0xff]
    %v11365 = vld [vmem:[#allocation2 + $0x1208] sm:$0xff]
    %v11366 = vld [vmem:[#allocation2 + $0x1210] sm:$0xff]
    %v11367 = vld [vmem:[#allocation2 + $0x1218] sm:$0xff]
    %v11368 = vld [vmem:[#allocation2 + $0x1220] sm:$0xff]
    %v11369 = vld [vmem:[#allocation2 + $0x1228] sm:$0xff]
    %v11370 = vld [vmem:[#allocation2 + $0x1230] sm:$0xff]
    %v11371 = vld [vmem:[#allocation2 + $0x1238] sm:$0xff]
    %v11372 = vld [vmem:[#allocation2 + $0x1240] sm:$0xff]
    %v11373 = vld [vmem:[#allocation2 + $0x1248] sm:$0xff]
    %v11374 = vld [vmem:[#allocation2 + $0x1250] sm:$0xff]
    %v11375 = vld [vmem:[#allocation2 + $0x1258] sm:$0xff]
    %v11376 = vld [vmem:[#allocation2 + $0x1260] sm:$0xff]
    %v11377 = vld [vmem:[#allocation2 + $0x1268] sm:$0xff]
    %v11378 = vld [vmem:[#allocation2 + $0x1270] sm:$0xff]
    %v11379 = vld [vmem:[#allocation2 + $0x1278] sm:$0xff]
    %v11380 = vld [vmem:[#allocation2 + $0x1280] sm:$0xff]
    %v11381 = vld [vmem:[#allocation2 + $0x1288] sm:$0xff]
    %v11382 = vld [vmem:[#allocation2 + $0x1290] sm:$0xff]
    %v11383 = vld [vmem:[#allocation2 + $0x1298] sm:$0xff]
    %v11384 = vld [vmem:[#allocation2 + $0x12a0] sm:$0xff]
    %v11385 = vld [vmem:[#allocation2 + $0x12a8] sm:$0xff]
    %v11386 = vld [vmem:[#allocation2 + $0x12b0] sm:$0xff]
    %v11387 = vld [vmem:[#allocation2 + $0x12b8] sm:$0xff]
    %v11388 = vld [vmem:[#allocation2 + $0x12c0] sm:$0xff]
    %v11389 = vld [vmem:[#allocation2 + $0x12c8] sm:$0xff]
    %v11390 = vld [vmem:[#allocation2 + $0x12d0] sm:$0xff]
    %v11391 = vld [vmem:[#allocation2 + $0x12d8] sm:$0xff]
    %v11392 = vld [vmem:[#allocation2 + $0x12e0] sm:$0xff]
    %v11393 = vld [vmem:[#allocation2 + $0x12e8] sm:$0xff]
    %v11394 = vld [vmem:[#allocation2 + $0x12f0] sm:$0xff]
    %v11395 = vld [vmem:[#allocation2 + $0x12f8] sm:$0xff]
    %v11396 = vld [vmem:[#allocation2 + $0x1300] sm:$0xff]
    %v11397 = vld [vmem:[#allocation2 + $0x1308] sm:$0xff]
    %v11398 = vld [vmem:[#allocation2 + $0x1310] sm:$0xff]
    %v11399 = vld [vmem:[#allocation2 + $0x1318] sm:$0xff]
    %v11400 = vld [vmem:[#allocation2 + $0x1320] sm:$0xff]
    %v11401 = vld [vmem:[#allocation2 + $0x1328] sm:$0xff]
    %v11402 = vld [vmem:[#allocation2 + $0x1330] sm:$0xff]
    %v11403 = vld [vmem:[#allocation2 + $0x1338] sm:$0xff]
    %v11404 = vld [vmem:[#allocation2 + $0x1340] sm:$0xff]
    %v11405 = vld [vmem:[#allocation2 + $0x1348] sm:$0xff]
    %v11406 = vld [vmem:[#allocation2 + $0x1350] sm:$0xff]
    %v11407 = vld [vmem:[#allocation2 + $0x1358] sm:$0xff]
    %v11408 = vld [vmem:[#allocation2 + $0x1360] sm:$0xff]
    %v11409 = vld [vmem:[#allocation2 + $0x1368] sm:$0xff]
    %v11410 = vld [vmem:[#allocation2 + $0x1370] sm:$0xff]
    %v11411 = vld [vmem:[#allocation2 + $0x1378] sm:$0xff]
    %v11412 = vld [vmem:[#allocation2 + $0x1380] sm:$0xff]
    %v11413 = vld [vmem:[#allocation2 + $0x1388] sm:$0xff]
    %v11414 = vld [vmem:[#allocation2 + $0x1390] sm:$0xff]
    %v11415 = vld [vmem:[#allocation2 + $0x1398] sm:$0xff]
    %v11416 = vld [vmem:[#allocation2 + $0x13a0] sm:$0xff]
    %v11417 = vld [vmem:[#allocation2 + $0x13a8] sm:$0xff]
    %v11418 = vld [vmem:[#allocation2 + $0x13b0] sm:$0xff]
    %v11419 = vld [vmem:[#allocation2 + $0x13b8] sm:$0xff]
    %v11420 = vld [vmem:[#allocation2 + $0x13c0] sm:$0xff]
    %v11421 = vld [vmem:[#allocation2 + $0x13c8] sm:$0xff]
    %v11422 = vld [vmem:[#allocation2 + $0x13d0] sm:$0xff]
    %v11423 = vld [vmem:[#allocation2 + $0x13d8] sm:$0xff]
    %v11424 = vld [vmem:[#allocation2 + $0x13e0] sm:$0xff]
    %v11425 = vld [vmem:[#allocation2 + $0x13e8] sm:$0xff]
    %v11426 = vld [vmem:[#allocation2 + $0x13f0] sm:$0xff]
    %v11427 = vld [vmem:[#allocation2 + $0x13f8] sm:$0xff]
    %v11428 = vld [vmem:[#allocation2 + $0x1400] sm:$0xff]
    %v11429 = vld [vmem:[#allocation2 + $0x1408] sm:$0xff]
    %v11430 = vld [vmem:[#allocation2 + $0x1410] sm:$0xff]
    %v11431 = vld [vmem:[#allocation2 + $0x1418] sm:$0xff]
    %v11432 = vld [vmem:[#allocation2 + $0x1420] sm:$0xff]
    %v11433 = vld [vmem:[#allocation2 + $0x1428] sm:$0xff]
    %v11434 = vld [vmem:[#allocation2 + $0x1430] sm:$0xff]
    %v11435 = vld [vmem:[#allocation2 + $0x1438] sm:$0xff]
    %v11436 = vld [vmem:[#allocation2 + $0x1440] sm:$0xff]
    %v11437 = vld [vmem:[#allocation2 + $0x1448] sm:$0xff]
    %v11438 = vld [vmem:[#allocation2 + $0x1450] sm:$0xff]
    %v11439 = vld [vmem:[#allocation2 + $0x1458] sm:$0xff]
    %v11440 = vld [vmem:[#allocation2 + $0x1460] sm:$0xff]
    %v11441 = vld [vmem:[#allocation2 + $0x1468] sm:$0xff]
    %v11442 = vld [vmem:[#allocation2 + $0x1470] sm:$0xff]
    %v11443 = vld [vmem:[#allocation2 + $0x1478] sm:$0xff]
    %v11444 = vld [vmem:[#allocation2 + $0x1480] sm:$0xff]
    %v11445 = vld [vmem:[#allocation2 + $0x1488] sm:$0xff]
    %v11446 = vld [vmem:[#allocation2 + $0x1490] sm:$0xff]
    %v11447 = vld [vmem:[#allocation2 + $0x1498] sm:$0xff]
    %v11448 = vld [vmem:[#allocation2 + $0x14a0] sm:$0xff]
    %v11449 = vld [vmem:[#allocation2 + $0x14a8] sm:$0xff]
    %v11450 = vld [vmem:[#allocation2 + $0x14b0] sm:$0xff]
    %v11451 = vld [vmem:[#allocation2 + $0x14b8] sm:$0xff]
    %v11452 = vld [vmem:[#allocation2 + $0x14c0] sm:$0xff]
    %v11453 = vld [vmem:[#allocation2 + $0x14c8] sm:$0xff]
    %v11454 = vld [vmem:[#allocation2 + $0x14d0] sm:$0xff]
    %v11455 = vld [vmem:[#allocation2 + $0x14d8] sm:$0xff]
    %v11456 = vld [vmem:[#allocation2 + $0x14e0] sm:$0xff]
    %v11457 = vld [vmem:[#allocation2 + $0x14e8] sm:$0xff]
    %v11458 = vld [vmem:[#allocation2 + $0x14f0] sm:$0xff]
    %v11459 = vld [vmem:[#allocation2 + $0x14f8] sm:$0xff]
    %v11460 = vld [vmem:[#allocation2 + $0x1500] sm:$0xff]
    %v11461 = vld [vmem:[#allocation2 + $0x1508] sm:$0xff]
    %v11462 = vld [vmem:[#allocation2 + $0x1510] sm:$0xff]
    %v11463 = vld [vmem:[#allocation2 + $0x1518] sm:$0xff]
    %v11464 = vld [vmem:[#allocation2 + $0x1520] sm:$0xff]
    %v11465 = vld [vmem:[#allocation2 + $0x1528] sm:$0xff]
    %v11466 = vld [vmem:[#allocation2 + $0x1530] sm:$0xff]
    %v11467 = vld [vmem:[#allocation2 + $0x1538] sm:$0xff]
    %v11468 = vld [vmem:[#allocation2 + $0x1540] sm:$0xff]
    %v11469 = vld [vmem:[#allocation2 + $0x1548] sm:$0xff]
    %v11470 = vld [vmem:[#allocation2 + $0x1550] sm:$0xff]
    %v11471 = vld [vmem:[#allocation2 + $0x1558] sm:$0xff]
    %v11472 = vld [vmem:[#allocation2 + $0x1560] sm:$0xff]
    %v11473 = vld [vmem:[#allocation2 + $0x1568] sm:$0xff]
    %v11474 = vld [vmem:[#allocation2 + $0x1570] sm:$0xff]
    %v11475 = vld [vmem:[#allocation2 + $0x1578] sm:$0xff]
    %v11476 = vld [vmem:[#allocation2 + $0x1580] sm:$0xff]
    %v11477 = vld [vmem:[#allocation2 + $0x1588] sm:$0xff]
    %v11478 = vld [vmem:[#allocation2 + $0x1590] sm:$0xff]
    %v11479 = vld [vmem:[#allocation2 + $0x1598] sm:$0xff]
    %v11480 = vld [vmem:[#allocation2 + $0x15a0] sm:$0xff]
    %v11481 = vld [vmem:[#allocation2 + $0x15a8] sm:$0xff]
    %v11482 = vld [vmem:[#allocation2 + $0x15b0] sm:$0xff]
    %v11483 = vld [vmem:[#allocation2 + $0x15b8] sm:$0xff]
    %v11484 = vld [vmem:[#allocation2 + $0x15c0] sm:$0xff]
    %v11485 = vld [vmem:[#allocation2 + $0x15c8] sm:$0xff]
    %v11486 = vld [vmem:[#allocation2 + $0x15d0] sm:$0xff]
    %v11487 = vld [vmem:[#allocation2 + $0x15d8] sm:$0xff]
    %v11488 = vld [vmem:[#allocation2 + $0x15e0] sm:$0xff]
    %v11489 = vld [vmem:[#allocation2 + $0x15e8] sm:$0xff]
    %v11490 = vld [vmem:[#allocation2 + $0x15f0] sm:$0xff]
    %v11491 = vld [vmem:[#allocation2 + $0x15f8] sm:$0xff]
    %11493 = vst [vmem:[#allocation1] ss:$9 sm:$0xff] %v11314
    %v11494 = vld [vmem:[#allocation1] sm:$0xff]
    %v11495 = vld [vmem:[#allocation1 + $0x9] sm:$0xff]
    %v11496 = vld [vmem:[#allocation1 + $0x12] sm:$0xff]
    %v11497 = vld [vmem:[#allocation1 + $0x1b] sm:$0xff]
    %v11498 = vld [vmem:[#allocation1 + $0x24] sm:$0xff]
    %v11499 = vld [vmem:[#allocation1 + $0x2d] sm:$0xff]
    %v11500 = vld [vmem:[#allocation1 + $0x36] sm:$0xff]
    %v11501 = vld [vmem:[#allocation1 + $0x3f] sm:$0xff]
    %11503 = vst [vmem:[#allocation1] ss:$9 sm:$0xff] %v11315
    %v11504 = vld [vmem:[#allocation1] sm:$0xff]
    %v11505 = vld [vmem:[#allocation1 + $0x9] sm:$0xff]
    %v11506 = vld [vmem:[#allocation1 + $0x12] sm:$0xff]
    %v11694 = vunpack.c.l.b16 %v11316
    %v11695 = vunpack.c.h.b16 %v11316
    %v11696 = vunpack.c.l.b16 %v11317
    %v11697 = vunpack.c.h.b16 %v11317
    %v11698 = vunpack.c.l.b16 %v11318
    %v11699 = vunpack.c.h.b16 %v11318
    %v11700 = vunpack.c.l.b16 %v11319
    %v11701 = vunpack.c.h.b16 %v11319
    %v11702 = vunpack.c.l.b16 %v11320
    %v11703 = vunpack.c.h.b16 %v11320
    %v11704 = vunpack.c.l.b16 %v11321
    %v11705 = vunpack.c.h.b16 %v11321
    %v11706 = vunpack.c.l.b16 %v11322
    %v11707 = vunpack.c.h.b16 %v11322
    %v11708 = vunpack.c.l.b16 %v11323
    %v11709 = vunpack.c.h.b16 %v11323
    %v11710 = vunpack.c.l.b16 %v11324
    %v11711 = vunpack.c.h.b16 %v11324
    %v11712 = vunpack.c.l.b16 %v11325
    %v11713 = vunpack.c.h.b16 %v11325
    %v11714 = vunpack.c.l.b16 %v11326
    %v11715 = vunpack.c.h.b16 %v11326
    %v11716 = vunpack.c.l.b16 %v11327
    %v11717 = vunpack.c.h.b16 %v11327
    %v11718 = vunpack.c.l.b16 %v11328
    %v11719 = vunpack.c.h.b16 %v11328
    %v11720 = vunpack.c.l.b16 %v11329
    %v11721 = vunpack.c.h.b16 %v11329
    %v11722 = vunpack.c.l.b16 %v11330
    %v11723 = vunpack.c.h.b16 %v11330
    %v11724 = vunpack.c.l.b16 %v11331
    %v11725 = vunpack.c.h.b16 %v11331
    %v11726 = vunpack.c.l.b16 %v11332
    %v11727 = vunpack.c.h.b16 %v11332
    %v11728 = vunpack.c.l.b16 %v11333
    %v11729 = vunpack.c.h.b16 %v11333
    %v11730 = vunpack.c.l.b16 %v11334
    %v11731 = vunpack.c.h.b16 %v11334
    %v11732 = vunpack.c.l.b16 %v11335
    %v11733 = vunpack.c.h.b16 %v11335
    %v11734 = vunpack.c.l.b16 %v11336
    %v11735 = vunpack.c.h.b16 %v11336
    %v11736 = vunpack.c.l.b16 %v11337
    %v11737 = vunpack.c.h.b16 %v11337
    %v11738 = vunpack.c.l.b16 %v11338
    %v11739 = vunpack.c.h.b16 %v11338
    %v11740 = vunpack.c.l.b16 %v11339
    %v11741 = vunpack.c.h.b16 %v11339
    %v11742 = vunpack.c.l.b16 %v11340
    %v11743 = vunpack.c.h.b16 %v11340
    %v11744 = vunpack.c.l.b16 %v11341
    %v11745 = vunpack.c.h.b16 %v11341
    %v11746 = vunpack.c.l.b16 %v11342
    %v11747 = vunpack.c.h.b16 %v11342
    %v11748 = vunpack.c.l.b16 %v11343
    %v11749 = vunpack.c.h.b16 %v11343
    %v11750 = vunpack.c.l.b16 %v11344
    %v11751 = vunpack.c.h.b16 %v11344
    %v11752 = vunpack.c.l.b16 %v11345
    %v11753 = vunpack.c.h.b16 %v11345
    %v11754 = vunpack.c.l.b16 %v11346
    %v11755 = vunpack.c.h.b16 %v11346
    %v11756 = vunpack.c.l.b16 %v11347
    %v11757 = vunpack.c.h.b16 %v11347
    %v11758 = vunpack.c.l.b16 %v11348
    %v11759 = vunpack.c.h.b16 %v11348
    %v11760 = vunpack.c.l.b16 %v11349
    %v11761 = vunpack.c.h.b16 %v11349
    %v11762 = vunpack.c.l.b16 %v11350
    %v11763 = vunpack.c.h.b16 %v11350
    %v11764 = vunpack.c.l.b16 %v11351
    %v11765 = vunpack.c.h.b16 %v11351
    %v11766 = vunpack.c.l.b16 %v11352
    %v11767 = vunpack.c.h.b16 %v11352
    %v11768 = vunpack.c.l.b16 %v11353
    %v11769 = vunpack.c.h.b16 %v11353
    %v11770 = vunpack.c.l.b16 %v11354
    %v11771 = vunpack.c.h.b16 %v11354
    %v11772 = vunpack.c.l.b16 %v11355
    %v11773 = vunpack.c.h.b16 %v11355
    %v11774 = vunpack.c.l.b16 %v11356
    %v11775 = vunpack.c.h.b16 %v11356
    %v11776 = vunpack.c.l.b16 %v11357
    %v11777 = vunpack.c.h.b16 %v11357
    %v11778 = vunpack.c.l.b16 %v11358
    %v11779 = vunpack.c.h.b16 %v11358
    %v11780 = vunpack.c.l.b16 %v11359
    %v11781 = vunpack.c.h.b16 %v11359
    %v11782 = vunpack.c.l.b16 %v11360
    %v11783 = vunpack.c.h.b16 %v11360
    %v11784 = vunpack.c.l.b16 %v11361
    %v11785 = vunpack.c.h.b16 %v11361
    %v11786 = vunpack.c.l.b16 %v11362
    %v11787 = vunpack.c.h.b16 %v11362
    %v11788 = vunpack.c.l.b16 %v11363
    %v11789 = vunpack.c.h.b16 %v11363
    %v11790 = vunpack.c.l.b16 %v11364
    %v11791 = vunpack.c.h.b16 %v11364
    %v11792 = vunpack.c.l.b16 %v11365
    %v11793 = vunpack.c.h.b16 %v11365
    %v11794 = vunpack.c.l.b16 %v11366
    %v11795 = vunpack.c.h.b16 %v11366
    %v11796 = vunpack.c.l.b16 %v11367
    %v11797 = vunpack.c.h.b16 %v11367
    %v11798 = vunpack.c.l.b16 %v11368
    %v11799 = vunpack.c.h.b16 %v11368
    %v11800 = vunpack.c.l.b16 %v11369
    %v11801 = vunpack.c.h.b16 %v11369
    %v11802 = vunpack.c.l.b16 %v11370
    %v11803 = vunpack.c.h.b16 %v11370
    %v11804 = vunpack.c.l.b16 %v11371
    %v11805 = vunpack.c.h.b16 %v11371
    %v11806 = vunpack.c.l.b16 %v11372
    %v11807 = vunpack.c.h.b16 %v11372
    %v11808 = vunpack.c.l.b16 %v11373
    %v11809 = vunpack.c.h.b16 %v11373
    %v11810 = vunpack.c.l.b16 %v11374
    %v11811 = vunpack.c.h.b16 %v11374
    %v11812 = vunpack.c.l.b16 %v11375
    %v11813 = vunpack.c.h.b16 %v11375
    %v11814 = vunpack.c.l.b16 %v11376
    %v11815 = vunpack.c.h.b16 %v11376
    %v11816 = vunpack.c.l.b16 %v11377
    %v11817 = vunpack.c.h.b16 %v11377
    %v11818 = vunpack.c.l.b16 %v11378
    %v11819 = vunpack.c.h.b16 %v11378
    %v11820 = vunpack.c.l.b16 %v11379
    %v11821 = vunpack.c.h.b16 %v11379
    %v11822 = vunpack.c.l.b16 %v11380
    %v11823 = vunpack.c.h.b16 %v11380
    %v11824 = vunpack.c.l.b16 %v11381
    %v11825 = vunpack.c.h.b16 %v11381
    %v11826 = vunpack.c.l.b16 %v11382
    %v11827 = vunpack.c.h.b16 %v11382
    %v11828 = vunpack.c.l.b16 %v11383
    %v11829 = vunpack.c.h.b16 %v11383
    %v11830 = vunpack.c.l.b16 %v11384
    %v11831 = vunpack.c.h.b16 %v11384
    %v11832 = vunpack.c.l.b16 %v11385
    %v11833 = vunpack.c.h.b16 %v11385
    %v11834 = vunpack.c.l.b16 %v11386
    %v11835 = vunpack.c.h.b16 %v11386
    %v11836 = vunpack.c.l.b16 %v11387
    %v11837 = vunpack.c.h.b16 %v11387
    %v11838 = vunpack.c.l.b16 %v11388
    %v11839 = vunpack.c.h.b16 %v11388
    %v11840 = vunpack.c.l.b16 %v11389
    %v11841 = vunpack.c.h.b16 %v11389
    %v11842 = vunpack.c.l.b16 %v11390
    %v11843 = vunpack.c.h.b16 %v11390
    %v11844 = vunpack.c.l.b16 %v11391
    %v11845 = vunpack.c.h.b16 %v11391
    %v11846 = vunpack.c.l.b16 %v11392
    %v11847 = vunpack.c.h.b16 %v11392
    %v11848 = vunpack.c.l.b16 %v11393
    %v11849 = vunpack.c.h.b16 %v11393
    %v11850 = vunpack.c.l.b16 %v11394
    %v11851 = vunpack.c.h.b16 %v11394
    %v11852 = vunpack.c.l.b16 %v11395
    %v11853 = vunpack.c.h.b16 %v11395
    %v11854 = vunpack.c.l.b16 %v11396
    %v11855 = vunpack.c.h.b16 %v11396
    %v11856 = vunpack.c.l.b16 %v11397
    %v11857 = vunpack.c.h.b16 %v11397
    %v11858 = vunpack.c.l.b16 %v11398
    %v11859 = vunpack.c.h.b16 %v11398
    %v11860 = vunpack.c.l.b16 %v11399
    %v11861 = vunpack.c.h.b16 %v11399
    %v11862 = vunpack.c.l.b16 %v11400
    %v11863 = vunpack.c.h.b16 %v11400
    %v11864 = vunpack.c.l.b16 %v11401
    %v11865 = vunpack.c.h.b16 %v11401
    %v11866 = vunpack.c.l.b16 %v11402
    %v11867 = vunpack.c.h.b16 %v11402
    %v11868 = vunpack.c.l.b16 %v11403
    %v11869 = vunpack.c.h.b16 %v11403
    %v11870 = vunpack.c.l.b16 %v11404
    %v11871 = vunpack.c.h.b16 %v11404
    %v11872 = vunpack.c.l.b16 %v11405
    %v11873 = vunpack.c.h.b16 %v11405
    %v11874 = vunpack.c.l.b16 %v11406
    %v11875 = vunpack.c.h.b16 %v11406
    %v11876 = vunpack.c.l.b16 %v11407
    %v11877 = vunpack.c.h.b16 %v11407
    %v11878 = vunpack.c.l.b16 %v11408
    %v11879 = vunpack.c.h.b16 %v11408
    %v11880 = vunpack.c.l.b16 %v11409
    %v11881 = vunpack.c.h.b16 %v11409
    %v11882 = vunpack.c.l.b16 %v11410
    %v11883 = vunpack.c.h.b16 %v11410
    %v11884 = vunpack.c.l.b16 %v11411
    %v11885 = vunpack.c.h.b16 %v11411
    %v11886 = vunpack.c.l.b16 %v11412
    %v11887 = vunpack.c.h.b16 %v11412
    %v11888 = vunpack.c.l.b16 %v11413
    %v11889 = vunpack.c.h.b16 %v11413
    %v11890 = vunpack.c.l.b16 %v11414
    %v11891 = vunpack.c.h.b16 %v11414
    %v11892 = vunpack.c.l.b16 %v11415
    %v11893 = vunpack.c.h.b16 %v11415
    %v11894 = vunpack.c.l.b16 %v11416
    %v11895 = vunpack.c.h.b16 %v11416
    %v11896 = vunpack.c.l.b16 %v11417
    %v11897 = vunpack.c.h.b16 %v11417
    %v11898 = vunpack.c.l.b16 %v11418
    %v11899 = vunpack.c.h.b16 %v11418
    %v11900 = vunpack.c.l.b16 %v11419
    %v11901 = vunpack.c.h.b16 %v11419
    %v11902 = vunpack.c.l.b16 %v11420
    %v11903 = vunpack.c.h.b16 %v11420
    %v11904 = vunpack.c.l.b16 %v11421
    %v11905 = vunpack.c.h.b16 %v11421
    %v11906 = vunpack.c.l.b16 %v11422
    %v11907 = vunpack.c.h.b16 %v11422
    %v11908 = vunpack.c.l.b16 %v11423
    %v11909 = vunpack.c.h.b16 %v11423
    %v11910 = vunpack.c.l.b16 %v11424
    %v11911 = vunpack.c.h.b16 %v11424
    %v11912 = vunpack.c.l.b16 %v11425
    %v11913 = vunpack.c.h.b16 %v11425
    %v11914 = vunpack.c.l.b16 %v11426
    %v11915 = vunpack.c.h.b16 %v11426
    %v11916 = vunpack.c.l.b16 %v11427
    %v11917 = vunpack.c.h.b16 %v11427
    %v11918 = vunpack.c.l.b16 %v11428
    %v11919 = vunpack.c.h.b16 %v11428
    %v11920 = vunpack.c.l.b16 %v11429
    %v11921 = vunpack.c.h.b16 %v11429
    %v11922 = vunpack.c.l.b16 %v11430
    %v11923 = vunpack.c.h.b16 %v11430
    %v11924 = vunpack.c.l.b16 %v11431
    %v11925 = vunpack.c.h.b16 %v11431
    %v11926 = vunpack.c.l.b16 %v11432
    %v11927 = vunpack.c.h.b16 %v11432
    %v11928 = vunpack.c.l.b16 %v11433
    %v11929 = vunpack.c.h.b16 %v11433
    %v11930 = vunpack.c.l.b16 %v11434
    %v11931 = vunpack.c.h.b16 %v11434
    %v11932 = vunpack.c.l.b16 %v11435
    %v11933 = vunpack.c.h.b16 %v11435
    %v11934 = vunpack.c.l.b16 %v11436
    %v11935 = vunpack.c.h.b16 %v11436
    %v11936 = vunpack.c.l.b16 %v11437
    %v11937 = vunpack.c.h.b16 %v11437
    %v11938 = vunpack.c.l.b16 %v11438
    %v11939 = vunpack.c.h.b16 %v11438
    %v11940 = vunpack.c.l.b16 %v11439
    %v11941 = vunpack.c.h.b16 %v11439
    %v11942 = vunpack.c.l.b16 %v11440
    %v11943 = vunpack.c.h.b16 %v11440
    %v11944 = vunpack.c.l.b16 %v11441
    %v11945 = vunpack.c.h.b16 %v11441
    %v11946 = vunpack.c.l.b16 %v11442
    %v11947 = vunpack.c.h.b16 %v11442
    %v11948 = vunpack.c.l.b16 %v11443
    %v11949 = vunpack.c.h.b16 %v11443
    %v11950 = vunpack.c.l.b16 %v11444
    %v11951 = vunpack.c.h.b16 %v11444
    %v11952 = vunpack.c.l.b16 %v11445
    %v11953 = vunpack.c.h.b16 %v11445
    %v11954 = vunpack.c.l.b16 %v11446
    %v11955 = vunpack.c.h.b16 %v11446
    %v11956 = vunpack.c.l.b16 %v11447
    %v11957 = vunpack.c.h.b16 %v11447
    %v11958 = vunpack.c.l.b16 %v11448
    %v11959 = vunpack.c.h.b16 %v11448
    %v11960 = vunpack.c.l.b16 %v11449
    %v11961 = vunpack.c.h.b16 %v11449
    %v11962 = vunpack.c.l.b16 %v11450
    %v11963 = vunpack.c.h.b16 %v11450
    %v11964 = vunpack.c.l.b16 %v11451
    %v11965 = vunpack.c.h.b16 %v11451
    %v11966 = vunpack.c.l.b16 %v11452
    %v11967 = vunpack.c.h.b16 %v11452
    %v11968 = vunpack.c.l.b16 %v11453
    %v11969 = vunpack.c.h.b16 %v11453
    %v11970 = vunpack.c.l.b16 %v11454
    %v11971 = vunpack.c.h.b16 %v11454
    %v11972 = vunpack.c.l.b16 %v11455
    %v11973 = vunpack.c.h.b16 %v11455
    %v11974 = vunpack.c.l.b16 %v11456
    %v11975 = vunpack.c.h.b16 %v11456
    %v11976 = vunpack.c.l.b16 %v11457
    %v11977 = vunpack.c.h.b16 %v11457
    %v11978 = vunpack.c.l.b16 %v11458
    %v11979 = vunpack.c.h.b16 %v11458
    %v11980 = vunpack.c.l.b16 %v11459
    %v11981 = vunpack.c.h.b16 %v11459
    %v11982 = vunpack.c.l.b16 %v11460
    %v11983 = vunpack.c.h.b16 %v11460
    %v11984 = vunpack.c.l.b16 %v11461
    %v11985 = vunpack.c.h.b16 %v11461
    %v11986 = vunpack.c.l.b16 %v11462
    %v11987 = vunpack.c.h.b16 %v11462
    %v11988 = vunpack.c.l.b16 %v11463
    %v11989 = vunpack.c.h.b16 %v11463
    %v11990 = vunpack.c.l.b16 %v11464
    %v11991 = vunpack.c.h.b16 %v11464
    %v11992 = vunpack.c.l.b16 %v11465
    %v11993 = vunpack.c.h.b16 %v11465
    %v11994 = vunpack.c.l.b16 %v11466
    %v11995 = vunpack.c.h.b16 %v11466
    %v11996 = vunpack.c.l.b16 %v11467
    %v11997 = vunpack.c.h.b16 %v11467
    %v11998 = vunpack.c.l.b16 %v11468
    %v11999 = vunpack.c.h.b16 %v11468
    %v12000 = vunpack.c.l.b16 %v11469
    %v12001 = vunpack.c.h.b16 %v11469
    %v12002 = vunpack.c.l.b16 %v11470
    %v12003 = vunpack.c.h.b16 %v11470
    %v12004 = vunpack.c.l.b16 %v11471
    %v12005 = vunpack.c.h.b16 %v11471
    %v12006 = vunpack.c.l.b16 %v11472
    %v12007 = vunpack.c.h.b16 %v11472
    %v12008 = vunpack.c.l.b16 %v11473
    %v12009 = vunpack.c.h.b16 %v11473
    %v12010 = vunpack.c.l.b16 %v11474
    %v12011 = vunpack.c.h.b16 %v11474
    %v12012 = vunpack.c.l.b16 %v11475
    %v12013 = vunpack.c.h.b16 %v11475
    %v12014 = vunpack.c.l.b16 %v11476
    %v12015 = vunpack.c.h.b16 %v11476
    %v12016 = vunpack.c.l.b16 %v11477
    %v12017 = vunpack.c.h.b16 %v11477
    %v12018 = vunpack.c.l.b16 %v11478
    %v12019 = vunpack.c.h.b16 %v11478
    %v12020 = vunpack.c.l.b16 %v11479
    %v12021 = vunpack.c.h.b16 %v11479
    %v12022 = vunpack.c.l.b16 %v11480
    %v12023 = vunpack.c.h.b16 %v11480
    %v12024 = vunpack.c.l.b16 %v11481
    %v12025 = vunpack.c.h.b16 %v11481
    %v12026 = vunpack.c.l.b16 %v11482
    %v12027 = vunpack.c.h.b16 %v11482
    %v12028 = vunpack.c.l.b16 %v11483
    %v12029 = vunpack.c.h.b16 %v11483
    %v12030 = vunpack.c.l.b16 %v11484
    %v12031 = vunpack.c.h.b16 %v11484
    %v12032 = vunpack.c.l.b16 %v11485
    %v12033 = vunpack.c.h.b16 %v11485
    %v12034 = vunpack.c.l.b16 %v11486
    %v12035 = vunpack.c.h.b16 %v11486
    %v12036 = vunpack.c.l.b16 %v11487
    %v12037 = vunpack.c.h.b16 %v11487
    %v12038 = vunpack.c.l.b16 %v11488
    %v12039 = vunpack.c.h.b16 %v11488
    %v12040 = vunpack.c.l.b16 %v11489
    %v12041 = vunpack.c.h.b16 %v11489
    %v12042 = vunpack.c.l.b16 %v11490
    %v12043 = vunpack.c.h.b16 %v11490
    %v12044 = vunpack.c.l.b16 %v11491
    %v12045 = vunpack.c.h.b16 %v11491
    %v12046 = vpack.c.b16 %v11696, %v11694
    %v12047 = vpack.c.b16 %v11697, %v11695
    %v12048 = vpack.c.b16 %v11700, %v11698
    %v12049 = vpack.c.b16 %v11701, %v11699
    %v12050 = vpack.c.b16 %v11704, %v11702
    %v12051 = vpack.c.b16 %v11705, %v11703
    %v12052 = vpack.c.b16 %v11708, %v11706
    %v12053 = vpack.c.b16 %v11709, %v11707
    %v12054 = vpack.c.b16 %v11712, %v11710
    %v12055 = vpack.c.b16 %v11713, %v11711
    %v12056 = vpack.c.b16 %v11716, %v11714
    %v12057 = vpack.c.b16 %v11717, %v11715
    %v12058 = vpack.c.b16 %v11720, %v11718
    %v12059 = vpack.c.b16 %v11721, %v11719
    %v12060 = vpack.c.b16 %v11724, %v11722
    %v12061 = vpack.c.b16 %v11725, %v11723
    %v12062 = vpack.c.b16 %v11728, %v11726
    %v12063 = vpack.c.b16 %v11729, %v11727
    %v12064 = vpack.c.b16 %v11732, %v11730
    %v12065 = vpack.c.b16 %v11733, %v11731
    %v12066 = vpack.c.b16 %v11736, %v11734
    %v12067 = vpack.c.b16 %v11737, %v11735
    %v12068 = vpack.c.b16 %v11740, %v11738
    %v12069 = vpack.c.b16 %v11741, %v11739
    %v12070 = vpack.c.b16 %v11744, %v11742
    %v12071 = vpack.c.b16 %v11745, %v11743
    %v12072 = vpack.c.b16 %v11748, %v11746
    %v12073 = vpack.c.b16 %v11749, %v11747
    %v12074 = vpack.c.b16 %v11752, %v11750
    %v12075 = vpack.c.b16 %v11753, %v11751
    %v12076 = vpack.c.b16 %v11756, %v11754
    %v12077 = vpack.c.b16 %v11757, %v11755
    %v12078 = vpack.c.b16 %v11760, %v11758
    %v12079 = vpack.c.b16 %v11761, %v11759
    %v12080 = vpack.c.b16 %v11764, %v11762
    %v12081 = vpack.c.b16 %v11765, %v11763
    %v12082 = vpack.c.b16 %v11768, %v11766
    %v12083 = vpack.c.b16 %v11769, %v11767
    %v12084 = vpack.c.b16 %v11772, %v11770
    %v12085 = vpack.c.b16 %v11773, %v11771
    %v12086 = vpack.c.b16 %v11776, %v11774
    %v12087 = vpack.c.b16 %v11777, %v11775
    %v12088 = vpack.c.b16 %v11780, %v11778
    %v12089 = vpack.c.b16 %v11781, %v11779
    %v12090 = vpack.c.b16 %v11784, %v11782
    %v12091 = vpack.c.b16 %v11785, %v11783
    %v12092 = vpack.c.b16 %v11788, %v11786
    %v12093 = vpack.c.b16 %v11789, %v11787
    %v12094 = vpack.c.b16 %v11792, %v11790
    %v12095 = vpack.c.b16 %v11793, %v11791
    %v12096 = vpack.c.b16 %v11796, %v11794
    %v12097 = vpack.c.b16 %v11797, %v11795
    %v12098 = vpack.c.b16 %v11800, %v11798
    %v12099 = vpack.c.b16 %v11801, %v11799
    %v12100 = vpack.c.b16 %v11804, %v11802
    %v12101 = vpack.c.b16 %v11805, %v11803
    %v12102 = vpack.c.b16 %v11808, %v11806
    %v12103 = vpack.c.b16 %v11809, %v11807
    %v12104 = vpack.c.b16 %v11812, %v11810
    %v12105 = vpack.c.b16 %v11813, %v11811
    %v12106 = vpack.c.b16 %v11816, %v11814
    %v12107 = vpack.c.b16 %v11817, %v11815
    %v12108 = vpack.c.b16 %v11820, %v11818
    %v12109 = vpack.c.b16 %v11821, %v11819
    %v12110 = vpack.c.b16 %v11824, %v11822
    %v12111 = vpack.c.b16 %v11825, %v11823
    %v12112 = vpack.c.b16 %v11828, %v11826
    %v12113 = vpack.c.b16 %v11829, %v11827
    %v12114 = vpack.c.b16 %v11832, %v11830
    %v12115 = vpack.c.b16 %v11833, %v11831
    %v12116 = vpack.c.b16 %v11836, %v11834
    %v12117 = vpack.c.b16 %v11837, %v11835
    %v12118 = vpack.c.b16 %v11840, %v11838
    %v12119 = vpack.c.b16 %v11841, %v11839
    %v12120 = vpack.c.b16 %v11844, %v11842
    %v12121 = vpack.c.b16 %v11845, %v11843
    %v12122 = vpack.c.b16 %v11848, %v11846
    %v12123 = vpack.c.b16 %v11849, %v11847
    %v12124 = vpack.c.b16 %v11852, %v11850
    %v12125 = vpack.c.b16 %v11853, %v11851
    %v12126 = vpack.c.b16 %v11856, %v11854
    %v12127 = vpack.c.b16 %v11857, %v11855
    %v12128 = vpack.c.b16 %v11860, %v11858
    %v12129 = vpack.c.b16 %v11861, %v11859
    %v12130 = vpack.c.b16 %v11864, %v11862
    %v12131 = vpack.c.b16 %v11865, %v11863
    %v12132 = vpack.c.b16 %v11868, %v11866
    %v12133 = vpack.c.b16 %v11869, %v11867
    %v12134 = vpack.c.b16 %v11872, %v11870
    %v12135 = vpack.c.b16 %v11873, %v11871
    %v12136 = vpack.c.b16 %v11876, %v11874
    %v12137 = vpack.c.b16 %v11877, %v11875
    %v12138 = vpack.c.b16 %v11880, %v11878
    %v12139 = vpack.c.b16 %v11881, %v11879
    %v12140 = vpack.c.b16 %v11884, %v11882
    %v12141 = vpack.c.b16 %v11885, %v11883
    %v12142 = vpack.c.b16 %v11888, %v11886
    %v12143 = vpack.c.b16 %v11889, %v11887
    %v12144 = vpack.c.b16 %v11892, %v11890
    %v12145 = vpack.c.b16 %v11893, %v11891
    %v12146 = vpack.c.b16 %v11896, %v11894
    %v12147 = vpack.c.b16 %v11897, %v11895
    %v12148 = vpack.c.b16 %v11900, %v11898
    %v12149 = vpack.c.b16 %v11901, %v11899
    %v12150 = vpack.c.b16 %v11904, %v11902
    %v12151 = vpack.c.b16 %v11905, %v11903
    %v12152 = vpack.c.b16 %v11908, %v11906
    %v12153 = vpack.c.b16 %v11909, %v11907
    %v12154 = vpack.c.b16 %v11912, %v11910
    %v12155 = vpack.c.b16 %v11913, %v11911
    %v12156 = vpack.c.b16 %v11916, %v11914
    %v12157 = vpack.c.b16 %v11917, %v11915
    %v12158 = vpack.c.b16 %v11920, %v11918
    %v12159 = vpack.c.b16 %v11921, %v11919
    %v12160 = vpack.c.b16 %v11924, %v11922
    %v12161 = vpack.c.b16 %v11925, %v11923
    %v12162 = vpack.c.b16 %v11928, %v11926
    %v12163 = vpack.c.b16 %v11929, %v11927
    %v12164 = vpack.c.b16 %v11932, %v11930
    %v12165 = vpack.c.b16 %v11933, %v11931
    %v12166 = vpack.c.b16 %v11936, %v11934
    %v12167 = vpack.c.b16 %v11937, %v11935
    %v12168 = vpack.c.b16 %v11940, %v11938
    %v12169 = vpack.c.b16 %v11941, %v11939
    %v12170 = vpack.c.b16 %v11944, %v11942
    %v12171 = vpack.c.b16 %v11945, %v11943
    %v12172 = vpack.c.b16 %v11948, %v11946
    %v12173 = vpack.c.b16 %v11949, %v11947
    %v12174 = vpack.c.b16 %v11952, %v11950
    %v12175 = vpack.c.b16 %v11953, %v11951
    %v12176 = vpack.c.b16 %v11956, %v11954
    %v12177 = vpack.c.b16 %v11957, %v11955
    %v12178 = vpack.c.b16 %v11960, %v11958
    %v12179 = vpack.c.b16 %v11961, %v11959
    %v12180 = vpack.c.b16 %v11964, %v11962
    %v12181 = vpack.c.b16 %v11965, %v11963
    %v12182 = vpack.c.b16 %v11968, %v11966
    %v12183 = vpack.c.b16 %v11969, %v11967
    %v12184 = vpack.c.b16 %v11972, %v11970
    %v12185 = vpack.c.b16 %v11973, %v11971
    %v12186 = vpack.c.b16 %v11976, %v11974
    %v12187 = vpack.c.b16 %v11977, %v11975
    %v12188 = vpack.c.b16 %v11980, %v11978
    %v12189 = vpack.c.b16 %v11981, %v11979
    %v12190 = vpack.c.b16 %v11984, %v11982
    %v12191 = vpack.c.b16 %v11985, %v11983
    %v12192 = vpack.c.b16 %v11988, %v11986
    %v12193 = vpack.c.b16 %v11989, %v11987
    %v12194 = vpack.c.b16 %v11992, %v11990
    %v12195 = vpack.c.b16 %v11993, %v11991
    %v12196 = vpack.c.b16 %v11996, %v11994
    %v12197 = vpack.c.b16 %v11997, %v11995
    %v12198 = vpack.c.b16 %v12000, %v11998
    %v12199 = vpack.c.b16 %v12001, %v11999
    %v12200 = vpack.c.b16 %v12004, %v12002
    %v12201 = vpack.c.b16 %v12005, %v12003
    %v12202 = vpack.c.b16 %v12008, %v12006
    %v12203 = vpack.c.b16 %v12009, %v12007
    %v12204 = vpack.c.b16 %v12012, %v12010
    %v12205 = vpack.c.b16 %v12013, %v12011
    %v12206 = vpack.c.b16 %v12016, %v12014
    %v12207 = vpack.c.b16 %v12017, %v12015
    %v12208 = vpack.c.b16 %v12020, %v12018
    %v12209 = vpack.c.b16 %v12021, %v12019
    %v12210 = vpack.c.b16 %v12024, %v12022
    %v12211 = vpack.c.b16 %v12025, %v12023
    %v12212 = vpack.c.b16 %v12028, %v12026
    %v12213 = vpack.c.b16 %v12029, %v12027
    %v12214 = vpack.c.b16 %v12032, %v12030
    %v12215 = vpack.c.b16 %v12033, %v12031
    %v12216 = vpack.c.b16 %v12036, %v12034
    %v12217 = vpack.c.b16 %v12037, %v12035
    %v12218 = vpack.c.b16 %v12040, %v12038
    %v12219 = vpack.c.b16 %v12041, %v12039
    %v12220 = vpack.c.b16 %v12044, %v12042
    %v12221 = vpack.c.b16 %v12045, %v12043
    %12398 = vmatpush.bf16.msra.mxu0 %v12060
    %12399 = vmatpush.bf16.msra.mxu0 %v12058
    %12400 = vmatpush.bf16.msra.mxu0 %v12056
    %12401 = vmatpush.bf16.msra.mxu0 %v12054
    %12402 = vmatpush.bf16.msra.mxu0 %v12052
    %12403 = vmatpush.bf16.msra.mxu0 %v12050
    %12404 = vmatpush.bf16.msra.mxu0 %v12048
    %12405 = vmatpush.bf16.msra.mxu0 %v12046
    %12406 = vmatmul.bf16.gmra.mxu0 %v11494
    %v12407 = vpop.f32.mrf.mxu0
    %v12408 = vadd.f32 0.0, %v12407
    %v12409 = vpop.f32.mrf.mxu0
    %12410 = vdwg.mxu0
    %12411 = vmatpush.bf16.msra.mxu0 %v12076
    %12412 = vmatpush.bf16.msra.mxu0 %v12074
    %12413 = vmatpush.bf16.msra.mxu0 %v12072
    %12414 = vmatpush.bf16.msra.mxu0 %v12070
    %12415 = vmatpush.bf16.msra.mxu0 %v12068
    %12416 = vmatpush.bf16.msra.mxu0 %v12066
    %12417 = vmatpush.bf16.msra.mxu0 %v12064
    %12418 = vmatpush.bf16.msra.mxu0 %v12062
    %12419 = vmatmul.bf16.gmra.mxu0 %v11495
    %v12420 = vpop.f32.mrf.mxu0
    %v12421 = vadd.f32 %v12408, %v12420
    %v12422 = vpop.f32.mrf.mxu0
    %12423 = vdwg.mxu0
    %12424 = vmatpush.bf16.msra.mxu0 %v12092
    %12425 = vmatpush.bf16.msra.mxu0 %v12090
    %12426 = vmatpush.bf16.msra.mxu0 %v12088
    %12427 = vmatpush.bf16.msra.mxu0 %v12086
    %12428 = vmatpush.bf16.msra.mxu0 %v12084
    %12429 = vmatpush.bf16.msra.mxu0 %v12082
    %12430 = vmatpush.bf16.msra.mxu0 %v12080
    %12431 = vmatpush.bf16.msra.mxu0 %v12078
    %12432 = vmatmul.bf16.gmra.mxu0 %v11496
    %v12433 = vpop.f32.mrf.mxu0
    %v12434 = vadd.f32 %v12421, %v12433
    %v12435 = vpop.f32.mrf.mxu0
    %12436 = vdwg.mxu0
    %12437 = vmatpush.bf16.msra.mxu0 %v12108
    %12438 = vmatpush.bf16.msra.mxu0 %v12106
    %12439 = vmatpush.bf16.msra.mxu0 %v12104
    %12440 = vmatpush.bf16.msra.mxu0 %v12102
    %12441 = vmatpush.bf16.msra.mxu0 %v12100
    %12442 = vmatpush.bf16.msra.mxu0 %v12098
    %12443 = vmatpush.bf16.msra.mxu0 %v12096
    %12444 = vmatpush.bf16.msra.mxu0 %v12094
    %12445 = vmatmul.bf16.gmra.mxu0 %v11497
    %v12446 = vpop.f32.mrf.mxu0
    %v12447 = vadd.f32 %v12434, %v12446
    %v12448 = vpop.f32.mrf.mxu0
    %12449 = vdwg.mxu0
    %12450 = vmatpush.bf16.msra.mxu0 %v12124
    %12451 = vmatpush.bf16.msra.mxu0 %v12122
    %12452 = vmatpush.bf16.msra.mxu0 %v12120
    %12453 = vmatpush.bf16.msra.mxu0 %v12118
    %12454 = vmatpush.bf16.msra.mxu0 %v12116
    %12455 = vmatpush.bf16.msra.mxu0 %v12114
    %12456 = vmatpush.bf16.msra.mxu0 %v12112
    %12457 = vmatpush.bf16.msra.mxu0 %v12110
    %12458 = vmatmul.bf16.gmra.mxu0 %v11498
    %v12459 = vpop.f32.mrf.mxu0
    %v12460 = vadd.f32 %v12447, %v12459
    %v12461 = vpop.f32.mrf.mxu0
    %12462 = vdwg.mxu0
    %12463 = vmatpush.bf16.msra.mxu0 %v12140
    %12464 = vmatpush.bf16.msra.mxu0 %v12138
    %12465 = vmatpush.bf16.msra.mxu0 %v12136
    %12466 = vmatpush.bf16.msra.mxu0 %v12134
    %12467 = vmatpush.bf16.msra.mxu0 %v12132
    %12468 = vmatpush.bf16.msra.mxu0 %v12130
    %12469 = vmatpush.bf16.msra.mxu0 %v12128
    %12470 = vmatpush.bf16.msra.mxu0 %v12126
    %12471 = vmatmul.bf16.gmra.mxu0 %v11499
    %v12472 = vpop.f32.mrf.mxu0
    %v12473 = vadd.f32 %v12460, %v12472
    %v12474 = vpop.f32.mrf.mxu0
    %12475 = vdwg.mxu0
    %12476 = vmatpush.bf16.msra.mxu0 %v12156
    %12477 = vmatpush.bf16.msra.mxu0 %v12154
    %12478 = vmatpush.bf16.msra.mxu0 %v12152
    %12479 = vmatpush.bf16.msra.mxu0 %v12150
    %12480 = vmatpush.bf16.msra.mxu0 %v12148
    %12481 = vmatpush.bf16.msra.mxu0 %v12146
    %12482 = vmatpush.bf16.msra.mxu0 %v12144
    %12483 = vmatpush.bf16.msra.mxu0 %v12142
    %12484 = vmatmul.bf16.gmra.mxu0 %v11500
    %v12485 = vpop.f32.mrf.mxu0
    %v12486 = vadd.f32 %v12473, %v12485
    %v12487 = vpop.f32.mrf.mxu0
    %12488 = vdwg.mxu0
    %12489 = vmatpush.bf16.msra.mxu0 %v12172
    %12490 = vmatpush.bf16.msra.mxu0 %v12170
    %12491 = vmatpush.bf16.msra.mxu0 %v12168
    %12492 = vmatpush.bf16.msra.mxu0 %v12166
    %12493 = vmatpush.bf16.msra.mxu0 %v12164
    %12494 = vmatpush.bf16.msra.mxu0 %v12162
    %12495 = vmatpush.bf16.msra.mxu0 %v12160
    %12496 = vmatpush.bf16.msra.mxu0 %v12158
    %12497 = vmatmul.bf16.gmra.mxu0 %v11501
    %v12498 = vpop.f32.mrf.mxu0
    %v12499 = vadd.f32 %v12486, %v12498
    %v12500 = vpop.f32.mrf.mxu0
    %12501 = vdwg.mxu0
    %12502 = vmatpush.bf16.msra.mxu0 %v12188
    %12503 = vmatpush.bf16.msra.mxu0 %v12186
    %12504 = vmatpush.bf16.msra.mxu0 %v12184
    %12505 = vmatpush.bf16.msra.mxu0 %v12182
    %12506 = vmatpush.bf16.msra.mxu0 %v12180
    %12507 = vmatpush.bf16.msra.mxu0 %v12178
    %12508 = vmatpush.bf16.msra.mxu0 %v12176
    %12509 = vmatpush.bf16.msra.mxu0 %v12174
    %12510 = vmatmul.bf16.gmra.mxu0 %v11504
    %v12511 = vpop.f32.mrf.mxu0
    %v12512 = vadd.f32 %v12499, %v12511
    %v12513 = vpop.f32.mrf.mxu0
    %12514 = vdwg.mxu0
    %12515 = vmatpush.bf16.msra.mxu0 %v12204
    %12516 = vmatpush.bf16.msra.mxu0 %v12202
    %12517 = vmatpush.bf16.msra.mxu0 %v12200
    %12518 = vmatpush.bf16.msra.mxu0 %v12198
    %12519 = vmatpush.bf16.msra.mxu0 %v12196
    %12520 = vmatpush.bf16.msra.mxu0 %v12194
    %12521 = vmatpush.bf16.msra.mxu0 %v12192
    %12522 = vmatpush.bf16.msra.mxu0 %v12190
    %12523 = vmatmul.bf16.gmra.mxu0 %v11505
    %v12524 = vpop.f32.mrf.mxu0
    %v12525 = vadd.f32 %v12512, %v12524
    %v12526 = vpop.f32.mrf.mxu0
    %12527 = vdwg.mxu0
    %12528 = vmatpush.bf16.msra.mxu0 %v12220
    %12529 = vmatpush.bf16.msra.mxu0 %v12218
    %12530 = vmatpush.bf16.msra.mxu0 %v12216
    %12531 = vmatpush.bf16.msra.mxu0 %v12214
    %12532 = vmatpush.bf16.msra.mxu0 %v12212
    %12533 = vmatpush.bf16.msra.mxu0 %v12210
    %12534 = vmatpush.bf16.msra.mxu0 %v12208
    %12535 = vmatpush.bf16.msra.mxu0 %v12206
    %12536 = vmatmul.bf16.gmra.mxu0 %v11506
    %v12537 = vpop.f32.mrf.mxu0
    %v12538 = vadd.f32 %v12525, %v12537
    %v12539 = vpop.f32.mrf.mxu0
    %12540 = vdwg.mxu0
    %12541 = vmatpush.bf16.msra.mxu0 %v12061
    %12542 = vmatpush.bf16.msra.mxu0 %v12059
    %12543 = vmatpush.bf16.msra.mxu0 %v12057
    %12544 = vmatpush.bf16.msra.mxu0 %v12055
    %12545 = vmatpush.bf16.msra.mxu0 %v12053
    %12546 = vmatpush.bf16.msra.mxu0 %v12051
    %12547 = vmatpush.bf16.msra.mxu0 %v12049
    %12548 = vmatpush.bf16.msra.mxu0 %v12047
    %12549 = vmatmul.bf16.gmra.mxu0 %v11494
    %v12550 = vpop.f32.mrf.mxu0
    %v12551 = vadd.f32 0.0, %v12550
    %v12552 = vpop.f32.mrf.mxu0
    %12553 = vdwg.mxu0
    %12554 = vmatpush.bf16.msra.mxu0 %v12077
    %12555 = vmatpush.bf16.msra.mxu0 %v12075
    %12556 = vmatpush.bf16.msra.mxu0 %v12073
    %12557 = vmatpush.bf16.msra.mxu0 %v12071
    %12558 = vmatpush.bf16.msra.mxu0 %v12069
    %12559 = vmatpush.bf16.msra.mxu0 %v12067
    %12560 = vmatpush.bf16.msra.mxu0 %v12065
    %12561 = vmatpush.bf16.msra.mxu0 %v12063
    %12562 = vmatmul.bf16.gmra.mxu0 %v11495
    %v12563 = vpop.f32.mrf.mxu0
    %v12564 = vadd.f32 %v12551, %v12563
    %v12565 = vpop.f32.mrf.mxu0
    %12566 = vdwg.mxu0
    %12567 = vmatpush.bf16.msra.mxu0 %v12093
    %12568 = vmatpush.bf16.msra.mxu0 %v12091
    %12569 = vmatpush.bf16.msra.mxu0 %v12089
    %12570 = vmatpush.bf16.msra.mxu0 %v12087
    %12571 = vmatpush.bf16.msra.mxu0 %v12085
    %12572 = vmatpush.bf16.msra.mxu0 %v12083
    %12573 = vmatpush.bf16.msra.mxu0 %v12081
    %12574 = vmatpush.bf16.msra.mxu0 %v12079
    %12575 = vmatmul.bf16.gmra.mxu0 %v11496
    %v12576 = vpop.f32.mrf.mxu0
    %v12577 = vadd.f32 %v12564, %v12576
    %v12578 = vpop.f32.mrf.mxu0
    %12579 = vdwg.mxu0
    %12580 = vmatpush.bf16.msra.mxu0 %v12109
    %12581 = vmatpush.bf16.msra.mxu0 %v12107
    %12582 = vmatpush.bf16.msra.mxu0 %v12105
    %12583 = vmatpush.bf16.msra.mxu0 %v12103
    %12584 = vmatpush.bf16.msra.mxu0 %v12101
    %12585 = vmatpush.bf16.msra.mxu0 %v12099
    %12586 = vmatpush.bf16.msra.mxu0 %v12097
    %12587 = vmatpush.bf16.msra.mxu0 %v12095
    %12588 = vmatmul.bf16.gmra.mxu0 %v11497
    %v12589 = vpop.f32.mrf.mxu0
    %v12590 = vadd.f32 %v12577, %v12589
    %v12591 = vpop.f32.mrf.mxu0
    %12592 = vdwg.mxu0
    %12593 = vmatpush.bf16.msra.mxu0 %v12125
    %12594 = vmatpush.bf16.msra.mxu0 %v12123
    %12595 = vmatpush.bf16.msra.mxu0 %v12121
    %12596 = vmatpush.bf16.msra.mxu0 %v12119
    %12597 = vmatpush.bf16.msra.mxu0 %v12117
    %12598 = vmatpush.bf16.msra.mxu0 %v12115
    %12599 = vmatpush.bf16.msra.mxu0 %v12113
    %12600 = vmatpush.bf16.msra.mxu0 %v12111
    %12601 = vmatmul.bf16.gmra.mxu0 %v11498
    %v12602 = vpop.f32.mrf.mxu0
    %v12603 = vadd.f32 %v12590, %v12602
    %v12604 = vpop.f32.mrf.mxu0
    %12605 = vdwg.mxu0
    %12606 = vmatpush.bf16.msra.mxu0 %v12141
    %12607 = vmatpush.bf16.msra.mxu0 %v12139
    %12608 = vmatpush.bf16.msra.mxu0 %v12137
    %12609 = vmatpush.bf16.msra.mxu0 %v12135
    %12610 = vmatpush.bf16.msra.mxu0 %v12133
    %12611 = vmatpush.bf16.msra.mxu0 %v12131
    %12612 = vmatpush.bf16.msra.mxu0 %v12129
    %12613 = vmatpush.bf16.msra.mxu0 %v12127
    %12614 = vmatmul.bf16.gmra.mxu0 %v11499
    %v12615 = vpop.f32.mrf.mxu0
    %v12616 = vadd.f32 %v12603, %v12615
    %v12617 = vpop.f32.mrf.mxu0
    %12618 = vdwg.mxu0
    %12619 = vmatpush.bf16.msra.mxu0 %v12157
    %12620 = vmatpush.bf16.msra.mxu0 %v12155
    %12621 = vmatpush.bf16.msra.mxu0 %v12153
    %12622 = vmatpush.bf16.msra.mxu0 %v12151
    %12623 = vmatpush.bf16.msra.mxu0 %v12149
    %12624 = vmatpush.bf16.msra.mxu0 %v12147
    %12625 = vmatpush.bf16.msra.mxu0 %v12145
    %12626 = vmatpush.bf16.msra.mxu0 %v12143
    %12627 = vmatmul.bf16.gmra.mxu0 %v11500
    %v12628 = vpop.f32.mrf.mxu0
    %v12629 = vadd.f32 %v12616, %v12628
    %v12630 = vpop.f32.mrf.mxu0
    %12631 = vdwg.mxu0
    %12632 = vmatpush.bf16.msra.mxu0 %v12173
    %12633 = vmatpush.bf16.msra.mxu0 %v12171
    %12634 = vmatpush.bf16.msra.mxu0 %v12169
    %12635 = vmatpush.bf16.msra.mxu0 %v12167
    %12636 = vmatpush.bf16.msra.mxu0 %v12165
    %12637 = vmatpush.bf16.msra.mxu0 %v12163
    %12638 = vmatpush.bf16.msra.mxu0 %v12161
    %12639 = vmatpush.bf16.msra.mxu0 %v12159
    %12640 = vmatmul.bf16.gmra.mxu0 %v11501
    %v12641 = vpop.f32.mrf.mxu0
    %v12642 = vadd.f32 %v12629, %v12641
    %v12643 = vpop.f32.mrf.mxu0
    %12644 = vdwg.mxu0
    %12645 = vmatpush.bf16.msra.mxu0 %v12189
    %12646 = vmatpush.bf16.msra.mxu0 %v12187
    %12647 = vmatpush.bf16.msra.mxu0 %v12185
    %12648 = vmatpush.bf16.msra.mxu0 %v12183
    %12649 = vmatpush.bf16.msra.mxu0 %v12181
    %12650 = vmatpush.bf16.msra.mxu0 %v12179
    %12651 = vmatpush.bf16.msra.mxu0 %v12177
    %12652 = vmatpush.bf16.msra.mxu0 %v12175
    %12653 = vmatmul.bf16.gmra.mxu0 %v11504
    %v12654 = vpop.f32.mrf.mxu0
    %v12655 = vadd.f32 %v12642, %v12654
    %v12656 = vpop.f32.mrf.mxu0
    %12657 = vdwg.mxu0
    %12658 = vmatpush.bf16.msra.mxu0 %v12205
    %12659 = vmatpush.bf16.msra.mxu0 %v12203
    %12660 = vmatpush.bf16.msra.mxu0 %v12201
    %12661 = vmatpush.bf16.msra.mxu0 %v12199
    %12662 = vmatpush.bf16.msra.mxu0 %v12197
    %12663 = vmatpush.bf16.msra.mxu0 %v12195
    %12664 = vmatpush.bf16.msra.mxu0 %v12193
    %12665 = vmatpush.bf16.msra.mxu0 %v12191
    %12666 = vmatmul.bf16.gmra.mxu0 %v11505
    %v12667 = vpop.f32.mrf.mxu0
    %v12668 = vadd.f32 %v12655, %v12667
    %v12669 = vpop.f32.mrf.mxu0
    %12670 = vdwg.mxu0
    %12671 = vmatpush.bf16.msra.mxu0 %v12221
    %12672 = vmatpush.bf16.msra.mxu0 %v12219
    %12673 = vmatpush.bf16.msra.mxu0 %v12217
    %12674 = vmatpush.bf16.msra.mxu0 %v12215
    %12675 = vmatpush.bf16.msra.mxu0 %v12213
    %12676 = vmatpush.bf16.msra.mxu0 %v12211
    %12677 = vmatpush.bf16.msra.mxu0 %v12209
    %12678 = vmatpush.bf16.msra.mxu0 %v12207
    %12679 = vmatmul.bf16.gmra.mxu0 %v11506
    %v12680 = vpop.f32.mrf.mxu0
    %v12681 = vadd.f32 %v12668, %v12680
    %v12682 = vpop.f32.mrf.mxu0
    %12683 = vdwg.mxu0
    %v12684 = vadd.f32 %v11310, %v12538
    %v12685 = vadd.f32 %v11311, %v12681
    %v12686 = vld [vmem:[#allocation17] sm:$0x3]
    %v12688 = vperm.slane %v12686, 0
    %v12689 = vperm.slane %v12686, 1
    %v12692 = vadd.f32 %v12684, %v12688
    %v12693 = vadd.f32 %v12685, %v12689
    %v12694 = vmax.f32 %v12692, 0.0
    %v12695 = vmax.f32 %v12693, 0.0
    %v12696 = vld [vmem:[%s9] sm:$0xff]
    %v12697 = vld [vmem:[%s9 + $0x8] sm:$0xff]
    %v12698 = vld [vmem:[%s9 + $0x10] sm:$0xff]
    %v12699 = vld [vmem:[%s9 + $0x18] sm:$0xff]
    %v12700 = vld [vmem:[%s9 + $0x20] sm:$0xff]
    %v12701 = vld [vmem:[%s9 + $0x28] sm:$0xff]
    %v12702 = vld [vmem:[%s9 + $0x30] sm:$0xff]
    %v12703 = vld [vmem:[%s9 + $0x38] sm:$0xff]
    %v12704 = vld [vmem:[%s9 + $0x40] sm:$0xff]
    %v12705 = vld [vmem:[%s9 + $0x48] sm:$0xff]
    %v12706 = vld [vmem:[%s9 + $0x50] sm:$0xff]
    %v12707 = vld [vmem:[%s9 + $0x58] sm:$0xff]
    %v12708 = vld [vmem:[%s9 + $0x60] sm:$0xff]
    %v12709 = vld [vmem:[%s9 + $0x68] sm:$0xff]
    %v12710 = vld [vmem:[%s9 + $0x70] sm:$0xff]
    %v12711 = vld [vmem:[%s9 + $0x78] sm:$0xff]
    %v12712 = vld [vmem:[%s9 + $0x80] sm:$0xff]
    %v12713 = vld [vmem:[%s9 + $0x88] sm:$0xff]
    %v12714 = vld [vmem:[%s9 + $0x90] sm:$0xff]
    %v12715 = vld [vmem:[%s9 + $0x98] sm:$0xff]
    %v12716 = vld [vmem:[%s9 + $0xa0] sm:$0xff]
    %v12717 = vld [vmem:[%s9 + $0xa8] sm:$0xff]
    %v12718 = vld [vmem:[%s9 + $0xb0] sm:$0xff]
    %v12719 = vld [vmem:[%s9 + $0xb8] sm:$0xff]
    %v12720 = vld [vmem:[%s9 + $0xc0] sm:$0xff]
    %v12721 = vld [vmem:[%s9 + $0xc8] sm:$0xff]
    %v12722 = vld [vmem:[%s9 + $0xd0] sm:$0xff]
    %v12723 = vld [vmem:[%s9 + $0xd8] sm:$0xff]
    %v12724 = vld [vmem:[%s9 + $0xe0] sm:$0xff]
    %v12725 = vld [vmem:[%s9 + $0xe8] sm:$0xff]
    %v12726 = vld [vmem:[%s9 + $0xf0] sm:$0xff]
    %v12727 = vld [vmem:[%s9 + $0xf8] sm:$0xff]
    %v12728 = vld [vmem:[#allocation18] sm:$0x1]
    %v12730 = vperm.slane %v12728, 0
    %12732 = vmatpush.msra.mxu0 %v12711
    %12733 = vmatpush.msra.mxu0 %v12710
    %12734 = vmatpush.msra.mxu0 %v12709
    %12735 = vmatpush.msra.mxu0 %v12708
    %12736 = vmatpush.msra.mxu0 %v12707
    %12737 = vmatpush.msra.mxu0 %v12706
    %12738 = vmatpush.msra.mxu0 %v12705
    %12739 = vmatpush.msra.mxu0 %v12704
    %12740 = vmatpush.msra.mxu0 %v12703
    %12741 = vmatpush.msra.mxu0 %v12702
    %12742 = vmatpush.msra.mxu0 %v12701
    %12743 = vmatpush.msra.mxu0 %v12700
    %12744 = vmatpush.msra.mxu0 %v12699
    %12745 = vmatpush.msra.mxu0 %v12698
    %12746 = vmatpush.msra.mxu0 %v12697
    %12747 = vmatpush.msra.mxu0 %v12696
    %12748 = vmatmul.f32.gmra.mxu0 %v12694
    %v12749 = vpop.f32.mrf.mxu0
    %v12750 = vadd.f32 %v12730, %v12749
    %12751 = vdwg.mxu0
    %12752 = vmatpush.msra.mxu0 %v12727
    %12753 = vmatpush.msra.mxu0 %v12726
    %12754 = vmatpush.msra.mxu0 %v12725
    %12755 = vmatpush.msra.mxu0 %v12724
    %12756 = vmatpush.msra.mxu0 %v12723
    %12757 = vmatpush.msra.mxu0 %v12722
    %12758 = vmatpush.msra.mxu0 %v12721
    %12759 = vmatpush.msra.mxu0 %v12720
    %12760 = vmatpush.msra.mxu0 %v12719
    %12761 = vmatpush.msra.mxu0 %v12718
    %12762 = vmatpush.msra.mxu0 %v12717
    %12763 = vmatpush.msra.mxu0 %v12716
    %12764 = vmatpush.msra.mxu0 %v12715
    %12765 = vmatpush.msra.mxu0 %v12714
    %12766 = vmatpush.msra.mxu0 %v12713
    %12767 = vmatpush.msra.mxu0 %v12712
    %12768 = vmatmul.f32.gmra.mxu0 %v12695
    %v12769 = vpop.f32.mrf.mxu0
    %v12770 = vadd.f32 %v12750, %v12769
    %12771 = vdwg.mxu0
    %vm12772 = vcmask 25600
    %v12773 = vsel %vm12772, %v12770, -inf
    %12774 = vmax.xlane.f32.xlu0 %v12773
    %v12775 = vpop.xlane.xlu0 %12774
    %v12776 = vsub.f32 %v12770, %v12775
    %v12777 = vmul.f32 %v12776, 1.442695
    %v12778 = vpow.pop %v12777
    %v12779 = vsel %vm12772, %v12778, 0.0
    %12780 = vadd.xlane.f32.xlu0 %v12779
    %v12781 = vpop.xlane.xlu0 %12780
    %v12782 = vlog2.pop %v12781
    %v12783 = vmul.f32 %v12782, 0.6931472
    %v12784 = vsub.f32 %v12776, %v12783
    %12785 = vst.msk [vmem:[#allocation20] sm:$0x3] %vm12772, %v12784
    // Predicated region
    $region90: #{classifier_forward.1} parent=1 // pred_check
      _
    $region91: #{classifier_forward.1} parent=1 // pred_check_branch
      %12787 = sbr.rel (0) target = $region93
    $region92: #{classifier_forward.1} parent=1 // pred_region
      %12789 = vsyncadd [#allocation8], 0
      %s12791 = sshll.u32 [#allocation20], 4
      %s12792 = int_to_ptr.vmem [resolvable:$true] %s12791
      %s12793 = sshll.u32 %s11, 4
      %s12794 = int_to_ptr.hbm [resolvable:$true] %s12793
      %12796 = dma.vmem_to_hbm [thread:$0]  %s12792, 32, %s12794, [#allocation8]
    $region93: #{classifier_forward.1} parent=1 // pred_fallthru
      _
    // Predicated region
    $region94: #{classifier_forward.1} parent=1 // pred_check
      _
    $region95: #{classifier_forward.1} parent=1 // pred_check_branch
      %12798 = sbr.rel (0) target = $region97
    $region96: #{classifier_forward.1} parent=1 // pred_region
      %12800 = dma.done [#allocation8], 32
    $region97: #{classifier_forward.1} parent=1 // pred_fallthru
      _
    %12801 = vsyncpa [#allocation7], 1
    %12802 = vsyncpa [#allocation10], 1
    %12803 = vsyncpa [#allocation13], 1
    %12804 = vsyncpa [#allocation16], 1
    %12805 = vsyncpa [#allocation19], 1
    %12806 = vsyncpa [#allocation8], 1
  %12807 = vsyncmov [#allocation5]
  %s12808 = vpop.sfrf %12807
  %p12809 = scmp.eq.s32.totalorder %s12808, 0
  %p12810 = pneg %p12809
  %12812 = shalt.err (%p12810)
  %s12813 = scalar_lea.sflag [#allocation5], 1
  %12814 = vsyncmov %s12813
  %s12815 = vpop.sfrf %12814
  %p12816 = scmp.eq.s32.totalorder %s12815, 0
  %p12817 = pneg %p12816
  %12819 = shalt.err (%p12817)
  %s12820 = scalar_lea.sflag [#allocation5], 2
  %12821 = vsyncmov %s12820
  %s12822 = vpop.sfrf %12821
  %p12823 = scmp.eq.s32.totalorder %s12822, 0
  %p12824 = pneg %p12823
  %12826 = shalt.err (%p12824)
  %s12827 = scalar_lea.sflag [#allocation5], 3
  %12828 = vsyncmov %s12827
  %s12829 = vpop.sfrf %12828
  %p12830 = scmp.eq.s32.totalorder %s12829, 0
  %p12831 = pneg %p12830
  %12833 = shalt.err (%p12831)

</llo_original>
